<compile_context>
chip_gen: v7x
topology: tpu7x:2x2x1
jax: 0.10.0
libtpu: 0.0.40
codegen_flags: <defaults>
</compile_context>

<pallas_src>
import functools

import jax
import jax.numpy as jnp
from jax.experimental import pallas as pl
from jax.experimental.pallas import tpu as pltpu

_VMEM_LIMIT = 32 * 1024 * 1024  # raised scoped-VMEM headroom (<= physical on v5e/v6e/v7x)


def _round_up(x, m):
    return (x + m - 1) // m * m


def _pad2(x, rows, cols):
    r, c = x.shape
    if r == rows and c == cols:
        return x
    return jnp.pad(x, ((0, rows - r), (0, cols - c)))


# -----------------------------------------------------------------------------
# Fused, tiled matmul kernel:  out = [relu](A @ B + bias)
# -----------------------------------------------------------------------------

def _matmul_kernel(a_ref, b_ref, bias_ref, o_ref, acc_ref, *, relu):
    k = pl.program_id(2)

    @pl.when(k == 0)
    def _init():
        acc_ref[...] = jnp.zeros_like(acc_ref)

    acc_ref[...] += jnp.dot(a_ref[...], b_ref[...],
                            preferred_element_type=jnp.float32)

    @pl.when(k == pl.num_programs(2) - 1)
    def _finalize():
        r = acc_ref[...] + bias_ref[...]      # bias broadcasts [1,tn] or [tm,1]
        if relu:
            r = jnp.maximum(r, 0.0)
        o_ref[...] = r.astype(o_ref.dtype)


def matmul_fused(a, b, bias, *, bias_is_row, relu, out_dtype,
                 tm=256, tn=2048, tk=2048):
    """out = relu?(a @ b + bias).  a:[M,K] b:[K,N].  bf16 MXU inputs, f32
    accumulation in VMEM scratch, bias/ReLU fused into the k==last epilogue."""
    M, K = a.shape
    K2, N = b.shape
    assert K == K2

    tm = min(tm, _round_up(M, 8))
    tn = min(tn, _round_up(N, 128))
    # K tiling: single K step (pad K only to a sublane multiple) when it fits
    # one tile -- avoids blowing up the im2col patch matrix; else 128-mult tiles.
    k8 = _round_up(K, 8)
    if k8 <= tk:
        tk = k8
        Kp = k8
    else:
        tk = _round_up(min(tk, K), 128)
        Kp = _round_up(K, tk)
    Mp, Np = _round_up(M, tm), _round_up(N, tn)

    a_p = _pad2(a.astype(jnp.bfloat16), Mp, Kp)
    b_p = _pad2(b.astype(jnp.bfloat16), Kp, Np)
    if bias_is_row:                                  # bias per output column
        bias_p = _pad2(bias.reshape(1, N).astype(jnp.float32), 1, Np)
        bias_spec = pl.BlockSpec((1, tn), lambda i, j, k: (0, j))
    else:                                            # bias per output row
        bias_p = _pad2(bias.reshape(M, 1).astype(jnp.float32), Mp, 1)
        bias_spec = pl.BlockSpec((tm, 1), lambda i, j, k: (i, 0))

    grid = (Mp // tm, Np // tn, Kp // tk)
    out = pl.pallas_call(
        functools.partial(_matmul_kernel, relu=relu),
        out_shape=jax.ShapeDtypeStruct((Mp, Np), out_dtype),
        grid_spec=pltpu.PrefetchScalarGridSpec(
            num_scalar_prefetch=0,
            grid=grid,
            in_specs=[pl.BlockSpec((tm, tk), lambda i, j, k: (i, k)),
                      pl.BlockSpec((tk, tn), lambda i, j, k: (k, j)),
                      bias_spec],
            out_specs=pl.BlockSpec((tm, tn), lambda i, j, k: (i, j)),
            scratch_shapes=[pltpu.VMEM((tm, tn), jnp.float32)]),
        compiler_params=pltpu.CompilerParams(
            dimension_semantics=("parallel", "parallel", "arbitrary"),
            vmem_limit_bytes=_VMEM_LIMIT),
    )(a_p, b_p, bias_p)
    return out[:M, :N]


# -----------------------------------------------------------------------------
# MaxPool 2x2 / stride 2 (lane-dense elementwise max over 4 shifted views)
# -----------------------------------------------------------------------------

def _max4_kernel(a_ref, b_ref, c_ref, d_ref, o_ref):
    o_ref[...] = jnp.maximum(jnp.maximum(a_ref[...], b_ref[...]),
                             jnp.maximum(c_ref[...], d_ref[...]))


def maxpool_2x2(x):
    """2x2/s2 max pool on a C-major activation [C, N, H, W] (H, W even)."""
    C, N, H, W = x.shape
    Ho, Wo = H // 2, W // 2
    views = [x[:, :, i::2, j::2].reshape(-1) for i in (0, 1) for j in (0, 1)]
    total = C * N * Ho * Wo
    lane, tr = 512, 512                       # lane-dense (rows, 512) layout
    total_p = _round_up(total, lane * tr)
    if total_p != total:
        views = [jnp.pad(v, (0, total_p - total)) for v in views]
    rows = total_p // lane
    views = [v.reshape(rows, lane) for v in views]
    out = pl.pallas_call(
        _max4_kernel,
        out_shape=jax.ShapeDtypeStruct((rows, lane), x.dtype),
        grid=(rows // tr,),
        in_specs=[pl.BlockSpec((tr, lane), lambda i: (i, 0)) for _ in range(4)],
        out_specs=pl.BlockSpec((tr, lane), lambda i: (i, 0)),
        compiler_params=pltpu.CompilerParams(
            dimension_semantics=("parallel",),
            vmem_limit_bytes=_VMEM_LIMIT),
    )(*views)
    return out.reshape(-1)[:total].reshape(C, N, Ho, Wo)


# -----------------------------------------------------------------------------
# Convolution (stride 1) = bf16 im2col (XLA glue) + fused matmul kernel
# -----------------------------------------------------------------------------

def conv2d_relu(x, w2t, b, *, kh, kw, pad):
    """x: [Cin, N, H, W] (C-major bf16); w2t: [Cout, kh*kw*Cin] matmul-ready.
    Transposed orientation: out[Cout, N*Ho*Wo] = w2t @ patches, so the output
    lane dim is the 128-multiple spatial axis (unmasked lane-dense stores)."""
    Cin, N, H, W = x.shape
    Cout = w2t.shape[0]
    Ho = H + 2 * pad - kh + 1
    Wo = W + 2 * pad - kw + 1
    xp = jnp.pad(x, ((0, 0), (0, 0), (pad, pad), (pad, pad)))
    taps = [xp[:, :, i:i + Ho, j:j + Wo] for i in range(kh) for j in range(kw)]
    patches = jnp.stack(taps, axis=0).reshape(kh * kw * Cin, N * Ho * Wo)
    out = matmul_fused(w2t, patches, b, bias_is_row=False, relu=True,
                       out_dtype=jnp.bfloat16)
    return out.reshape(Cout, N, Ho, Wo)


# -----------------------------------------------------------------------------
# Parameters (deterministic synthetic init, pre-folded to matmul-ready form)
# -----------------------------------------------------------------------------

def _fold_conv_weight(w):
    """PyTorch [O, Cin, kh, kw] -> matmul-ready [O, kh*kw*Cin] bf16 (row order
    (i, j, c) matches the im2col tap/channel order)."""
    O, Cin, kh, kw = w.shape
    w2 = jnp.transpose(w, (2, 3, 1, 0)).reshape(kh * kw * Cin, O)
    return w2.T.astype(jnp.bfloat16)


def init_params(key):
    ks = jax.random.split(key, 8)

    def conv_init(k, o, c, kh, kw):
        fan_in = c * kh * kw
        return jax.random.normal(k, (o, c, kh, kw), jnp.float32) * (2.0 / fan_in) ** 0.5

    def uniform_init(k, shape, fan_in):
        bound = 1.0 / (fan_in ** 0.5)
        return jax.random.uniform(k, shape, jnp.float32, -bound, bound)

    conv1 = conv_init(ks[0], 16, 3, 3, 3)
    conv2 = conv_init(ks[1], 32, 16, 3, 3)
    fc1_w = uniform_init(ks[2], (128, 32 * 56 * 56), 32 * 56 * 56)
    fc1_b = uniform_init(ks[3], (128,), 32 * 56 * 56)
    fc2_w = uniform_init(ks[4], (2, 128), 128)
    fc2_b = uniform_init(ks[5], (2,), 128)

    return {
        "conv1_w": _fold_conv_weight(conv1),                       # [16, 27]
        "conv1_b": uniform_init(ks[6], (16,), 3 * 9),
        "conv2_w": _fold_conv_weight(conv2),                       # [32, 144]
        "conv2_b": uniform_init(ks[7], (32,), 16 * 9),
        "fc1_w": fc1_w.T.astype(jnp.bfloat16),                     # [100352, 128]
        "fc1_b": fc1_b,
        "fc2_w": fc2_w.T.astype(jnp.bfloat16),                     # [128, 2]
        "fc2_b": fc2_b,
    }


# -----------------------------------------------------------------------------
# Forward pass (== SimpleCNN.forward)
# -----------------------------------------------------------------------------

def simple_cnn_forward(x_nchw, p):
    # Internal activation layout is C-major [C, N, H, W] in bf16.
    x = jnp.transpose(x_nchw, (1, 0, 2, 3)).astype(jnp.bfloat16)

    x = conv2d_relu(x, p["conv1_w"], p["conv1_b"], kh=3, kw=3, pad=1)  # [16,N,224,224]
    x = maxpool_2x2(x)                                                 # [16,N,112,112]
    x = conv2d_relu(x, p["conv2_w"], p["conv2_b"], kh=3, kw=3, pad=1)  # [32,N,112,112]
    x = maxpool_2x2(x)                                                 # [32,N, 56, 56]

    # PyTorch x.view(N, -1) flattens NCHW -> [N, C*H*W]
    n = x.shape[1]
    feat = jnp.transpose(x, (1, 0, 2, 3)).reshape(n, -1)               # [N, 32*56*56]

    h = matmul_fused(feat, p["fc1_w"], p["fc1_b"],
                     bias_is_row=True, relu=True, out_dtype=jnp.bfloat16)   # [N,128]
    out = matmul_fused(h, p["fc2_w"], p["fc2_b"],
                       bias_is_row=True, relu=False, out_dtype=jnp.float32) # [N,2]
    return out


# -----------------------------------------------------------------------------

if __name__ == "__main__":
    key = jax.random.PRNGKey(0)
    k_param, k_x = jax.random.split(key)
    params = init_params(k_param)

    # The module's Linear(32*56*56, 128) pins the input resolution to 224x224
    # (224 -> pool/2 -> pool/2 -> 56); batch kept small.
    x = jax.random.normal(k_x, (2, 3, 224, 224), jnp.float32)   # NCHW like PyTorch

    fwd = jax.jit(lambda inp: simple_cnn_forward(inp, params))
    out = fwd(x)
    jax.block_until_ready(out)

    assert out.shape == (2, 2) and out.dtype == jnp.float32
    assert bool(jnp.all(jnp.isfinite(out)))
    print("KERNEL_OK")
</pallas_src>

<mosaic_0001>
module attributes {stable_mosaic.version = 11 : i64} {
  func.func @_matmul_kernel(%arg0: i32, %arg1: i32, %arg2: i32, %arg3: memref<16x32xbf16, #tpu.memory_space<vmem>>, %arg4: memref<32x2048xbf16, #tpu.memory_space<vmem>>, %arg5: memref<16x1xf32, #tpu.memory_space<vmem>>, %arg6: memref<16x2048xbf16, #tpu.memory_space<vmem>>, %arg7: memref<16x2048xf32, #tpu.memory_space<vmem>>) attributes {dimension_semantics = [#tpu.dimension_semantics<parallel>, #tpu.dimension_semantics<parallel>, #tpu.dimension_semantics<arbitrary>], iteration_bounds = array<i64: 1, 49, 1>, scalar_prefetch = 0 : i64, scratch_operands = 1 : i64, tpu.core_type = #tpu.core_type<tc>, window_params = [{transform_indices = @transform_0, window_bounds = array<i64: 16, 32>}, {transform_indices = @transform_1, window_bounds = array<i64: 32, 2048>}, {transform_indices = @transform_2, window_bounds = array<i64: 16, 1>}, {transform_indices = @transform_3, window_bounds = array<i64: 16, 2048>}]} {
    %c0_i32 = arith.constant 0 : i32
    %0 = arith.cmpi eq, %arg2, %c0_i32 : i32
    %1 = arith.extui %0 : i1 to i32
    %c0_i32_0 = arith.constant 0 : i32
    %2 = arith.cmpi ne, %1, %c0_i32_0 : i32
    scf.if %2 {
      %cst_10 = arith.constant 0.000000e+00 : f32
      %12 = vector.broadcast %cst_10 : f32 to vector<16x2048xf32>
      %c0_11 = arith.constant 0 : index
      %c0_12 = arith.constant 0 : index
      %13 = vector.load %arg7[%c0_11, %c0_12] : memref<16x2048xf32, #tpu.memory_space<vmem>>, vector<16x2048xf32>
      tpu.vector_store %arg7[%c0_11, %c0_12], %12 {strides = array<i32>} : memref<16x2048xf32, #tpu.memory_space<vmem>>, vector<16x2048xf32>,
    } else {
    }
    %c0 = arith.constant 0 : index
    %c0_1 = arith.constant 0 : index
    %3 = vector.load %arg7[%c0, %c0_1] : memref<16x2048xf32, #tpu.memory_space<vmem>>, vector<16x2048xf32>
    %c0_2 = arith.constant 0 : index
    %c0_3 = arith.constant 0 : index
    %4 = vector.load %arg3[%c0_2, %c0_3] : memref<16x32xbf16, #tpu.memory_space<vmem>>, vector<16x32xbf16>
    %c0_4 = arith.constant 0 : index
    %c0_5 = arith.constant 0 : index
    %5 = vector.load %arg4[%c0_4, %c0_5] : memref<32x2048xbf16, #tpu.memory_space<vmem>>, vector<32x2048xbf16>
    %cst = arith.constant dense<0.000000e+00> : vector<16x2048xf32>
    %6 = tpu.matmul %4, %5, %cst {dimension_numbers = #tpu.dot_dimension_numbers<[1], [0], [0], [1], [0, 0, 1, 1], [], []>} : vector<16x32xbf16>, vector<32x2048xbf16>, vector<16x2048xf32> -> vector<16x2048xf32>
    %7 = arith.addf %3, %6 : vector<16x2048xf32>
    %c0_6 = arith.constant 0 : index
    %c0_7 = arith.constant 0 : index
    %8 = vector.load %arg7[%c0_6, %c0_7] : memref<16x2048xf32, #tpu.memory_space<vmem>>, vector<16x2048xf32>
    tpu.vector_store %arg7[%c0_6, %c0_7], %7 {strides = array<i32>} : memref<16x2048xf32, #tpu.memory_space<vmem>>, vector<16x2048xf32>,
    %c0_i32_8 = arith.constant 0 : i32
    %9 = arith.cmpi eq, %arg2, %c0_i32_8 : i32
    %10 = arith.extui %9 : i1 to i32
    %c0_i32_9 = arith.constant 0 : i32
    %11 = arith.cmpi ne, %10, %c0_i32_9 : i32
    scf.if %11 {
      %c0_10 = arith.constant 0 : index
      %c0_11 = arith.constant 0 : index
      %12 = vector.load %arg7[%c0_10, %c0_11] : memref<16x2048xf32, #tpu.memory_space<vmem>>, vector<16x2048xf32>
      %c0_12 = arith.constant 0 : index
      %c0_13 = arith.constant 0 : index
      %13 = vector.load %arg5[%c0_12, %c0_13] : memref<16x1xf32, #tpu.memory_space<vmem>>, vector<16x1xf32>
      %14 = vector.broadcast %13 : vector<16x1xf32> to vector<16x2048xf32>
      %15 = arith.addf %12, %14 : vector<16x2048xf32>
      %cst_14 = arith.constant 0.000000e+00 : f32
      %16 = vector.broadcast %cst_14 : f32 to vector<16x2048xf32>
      %17 = arith.maximumf %15, %16 : vector<16x2048xf32>
      %18 = arith.truncf %17 : vector<16x2048xf32> to vector<16x2048xbf16>
      %c0_15 = arith.constant 0 : index
      %c0_16 = arith.constant 0 : index
      %19 = vector.load %arg6[%c0_15, %c0_16] : memref<16x2048xbf16, #tpu.memory_space<vmem>>, vector<16x2048xbf16>
      tpu.vector_store %arg6[%c0_15, %c0_16], %18 {strides = array<i32>} : memref<16x2048xbf16, #tpu.memory_space<vmem>>, vector<16x2048xbf16>,
    } else {
    }
    return
  }
  func.func @transform_0(%arg0: i32, %arg1: i32, %arg2: i32) -> (i32, i32) {
    %c0_i32 = arith.constant 0 : i32
    return %arg0, %arg2 : i32, i32
  }
  func.func @transform_1(%arg0: i32, %arg1: i32, %arg2: i32) -> (i32, i32) {
    %c0_i32 = arith.constant 0 : i32
    return %arg2, %arg1 : i32, i32
  }
  func.func @transform_2(%arg0: i32, %arg1: i32, %arg2: i32) -> (i32, i32) {
    %c0_i32 = arith.constant 0 : i32
    %c0_i32_0 = arith.constant 0 : i32
    return %arg0, %c0_i32 : i32, i32
  }
  func.func @transform_3(%arg0: i32, %arg1: i32, %arg2: i32) -> (i32, i32) {
    %c0_i32 = arith.constant 0 : i32
    return %arg0, %arg1 : i32, i32
  }
}

module attributes {stable_mosaic.version = 11 : i64} {
  func.func @_max4_kernel(%arg0: i32, %arg1: memref<512x512xbf16, #tpu.memory_space<vmem>>, %arg2: memref<512x512xbf16, #tpu.memory_space<vmem>>, %arg3: memref<512x512xbf16, #tpu.memory_space<vmem>>, %arg4: memref<512x512xbf16, #tpu.memory_space<vmem>>, %arg5: memref<512x512xbf16, #tpu.memory_space<vmem>>) attributes {dimension_semantics = [#tpu.dimension_semantics<parallel>], iteration_bounds = array<i64: 2>, scalar_prefetch = 0 : i64, scratch_operands = 0 : i64, tpu.core_type = #tpu.core_type<tc>, window_params = [{transform_indices = @transform_0, window_bounds = array<i64: 512, 512>}, {transform_indices = @transform_1, window_bounds = array<i64: 512, 512>}, {transform_indices = @transform_2, window_bounds = array<i64: 512, 512>}, {transform_indices = @transform_3, window_bounds = array<i64: 512, 512>}, {transform_indices = @transform_4, window_bounds = array<i64: 512, 512>}]} {
    %c0 = arith.constant 0 : index
    %c0_0 = arith.constant 0 : index
    %0 = vector.load %arg1[%c0, %c0_0] : memref<512x512xbf16, #tpu.memory_space<vmem>>, vector<512x512xbf16>
    %c0_1 = arith.constant 0 : index
    %c0_2 = arith.constant 0 : index
    %1 = vector.load %arg2[%c0_1, %c0_2] : memref<512x512xbf16, #tpu.memory_space<vmem>>, vector<512x512xbf16>
    %2 = arith.maximumf %0, %1 : vector<512x512xbf16>
    %c0_3 = arith.constant 0 : index
    %c0_4 = arith.constant 0 : index
    %3 = vector.load %arg3[%c0_3, %c0_4] : memref<512x512xbf16, #tpu.memory_space<vmem>>, vector<512x512xbf16>
    %c0_5 = arith.constant 0 : index
    %c0_6 = arith.constant 0 : index
    %4 = vector.load %arg4[%c0_5, %c0_6] : memref<512x512xbf16, #tpu.memory_space<vmem>>, vector<512x512xbf16>
    %5 = arith.maximumf %3, %4 : vector<512x512xbf16>
    %6 = arith.maximumf %2, %5 : vector<512x512xbf16>
    %c0_7 = arith.constant 0 : index
    %c0_8 = arith.constant 0 : index
    %7 = vector.load %arg5[%c0_7, %c0_8] : memref<512x512xbf16, #tpu.memory_space<vmem>>, vector<512x512xbf16>
    tpu.vector_store %arg5[%c0_7, %c0_8], %6 {strides = array<i32>} : memref<512x512xbf16, #tpu.memory_space<vmem>>, vector<512x512xbf16>,
    return
  }
  func.func @transform_0(%arg0: i32) -> (i32, i32) {
    %c0_i32 = arith.constant 0 : i32
    %c0_i32_0 = arith.constant 0 : i32
    return %arg0, %c0_i32 : i32, i32
  }
  func.func @transform_1(%arg0: i32) -> (i32, i32) {
    %c0_i32 = arith.constant 0 : i32
    %c0_i32_0 = arith.constant 0 : i32
    return %arg0, %c0_i32 : i32, i32
  }
  func.func @transform_2(%arg0: i32) -> (i32, i32) {
    %c0_i32 = arith.constant 0 : i32
    %c0_i32_0 = arith.constant 0 : i32
    return %arg0, %c0_i32 : i32, i32
  }
  func.func @transform_3(%arg0: i32) -> (i32, i32) {
    %c0_i32 = arith.constant 0 : i32
    %c0_i32_0 = arith.constant 0 : i32
    return %arg0, %c0_i32 : i32, i32
  }
  func.func @transform_4(%arg0: i32) -> (i32, i32) {
    %c0_i32 = arith.constant 0 : i32
    %c0_i32_0 = arith.constant 0 : i32
    return %arg0, %c0_i32 : i32, i32
  }
}

module attributes {stable_mosaic.version = 11 : i64} {
  func.func @_matmul_kernel(%arg0: i32, %arg1: i32, %arg2: i32, %arg3: memref<32x144xbf16, #tpu.memory_space<vmem>>, %arg4: memref<144x2048xbf16, #tpu.memory_space<vmem>>, %arg5: memref<32x1xf32, #tpu.memory_space<vmem>>, %arg6: memref<32x2048xbf16, #tpu.memory_space<vmem>>, %arg7: memref<32x2048xf32, #tpu.memory_space<vmem>>) attributes {dimension_semantics = [#tpu.dimension_semantics<parallel>, #tpu.dimension_semantics<parallel>, #tpu.dimension_semantics<arbitrary>], iteration_bounds = array<i64: 1, 13, 1>, scalar_prefetch = 0 : i64, scratch_operands = 1 : i64, tpu.core_type = #tpu.core_type<tc>, window_params = [{transform_indices = @transform_0, window_bounds = array<i64: 32, 144>}, {transform_indices = @transform_1, window_bounds = array<i64: 144, 2048>}, {transform_indices = @transform_2, window_bounds = array<i64: 32, 1>}, {transform_indices = @transform_3, window_bounds = array<i64: 32, 2048>}]} {
    %c0_i32 = arith.constant 0 : i32
    %0 = arith.cmpi eq, %arg2, %c0_i32 : i32
    %1 = arith.extui %0 : i1 to i32
    %c0_i32_0 = arith.constant 0 : i32
    %2 = arith.cmpi ne, %1, %c0_i32_0 : i32
    scf.if %2 {
      %cst_10 = arith.constant 0.000000e+00 : f32
      %12 = vector.broadcast %cst_10 : f32 to vector<32x2048xf32>
      %c0_11 = arith.constant 0 : index
      %c0_12 = arith.constant 0 : index
      %13 = vector.load %arg7[%c0_11, %c0_12] : memref<32x2048xf32, #tpu.memory_space<vmem>>, vector<32x2048xf32>
      tpu.vector_store %arg7[%c0_11, %c0_12], %12 {strides = array<i32>} : memref<32x2048xf32, #tpu.memory_space<vmem>>, vector<32x2048xf32>,
    } else {
    }
    %c0 = arith.constant 0 : index
    %c0_1 = arith.constant 0 : index
    %3 = vector.load %arg7[%c0, %c0_1] : memref<32x2048xf32, #tpu.memory_space<vmem>>, vector<32x2048xf32>
    %c0_2 = arith.constant 0 : index
    %c0_3 = arith.constant 0 : index
    %4 = vector.load %arg3[%c0_2, %c0_3] : memref<32x144xbf16, #tpu.memory_space<vmem>>, vector<32x144xbf16>
    %c0_4 = arith.constant 0 : index
    %c0_5 = arith.constant 0 : index
    %5 = vector.load %arg4[%c0_4, %c0_5] : memref<144x2048xbf16, #tpu.memory_space<vmem>>, vector<144x2048xbf16>
    %cst = arith.constant dense<0.000000e+00> : vector<32x2048xf32>
    %6 = tpu.matmul %4, %5, %cst {dimension_numbers = #tpu.dot_dimension_numbers<[1], [0], [0], [1], [0, 0, 1, 1], [], []>} : vector<32x144xbf16>, vector<144x2048xbf16>, vector<32x2048xf32> -> vector<32x2048xf32>
    %7 = arith.addf %3, %6 : vector<32x2048xf32>
    %c0_6 = arith.constant 0 : index
    %c0_7 = arith.constant 0 : index
    %8 = vector.load %arg7[%c0_6, %c0_7] : memref<32x2048xf32, #tpu.memory_space<vmem>>, vector<32x2048xf32>
    tpu.vector_store %arg7[%c0_6, %c0_7], %7 {strides = array<i32>} : memref<32x2048xf32, #tpu.memory_space<vmem>>, vector<32x2048xf32>,
    %c0_i32_8 = arith.constant 0 : i32
    %9 = arith.cmpi eq, %arg2, %c0_i32_8 : i32
    %10 = arith.extui %9 : i1 to i32
    %c0_i32_9 = arith.constant 0 : i32
    %11 = arith.cmpi ne, %10, %c0_i32_9 : i32
    scf.if %11 {
      %c0_10 = arith.constant 0 : index
      %c0_11 = arith.constant 0 : index
      %12 = vector.load %arg7[%c0_10, %c0_11] : memref<32x2048xf32, #tpu.memory_space<vmem>>, vector<32x2048xf32>
      %c0_12 = arith.constant 0 : index
      %c0_13 = arith.constant 0 : index
      %13 = vector.load %arg5[%c0_12, %c0_13] : memref<32x1xf32, #tpu.memory_space<vmem>>, vector<32x1xf32>
      %14 = vector.broadcast %13 : vector<32x1xf32> to vector<32x2048xf32>
      %15 = arith.addf %12, %14 : vector<32x2048xf32>
      %cst_14 = arith.constant 0.000000e+00 : f32
      %16 = vector.broadcast %cst_14 : f32 to vector<32x2048xf32>
      %17 = arith.maximumf %15, %16 : vector<32x2048xf32>
      %18 = arith.truncf %17 : vector<32x2048xf32> to vector<32x2048xbf16>
      %c0_15 = arith.constant 0 : index
      %c0_16 = arith.constant 0 : index
      %19 = vector.load %arg6[%c0_15, %c0_16] : memref<32x2048xbf16, #tpu.memory_space<vmem>>, vector<32x2048xbf16>
      tpu.vector_store %arg6[%c0_15, %c0_16], %18 {strides = array<i32>} : memref<32x2048xbf16, #tpu.memory_space<vmem>>, vector<32x2048xbf16>,
    } else {
    }
    return
  }
  func.func @transform_0(%arg0: i32, %arg1: i32, %arg2: i32) -> (i32, i32) {
    %c0_i32 = arith.constant 0 : i32
    return %arg0, %arg2 : i32, i32
  }
  func.func @transform_1(%arg0: i32, %arg1: i32, %arg2: i32) -> (i32, i32) {
    %c0_i32 = arith.constant 0 : i32
    return %arg2, %arg1 : i32, i32
  }
  func.func @transform_2(%arg0: i32, %arg1: i32, %arg2: i32) -> (i32, i32) {
    %c0_i32 = arith.constant 0 : i32
    %c0_i32_0 = arith.constant 0 : i32
    return %arg0, %c0_i32 : i32, i32
  }
  func.func @transform_3(%arg0: i32, %arg1: i32, %arg2: i32) -> (i32, i32) {
    %c0_i32 = arith.constant 0 : i32
    return %arg0, %arg1 : i32, i32
  }
}

module attributes {stable_mosaic.version = 11 : i64} {
  func.func @_max4_kernel(%arg0: i32, %arg1: memref<512x512xbf16, #tpu.memory_space<vmem>>, %arg2: memref<512x512xbf16, #tpu.memory_space<vmem>>, %arg3: memref<512x512xbf16, #tpu.memory_space<vmem>>, %arg4: memref<512x512xbf16, #tpu.memory_space<vmem>>, %arg5: memref<512x512xbf16, #tpu.memory_space<vmem>>) attributes {dimension_semantics = [#tpu.dimension_semantics<parallel>], iteration_bounds = array<i64: 1>, scalar_prefetch = 0 : i64, scratch_operands = 0 : i64, tpu.core_type = #tpu.core_type<tc>, window_params = [{transform_indices = @transform_0, window_bounds = array<i64: 512, 512>}, {transform_indices = @transform_1, window_bounds = array<i64: 512, 512>}, {transform_indices = @transform_2, window_bounds = array<i64: 512, 512>}, {transform_indices = @transform_3, window_bounds = array<i64: 512, 512>}, {transform_indices = @transform_4, window_bounds = array<i64: 512, 512>}]} {
    %c0 = arith.constant 0 : index
    %c0_0 = arith.constant 0 : index
    %0 = vector.load %arg1[%c0, %c0_0] : memref<512x512xbf16, #tpu.memory_space<vmem>>, vector<512x512xbf16>
    %c0_1 = arith.constant 0 : index
    %c0_2 = arith.constant 0 : index
    %1 = vector.load %arg2[%c0_1, %c0_2] : memref<512x512xbf16, #tpu.memory_space<vmem>>, vector<512x512xbf16>
    %2 = arith.maximumf %0, %1 : vector<512x512xbf16>
    %c0_3 = arith.constant 0 : index
    %c0_4 = arith.constant 0 : index
    %3 = vector.load %arg3[%c0_3, %c0_4] : memref<512x512xbf16, #tpu.memory_space<vmem>>, vector<512x512xbf16>
    %c0_5 = arith.constant 0 : index
    %c0_6 = arith.constant 0 : index
    %4 = vector.load %arg4[%c0_5, %c0_6] : memref<512x512xbf16, #tpu.memory_space<vmem>>, vector<512x512xbf16>
    %5 = arith.maximumf %3, %4 : vector<512x512xbf16>
    %6 = arith.maximumf %2, %5 : vector<512x512xbf16>
    %c0_7 = arith.constant 0 : index
    %c0_8 = arith.constant 0 : index
    %7 = vector.load %arg5[%c0_7, %c0_8] : memref<512x512xbf16, #tpu.memory_space<vmem>>, vector<512x512xbf16>
    tpu.vector_store %arg5[%c0_7, %c0_8], %6 {strides = array<i32>} : memref<512x512xbf16, #tpu.memory_space<vmem>>, vector<512x512xbf16>,
    return
  }
  func.func @transform_0(%arg0: i32) -> (i32, i32) {
    %c0_i32 = arith.constant 0 : i32
    %c0_i32_0 = arith.constant 0 : i32
    return %arg0, %c0_i32 : i32, i32
  }
  func.func @transform_1(%arg0: i32) -> (i32, i32) {
    %c0_i32 = arith.constant 0 : i32
    %c0_i32_0 = arith.constant 0 : i32
    return %arg0, %c0_i32 : i32, i32
  }
  func.func @transform_2(%arg0: i32) -> (i32, i32) {
    %c0_i32 = arith.constant 0 : i32
    %c0_i32_0 = arith.constant 0 : i32
    return %arg0, %c0_i32 : i32, i32
  }
  func.func @transform_3(%arg0: i32) -> (i32, i32) {
    %c0_i32 = arith.constant 0 : i32
    %c0_i32_0 = arith.constant 0 : i32
    return %arg0, %c0_i32 : i32, i32
  }
  func.func @transform_4(%arg0: i32) -> (i32, i32) {
    %c0_i32 = arith.constant 0 : i32
    %c0_i32_0 = arith.constant 0 : i32
    return %arg0, %c0_i32 : i32, i32
  }
}

module attributes {stable_mosaic.version = 11 : i64} {
  func.func @_matmul_kernel(%arg0: i32, %arg1: i32, %arg2: i32, %arg3: memref<8x2048xbf16, #tpu.memory_space<vmem>>, %arg4: memref<2048x128xbf16, #tpu.memory_space<vmem>>, %arg5: memref<1x128xf32, #tpu.memory_space<vmem>>, %arg6: memref<8x128xbf16, #tpu.memory_space<vmem>>, %arg7: memref<8x128xf32, #tpu.memory_space<vmem>>) attributes {dimension_semantics = [#tpu.dimension_semantics<parallel>, #tpu.dimension_semantics<parallel>, #tpu.dimension_semantics<arbitrary>], iteration_bounds = array<i64: 1, 1, 49>, scalar_prefetch = 0 : i64, scratch_operands = 1 : i64, tpu.core_type = #tpu.core_type<tc>, window_params = [{transform_indices = @transform_0, window_bounds = array<i64: 8, 2048>}, {transform_indices = @transform_1, window_bounds = array<i64: 2048, 128>}, {transform_indices = @transform_2, window_bounds = array<i64: 1, 128>}, {transform_indices = @transform_3, window_bounds = array<i64: 8, 128>}]} {
    %c0_i32 = arith.constant 0 : i32
    %0 = arith.cmpi eq, %arg2, %c0_i32 : i32
    %1 = arith.extui %0 : i1 to i32
    %c0_i32_0 = arith.constant 0 : i32
    %2 = arith.cmpi ne, %1, %c0_i32_0 : i32
    scf.if %2 {
      %cst_9 = arith.constant 0.000000e+00 : f32
      %12 = vector.broadcast %cst_9 : f32 to vector<8x128xf32>
      %c0_10 = arith.constant 0 : index
      %c0_11 = arith.constant 0 : index
      %13 = vector.load %arg7[%c0_10, %c0_11] : memref<8x128xf32, #tpu.memory_space<vmem>>, vector<8x128xf32>
      tpu.vector_store %arg7[%c0_10, %c0_11], %12 {strides = array<i32>} : memref<8x128xf32, #tpu.memory_space<vmem>>, vector<8x128xf32>,
    } else {
    }
    %c0 = arith.constant 0 : index
    %c0_1 = arith.constant 0 : index
    %3 = vector.load %arg7[%c0, %c0_1] : memref<8x128xf32, #tpu.memory_space<vmem>>, vector<8x128xf32>
    %c0_2 = arith.constant 0 : index
    %c0_3 = arith.constant 0 : index
    %4 = vector.load %arg3[%c0_2, %c0_3] : memref<8x2048xbf16, #tpu.memory_space<vmem>>, vector<8x2048xbf16>
    %c0_4 = arith.constant 0 : index
    %c0_5 = arith.constant 0 : index
    %5 = vector.load %arg4[%c0_4, %c0_5] : memref<2048x128xbf16, #tpu.memory_space<vmem>>, vector<2048x128xbf16>
    %cst = arith.constant dense<0.000000e+00> : vector<8x128xf32>
    %6 = tpu.matmul %4, %5, %cst {dimension_numbers = #tpu.dot_dimension_numbers<[1], [0], [0], [1], [0, 0, 1, 1], [], []>} : vector<8x2048xbf16>, vector<2048x128xbf16>, vector<8x128xf32> -> vector<8x128xf32>
    %7 = arith.addf %3, %6 : vector<8x128xf32>
    %c0_6 = arith.constant 0 : index
    %c0_7 = arith.constant 0 : index
    %8 = vector.load %arg7[%c0_6, %c0_7] : memref<8x128xf32, #tpu.memory_space<vmem>>, vector<8x128xf32>
    tpu.vector_store %arg7[%c0_6, %c0_7], %7 {strides = array<i32>} : memref<8x128xf32, #tpu.memory_space<vmem>>, vector<8x128xf32>,
    %c48_i32 = arith.constant 48 : i32
    %9 = arith.cmpi eq, %arg2, %c48_i32 : i32
    %10 = arith.extui %9 : i1 to i32
    %c0_i32_8 = arith.constant 0 : i32
    %11 = arith.cmpi ne, %10, %c0_i32_8 : i32
    scf.if %11 {
      %c0_9 = arith.constant 0 : index
      %c0_10 = arith.constant 0 : index
      %12 = vector.load %arg7[%c0_9, %c0_10] : memref<8x128xf32, #tpu.memory_space<vmem>>, vector<8x128xf32>
      %c0_11 = arith.constant 0 : index
      %c0_12 = arith.constant 0 : index
      %13 = vector.load %arg5[%c0_11, %c0_12] : memref<1x128xf32, #tpu.memory_space<vmem>>, vector<1x128xf32>
      %14 = vector.broadcast %13 : vector<1x128xf32> to vector<8x128xf32>
      %15 = arith.addf %12, %14 : vector<8x128xf32>
      %cst_13 = arith.constant 0.000000e+00 : f32
      %16 = vector.broadcast %cst_13 : f32 to vector<8x128xf32>
      %17 = arith.maximumf %15, %16 : vector<8x128xf32>
      %18 = arith.truncf %17 : vector<8x128xf32> to vector<8x128xbf16>
      %c0_14 = arith.constant 0 : index
      %c0_15 = arith.constant 0 : index
      %19 = vector.load %arg6[%c0_14, %c0_15] : memref<8x128xbf16, #tpu.memory_space<vmem>>, vector<8x128xbf16>
      tpu.vector_store %arg6[%c0_14, %c0_15], %18 {strides = array<i32>} : memref<8x128xbf16, #tpu.memory_space<vmem>>, vector<8x128xbf16>,
    } else {
    }
    return
  }
  func.func @transform_0(%arg0: i32, %arg1: i32, %arg2: i32) -> (i32, i32) {
    %c0_i32 = arith.constant 0 : i32
    return %arg0, %arg2 : i32, i32
  }
  func.func @transform_1(%arg0: i32, %arg1: i32, %arg2: i32) -> (i32, i32) {
    %c0_i32 = arith.constant 0 : i32
    return %arg2, %arg1 : i32, i32
  }
  func.func @transform_2(%arg0: i32, %arg1: i32, %arg2: i32) -> (i32, i32) {
    %c0_i32 = arith.constant 0 : i32
    %c0_i32_0 = arith.constant 0 : i32
    return %c0_i32, %arg1 : i32, i32
  }
  func.func @transform_3(%arg0: i32, %arg1: i32, %arg2: i32) -> (i32, i32) {
    %c0_i32 = arith.constant 0 : i32
    return %arg0, %arg1 : i32, i32
  }
}

module attributes {stable_mosaic.version = 11 : i64} {
  func.func @_matmul_kernel(%arg0: i32, %arg1: i32, %arg2: i32, %arg3: memref<8x128xbf16, #tpu.memory_space<vmem>>, %arg4: memref<128x128xbf16, #tpu.memory_space<vmem>>, %arg5: memref<1x128xf32, #tpu.memory_space<vmem>>, %arg6: memref<8x128xf32, #tpu.memory_space<vmem>>, %arg7: memref<8x128xf32, #tpu.memory_space<vmem>>) attributes {dimension_semantics = [#tpu.dimension_semantics<parallel>, #tpu.dimension_semantics<parallel>, #tpu.dimension_semantics<arbitrary>], iteration_bounds = array<i64: 1, 1, 1>, scalar_prefetch = 0 : i64, scratch_operands = 1 : i64, tpu.core_type = #tpu.core_type<tc>, window_params = [{transform_indices = @transform_0, window_bounds = array<i64: 8, 128>}, {transform_indices = @transform_1, window_bounds = array<i64: 128, 128>}, {transform_indices = @transform_2, window_bounds = array<i64: 1, 128>}, {transform_indices = @transform_3, window_bounds = array<i64: 8, 128>}]} {
    %c0_i32 = arith.constant 0 : i32
    %0 = arith.cmpi eq, %arg2, %c0_i32 : i32
    %1 = arith.extui %0 : i1 to i32
    %c0_i32_0 = arith.constant 0 : i32
    %2 = arith.cmpi ne, %1, %c0_i32_0 : i32
    scf.if %2 {
      %cst_10 = arith.constant 0.000000e+00 : f32
      %12 = vector.broadcast %cst_10 : f32 to vector<8x128xf32>
      %c0_11 = arith.constant 0 : index
      %c0_12 = arith.constant 0 : index
      %13 = vector.load %arg7[%c0_11, %c0_12] : memref<8x128xf32, #tpu.memory_space<vmem>>, vector<8x128xf32>
      tpu.vector_store %arg7[%c0_11, %c0_12], %12 {strides = array<i32>} : memref<8x128xf32, #tpu.memory_space<vmem>>, vector<8x128xf32>,
    } else {
    }
    %c0 = arith.constant 0 : index
    %c0_1 = arith.constant 0 : index
    %3 = vector.load %arg7[%c0, %c0_1] : memref<8x128xf32, #tpu.memory_space<vmem>>, vector<8x128xf32>
    %c0_2 = arith.constant 0 : index
    %c0_3 = arith.constant 0 : index
    %4 = vector.load %arg3[%c0_2, %c0_3] : memref<8x128xbf16, #tpu.memory_space<vmem>>, vector<8x128xbf16>
    %c0_4 = arith.constant 0 : index
    %c0_5 = arith.constant 0 : index
    %5 = vector.load %arg4[%c0_4, %c0_5] : memref<128x128xbf16, #tpu.memory_space<vmem>>, vector<128x128xbf16>
    %cst = arith.constant dense<0.000000e+00> : vector<8x128xf32>
    %6 = tpu.matmul %4, %5, %cst {dimension_numbers = #tpu.dot_dimension_numbers<[1], [0], [0], [1], [0, 0, 1, 1], [], []>} : vector<8x128xbf16>, vector<128x128xbf16>, vector<8x128xf32> -> vector<8x128xf32>
    %7 = arith.addf %3, %6 : vector<8x128xf32>
    %c0_6 = arith.constant 0 : index
    %c0_7 = arith.constant 0 : index
    %8 = vector.load %arg7[%c0_6, %c0_7] : memref<8x128xf32, #tpu.memory_space<vmem>>, vector<8x128xf32>
    tpu.vector_store %arg7[%c0_6, %c0_7], %7 {strides = array<i32>} : memref<8x128xf32, #tpu.memory_space<vmem>>, vector<8x128xf32>,
    %c0_i32_8 = arith.constant 0 : i32
    %9 = arith.cmpi eq, %arg2, %c0_i32_8 : i32
    %10 = arith.extui %9 : i1 to i32
    %c0_i32_9 = arith.constant 0 : i32
    %11 = arith.cmpi ne, %10, %c0_i32_9 : i32
    scf.if %11 {
      %c0_10 = arith.constant 0 : index
      %c0_11 = arith.constant 0 : index
      %12 = vector.load %arg7[%c0_10, %c0_11] : memref<8x128xf32, #tpu.memory_space<vmem>>, vector<8x128xf32>
      %c0_12 = arith.constant 0 : index
      %c0_13 = arith.constant 0 : index
      %13 = vector.load %arg5[%c0_12, %c0_13] : memref<1x128xf32, #tpu.memory_space<vmem>>, vector<1x128xf32>
      %14 = vector.broadcast %13 : vector<1x128xf32> to vector<8x128xf32>
      %15 = arith.addf %12, %14 : vector<8x128xf32>
      %c0_14 = arith.constant 0 : index
      %c0_15 = arith.constant 0 : index
      %16 = vector.load %arg6[%c0_14, %c0_15] : memref<8x128xf32, #tpu.memory_space<vmem>>, vector<8x128xf32>
      tpu.vector_store %arg6[%c0_14, %c0_15], %15 {strides = array<i32>} : memref<8x128xf32, #tpu.memory_space<vmem>>, vector<8x128xf32>,
    } else {
    }
    return
  }
  func.func @transform_0(%arg0: i32, %arg1: i32, %arg2: i32) -> (i32, i32) {
    %c0_i32 = arith.constant 0 : i32
    return %arg0, %arg2 : i32, i32
  }
  func.func @transform_1(%arg0: i32, %arg1: i32, %arg2: i32) -> (i32, i32) {
    %c0_i32 = arith.constant 0 : i32
    return %arg2, %arg1 : i32, i32
  }
  func.func @transform_2(%arg0: i32, %arg1: i32, %arg2: i32) -> (i32, i32) {
    %c0_i32 = arith.constant 0 : i32
    %c0_i32_0 = arith.constant 0 : i32
    return %c0_i32, %arg1 : i32, i32
  }
  func.func @transform_3(%arg0: i32, %arg1: i32, %arg2: i32) -> (i32, i32) {
    %c0_i32 = arith.constant 0 : i32
    return %arg0, %arg1 : i32, i32
  }
}

</mosaic_0001>

<llo_original>
// kernel: _lambda_.6
$region0: #{_lambda_.6}
  #allocation0 [shape = 'u32[]', space=smem, size = 0x4, offset = 0x4, fixed_abs, tag = 'smem constant byte address 0x4 - core index']
  #allocation1 [shape = 'u32[144,128]{1,0:T(1,128)}', space=vmem, size = 0x12000, scoped, tag = 'internal scratch']
  #allocation2 [shape = 'f32[16,2048]{1,0:T(8,128)}', space=vmem, size = 0x20000, scoped, tag = 'scratch operand']
  %s0 = inlined_call_operand.vmem [shape: bf16[16,32], index: 0, kind: input, shape index: {}]
  %s1 = inlined_call_operand.vmem [shape: bf16[32,100352], index: 1, kind: input, shape index: {}]
  %s2 = inlined_call_operand.vmem [shape: f32[16,1], index: 2, kind: input, shape index: {}]
  %s3 = inlined_call_operand.vmem [shape: bf16[16,100352], index: 3, kind: output, shape index: {}]
  %s4 = sld [smem:[#allocation0]]
  $region95: #{_lambda_.6} parent=0
    _
  %s6 = ssub.s32 1, %s4
  %s7 = scalar_select 0, %s6, %s4
  $region1: #{_lambda_.6} parent=0
    #allocation3 [shape = 'u8[262144]{0}', space=vmem, size = 0x40000, scoped, tag = 'input window, operand 1']
    #allocation4 [shape = 'u8[131072]{0}', space=vmem, size = 0x20000, scoped, tag = 'output window, operand 0']
    loop: start=0, step=1, limit=51
    $region2: #{_lambda_.6} parent=1 // loop_pre_header
      _
    $region3: #{_lambda_.6} parent=1 // loop_header
      %s9 = sphi 0, %s13
      %p10 = scmp.ge.s32.totalorder %s9, 51
      %s16 = sphi 0, %s35
      %s17 = sphi 0, %s31
      %s18 = sphi 0, %s27
      %s19 = sphi 0, %s16
      %s20 = sphi 0, %s17
      %s21 = sphi 0, %s18
      %s22 = sphi 0, %s19
      %s23 = sphi 0, %s20
      %s24 = sphi 0, %s21
      %s40 = sphi 0, %s42
      %s43 = sphi 0, %s40
      %s44 = sphi 0, %s43
      %s60 = sphi 0, %s44
      %s68 = sphi 0, %s70
      %s71 = sphi 0, %s68
      %s72 = sphi 0, %s71
      %s88 = sphi 0, %s72
      %s94 = sphi 0, %s96
      %s97 = sphi 0, %s94
      %s98 = sphi 0, %s97
      %s114 = sphi 0, %s98
      %s122 = sphi 0, %s124
      %s125 = sphi 0, %s122
      %s126 = sphi 0, %s125
      %s142 = sphi 0, %s126
    $region4: #{_lambda_.6} parent=1 // loop_header_branch
      %12 = sbr.rel (%p10) target = $region8
    $region5: #{_lambda_.6} parent=1 // loop_body
      %s14 = ssub.s32 %s9, 1
      %s15 = ssub.s32 %s9, 2
      %s25 = sadd.s32 1, %s18
      %p26 = scmp.ge.s32.totalorder %s25, 1
      %s27 = scalar_select %p26, 0, %s25
      %s28 = sadd.s32 1, %s17
      %s29 = scalar_select %p26, %s28, %s17
      %p30 = scmp.ge.s32.totalorder %s29, 49
      %s31 = scalar_select %p30, 0, %s29
      %s32 = sadd.s32 1, %s16
      %s33 = scalar_select %p30, %s32, %s16
      %p34 = scmp.ge.s32.totalorder %s33, 1
      %s35 = scalar_select %p34, 0, %s33
      %s36 = ssub.s32 %s16, %s35
      %s37 = ssub.s32 %s18, %s27
      %s38 = sor.u32 %s36, %s37
      %p39 = scmp.eq.s32.totalorder %s38, 0
      %s41 = sadd.s32 %s40, 1
      %s42 = scalar_select %p39, %s40, %s41
      %p45 = pneg %p39
      %p46 = scmp.eq.s32.totalorder %s9, 48
      %p47 = por %p45, %p46
      %p48 = scmp.ne.s32.totalorder %s40, %s43
      %p49 = scmp.eq.s32.totalorder %s9, 0
      %p50 = por %p48, %p49
      %p51 = scmp.ne.s32.totalorder %s40, %s43
      %p52 = scmp.eq.s32.totalorder %s14, 48
      %p53 = por %p51, %p52
      %p54 = scmp.ne.s32.totalorder %s43, %s44
      %p55 = scmp.eq.s32.totalorder %s14, 0
      %p56 = por %p54, %p55
      %p57 = scmp.ne.s32.totalorder %s43, %s44
      %p58 = scmp.eq.s32.totalorder %s15, 48
      %p59 = por %p57, %p58
      %p61 = scmp.ne.s32.totalorder %s44, %s60
      %p62 = scmp.eq.s32.totalorder %s15, 0
      %p63 = por %p61, %p62
      %s64 = ssub.s32 %s18, %s27
      %s65 = ssub.s32 %s17, %s31
      %s66 = sor.u32 %s64, %s65
      %p67 = scmp.eq.s32.totalorder %s66, 0
      %s69 = sadd.s32 %s68, 1
      %s70 = scalar_select %p67, %s68, %s69
      %p73 = pneg %p67
      %p74 = scmp.eq.s32.totalorder %s9, 48
      %p75 = por %p73, %p74
      %p76 = scmp.ne.s32.totalorder %s68, %s71
      %p77 = scmp.eq.s32.totalorder %s9, 0
      %p78 = por %p76, %p77
      %p79 = scmp.ne.s32.totalorder %s68, %s71
      %p80 = scmp.eq.s32.totalorder %s14, 48
      %p81 = por %p79, %p80
      %p82 = scmp.ne.s32.totalorder %s71, %s72
      %p83 = scmp.eq.s32.totalorder %s14, 0
      %p84 = por %p82, %p83
      %p85 = scmp.ne.s32.totalorder %s71, %s72
      %p86 = scmp.eq.s32.totalorder %s15, 48
      %p87 = por %p85, %p86
      %p89 = scmp.ne.s32.totalorder %s72, %s88
      %p90 = scmp.eq.s32.totalorder %s15, 0
      %p91 = por %p89, %p90
      %s92 = ssub.s32 %s16, %s35
      %p93 = scmp.eq.s32.totalorder %s92, 0
      %s95 = sadd.s32 %s94, 1
      %s96 = scalar_select %p93, %s94, %s95
      %p99 = pneg %p93
      %p100 = scmp.eq.s32.totalorder %s9, 48
      %p101 = por %p99, %p100
      %p102 = scmp.ne.s32.totalorder %s94, %s97
      %p103 = scmp.eq.s32.totalorder %s9, 0
      %p104 = por %p102, %p103
      %p105 = scmp.ne.s32.totalorder %s94, %s97
      %p106 = scmp.eq.s32.totalorder %s14, 48
      %p107 = por %p105, %p106
      %p108 = scmp.ne.s32.totalorder %s97, %s98
      %p109 = scmp.eq.s32.totalorder %s14, 0
      %p110 = por %p108, %p109
      %p111 = scmp.ne.s32.totalorder %s97, %s98
      %p112 = scmp.eq.s32.totalorder %s15, 48
      %p113 = por %p111, %p112
      %p115 = scmp.ne.s32.totalorder %s98, %s114
      %p116 = scmp.eq.s32.totalorder %s15, 0
      %p117 = por %p115, %p116
      %s118 = ssub.s32 %s16, %s35
      %s119 = ssub.s32 %s17, %s31
      %s120 = sor.u32 %s118, %s119
      %p121 = scmp.eq.s32.totalorder %s120, 0
      %s123 = sadd.s32 %s122, 1
      %s124 = scalar_select %p121, %s122, %s123
      %p127 = pneg %p121
      %p128 = scmp.eq.s32.totalorder %s9, 48
      %p129 = por %p127, %p128
      %p130 = scmp.ne.s32.totalorder %s122, %s125
      %p131 = scmp.eq.s32.totalorder %s9, 0
      %p132 = por %p130, %p131
      %p133 = scmp.ne.s32.totalorder %s122, %s125
      %p134 = scmp.eq.s32.totalorder %s14, 48
      %p135 = por %p133, %p134
      %p136 = scmp.ne.s32.totalorder %s125, %s126
      %p137 = scmp.eq.s32.totalorder %s14, 0
      %p138 = por %p136, %p137
      %p139 = scmp.ne.s32.totalorder %s125, %s126
      %p140 = scmp.eq.s32.totalorder %s15, 48
      %p141 = por %p139, %p140
      %p143 = scmp.ne.s32.totalorder %s126, %s142
      %p144 = scmp.eq.s32.totalorder %s15, 0
      %p145 = por %p143, %p144
      %p146 = scmp.le.s32.totalorder 1, %s9
      %p147 = scmp.lt.s32.totalorder %s9, 50
      %p148 = pnand %p146, %p147
      %p149 = pneg %p148
      // Predicated region
      $region9: #{_lambda_.6} parent=5 // pred_check
        _
      $region10: #{_lambda_.6} parent=5 // pred_check_branch
        %151 = sbr.rel (%p148) target = $region12
      $region11: #{_lambda_.6} parent=5 // pred_region
        %s152 = ssub.s32 %s9, 1
        // Predicated region
        $region13: #{_lambda_.6} parent=11 // pred_check
          %p153 = pneg %p56
        $region14: #{_lambda_.6} parent=11 // pred_check_branch
          %155 = sbr.rel (%p153) target = $region16
        $region15: #{_lambda_.6} parent=11 // pred_region
          %s156 = smul.u32 2, %s19
          %p157 = scmp.lt.s32.totalorder %s156, 1
          %s158 = scalar_select %p157, %s156, 1
          %p159 = scmp.lt.s32.totalorder %s21, 0
          %s160 = scalar_select %p159, %s21, 0
          %s161 = sadd.s32 %s160, %s158
          %s162 = smul.addr %s161, 4
          %s163 = scalar_lea.vmem %s0, %s162
          %s164 = smul.u32 2, %s19
        $region16: #{_lambda_.6} parent=11 // pred_fallthru
          _
        // Predicated region
        $region17: #{_lambda_.6} parent=11 // pred_check
          %p165 = pneg %p110
        $region18: #{_lambda_.6} parent=11 // pred_check_branch
          %167 = sbr.rel (%p165) target = $region20
        $region19: #{_lambda_.6} parent=11 // pred_region
          %s168 = smul.u32 2, %s19
          %p169 = scmp.lt.s32.totalorder %s168, 1
          %s170 = scalar_select %p169, %s168, 1
          %s171 = smul.addr %s170, 8
          %s172 = scalar_lea.vmem %s2, %s171
          %s173 = smul.u32 2, %s19
        $region20: #{_lambda_.6} parent=11 // pred_fallthru
          _
      $region12: #{_lambda_.6} parent=5 // pred_fallthru
        _
      %p174 = scmp.lt.s32.totalorder %s9, 49
      // Predicated region
      $region21: #{_lambda_.6} parent=5 // pred_check
        %p175 = pneg %p174
      $region22: #{_lambda_.6} parent=5 // pred_check_branch
        %177 = sbr.rel (%p175) target = $region24
      $region23: #{_lambda_.6} parent=5 // pred_region
        // Predicated region
        $region25: #{_lambda_.6} parent=23 // pred_check
          %p178 = pneg %p78
        $region26: #{_lambda_.6} parent=23 // pred_check_branch
          %180 = sbr.rel (%p178) target = $region28
        $region27: #{_lambda_.6} parent=23 // pred_region
          %s181 = sand.u32 %s68, 1
          %s182 = sand.u32 %s68, 1
          %s183 = smul.addr %s182, 256
          %s184 = scalar_lea.vmem [#allocation3], %s183
          %s185 = smul.u32 4, %s18
          %s186 = smul.u32 16, %s17
          %s187 = smul.addr %s185, 784
          %s188 = sadd.s32 %s186, %s187
          %s189 = smul.addr %s188, 4
          %s190 = scalar_lea.vmem %s1, %s189
          // Predicated region
          $region29: #{_lambda_.6} parent=27 // pred_check
            _
          $region30: #{_lambda_.6} parent=27 // pred_check_branch
            %192 = sbr.rel (0) target = $region32
          $region31: #{_lambda_.6} parent=27 // pred_region
            // Predicated region
            $region33: #{_lambda_.6} parent=31 // pred_check
              _
            $region34: #{_lambda_.6} parent=31 // pred_check_branch
              %194 = sbr.rel (0) target = $region36
            $region35: #{_lambda_.6} parent=31 // pred_region
              loop: start=0, step=1, limit=1
              $region37: #{_lambda_.6} parent=35 // loop_pre_header
                _
              $region38: #{_lambda_.6} parent=35 // loop_header
                %s196 = sphi 0, %s200
                %p197 = scmp.ge.s32.totalorder %s196, 1
                %s201 = sphi %s190, %s190
                %s202 = sphi %s184, %s184
              $region39: #{_lambda_.6} parent=35 // loop_header_branch
                %199 = sbr.rel (%p197) target = $region43
              $region40: #{_lambda_.6} parent=35 // loop_body
                %v203 = vld [vmem:[%s201] sm:$0xff]
                %204 = vst [vmem:[%s202] sm:$0xff] %v203
                %v205 = vld [vmem:[%s201 + $0x8] sm:$0xff]
                %206 = vst [vmem:[%s202 + $0x8] sm:$0xff] %v205
                %v207 = vld [vmem:[%s201 + $0x10] sm:$0xff]
                %208 = vst [vmem:[%s202 + $0x10] sm:$0xff] %v207
                %v209 = vld [vmem:[%s201 + $0x18] sm:$0xff]
                %210 = vst [vmem:[%s202 + $0x18] sm:$0xff] %v209
                %v211 = vld [vmem:[%s201 + $0x20] sm:$0xff]
                %212 = vst [vmem:[%s202 + $0x20] sm:$0xff] %v211
                %v213 = vld [vmem:[%s201 + $0x28] sm:$0xff]
                %214 = vst [vmem:[%s202 + $0x28] sm:$0xff] %v213
                %v215 = vld [vmem:[%s201 + $0x30] sm:$0xff]
                %216 = vst [vmem:[%s202 + $0x30] sm:$0xff] %v215
                %v217 = vld [vmem:[%s201 + $0x38] sm:$0xff]
                %218 = vst [vmem:[%s202 + $0x38] sm:$0xff] %v217
                %v219 = vld [vmem:[%s201 + $0xc40] sm:$0xff]
                %220 = vst [vmem:[%s202 + $0x40] sm:$0xff] %v219
                %v221 = vld [vmem:[%s201 + $0xc48] sm:$0xff]
                %222 = vst [vmem:[%s202 + $0x48] sm:$0xff] %v221
                %v223 = vld [vmem:[%s201 + $0xc50] sm:$0xff]
                %224 = vst [vmem:[%s202 + $0x50] sm:$0xff] %v223
                %v225 = vld [vmem:[%s201 + $0xc58] sm:$0xff]
                %226 = vst [vmem:[%s202 + $0x58] sm:$0xff] %v225
                %v227 = vld [vmem:[%s201 + $0xc60] sm:$0xff]
                %228 = vst [vmem:[%s202 + $0x60] sm:$0xff] %v227
                %v229 = vld [vmem:[%s201 + $0xc68] sm:$0xff]
                %230 = vst [vmem:[%s202 + $0x68] sm:$0xff] %v229
                %v231 = vld [vmem:[%s201 + $0xc70] sm:$0xff]
                %232 = vst [vmem:[%s202 + $0x70] sm:$0xff] %v231
                %v233 = vld [vmem:[%s201 + $0xc78] sm:$0xff]
                %234 = vst [vmem:[%s202 + $0x78] sm:$0xff] %v233
                %v235 = vld [vmem:[%s201 + $0x1880] sm:$0xff]
                %236 = vst [vmem:[%s202 + $0x80] sm:$0xff] %v235
                %v237 = vld [vmem:[%s201 + $0x1888] sm:$0xff]
                %238 = vst [vmem:[%s202 + $0x88] sm:$0xff] %v237
                %v239 = vld [vmem:[%s201 + $0x1890] sm:$0xff]
                %240 = vst [vmem:[%s202 + $0x90] sm:$0xff] %v239
                %v241 = vld [vmem:[%s201 + $0x1898] sm:$0xff]
                %242 = vst [vmem:[%s202 + $0x98] sm:$0xff] %v241
                %v243 = vld [vmem:[%s201 + $0x18a0] sm:$0xff]
                %244 = vst [vmem:[%s202 + $0xa0] sm:$0xff] %v243
                %v245 = vld [vmem:[%s201 + $0x18a8] sm:$0xff]
                %246 = vst [vmem:[%s202 + $0xa8] sm:$0xff] %v245
                %v247 = vld [vmem:[%s201 + $0x18b0] sm:$0xff]
                %248 = vst [vmem:[%s202 + $0xb0] sm:$0xff] %v247
                %v249 = vld [vmem:[%s201 + $0x18b8] sm:$0xff]
                %250 = vst [vmem:[%s202 + $0xb8] sm:$0xff] %v249
                %v251 = vld [vmem:[%s201 + $0x24c0] sm:$0xff]
                %252 = vst [vmem:[%s202 + $0xc0] sm:$0xff] %v251
                %v253 = vld [vmem:[%s201 + $0x24c8] sm:$0xff]
                %254 = vst [vmem:[%s202 + $0xc8] sm:$0xff] %v253
                %v255 = vld [vmem:[%s201 + $0x24d0] sm:$0xff]
                %256 = vst [vmem:[%s202 + $0xd0] sm:$0xff] %v255
                %v257 = vld [vmem:[%s201 + $0x24d8] sm:$0xff]
                %258 = vst [vmem:[%s202 + $0xd8] sm:$0xff] %v257
                %v259 = vld [vmem:[%s201 + $0x24e0] sm:$0xff]
                %260 = vst [vmem:[%s202 + $0xe0] sm:$0xff] %v259
                %v261 = vld [vmem:[%s201 + $0x24e8] sm:$0xff]
                %262 = vst [vmem:[%s202 + $0xe8] sm:$0xff] %v261
                %v263 = vld [vmem:[%s201 + $0x24f0] sm:$0xff]
                %264 = vst [vmem:[%s202 + $0xf0] sm:$0xff] %v263
                %v265 = vld [vmem:[%s201 + $0x24f8] sm:$0xff]
                %266 = vst [vmem:[%s202 + $0xf8] sm:$0xff] %v265
              $region41: #{_lambda_.6} parent=35 // loop_footer
                %s200 = sadd.s32 1, %s196
              $region42: #{_lambda_.6} parent=35 // loop_footer_branch
                %195 = sbr.rel target = $region38
              $region43: #{_lambda_.6} parent=35 // loop_exit
                _
            $region36: #{_lambda_.6} parent=31 // pred_fallthru
              _
            // Predicated region
            $region44: #{_lambda_.6} parent=31 // pred_check
              _
            $region45: #{_lambda_.6} parent=31 // pred_check_branch
              %268 = sbr.rel target = $region47
            $region46: #{_lambda_.6} parent=31 // pred_region
              _
            $region47: #{_lambda_.6} parent=31 // pred_fallthru
              _
          $region32: #{_lambda_.6} parent=27 // pred_fallthru
            _
          %269 = vnop
        $region28: #{_lambda_.6} parent=23 // pred_fallthru
          _
      $region24: #{_lambda_.6} parent=5 // pred_fallthru
        _
      %p270 = scmp.le.s32.totalorder 1, %s9
      %p271 = scmp.lt.s32.totalorder %s9, 50
      %p272 = pnand %p270, %p271
      %p273 = pneg %p272
      // Predicated region
      $region48: #{_lambda_.6} parent=5 // pred_check
        _
      $region49: #{_lambda_.6} parent=5 // pred_check_branch
        %275 = sbr.rel (%p272) target = $region51
      $region50: #{_lambda_.6} parent=5 // pred_region
        %s276 = ssub.s32 %s9, 1
        %s277 = sand.u32 %s71, 1
        %s278 = sand.u32 %s71, 1
        %s279 = smul.addr %s278, 256
        %s280 = scalar_lea.vmem [#allocation3], %s279
        // Predicated region
        $region52: #{_lambda_.6} parent=50 // pred_check
          %p281 = pneg %p84
        $region53: #{_lambda_.6} parent=50 // pred_check_branch
          %283 = sbr.rel (%p281) target = $region55
        $region54: #{_lambda_.6} parent=50 // pred_region
          _
        $region55: #{_lambda_.6} parent=50 // pred_fallthru
          _
        %s284 = smul.u32 2, %s19
        %p285 = scmp.lt.s32.totalorder %s284, 1
        %s286 = scalar_select %p285, %s284, 1
        %p287 = scmp.lt.s32.totalorder %s21, 0
        %s288 = scalar_select %p287, %s21, 0
        %s289 = sadd.s32 %s288, %s286
        %s290 = smul.addr %s289, 4
        %s291 = scalar_lea.vmem %s0, %s290
        %p292 = pneg %p56
        %p293 = pneg %p53
        %s294 = sand.u32 %s71, 1
        %s295 = sand.u32 %s71, 1
        %s296 = smul.addr %s295, 256
        %s297 = scalar_lea.vmem [#allocation3], %s296
        %p298 = pneg %p84
        %p299 = pneg %p81
        %s300 = smul.u32 2, %s19
        %p301 = scmp.lt.s32.totalorder %s300, 1
        %s302 = scalar_select %p301, %s300, 1
        %s303 = smul.addr %s302, 8
        %s304 = scalar_lea.vmem %s2, %s303
        %p305 = pneg %p110
        %p306 = pneg %p107
        %p307 = pneg %p138
        %p308 = pneg %p135
        %s309 = sand.u32 %s125, 1
        %s310 = sand.u32 %s125, 1
        %s311 = smul.addr %s310, 128
        %s312 = scalar_lea.vmem [#allocation4], %s311
        %s313 = smul.u32 2, %s19
        %p314 = scmp.lt.s32.totalorder %s313, 1
        %s315 = scalar_select %p314, %s313, 1
        %p316 = scmp.lt.s32.totalorder %s21, 0
        %s317 = scalar_select %p316, %s21, 0
        %s318 = sadd.s32 %s317, %s315
        %s319 = smul.addr %s318, 4
        %s320 = scalar_lea.vmem %s0, %s319
        %s321 = smul.u32 2, %s19
        %s322 = smul.u32 4, %s21
        %s323 = smul.u32 16, %s20
        %s324 = smul.u32 2, %s19
        %p325 = scmp.lt.s32.totalorder %s324, 1
        %s326 = scalar_select %p325, %s324, 1
        %s327 = smul.addr %s326, 8
        %s328 = scalar_lea.vmem %s2, %s327
        %s329 = smul.u32 2, %s19
        %s330 = smul.u32 2, %s19
        %s331 = smul.u32 16, %s20
        %p333 = scmp.eq.s32.totalorder %s21, 0
        // Predicated region
        $region56: #{_lambda_.6} parent=50 // pred_check
          %p334 = pneg %p333
        $region57: #{_lambda_.6} parent=50 // pred_check_branch
          %336 = sbr.rel (%p334) target = $region59
        $region58: #{_lambda_.6} parent=50 // pred_region
          %337 = vst [vmem:[#allocation2] sm:$0xff] 0.0
          %338 = vst [vmem:[#allocation2 + $0x8] sm:$0xff] 0.0
          %339 = vst [vmem:[#allocation2 + $0x10] sm:$0xff] 0.0
          %340 = vst [vmem:[#allocation2 + $0x18] sm:$0xff] 0.0
          %341 = vst [vmem:[#allocation2 + $0x20] sm:$0xff] 0.0
          %342 = vst [vmem:[#allocation2 + $0x28] sm:$0xff] 0.0
          %343 = vst [vmem:[#allocation2 + $0x30] sm:$0xff] 0.0
          %344 = vst [vmem:[#allocation2 + $0x38] sm:$0xff] 0.0
          %345 = vst [vmem:[#allocation2 + $0x40] sm:$0xff] 0.0
          %346 = vst [vmem:[#allocation2 + $0x48] sm:$0xff] 0.0
          %347 = vst [vmem:[#allocation2 + $0x50] sm:$0xff] 0.0
          %348 = vst [vmem:[#allocation2 + $0x58] sm:$0xff] 0.0
          %349 = vst [vmem:[#allocation2 + $0x60] sm:$0xff] 0.0
          %350 = vst [vmem:[#allocation2 + $0x68] sm:$0xff] 0.0
          %351 = vst [vmem:[#allocation2 + $0x70] sm:$0xff] 0.0
          %352 = vst [vmem:[#allocation2 + $0x78] sm:$0xff] 0.0
          %353 = vst [vmem:[#allocation2 + $0x80] sm:$0xff] 0.0
          %354 = vst [vmem:[#allocation2 + $0x88] sm:$0xff] 0.0
          %355 = vst [vmem:[#allocation2 + $0x90] sm:$0xff] 0.0
          %356 = vst [vmem:[#allocation2 + $0x98] sm:$0xff] 0.0
          %357 = vst [vmem:[#allocation2 + $0xa0] sm:$0xff] 0.0
          %358 = vst [vmem:[#allocation2 + $0xa8] sm:$0xff] 0.0
          %359 = vst [vmem:[#allocation2 + $0xb0] sm:$0xff] 0.0
          %360 = vst [vmem:[#allocation2 + $0xb8] sm:$0xff] 0.0
          %361 = vst [vmem:[#allocation2 + $0xc0] sm:$0xff] 0.0
          %362 = vst [vmem:[#allocation2 + $0xc8] sm:$0xff] 0.0
          %363 = vst [vmem:[#allocation2 + $0xd0] sm:$0xff] 0.0
          %364 = vst [vmem:[#allocation2 + $0xd8] sm:$0xff] 0.0
          %365 = vst [vmem:[#allocation2 + $0xe0] sm:$0xff] 0.0
          %366 = vst [vmem:[#allocation2 + $0xe8] sm:$0xff] 0.0
          %367 = vst [vmem:[#allocation2 + $0xf0] sm:$0xff] 0.0
          %368 = vst [vmem:[#allocation2 + $0xf8] sm:$0xff] 0.0
        $region59: #{_lambda_.6} parent=50 // pred_fallthru
          _
        %v369 = vld [vmem:[#allocation2] sm:$0xff]
        %v370 = vld [vmem:[#allocation2 + $0x8] sm:$0xff]
        %v371 = vld [vmem:[#allocation2 + $0x10] sm:$0xff]
        %v372 = vld [vmem:[#allocation2 + $0x18] sm:$0xff]
        %v373 = vld [vmem:[#allocation2 + $0x20] sm:$0xff]
        %v374 = vld [vmem:[#allocation2 + $0x28] sm:$0xff]
        %v375 = vld [vmem:[#allocation2 + $0x30] sm:$0xff]
        %v376 = vld [vmem:[#allocation2 + $0x38] sm:$0xff]
        %v377 = vld [vmem:[#allocation2 + $0x40] sm:$0xff]
        %v378 = vld [vmem:[#allocation2 + $0x48] sm:$0xff]
        %v379 = vld [vmem:[#allocation2 + $0x50] sm:$0xff]
        %v380 = vld [vmem:[#allocation2 + $0x58] sm:$0xff]
        %v381 = vld [vmem:[#allocation2 + $0x60] sm:$0xff]
        %v382 = vld [vmem:[#allocation2 + $0x68] sm:$0xff]
        %v383 = vld [vmem:[#allocation2 + $0x70] sm:$0xff]
        %v384 = vld [vmem:[#allocation2 + $0x78] sm:$0xff]
        %v385 = vld [vmem:[#allocation2 + $0x80] sm:$0xff]
        %v386 = vld [vmem:[#allocation2 + $0x88] sm:$0xff]
        %v387 = vld [vmem:[#allocation2 + $0x90] sm:$0xff]
        %v388 = vld [vmem:[#allocation2 + $0x98] sm:$0xff]
        %v389 = vld [vmem:[#allocation2 + $0xa0] sm:$0xff]
        %v390 = vld [vmem:[#allocation2 + $0xa8] sm:$0xff]
        %v391 = vld [vmem:[#allocation2 + $0xb0] sm:$0xff]
        %v392 = vld [vmem:[#allocation2 + $0xb8] sm:$0xff]
        %v393 = vld [vmem:[#allocation2 + $0xc0] sm:$0xff]
        %v394 = vld [vmem:[#allocation2 + $0xc8] sm:$0xff]
        %v395 = vld [vmem:[#allocation2 + $0xd0] sm:$0xff]
        %v396 = vld [vmem:[#allocation2 + $0xd8] sm:$0xff]
        %v397 = vld [vmem:[#allocation2 + $0xe0] sm:$0xff]
        %v398 = vld [vmem:[#allocation2 + $0xe8] sm:$0xff]
        %v399 = vld [vmem:[#allocation2 + $0xf0] sm:$0xff]
        %v400 = vld [vmem:[#allocation2 + $0xf8] sm:$0xff]
        %v401 = vld [vmem:[%s320] sm:$0xf]
        %v402 = vld [vmem:[%s320 + $0x4] sm:$0xf]
        %v403 = vld [vmem:[%s280] sm:$0xff]
        %v404 = vld [vmem:[%s280 + $0x8] sm:$0xff]
        %v405 = vld [vmem:[%s280 + $0x10] sm:$0xff]
        %v406 = vld [vmem:[%s280 + $0x18] sm:$0xff]
        %v407 = vld [vmem:[%s280 + $0x20] sm:$0xff]
        %v408 = vld [vmem:[%s280 + $0x28] sm:$0xff]
        %v409 = vld [vmem:[%s280 + $0x30] sm:$0xff]
        %v410 = vld [vmem:[%s280 + $0x38] sm:$0xff]
        %v411 = vld [vmem:[%s280 + $0x40] sm:$0xff]
        %v412 = vld [vmem:[%s280 + $0x48] sm:$0xff]
        %v413 = vld [vmem:[%s280 + $0x50] sm:$0xff]
        %v414 = vld [vmem:[%s280 + $0x58] sm:$0xff]
        %v415 = vld [vmem:[%s280 + $0x60] sm:$0xff]
        %v416 = vld [vmem:[%s280 + $0x68] sm:$0xff]
        %v417 = vld [vmem:[%s280 + $0x70] sm:$0xff]
        %v418 = vld [vmem:[%s280 + $0x78] sm:$0xff]
        %v419 = vld [vmem:[%s280 + $0x80] sm:$0xff]
        %v420 = vld [vmem:[%s280 + $0x88] sm:$0xff]
        %v421 = vld [vmem:[%s280 + $0x90] sm:$0xff]
        %v422 = vld [vmem:[%s280 + $0x98] sm:$0xff]
        %v423 = vld [vmem:[%s280 + $0xa0] sm:$0xff]
        %v424 = vld [vmem:[%s280 + $0xa8] sm:$0xff]
        %v425 = vld [vmem:[%s280 + $0xb0] sm:$0xff]
        %v426 = vld [vmem:[%s280 + $0xb8] sm:$0xff]
        %v427 = vld [vmem:[%s280 + $0xc0] sm:$0xff]
        %v428 = vld [vmem:[%s280 + $0xc8] sm:$0xff]
        %v429 = vld [vmem:[%s280 + $0xd0] sm:$0xff]
        %v430 = vld [vmem:[%s280 + $0xd8] sm:$0xff]
        %v431 = vld [vmem:[%s280 + $0xe0] sm:$0xff]
        %v432 = vld [vmem:[%s280 + $0xe8] sm:$0xff]
        %v433 = vld [vmem:[%s280 + $0xf0] sm:$0xff]
        %v434 = vld [vmem:[%s280 + $0xf8] sm:$0xff]
        %v437 = vunpack.c.l.b16 %v401
        %v438 = vunpack.c.l.b16 %v402
        %v439 = vpack.c.b16 %v438, %v437
        %v472 = vunpack.c.l.b16 %v403
        %v473 = vunpack.c.h.b16 %v403
        %v474 = vunpack.c.l.b16 %v404
        %v475 = vunpack.c.h.b16 %v404
        %v476 = vunpack.c.l.b16 %v405
        %v477 = vunpack.c.h.b16 %v405
        %v478 = vunpack.c.l.b16 %v406
        %v479 = vunpack.c.h.b16 %v406
        %v480 = vunpack.c.l.b16 %v407
        %v481 = vunpack.c.h.b16 %v407
        %v482 = vunpack.c.l.b16 %v408
        %v483 = vunpack.c.h.b16 %v408
        %v484 = vunpack.c.l.b16 %v409
        %v485 = vunpack.c.h.b16 %v409
        %v486 = vunpack.c.l.b16 %v410
        %v487 = vunpack.c.h.b16 %v410
        %v488 = vunpack.c.l.b16 %v411
        %v489 = vunpack.c.h.b16 %v411
        %v490 = vunpack.c.l.b16 %v412
        %v491 = vunpack.c.h.b16 %v412
        %v492 = vunpack.c.l.b16 %v413
        %v493 = vunpack.c.h.b16 %v413
        %v494 = vunpack.c.l.b16 %v414
        %v495 = vunpack.c.h.b16 %v414
        %v496 = vunpack.c.l.b16 %v415
        %v497 = vunpack.c.h.b16 %v415
        %v498 = vunpack.c.l.b16 %v416
        %v499 = vunpack.c.h.b16 %v416
        %v500 = vunpack.c.l.b16 %v417
        %v501 = vunpack.c.h.b16 %v417
        %v502 = vunpack.c.l.b16 %v418
        %v503 = vunpack.c.h.b16 %v418
        %v504 = vunpack.c.l.b16 %v419
        %v505 = vunpack.c.h.b16 %v419
        %v506 = vunpack.c.l.b16 %v420
        %v507 = vunpack.c.h.b16 %v420
        %v508 = vunpack.c.l.b16 %v421
        %v509 = vunpack.c.h.b16 %v421
        %v510 = vunpack.c.l.b16 %v422
        %v511 = vunpack.c.h.b16 %v422
        %v512 = vunpack.c.l.b16 %v423
        %v513 = vunpack.c.h.b16 %v423
        %v514 = vunpack.c.l.b16 %v424
        %v515 = vunpack.c.h.b16 %v424
        %v516 = vunpack.c.l.b16 %v425
        %v517 = vunpack.c.h.b16 %v425
        %v518 = vunpack.c.l.b16 %v426
        %v519 = vunpack.c.h.b16 %v426
        %v520 = vunpack.c.l.b16 %v427
        %v521 = vunpack.c.h.b16 %v427
        %v522 = vunpack.c.l.b16 %v428
        %v523 = vunpack.c.h.b16 %v428
        %v524 = vunpack.c.l.b16 %v429
        %v525 = vunpack.c.h.b16 %v429
        %v526 = vunpack.c.l.b16 %v430
        %v527 = vunpack.c.h.b16 %v430
        %v528 = vunpack.c.l.b16 %v431
        %v529 = vunpack.c.h.b16 %v431
        %v530 = vunpack.c.l.b16 %v432
        %v531 = vunpack.c.h.b16 %v432
        %v532 = vunpack.c.l.b16 %v433
        %v533 = vunpack.c.h.b16 %v433
        %v534 = vunpack.c.l.b16 %v434
        %v535 = vunpack.c.h.b16 %v434
        %v536 = vpack.c.b16 %v488, %v472
        %v537 = vpack.c.b16 %v489, %v473
        %v538 = vpack.c.b16 %v490, %v474
        %v539 = vpack.c.b16 %v491, %v475
        %v540 = vpack.c.b16 %v492, %v476
        %v541 = vpack.c.b16 %v493, %v477
        %v542 = vpack.c.b16 %v494, %v478
        %v543 = vpack.c.b16 %v495, %v479
        %v544 = vpack.c.b16 %v496, %v480
        %v545 = vpack.c.b16 %v497, %v481
        %v546 = vpack.c.b16 %v498, %v482
        %v547 = vpack.c.b16 %v499, %v483
        %v548 = vpack.c.b16 %v500, %v484
        %v549 = vpack.c.b16 %v501, %v485
        %v550 = vpack.c.b16 %v502, %v486
        %v551 = vpack.c.b16 %v503, %v487
        %v552 = vpack.c.b16 %v520, %v504
        %v553 = vpack.c.b16 %v521, %v505
        %v554 = vpack.c.b16 %v522, %v506
        %v555 = vpack.c.b16 %v523, %v507
        %v556 = vpack.c.b16 %v524, %v508
        %v557 = vpack.c.b16 %v525, %v509
        %v558 = vpack.c.b16 %v526, %v510
        %v559 = vpack.c.b16 %v527, %v511
        %v560 = vpack.c.b16 %v528, %v512
        %v561 = vpack.c.b16 %v529, %v513
        %v562 = vpack.c.b16 %v530, %v514
        %v563 = vpack.c.b16 %v531, %v515
        %v564 = vpack.c.b16 %v532, %v516
        %v565 = vpack.c.b16 %v533, %v517
        %v566 = vpack.c.b16 %v534, %v518
        %v567 = vpack.c.b16 %v535, %v519
        %vm600 = vcmask 261120
        %v602 = vsel %vm600, %v439, 0
        %604 = vmatprep.subr.bf16.mxu0 %v537
        %605 = vmatpush1.bf16.msra.mxu0 %v536
        %606 = vmatprep.subr.bf16.mxu0 %v553
        %607 = vmatpush1.bf16.msra.mxu0 %v552
        %608 = vmatprep.subr.bf16.mxu0 0
        %609 = vmatpush1.bf16.msra.mxu0 0
        %610 = vmatprep.subr.bf16.mxu0 0
        %611 = vmatpush1.bf16.msra.mxu0 0
        %612 = vmatprep.subr.bf16.mxu0 0
        %613 = vmatpush1.bf16.msra.mxu0 0
        %614 = vmatprep.subr.bf16.mxu0 0
        %615 = vmatpush1.bf16.msra.mxu0 0
        %616 = vmatprep.subr.bf16.mxu0 0
        %617 = vmatpush1.bf16.msra.mxu0 0
        %618 = vmatprep.subr.bf16.mxu0 0
        %619 = vmatpush1.bf16.msra.mxu0 0
        %620 = vmatprep.subr.bf16.mxu0 0
        %621 = vmatpush1.bf16.msra.mxu0 0
        %622 = vmatprep.subr.bf16.mxu0 0
        %623 = vmatpush1.bf16.msra.mxu0 0
        %624 = vmatprep.subr.bf16.mxu0 0
        %625 = vmatpush1.bf16.msra.mxu0 0
        %626 = vmatprep.subr.bf16.mxu0 0
        %627 = vmatpush1.bf16.msra.mxu0 0
        %628 = vmatprep.subr.bf16.mxu0 0
        %629 = vmatpush1.bf16.msra.mxu0 0
        %630 = vmatprep.subr.bf16.mxu0 0
        %631 = vmatpush1.bf16.msra.mxu0 0
        %632 = vmatprep.subr.bf16.mxu0 0
        %633 = vmatpush1.bf16.msra.mxu0 0
        %634 = vmatprep.subr.bf16.mxu0 0
        %635 = vmatpush1.bf16.msra.mxu0 0
        %636 = vmatprep.mubr.bf16.mxu0 0
        %637 = vmatmul.mubr.bf16.gmra.mrb[0].mxu0 %v602
        %v638 = vpop.f32.mrb[0].mxu0
        %v639 = vadd.f32 0.0, %v638
        %v640 = vpop.f32.mrb[0].mxu0
        %v641 = vadd.f32 0.0, %v640
        %v642 = vpop.f32.mrb[0].mxu0
        %v643 = vadd.f32 0.0, %v642
        %v644 = vpop.f32.mrb[0].mxu0
        %v645 = vadd.f32 0.0, %v644
        %646 = vdwg.mxu0
        %647 = vmatprep.subr.bf16.mxu0 %v539
        %648 = vmatpush1.bf16.msra.mxu0 %v538
        %649 = vmatprep.subr.bf16.mxu0 %v555
        %650 = vmatpush1.bf16.msra.mxu0 %v554
        %651 = vmatprep.subr.bf16.mxu0 0
        %652 = vmatpush1.bf16.msra.mxu0 0
        %653 = vmatprep.subr.bf16.mxu0 0
        %654 = vmatpush1.bf16.msra.mxu0 0
        %655 = vmatprep.subr.bf16.mxu0 0
        %656 = vmatpush1.bf16.msra.mxu0 0
        %657 = vmatprep.subr.bf16.mxu0 0
        %658 = vmatpush1.bf16.msra.mxu0 0
        %659 = vmatprep.subr.bf16.mxu0 0
        %660 = vmatpush1.bf16.msra.mxu0 0
        %661 = vmatprep.subr.bf16.mxu0 0
        %662 = vmatpush1.bf16.msra.mxu0 0
        %663 = vmatprep.subr.bf16.mxu0 0
        %664 = vmatpush1.bf16.msra.mxu0 0
        %665 = vmatprep.subr.bf16.mxu0 0
        %666 = vmatpush1.bf16.msra.mxu0 0
        %667 = vmatprep.subr.bf16.mxu0 0
        %668 = vmatpush1.bf16.msra.mxu0 0
        %669 = vmatprep.subr.bf16.mxu0 0
        %670 = vmatpush1.bf16.msra.mxu0 0
        %671 = vmatprep.subr.bf16.mxu0 0
        %672 = vmatpush1.bf16.msra.mxu0 0
        %673 = vmatprep.subr.bf16.mxu0 0
        %674 = vmatpush1.bf16.msra.mxu0 0
        %675 = vmatprep.subr.bf16.mxu0 0
        %676 = vmatpush1.bf16.msra.mxu0 0
        %677 = vmatprep.subr.bf16.mxu0 0
        %678 = vmatpush1.bf16.msra.mxu0 0
        %679 = vmatprep.mubr.bf16.mxu0 0
        %680 = vmatmul.mubr.bf16.gmra.mrb[0].mxu0 %v602
        %v681 = vpop.f32.mrb[0].mxu0
        %v682 = vadd.f32 0.0, %v681
        %v683 = vpop.f32.mrb[0].mxu0
        %v684 = vadd.f32 0.0, %v683
        %v685 = vpop.f32.mrb[0].mxu0
        %v686 = vadd.f32 0.0, %v685
        %v687 = vpop.f32.mrb[0].mxu0
        %v688 = vadd.f32 0.0, %v687
        %689 = vdwg.mxu0
        %690 = vmatprep.subr.bf16.mxu0 %v541
        %691 = vmatpush1.bf16.msra.mxu0 %v540
        %692 = vmatprep.subr.bf16.mxu0 %v557
        %693 = vmatpush1.bf16.msra.mxu0 %v556
        %694 = vmatprep.subr.bf16.mxu0 0
        %695 = vmatpush1.bf16.msra.mxu0 0
        %696 = vmatprep.subr.bf16.mxu0 0
        %697 = vmatpush1.bf16.msra.mxu0 0
        %698 = vmatprep.subr.bf16.mxu0 0
        %699 = vmatpush1.bf16.msra.mxu0 0
        %700 = vmatprep.subr.bf16.mxu0 0
        %701 = vmatpush1.bf16.msra.mxu0 0
        %702 = vmatprep.subr.bf16.mxu0 0
        %703 = vmatpush1.bf16.msra.mxu0 0
        %704 = vmatprep.subr.bf16.mxu0 0
        %705 = vmatpush1.bf16.msra.mxu0 0
        %706 = vmatprep.subr.bf16.mxu0 0
        %707 = vmatpush1.bf16.msra.mxu0 0
        %708 = vmatprep.subr.bf16.mxu0 0
        %709 = vmatpush1.bf16.msra.mxu0 0
        %710 = vmatprep.subr.bf16.mxu0 0
        %711 = vmatpush1.bf16.msra.mxu0 0
        %712 = vmatprep.subr.bf16.mxu0 0
        %713 = vmatpush1.bf16.msra.mxu0 0
        %714 = vmatprep.subr.bf16.mxu0 0
        %715 = vmatpush1.bf16.msra.mxu0 0
        %716 = vmatprep.subr.bf16.mxu0 0
        %717 = vmatpush1.bf16.msra.mxu0 0
        %718 = vmatprep.subr.bf16.mxu0 0
        %719 = vmatpush1.bf16.msra.mxu0 0
        %720 = vmatprep.subr.bf16.mxu0 0
        %721 = vmatpush1.bf16.msra.mxu0 0
        %722 = vmatprep.mubr.bf16.mxu0 0
        %723 = vmatmul.mubr.bf16.gmra.mrb[0].mxu0 %v602
        %v724 = vpop.f32.mrb[0].mxu0
        %v725 = vadd.f32 0.0, %v724
        %v726 = vpop.f32.mrb[0].mxu0
        %v727 = vadd.f32 0.0, %v726
        %v728 = vpop.f32.mrb[0].mxu0
        %v729 = vadd.f32 0.0, %v728
        %v730 = vpop.f32.mrb[0].mxu0
        %v731 = vadd.f32 0.0, %v730
        %732 = vdwg.mxu0
        %733 = vmatprep.subr.bf16.mxu0 %v543
        %734 = vmatpush1.bf16.msra.mxu0 %v542
        %735 = vmatprep.subr.bf16.mxu0 %v559
        %736 = vmatpush1.bf16.msra.mxu0 %v558
        %737 = vmatprep.subr.bf16.mxu0 0
        %738 = vmatpush1.bf16.msra.mxu0 0
        %739 = vmatprep.subr.bf16.mxu0 0
        %740 = vmatpush1.bf16.msra.mxu0 0
        %741 = vmatprep.subr.bf16.mxu0 0
        %742 = vmatpush1.bf16.msra.mxu0 0
        %743 = vmatprep.subr.bf16.mxu0 0
        %744 = vmatpush1.bf16.msra.mxu0 0
        %745 = vmatprep.subr.bf16.mxu0 0
        %746 = vmatpush1.bf16.msra.mxu0 0
        %747 = vmatprep.subr.bf16.mxu0 0
        %748 = vmatpush1.bf16.msra.mxu0 0
        %749 = vmatprep.subr.bf16.mxu0 0
        %750 = vmatpush1.bf16.msra.mxu0 0
        %751 = vmatprep.subr.bf16.mxu0 0
        %752 = vmatpush1.bf16.msra.mxu0 0
        %753 = vmatprep.subr.bf16.mxu0 0
        %754 = vmatpush1.bf16.msra.mxu0 0
        %755 = vmatprep.subr.bf16.mxu0 0
        %756 = vmatpush1.bf16.msra.mxu0 0
        %757 = vmatprep.subr.bf16.mxu0 0
        %758 = vmatpush1.bf16.msra.mxu0 0
        %759 = vmatprep.subr.bf16.mxu0 0
        %760 = vmatpush1.bf16.msra.mxu0 0
        %761 = vmatprep.subr.bf16.mxu0 0
        %762 = vmatpush1.bf16.msra.mxu0 0
        %763 = vmatprep.subr.bf16.mxu0 0
        %764 = vmatpush1.bf16.msra.mxu0 0
        %765 = vmatprep.mubr.bf16.mxu0 0
        %766 = vmatmul.mubr.bf16.gmra.mrb[0].mxu0 %v602
        %v767 = vpop.f32.mrb[0].mxu0
        %v768 = vadd.f32 0.0, %v767
        %v769 = vpop.f32.mrb[0].mxu0
        %v770 = vadd.f32 0.0, %v769
        %v771 = vpop.f32.mrb[0].mxu0
        %v772 = vadd.f32 0.0, %v771
        %v773 = vpop.f32.mrb[0].mxu0
        %v774 = vadd.f32 0.0, %v773
        %775 = vdwg.mxu0
        %776 = vmatprep.subr.bf16.mxu0 %v545
        %777 = vmatpush1.bf16.msra.mxu0 %v544
        %778 = vmatprep.subr.bf16.mxu0 %v561
        %779 = vmatpush1.bf16.msra.mxu0 %v560
        %780 = vmatprep.subr.bf16.mxu0 0
        %781 = vmatpush1.bf16.msra.mxu0 0
        %782 = vmatprep.subr.bf16.mxu0 0
        %783 = vmatpush1.bf16.msra.mxu0 0
        %784 = vmatprep.subr.bf16.mxu0 0
        %785 = vmatpush1.bf16.msra.mxu0 0
        %786 = vmatprep.subr.bf16.mxu0 0
        %787 = vmatpush1.bf16.msra.mxu0 0
        %788 = vmatprep.subr.bf16.mxu0 0
        %789 = vmatpush1.bf16.msra.mxu0 0
        %790 = vmatprep.subr.bf16.mxu0 0
        %791 = vmatpush1.bf16.msra.mxu0 0
        %792 = vmatprep.subr.bf16.mxu0 0
        %793 = vmatpush1.bf16.msra.mxu0 0
        %794 = vmatprep.subr.bf16.mxu0 0
        %795 = vmatpush1.bf16.msra.mxu0 0
        %796 = vmatprep.subr.bf16.mxu0 0
        %797 = vmatpush1.bf16.msra.mxu0 0
        %798 = vmatprep.subr.bf16.mxu0 0
        %799 = vmatpush1.bf16.msra.mxu0 0
        %800 = vmatprep.subr.bf16.mxu0 0
        %801 = vmatpush1.bf16.msra.mxu0 0
        %802 = vmatprep.subr.bf16.mxu0 0
        %803 = vmatpush1.bf16.msra.mxu0 0
        %804 = vmatprep.subr.bf16.mxu0 0
        %805 = vmatpush1.bf16.msra.mxu0 0
        %806 = vmatprep.subr.bf16.mxu0 0
        %807 = vmatpush1.bf16.msra.mxu0 0
        %808 = vmatprep.mubr.bf16.mxu0 0
        %809 = vmatmul.mubr.bf16.gmra.mrb[0].mxu0 %v602
        %v810 = vpop.f32.mrb[0].mxu0
        %v811 = vadd.f32 0.0, %v810
        %v812 = vpop.f32.mrb[0].mxu0
        %v813 = vadd.f32 0.0, %v812
        %v814 = vpop.f32.mrb[0].mxu0
        %v815 = vadd.f32 0.0, %v814
        %v816 = vpop.f32.mrb[0].mxu0
        %v817 = vadd.f32 0.0, %v816
        %818 = vdwg.mxu0
        %819 = vmatprep.subr.bf16.mxu0 %v547
        %820 = vmatpush1.bf16.msra.mxu0 %v546
        %821 = vmatprep.subr.bf16.mxu0 %v563
        %822 = vmatpush1.bf16.msra.mxu0 %v562
        %823 = vmatprep.subr.bf16.mxu0 0
        %824 = vmatpush1.bf16.msra.mxu0 0
        %825 = vmatprep.subr.bf16.mxu0 0
        %826 = vmatpush1.bf16.msra.mxu0 0
        %827 = vmatprep.subr.bf16.mxu0 0
        %828 = vmatpush1.bf16.msra.mxu0 0
        %829 = vmatprep.subr.bf16.mxu0 0
        %830 = vmatpush1.bf16.msra.mxu0 0
        %831 = vmatprep.subr.bf16.mxu0 0
        %832 = vmatpush1.bf16.msra.mxu0 0
        %833 = vmatprep.subr.bf16.mxu0 0
        %834 = vmatpush1.bf16.msra.mxu0 0
        %835 = vmatprep.subr.bf16.mxu0 0
        %836 = vmatpush1.bf16.msra.mxu0 0
        %837 = vmatprep.subr.bf16.mxu0 0
        %838 = vmatpush1.bf16.msra.mxu0 0
        %839 = vmatprep.subr.bf16.mxu0 0
        %840 = vmatpush1.bf16.msra.mxu0 0
        %841 = vmatprep.subr.bf16.mxu0 0
        %842 = vmatpush1.bf16.msra.mxu0 0
        %843 = vmatprep.subr.bf16.mxu0 0
        %844 = vmatpush1.bf16.msra.mxu0 0
        %845 = vmatprep.subr.bf16.mxu0 0
        %846 = vmatpush1.bf16.msra.mxu0 0
        %847 = vmatprep.subr.bf16.mxu0 0
        %848 = vmatpush1.bf16.msra.mxu0 0
        %849 = vmatprep.subr.bf16.mxu0 0
        %850 = vmatpush1.bf16.msra.mxu0 0
        %851 = vmatprep.mubr.bf16.mxu0 0
        %852 = vmatmul.mubr.bf16.gmra.mrb[0].mxu0 %v602
        %v853 = vpop.f32.mrb[0].mxu0
        %v854 = vadd.f32 0.0, %v853
        %v855 = vpop.f32.mrb[0].mxu0
        %v856 = vadd.f32 0.0, %v855
        %v857 = vpop.f32.mrb[0].mxu0
        %v858 = vadd.f32 0.0, %v857
        %v859 = vpop.f32.mrb[0].mxu0
        %v860 = vadd.f32 0.0, %v859
        %861 = vdwg.mxu0
        %862 = vmatprep.subr.bf16.mxu0 %v549
        %863 = vmatpush1.bf16.msra.mxu0 %v548
        %864 = vmatprep.subr.bf16.mxu0 %v565
        %865 = vmatpush1.bf16.msra.mxu0 %v564
        %866 = vmatprep.subr.bf16.mxu0 0
        %867 = vmatpush1.bf16.msra.mxu0 0
        %868 = vmatprep.subr.bf16.mxu0 0
        %869 = vmatpush1.bf16.msra.mxu0 0
        %870 = vmatprep.subr.bf16.mxu0 0
        %871 = vmatpush1.bf16.msra.mxu0 0
        %872 = vmatprep.subr.bf16.mxu0 0
        %873 = vmatpush1.bf16.msra.mxu0 0
        %874 = vmatprep.subr.bf16.mxu0 0
        %875 = vmatpush1.bf16.msra.mxu0 0
        %876 = vmatprep.subr.bf16.mxu0 0
        %877 = vmatpush1.bf16.msra.mxu0 0
        %878 = vmatprep.subr.bf16.mxu0 0
        %879 = vmatpush1.bf16.msra.mxu0 0
        %880 = vmatprep.subr.bf16.mxu0 0
        %881 = vmatpush1.bf16.msra.mxu0 0
        %882 = vmatprep.subr.bf16.mxu0 0
        %883 = vmatpush1.bf16.msra.mxu0 0
        %884 = vmatprep.subr.bf16.mxu0 0
        %885 = vmatpush1.bf16.msra.mxu0 0
        %886 = vmatprep.subr.bf16.mxu0 0
        %887 = vmatpush1.bf16.msra.mxu0 0
        %888 = vmatprep.subr.bf16.mxu0 0
        %889 = vmatpush1.bf16.msra.mxu0 0
        %890 = vmatprep.subr.bf16.mxu0 0
        %891 = vmatpush1.bf16.msra.mxu0 0
        %892 = vmatprep.subr.bf16.mxu0 0
        %893 = vmatpush1.bf16.msra.mxu0 0
        %894 = vmatprep.mubr.bf16.mxu0 0
        %895 = vmatmul.mubr.bf16.gmra.mrb[0].mxu0 %v602
        %v896 = vpop.f32.mrb[0].mxu0
        %v897 = vadd.f32 0.0, %v896
        %v898 = vpop.f32.mrb[0].mxu0
        %v899 = vadd.f32 0.0, %v898
        %v900 = vpop.f32.mrb[0].mxu0
        %v901 = vadd.f32 0.0, %v900
        %v902 = vpop.f32.mrb[0].mxu0
        %v903 = vadd.f32 0.0, %v902
        %904 = vdwg.mxu0
        %905 = vmatprep.subr.bf16.mxu0 %v551
        %906 = vmatpush1.bf16.msra.mxu0 %v550
        %907 = vmatprep.subr.bf16.mxu0 %v567
        %908 = vmatpush1.bf16.msra.mxu0 %v566
        %909 = vmatprep.subr.bf16.mxu0 0
        %910 = vmatpush1.bf16.msra.mxu0 0
        %911 = vmatprep.subr.bf16.mxu0 0
        %912 = vmatpush1.bf16.msra.mxu0 0
        %913 = vmatprep.subr.bf16.mxu0 0
        %914 = vmatpush1.bf16.msra.mxu0 0
        %915 = vmatprep.subr.bf16.mxu0 0
        %916 = vmatpush1.bf16.msra.mxu0 0
        %917 = vmatprep.subr.bf16.mxu0 0
        %918 = vmatpush1.bf16.msra.mxu0 0
        %919 = vmatprep.subr.bf16.mxu0 0
        %920 = vmatpush1.bf16.msra.mxu0 0
        %921 = vmatprep.subr.bf16.mxu0 0
        %922 = vmatpush1.bf16.msra.mxu0 0
        %923 = vmatprep.subr.bf16.mxu0 0
        %924 = vmatpush1.bf16.msra.mxu0 0
        %925 = vmatprep.subr.bf16.mxu0 0
        %926 = vmatpush1.bf16.msra.mxu0 0
        %927 = vmatprep.subr.bf16.mxu0 0
        %928 = vmatpush1.bf16.msra.mxu0 0
        %929 = vmatprep.subr.bf16.mxu0 0
        %930 = vmatpush1.bf16.msra.mxu0 0
        %931 = vmatprep.subr.bf16.mxu0 0
        %932 = vmatpush1.bf16.msra.mxu0 0
        %933 = vmatprep.subr.bf16.mxu0 0
        %934 = vmatpush1.bf16.msra.mxu0 0
        %935 = vmatprep.subr.bf16.mxu0 0
        %936 = vmatpush1.bf16.msra.mxu0 0
        %937 = vmatprep.mubr.bf16.mxu0 0
        %938 = vmatmul.mubr.bf16.gmra.mrb[0].mxu0 %v602
        %v939 = vpop.f32.mrb[0].mxu0
        %v940 = vadd.f32 0.0, %v939
        %v941 = vpop.f32.mrb[0].mxu0
        %v942 = vadd.f32 0.0, %v941
        %v943 = vpop.f32.mrb[0].mxu0
        %v944 = vadd.f32 0.0, %v943
        %v945 = vpop.f32.mrb[0].mxu0
        %v946 = vadd.f32 0.0, %v945
        %947 = vdwg.mxu0
        %v948 = vadd.f32 %v369, %v639
        %v949 = vadd.f32 %v370, %v641
        %v950 = vadd.f32 %v371, %v682
        %v951 = vadd.f32 %v372, %v684
        %v952 = vadd.f32 %v373, %v725
        %v953 = vadd.f32 %v374, %v727
        %v954 = vadd.f32 %v375, %v768
        %v955 = vadd.f32 %v376, %v770
        %v956 = vadd.f32 %v377, %v811
        %v957 = vadd.f32 %v378, %v813
        %v958 = vadd.f32 %v379, %v854
        %v959 = vadd.f32 %v380, %v856
        %v960 = vadd.f32 %v381, %v897
        %v961 = vadd.f32 %v382, %v899
        %v962 = vadd.f32 %v383, %v940
        %v963 = vadd.f32 %v384, %v942
        %v964 = vadd.f32 %v385, %v643
        %v965 = vadd.f32 %v386, %v645
        %v966 = vadd.f32 %v387, %v686
        %v967 = vadd.f32 %v388, %v688
        %v968 = vadd.f32 %v389, %v729
        %v969 = vadd.f32 %v390, %v731
        %v970 = vadd.f32 %v391, %v772
        %v971 = vadd.f32 %v392, %v774
        %v972 = vadd.f32 %v393, %v815
        %v973 = vadd.f32 %v394, %v817
        %v974 = vadd.f32 %v395, %v858
        %v975 = vadd.f32 %v396, %v860
        %v976 = vadd.f32 %v397, %v901
        %v977 = vadd.f32 %v398, %v903
        %v978 = vadd.f32 %v399, %v944
        %v979 = vadd.f32 %v400, %v946
        %980 = vst [vmem:[#allocation2] sm:$0xff] %v948
        %981 = vst [vmem:[#allocation2 + $0x8] sm:$0xff] %v949
        %982 = vst [vmem:[#allocation2 + $0x10] sm:$0xff] %v950
        %983 = vst [vmem:[#allocation2 + $0x18] sm:$0xff] %v951
        %984 = vst [vmem:[#allocation2 + $0x20] sm:$0xff] %v952
        %985 = vst [vmem:[#allocation2 + $0x28] sm:$0xff] %v953
        %986 = vst [vmem:[#allocation2 + $0x30] sm:$0xff] %v954
        %987 = vst [vmem:[#allocation2 + $0x38] sm:$0xff] %v955
        %988 = vst [vmem:[#allocation2 + $0x40] sm:$0xff] %v956
        %989 = vst [vmem:[#allocation2 + $0x48] sm:$0xff] %v957
        %990 = vst [vmem:[#allocation2 + $0x50] sm:$0xff] %v958
        %991 = vst [vmem:[#allocation2 + $0x58] sm:$0xff] %v959
        %992 = vst [vmem:[#allocation2 + $0x60] sm:$0xff] %v960
        %993 = vst [vmem:[#allocation2 + $0x68] sm:$0xff] %v961
        %994 = vst [vmem:[#allocation2 + $0x70] sm:$0xff] %v962
        %995 = vst [vmem:[#allocation2 + $0x78] sm:$0xff] %v963
        %996 = vst [vmem:[#allocation2 + $0x80] sm:$0xff] %v964
        %997 = vst [vmem:[#allocation2 + $0x88] sm:$0xff] %v965
        %998 = vst [vmem:[#allocation2 + $0x90] sm:$0xff] %v966
        %999 = vst [vmem:[#allocation2 + $0x98] sm:$0xff] %v967
        %1000 = vst [vmem:[#allocation2 + $0xa0] sm:$0xff] %v968
        %1001 = vst [vmem:[#allocation2 + $0xa8] sm:$0xff] %v969
        %1002 = vst [vmem:[#allocation2 + $0xb0] sm:$0xff] %v970
        %1003 = vst [vmem:[#allocation2 + $0xb8] sm:$0xff] %v971
        %1004 = vst [vmem:[#allocation2 + $0xc0] sm:$0xff] %v972
        %1005 = vst [vmem:[#allocation2 + $0xc8] sm:$0xff] %v973
        %1006 = vst [vmem:[#allocation2 + $0xd0] sm:$0xff] %v974
        %1007 = vst [vmem:[#allocation2 + $0xd8] sm:$0xff] %v975
        %1008 = vst [vmem:[#allocation2 + $0xe0] sm:$0xff] %v976
        %1009 = vst [vmem:[#allocation2 + $0xe8] sm:$0xff] %v977
        %1010 = vst [vmem:[#allocation2 + $0xf0] sm:$0xff] %v978
        %1011 = vst [vmem:[#allocation2 + $0xf8] sm:$0xff] %v979
        // Predicated region
        $region60: #{_lambda_.6} parent=50 // pred_check
          %p1012 = pneg %p333
        $region61: #{_lambda_.6} parent=50 // pred_check_branch
          %1014 = sbr.rel (%p1012) target = $region63
        $region62: #{_lambda_.6} parent=50 // pred_region
          %v1015 = vld [vmem:[#allocation2] sm:$0xff]
          %v1016 = vld [vmem:[#allocation2 + $0x8] sm:$0xff]
          %v1017 = vld [vmem:[#allocation2 + $0x10] sm:$0xff]
          %v1018 = vld [vmem:[#allocation2 + $0x18] sm:$0xff]
          %v1019 = vld [vmem:[#allocation2 + $0x20] sm:$0xff]
          %v1020 = vld [vmem:[#allocation2 + $0x28] sm:$0xff]
          %v1021 = vld [vmem:[#allocation2 + $0x30] sm:$0xff]
          %v1022 = vld [vmem:[#allocation2 + $0x38] sm:$0xff]
          %v1023 = vld [vmem:[#allocation2 + $0x40] sm:$0xff]
          %v1024 = vld [vmem:[#allocation2 + $0x48] sm:$0xff]
          %v1025 = vld [vmem:[#allocation2 + $0x50] sm:$0xff]
          %v1026 = vld [vmem:[#allocation2 + $0x58] sm:$0xff]
          %v1027 = vld [vmem:[#allocation2 + $0x60] sm:$0xff]
          %v1028 = vld [vmem:[#allocation2 + $0x68] sm:$0xff]
          %v1029 = vld [vmem:[#allocation2 + $0x70] sm:$0xff]
          %v1030 = vld [vmem:[#allocation2 + $0x78] sm:$0xff]
          %v1031 = vld [vmem:[#allocation2 + $0x80] sm:$0xff]
          %v1032 = vld [vmem:[#allocation2 + $0x88] sm:$0xff]
          %v1033 = vld [vmem:[#allocation2 + $0x90] sm:$0xff]
          %v1034 = vld [vmem:[#allocation2 + $0x98] sm:$0xff]
          %v1035 = vld [vmem:[#allocation2 + $0xa0] sm:$0xff]
          %v1036 = vld [vmem:[#allocation2 + $0xa8] sm:$0xff]
          %v1037 = vld [vmem:[#allocation2 + $0xb0] sm:$0xff]
          %v1038 = vld [vmem:[#allocation2 + $0xb8] sm:$0xff]
          %v1039 = vld [vmem:[#allocation2 + $0xc0] sm:$0xff]
          %v1040 = vld [vmem:[#allocation2 + $0xc8] sm:$0xff]
          %v1041 = vld [vmem:[#allocation2 + $0xd0] sm:$0xff]
          %v1042 = vld [vmem:[#allocation2 + $0xd8] sm:$0xff]
          %v1043 = vld [vmem:[#allocation2 + $0xe0] sm:$0xff]
          %v1044 = vld [vmem:[#allocation2 + $0xe8] sm:$0xff]
          %v1045 = vld [vmem:[#allocation2 + $0xf0] sm:$0xff]
          %v1046 = vld [vmem:[#allocation2 + $0xf8] sm:$0xff]
          %v1047 = vld [vmem:[%s328] sm:$0xff]
          %v1048 = vld [vmem:[%s328 + $0x8] sm:$0xff]
          %1050 = vset.pattern.permute.xlu0 0
          %1051 = vperm.xlu0 %1050, %v1047
          %v1052 = vpop.permute.xlu0 %1051
          %1055 = vset.pattern.permute.xlu0 0
          %1056 = vperm.xlu0 %1055, %v1048
          %v1057 = vpop.permute.xlu0 %1056
          %v1059 = vadd.f32 %v1015, %v1052
          %v1060 = vadd.f32 %v1016, %v1052
          %v1061 = vadd.f32 %v1017, %v1052
          %v1062 = vadd.f32 %v1018, %v1052
          %v1063 = vadd.f32 %v1019, %v1052
          %v1064 = vadd.f32 %v1020, %v1052
          %v1065 = vadd.f32 %v1021, %v1052
          %v1066 = vadd.f32 %v1022, %v1052
          %v1067 = vadd.f32 %v1023, %v1052
          %v1068 = vadd.f32 %v1024, %v1052
          %v1069 = vadd.f32 %v1025, %v1052
          %v1070 = vadd.f32 %v1026, %v1052
          %v1071 = vadd.f32 %v1027, %v1052
          %v1072 = vadd.f32 %v1028, %v1052
          %v1073 = vadd.f32 %v1029, %v1052
          %v1074 = vadd.f32 %v1030, %v1052
          %v1075 = vadd.f32 %v1031, %v1057
          %v1076 = vadd.f32 %v1032, %v1057
          %v1077 = vadd.f32 %v1033, %v1057
          %v1078 = vadd.f32 %v1034, %v1057
          %v1079 = vadd.f32 %v1035, %v1057
          %v1080 = vadd.f32 %v1036, %v1057
          %v1081 = vadd.f32 %v1037, %v1057
          %v1082 = vadd.f32 %v1038, %v1057
          %v1083 = vadd.f32 %v1039, %v1057
          %v1084 = vadd.f32 %v1040, %v1057
          %v1085 = vadd.f32 %v1041, %v1057
          %v1086 = vadd.f32 %v1042, %v1057
          %v1087 = vadd.f32 %v1043, %v1057
          %v1088 = vadd.f32 %v1044, %v1057
          %v1089 = vadd.f32 %v1045, %v1057
          %v1090 = vadd.f32 %v1046, %v1057
          %v1091 = vmax.f32 %v1059, 0.0
          %v1092 = vmax.f32 %v1060, 0.0
          %v1093 = vmax.f32 %v1061, 0.0
          %v1094 = vmax.f32 %v1062, 0.0
          %v1095 = vmax.f32 %v1063, 0.0
          %v1096 = vmax.f32 %v1064, 0.0
          %v1097 = vmax.f32 %v1065, 0.0
          %v1098 = vmax.f32 %v1066, 0.0
          %v1099 = vmax.f32 %v1067, 0.0
          %v1100 = vmax.f32 %v1068, 0.0
          %v1101 = vmax.f32 %v1069, 0.0
          %v1102 = vmax.f32 %v1070, 0.0
          %v1103 = vmax.f32 %v1071, 0.0
          %v1104 = vmax.f32 %v1072, 0.0
          %v1105 = vmax.f32 %v1073, 0.0
          %v1106 = vmax.f32 %v1074, 0.0
          %v1107 = vmax.f32 %v1075, 0.0
          %v1108 = vmax.f32 %v1076, 0.0
          %v1109 = vmax.f32 %v1077, 0.0
          %v1110 = vmax.f32 %v1078, 0.0
          %v1111 = vmax.f32 %v1079, 0.0
          %v1112 = vmax.f32 %v1080, 0.0
          %v1113 = vmax.f32 %v1081, 0.0
          %v1114 = vmax.f32 %v1082, 0.0
          %v1115 = vmax.f32 %v1083, 0.0
          %v1116 = vmax.f32 %v1084, 0.0
          %v1117 = vmax.f32 %v1085, 0.0
          %v1118 = vmax.f32 %v1086, 0.0
          %v1119 = vmax.f32 %v1087, 0.0
          %v1120 = vmax.f32 %v1088, 0.0
          %v1121 = vmax.f32 %v1089, 0.0
          %v1122 = vmax.f32 %v1090, 0.0
          %v1123 = vpack.c.bf16 %v1107, %v1091
          %v1124 = vpack.c.bf16 %v1108, %v1092
          %v1125 = vpack.c.bf16 %v1109, %v1093
          %v1126 = vpack.c.bf16 %v1110, %v1094
          %v1127 = vpack.c.bf16 %v1111, %v1095
          %v1128 = vpack.c.bf16 %v1112, %v1096
          %v1129 = vpack.c.bf16 %v1113, %v1097
          %v1130 = vpack.c.bf16 %v1114, %v1098
          %v1131 = vpack.c.bf16 %v1115, %v1099
          %v1132 = vpack.c.bf16 %v1116, %v1100
          %v1133 = vpack.c.bf16 %v1117, %v1101
          %v1134 = vpack.c.bf16 %v1118, %v1102
          %v1135 = vpack.c.bf16 %v1119, %v1103
          %v1136 = vpack.c.bf16 %v1120, %v1104
          %v1137 = vpack.c.bf16 %v1121, %v1105
          %v1138 = vpack.c.bf16 %v1122, %v1106
          %v1155 = vunpack.c.l.b16 %v1123
          %v1156 = vunpack.c.l.b16 %v1124
          %v1157 = vunpack.c.l.b16 %v1125
          %v1158 = vunpack.c.l.b16 %v1126
          %v1159 = vunpack.c.l.b16 %v1127
          %v1160 = vunpack.c.l.b16 %v1128
          %v1161 = vunpack.c.l.b16 %v1129
          %v1162 = vunpack.c.l.b16 %v1130
          %v1163 = vunpack.c.l.b16 %v1131
          %v1164 = vunpack.c.l.b16 %v1132
          %v1165 = vunpack.c.l.b16 %v1133
          %v1166 = vunpack.c.l.b16 %v1134
          %v1167 = vunpack.c.l.b16 %v1135
          %v1168 = vunpack.c.l.b16 %v1136
          %v1169 = vunpack.c.l.b16 %v1137
          %v1170 = vunpack.c.l.b16 %v1138
          %v1171 = vunpack.c.h.b16 %v1123
          %v1172 = vunpack.c.h.b16 %v1124
          %v1173 = vunpack.c.h.b16 %v1125
          %v1174 = vunpack.c.h.b16 %v1126
          %v1175 = vunpack.c.h.b16 %v1127
          %v1176 = vunpack.c.h.b16 %v1128
          %v1177 = vunpack.c.h.b16 %v1129
          %v1178 = vunpack.c.h.b16 %v1130
          %v1179 = vunpack.c.h.b16 %v1131
          %v1180 = vunpack.c.h.b16 %v1132
          %v1181 = vunpack.c.h.b16 %v1133
          %v1182 = vunpack.c.h.b16 %v1134
          %v1183 = vunpack.c.h.b16 %v1135
          %v1184 = vunpack.c.h.b16 %v1136
          %v1185 = vunpack.c.h.b16 %v1137
          %v1186 = vunpack.c.h.b16 %v1138
          %v1187 = vpack.c.b16 %v1156, %v1155
          %v1188 = vpack.c.b16 %v1158, %v1157
          %v1189 = vpack.c.b16 %v1160, %v1159
          %v1190 = vpack.c.b16 %v1162, %v1161
          %v1191 = vpack.c.b16 %v1164, %v1163
          %v1192 = vpack.c.b16 %v1166, %v1165
          %v1193 = vpack.c.b16 %v1168, %v1167
          %v1194 = vpack.c.b16 %v1170, %v1169
          %v1195 = vpack.c.b16 %v1172, %v1171
          %v1196 = vpack.c.b16 %v1174, %v1173
          %v1197 = vpack.c.b16 %v1176, %v1175
          %v1198 = vpack.c.b16 %v1178, %v1177
          %v1199 = vpack.c.b16 %v1180, %v1179
          %v1200 = vpack.c.b16 %v1182, %v1181
          %v1201 = vpack.c.b16 %v1184, %v1183
          %v1202 = vpack.c.b16 %v1186, %v1185
          %1219 = vst [vmem:[%s312] sm:$0xff] %v1187
          %1220 = vst [vmem:[%s312 + $0x8] sm:$0xff] %v1188
          %1221 = vst [vmem:[%s312 + $0x10] sm:$0xff] %v1189
          %1222 = vst [vmem:[%s312 + $0x18] sm:$0xff] %v1190
          %1223 = vst [vmem:[%s312 + $0x20] sm:$0xff] %v1191
          %1224 = vst [vmem:[%s312 + $0x28] sm:$0xff] %v1192
          %1225 = vst [vmem:[%s312 + $0x30] sm:$0xff] %v1193
          %1226 = vst [vmem:[%s312 + $0x38] sm:$0xff] %v1194
          %1227 = vst [vmem:[%s312 + $0x40] sm:$0xff] %v1195
          %1228 = vst [vmem:[%s312 + $0x48] sm:$0xff] %v1196
          %1229 = vst [vmem:[%s312 + $0x50] sm:$0xff] %v1197
          %1230 = vst [vmem:[%s312 + $0x58] sm:$0xff] %v1198
          %1231 = vst [vmem:[%s312 + $0x60] sm:$0xff] %v1199
          %1232 = vst [vmem:[%s312 + $0x68] sm:$0xff] %v1200
          %1233 = vst [vmem:[%s312 + $0x70] sm:$0xff] %v1201
          %1234 = vst [vmem:[%s312 + $0x78] sm:$0xff] %v1202
        $region63: #{_lambda_.6} parent=50 // pred_fallthru
          _
        %s1235 = sand.u32 %s125, 1
        %s1236 = sand.u32 %s125, 1
        %s1237 = smul.addr %s1236, 128
        %s1238 = scalar_lea.vmem [#allocation4], %s1237
        // Predicated region
        $region64: #{_lambda_.6} parent=50 // pred_check
          %p1239 = pneg %p135
        $region65: #{_lambda_.6} parent=50 // pred_check_branch
          %1241 = sbr.rel (%p1239) target = $region67
        $region66: #{_lambda_.6} parent=50 // pred_region
          %s1242 = smul.u32 2, %s19
          %s1243 = smul.u32 16, %s20
          %s1244 = smul.addr %s1242, 784
          %s1245 = sadd.s32 %s1243, %s1244
          %s1246 = smul.addr %s1245, 4
          %s1247 = scalar_lea.vmem %s3, %s1246
          // Predicated region
          $region68: #{_lambda_.6} parent=66 // pred_check
            _
          $region69: #{_lambda_.6} parent=66 // pred_check_branch
            %1249 = sbr.rel (0) target = $region71
          $region70: #{_lambda_.6} parent=66 // pred_region
            // Predicated region
            $region72: #{_lambda_.6} parent=70 // pred_check
              _
            $region73: #{_lambda_.6} parent=70 // pred_check_branch
              %1251 = sbr.rel (0) target = $region75
            $region74: #{_lambda_.6} parent=70 // pred_region
              loop: start=0, step=1, limit=1
              $region76: #{_lambda_.6} parent=74 // loop_pre_header
                _
              $region77: #{_lambda_.6} parent=74 // loop_header
                %s1253 = sphi 0, %s1257
                %p1254 = scmp.ge.s32.totalorder %s1253, 1
                %s1258 = sphi %s1238, %s1238
                %s1259 = sphi %s1247, %s1247
              $region78: #{_lambda_.6} parent=74 // loop_header_branch
                %1256 = sbr.rel (%p1254) target = $region82
              $region79: #{_lambda_.6} parent=74 // loop_body
                %v1260 = vld [vmem:[%s1258] sm:$0xff]
                %1261 = vst [vmem:[%s1259] sm:$0xff] %v1260
                %v1262 = vld [vmem:[%s1258 + $0x8] sm:$0xff]
                %1263 = vst [vmem:[%s1259 + $0x8] sm:$0xff] %v1262
                %v1264 = vld [vmem:[%s1258 + $0x10] sm:$0xff]
                %1265 = vst [vmem:[%s1259 + $0x10] sm:$0xff] %v1264
                %v1266 = vld [vmem:[%s1258 + $0x18] sm:$0xff]
                %1267 = vst [vmem:[%s1259 + $0x18] sm:$0xff] %v1266
                %v1268 = vld [vmem:[%s1258 + $0x20] sm:$0xff]
                %1269 = vst [vmem:[%s1259 + $0x20] sm:$0xff] %v1268
                %v1270 = vld [vmem:[%s1258 + $0x28] sm:$0xff]
                %1271 = vst [vmem:[%s1259 + $0x28] sm:$0xff] %v1270
                %v1272 = vld [vmem:[%s1258 + $0x30] sm:$0xff]
                %1273 = vst [vmem:[%s1259 + $0x30] sm:$0xff] %v1272
                %v1274 = vld [vmem:[%s1258 + $0x38] sm:$0xff]
                %1275 = vst [vmem:[%s1259 + $0x38] sm:$0xff] %v1274
                %v1276 = vld [vmem:[%s1258 + $0x40] sm:$0xff]
                %1277 = vst [vmem:[%s1259 + $0xc40] sm:$0xff] %v1276
                %v1278 = vld [vmem:[%s1258 + $0x48] sm:$0xff]
                %1279 = vst [vmem:[%s1259 + $0xc48] sm:$0xff] %v1278
                %v1280 = vld [vmem:[%s1258 + $0x50] sm:$0xff]
                %1281 = vst [vmem:[%s1259 + $0xc50] sm:$0xff] %v1280
                %v1282 = vld [vmem:[%s1258 + $0x58] sm:$0xff]
                %1283 = vst [vmem:[%s1259 + $0xc58] sm:$0xff] %v1282
                %v1284 = vld [vmem:[%s1258 + $0x60] sm:$0xff]
                %1285 = vst [vmem:[%s1259 + $0xc60] sm:$0xff] %v1284
                %v1286 = vld [vmem:[%s1258 + $0x68] sm:$0xff]
                %1287 = vst [vmem:[%s1259 + $0xc68] sm:$0xff] %v1286
                %v1288 = vld [vmem:[%s1258 + $0x70] sm:$0xff]
                %1289 = vst [vmem:[%s1259 + $0xc70] sm:$0xff] %v1288
                %v1290 = vld [vmem:[%s1258 + $0x78] sm:$0xff]
                %1291 = vst [vmem:[%s1259 + $0xc78] sm:$0xff] %v1290
              $region80: #{_lambda_.6} parent=74 // loop_footer
                %s1257 = sadd.s32 1, %s1253
              $region81: #{_lambda_.6} parent=74 // loop_footer_branch
                %1252 = sbr.rel target = $region77
              $region82: #{_lambda_.6} parent=74 // loop_exit
                _
            $region75: #{_lambda_.6} parent=70 // pred_fallthru
              _
            // Predicated region
            $region83: #{_lambda_.6} parent=70 // pred_check
              _
            $region84: #{_lambda_.6} parent=70 // pred_check_branch
              %1293 = sbr.rel target = $region86
            $region85: #{_lambda_.6} parent=70 // pred_region
              _
            $region86: #{_lambda_.6} parent=70 // pred_fallthru
              _
          $region71: #{_lambda_.6} parent=66 // pred_fallthru
            _
          %1294 = vnop
        $region67: #{_lambda_.6} parent=50 // pred_fallthru
          _
      $region51: #{_lambda_.6} parent=5 // pred_fallthru
        _
      %p1295 = scmp.le.s32.totalorder 2, %s9
      // Predicated region
      $region87: #{_lambda_.6} parent=5 // pred_check
        %p1296 = pneg %p1295
      $region88: #{_lambda_.6} parent=5 // pred_check_branch
        %1298 = sbr.rel (%p1296) target = $region90
      $region89: #{_lambda_.6} parent=5 // pred_region
        %s1299 = ssub.s32 %s9, 2
        // Predicated region
        $region91: #{_lambda_.6} parent=89 // pred_check
          %p1300 = pneg %p141
        $region92: #{_lambda_.6} parent=89 // pred_check_branch
          %1302 = sbr.rel (%p1300) target = $region94
        $region93: #{_lambda_.6} parent=89 // pred_region
          %s1303 = sand.u32 %s126, 1
          %s1304 = sand.u32 %s126, 1
          %s1305 = smul.addr %s1304, 128
          %s1306 = scalar_lea.vmem [#allocation4], %s1305
        $region94: #{_lambda_.6} parent=89 // pred_fallthru
          _
      $region90: #{_lambda_.6} parent=5 // pred_fallthru
        _
    $region6: #{_lambda_.6} parent=1 // loop_footer
      %s13 = sadd.s32 1, %s9
    $region7: #{_lambda_.6} parent=1 // loop_footer_branch
      %8 = sbr.rel target = $region3
    $region8: #{_lambda_.6} parent=1 // loop_exit
      _

// kernel: _lambda_.7
$region0: #{_lambda_.7}
  #allocation0 [shape = 'u32[]', space=smem, size = 0x4, offset = 0x4, fixed_abs, tag = 'smem constant byte address 0x4 - core index']
  #allocation1 [shape = 'u32[144,128]{1,0:T(1,128)}', space=vmem, size = 0x12000, scoped, tag = 'internal scratch']
  %s0 = inlined_call_operand.vmem [shape: bf16[1024,512], index: 0, kind: input, shape index: {}]
  %s1 = inlined_call_operand.vmem [shape: bf16[1024,512], index: 1, kind: input, shape index: {}]
  %s2 = inlined_call_operand.vmem [shape: bf16[1024,512], index: 2, kind: input, shape index: {}]
  %s3 = inlined_call_operand.vmem [shape: bf16[1024,512], index: 3, kind: input, shape index: {}]
  %s4 = inlined_call_operand.vmem [shape: bf16[1024,512], index: 4, kind: output, shape index: {}]
  %s5 = sld [smem:[#allocation0]]
  $region49: #{_lambda_.7} parent=0
    _
  %s7 = ssub.s32 1, %s5
  %s8 = scalar_select 0, %s7, %s5
  loop: start=0, step=1, limit=4
  $region2: #{_lambda_.7} parent=0 // loop_pre_header
    _
  $region3: #{_lambda_.7} parent=0 // loop_header
    %s10 = sphi 0, %s14
    %p11 = scmp.ge.s32.totalorder %s10, 4
    %s20 = sphi 0, %s22
    %s23 = sphi 0, %s20
    %s24 = sphi 0, %s23
    %s40 = sphi 0, %s24
    %s46 = sphi 0, %s48
    %s49 = sphi 0, %s46
    %s50 = sphi 0, %s49
    %s66 = sphi 0, %s50
    %s72 = sphi 0, %s74
    %s75 = sphi 0, %s72
    %s76 = sphi 0, %s75
    %s92 = sphi 0, %s76
    %s98 = sphi 0, %s100
    %s101 = sphi 0, %s98
    %s102 = sphi 0, %s101
    %s118 = sphi 0, %s102
    %s124 = sphi 0, %s126
    %s127 = sphi 0, %s124
    %s128 = sphi 0, %s127
    %s144 = sphi 0, %s128
  $region4: #{_lambda_.7} parent=0 // loop_header_branch
    %13 = sbr.rel (%p11) target = $region8
  $region5: #{_lambda_.7} parent=0 // loop_body
    %s15 = ssub.s32 %s10, 1
    %s16 = ssub.s32 %s10, 2
    %s17 = sadd.s32 %s10, 1
    %s18 = ssub.s32 %s10, %s17
    %p19 = scmp.eq.s32.totalorder %s18, 0
    %s21 = sadd.s32 %s20, 1
    %s22 = scalar_select %p19, %s20, %s21
    %p25 = pneg %p19
    %p26 = scmp.eq.s32.totalorder %s10, 1
    %p27 = por %p25, %p26
    %p28 = scmp.ne.s32.totalorder %s20, %s23
    %p29 = scmp.eq.s32.totalorder %s10, 0
    %p30 = por %p28, %p29
    %p31 = scmp.ne.s32.totalorder %s20, %s23
    %p32 = scmp.eq.s32.totalorder %s15, 1
    %p33 = por %p31, %p32
    %p34 = scmp.ne.s32.totalorder %s23, %s24
    %p35 = scmp.eq.s32.totalorder %s15, 0
    %p36 = por %p34, %p35
    %p37 = scmp.ne.s32.totalorder %s23, %s24
    %p38 = scmp.eq.s32.totalorder %s16, 1
    %p39 = por %p37, %p38
    %p41 = scmp.ne.s32.totalorder %s24, %s40
    %p42 = scmp.eq.s32.totalorder %s16, 0
    %p43 = por %p41, %p42
    %s44 = ssub.s32 %s10, %s17
    %p45 = scmp.eq.s32.totalorder %s44, 0
    %s47 = sadd.s32 %s46, 1
    %s48 = scalar_select %p45, %s46, %s47
    %p51 = pneg %p45
    %p52 = scmp.eq.s32.totalorder %s10, 1
    %p53 = por %p51, %p52
    %p54 = scmp.ne.s32.totalorder %s46, %s49
    %p55 = scmp.eq.s32.totalorder %s10, 0
    %p56 = por %p54, %p55
    %p57 = scmp.ne.s32.totalorder %s46, %s49
    %p58 = scmp.eq.s32.totalorder %s15, 1
    %p59 = por %p57, %p58
    %p60 = scmp.ne.s32.totalorder %s49, %s50
    %p61 = scmp.eq.s32.totalorder %s15, 0
    %p62 = por %p60, %p61
    %p63 = scmp.ne.s32.totalorder %s49, %s50
    %p64 = scmp.eq.s32.totalorder %s16, 1
    %p65 = por %p63, %p64
    %p67 = scmp.ne.s32.totalorder %s50, %s66
    %p68 = scmp.eq.s32.totalorder %s16, 0
    %p69 = por %p67, %p68
    %s70 = ssub.s32 %s10, %s17
    %p71 = scmp.eq.s32.totalorder %s70, 0
    %s73 = sadd.s32 %s72, 1
    %s74 = scalar_select %p71, %s72, %s73
    %p77 = pneg %p71
    %p78 = scmp.eq.s32.totalorder %s10, 1
    %p79 = por %p77, %p78
    %p80 = scmp.ne.s32.totalorder %s72, %s75
    %p81 = scmp.eq.s32.totalorder %s10, 0
    %p82 = por %p80, %p81
    %p83 = scmp.ne.s32.totalorder %s72, %s75
    %p84 = scmp.eq.s32.totalorder %s15, 1
    %p85 = por %p83, %p84
    %p86 = scmp.ne.s32.totalorder %s75, %s76
    %p87 = scmp.eq.s32.totalorder %s15, 0
    %p88 = por %p86, %p87
    %p89 = scmp.ne.s32.totalorder %s75, %s76
    %p90 = scmp.eq.s32.totalorder %s16, 1
    %p91 = por %p89, %p90
    %p93 = scmp.ne.s32.totalorder %s76, %s92
    %p94 = scmp.eq.s32.totalorder %s16, 0
    %p95 = por %p93, %p94
    %s96 = ssub.s32 %s10, %s17
    %p97 = scmp.eq.s32.totalorder %s96, 0
    %s99 = sadd.s32 %s98, 1
    %s100 = scalar_select %p97, %s98, %s99
    %p103 = pneg %p97
    %p104 = scmp.eq.s32.totalorder %s10, 1
    %p105 = por %p103, %p104
    %p106 = scmp.ne.s32.totalorder %s98, %s101
    %p107 = scmp.eq.s32.totalorder %s10, 0
    %p108 = por %p106, %p107
    %p109 = scmp.ne.s32.totalorder %s98, %s101
    %p110 = scmp.eq.s32.totalorder %s15, 1
    %p111 = por %p109, %p110
    %p112 = scmp.ne.s32.totalorder %s101, %s102
    %p113 = scmp.eq.s32.totalorder %s15, 0
    %p114 = por %p112, %p113
    %p115 = scmp.ne.s32.totalorder %s101, %s102
    %p116 = scmp.eq.s32.totalorder %s16, 1
    %p117 = por %p115, %p116
    %p119 = scmp.ne.s32.totalorder %s102, %s118
    %p120 = scmp.eq.s32.totalorder %s16, 0
    %p121 = por %p119, %p120
    %s122 = ssub.s32 %s10, %s17
    %p123 = scmp.eq.s32.totalorder %s122, 0
    %s125 = sadd.s32 %s124, 1
    %s126 = scalar_select %p123, %s124, %s125
    %p129 = pneg %p123
    %p130 = scmp.eq.s32.totalorder %s10, 1
    %p131 = por %p129, %p130
    %p132 = scmp.ne.s32.totalorder %s124, %s127
    %p133 = scmp.eq.s32.totalorder %s10, 0
    %p134 = por %p132, %p133
    %p135 = scmp.ne.s32.totalorder %s124, %s127
    %p136 = scmp.eq.s32.totalorder %s15, 1
    %p137 = por %p135, %p136
    %p138 = scmp.ne.s32.totalorder %s127, %s128
    %p139 = scmp.eq.s32.totalorder %s15, 0
    %p140 = por %p138, %p139
    %p141 = scmp.ne.s32.totalorder %s127, %s128
    %p142 = scmp.eq.s32.totalorder %s16, 1
    %p143 = por %p141, %p142
    %p145 = scmp.ne.s32.totalorder %s128, %s144
    %p146 = scmp.eq.s32.totalorder %s16, 0
    %p147 = por %p145, %p146
    %p148 = scmp.le.s32.totalorder 1, %s10
    %p149 = scmp.lt.s32.totalorder %s10, 3
    %p150 = pnand %p148, %p149
    %p151 = pneg %p150
    // Predicated region
    $region9: #{_lambda_.7} parent=5 // pred_check
      _
    $region10: #{_lambda_.7} parent=5 // pred_check_branch
      %153 = sbr.rel (%p150) target = $region12
    $region11: #{_lambda_.7} parent=5 // pred_region
      %s154 = ssub.s32 %s10, 1
    $region12: #{_lambda_.7} parent=5 // pred_fallthru
      _
    %p155 = scmp.lt.s32.totalorder %s10, 2
    // Predicated region
    $region13: #{_lambda_.7} parent=5 // pred_check
      %p156 = pneg %p155
    $region14: #{_lambda_.7} parent=5 // pred_check_branch
      %158 = sbr.rel (%p156) target = $region16
    $region15: #{_lambda_.7} parent=5 // pred_region
      // Predicated region
      $region17: #{_lambda_.7} parent=15 // pred_check
        %p159 = pneg %p30
      $region18: #{_lambda_.7} parent=15 // pred_check_branch
        %161 = sbr.rel (%p159) target = $region20
      $region19: #{_lambda_.7} parent=15 // pred_region
        %s162 = smul.u32 64, %s10
        %p163 = scmp.lt.s32.totalorder %s162, 127
        %s164 = scalar_select %p163, %s162, 127
        %s165 = smul.addr %s164, 4
        %s166 = smul.addr %s165, 4
        %s167 = scalar_lea.vmem %s0, %s166
        %s168 = smul.u32 64, %s10
      $region20: #{_lambda_.7} parent=15 // pred_fallthru
        _
      // Predicated region
      $region21: #{_lambda_.7} parent=15 // pred_check
        %p169 = pneg %p56
      $region22: #{_lambda_.7} parent=15 // pred_check_branch
        %171 = sbr.rel (%p169) target = $region24
      $region23: #{_lambda_.7} parent=15 // pred_region
        %s172 = smul.u32 64, %s10
        %p173 = scmp.lt.s32.totalorder %s172, 127
        %s174 = scalar_select %p173, %s172, 127
        %s175 = smul.addr %s174, 4
        %s176 = smul.addr %s175, 4
        %s177 = scalar_lea.vmem %s1, %s176
        %s178 = smul.u32 64, %s10
      $region24: #{_lambda_.7} parent=15 // pred_fallthru
        _
      // Predicated region
      $region25: #{_lambda_.7} parent=15 // pred_check
        %p179 = pneg %p82
      $region26: #{_lambda_.7} parent=15 // pred_check_branch
        %181 = sbr.rel (%p179) target = $region28
      $region27: #{_lambda_.7} parent=15 // pred_region
        %s182 = smul.u32 64, %s10
        %p183 = scmp.lt.s32.totalorder %s182, 127
        %s184 = scalar_select %p183, %s182, 127
        %s185 = smul.addr %s184, 4
        %s186 = smul.addr %s185, 4
        %s187 = scalar_lea.vmem %s2, %s186
        %s188 = smul.u32 64, %s10
      $region28: #{_lambda_.7} parent=15 // pred_fallthru
        _
      // Predicated region
      $region29: #{_lambda_.7} parent=15 // pred_check
        %p189 = pneg %p108
      $region30: #{_lambda_.7} parent=15 // pred_check_branch
        %191 = sbr.rel (%p189) target = $region32
      $region31: #{_lambda_.7} parent=15 // pred_region
        %s192 = smul.u32 64, %s10
        %p193 = scmp.lt.s32.totalorder %s192, 127
        %s194 = scalar_select %p193, %s192, 127
        %s195 = smul.addr %s194, 4
        %s196 = smul.addr %s195, 4
        %s197 = scalar_lea.vmem %s3, %s196
        %s198 = smul.u32 64, %s10
      $region32: #{_lambda_.7} parent=15 // pred_fallthru
        _
    $region16: #{_lambda_.7} parent=5 // pred_fallthru
      _
    %p199 = scmp.le.s32.totalorder 1, %s10
    %p200 = scmp.lt.s32.totalorder %s10, 3
    %p201 = pnand %p199, %p200
    %p202 = pneg %p201
    // Predicated region
    $region33: #{_lambda_.7} parent=5 // pred_check
      _
    $region34: #{_lambda_.7} parent=5 // pred_check_branch
      %204 = sbr.rel (%p201) target = $region36
    $region35: #{_lambda_.7} parent=5 // pred_region
      %s205 = ssub.s32 %s10, 1
      %s206 = smul.u32 64, %s15
      %p207 = scmp.lt.s32.totalorder %s206, 127
      %s208 = scalar_select %p207, %s206, 127
      %s209 = smul.addr %s208, 4
      %s210 = smul.addr %s209, 4
      %s211 = scalar_lea.vmem %s0, %s210
      %p212 = pneg %p36
      %p213 = pneg %p33
      %s214 = smul.u32 64, %s15
      %p215 = scmp.lt.s32.totalorder %s214, 127
      %s216 = scalar_select %p215, %s214, 127
      %s217 = smul.addr %s216, 4
      %s218 = smul.addr %s217, 4
      %s219 = scalar_lea.vmem %s1, %s218
      %p220 = pneg %p62
      %p221 = pneg %p59
      %s222 = smul.u32 64, %s15
      %p223 = scmp.lt.s32.totalorder %s222, 127
      %s224 = scalar_select %p223, %s222, 127
      %s225 = smul.addr %s224, 4
      %s226 = smul.addr %s225, 4
      %s227 = scalar_lea.vmem %s2, %s226
      %p228 = pneg %p88
      %p229 = pneg %p85
      %s230 = smul.u32 64, %s15
      %p231 = scmp.lt.s32.totalorder %s230, 127
      %s232 = scalar_select %p231, %s230, 127
      %s233 = smul.addr %s232, 4
      %s234 = smul.addr %s233, 4
      %s235 = scalar_lea.vmem %s3, %s234
      %p236 = pneg %p114
      %p237 = pneg %p111
      %p238 = pneg %p140
      %p239 = pneg %p137
      %s240 = smul.u32 64, %s15
      %p241 = scmp.lt.s32.totalorder %s240, 127
      %s242 = scalar_select %p241, %s240, 127
      %s243 = smul.addr %s242, 4
      %s244 = smul.addr %s243, 4
      %s245 = scalar_lea.vmem %s4, %s244
      %s246 = smul.u32 64, %s15
      %p247 = scmp.lt.s32.totalorder %s246, 127
      %s248 = scalar_select %p247, %s246, 127
      %s249 = smul.addr %s248, 4
      %s250 = smul.addr %s249, 4
      %s251 = scalar_lea.vmem %s0, %s250
      %s252 = smul.u32 64, %s15
      %s253 = smul.u32 64, %s15
      %p254 = scmp.lt.s32.totalorder %s253, 127
      %s255 = scalar_select %p254, %s253, 127
      %s256 = smul.addr %s255, 4
      %s257 = smul.addr %s256, 4
      %s258 = scalar_lea.vmem %s1, %s257
      %s259 = smul.u32 64, %s15
      %s260 = smul.u32 64, %s15
      %p261 = scmp.lt.s32.totalorder %s260, 127
      %s262 = scalar_select %p261, %s260, 127
      %s263 = smul.addr %s262, 4
      %s264 = smul.addr %s263, 4
      %s265 = scalar_lea.vmem %s2, %s264
      %s266 = smul.u32 64, %s15
      %s267 = smul.u32 64, %s15
      %p268 = scmp.lt.s32.totalorder %s267, 127
      %s269 = scalar_select %p268, %s267, 127
      %s270 = smul.addr %s269, 4
      %s271 = smul.addr %s270, 4
      %s272 = scalar_lea.vmem %s3, %s271
      %s273 = smul.u32 64, %s15
      %s274 = smul.u32 64, %s15
      %p275 = scmp.lt.s32.totalorder %s274, 127
      %s276 = scalar_select %p275, %s274, 127
      %s277 = smul.addr %s276, 4
      %s278 = smul.addr %s277, 4
      %s279 = scalar_lea.vmem %s4, %s278
      %s280 = smul.u32 64, %s15
      %v281 = vld [vmem:[%s251] sm:$0xff]
      %v282 = vld [vmem:[%s251 + $0x8] sm:$0xff]
      %v283 = vld [vmem:[%s251 + $0x10] sm:$0xff]
      %v284 = vld [vmem:[%s251 + $0x18] sm:$0xff]
      %v285 = vld [vmem:[%s251 + $0x20] sm:$0xff]
      %v286 = vld [vmem:[%s251 + $0x28] sm:$0xff]
      %v287 = vld [vmem:[%s251 + $0x30] sm:$0xff]
      %v288 = vld [vmem:[%s251 + $0x38] sm:$0xff]
      %v289 = vld [vmem:[%s251 + $0x40] sm:$0xff]
      %v290 = vld [vmem:[%s251 + $0x48] sm:$0xff]
      %v291 = vld [vmem:[%s251 + $0x50] sm:$0xff]
      %v292 = vld [vmem:[%s251 + $0x58] sm:$0xff]
      %v293 = vld [vmem:[%s251 + $0x60] sm:$0xff]
      %v294 = vld [vmem:[%s251 + $0x68] sm:$0xff]
      %v295 = vld [vmem:[%s251 + $0x70] sm:$0xff]
      %v296 = vld [vmem:[%s251 + $0x78] sm:$0xff]
      %v297 = vld [vmem:[%s251 + $0x80] sm:$0xff]
      %v298 = vld [vmem:[%s251 + $0x88] sm:$0xff]
      %v299 = vld [vmem:[%s251 + $0x90] sm:$0xff]
      %v300 = vld [vmem:[%s251 + $0x98] sm:$0xff]
      %v301 = vld [vmem:[%s251 + $0xa0] sm:$0xff]
      %v302 = vld [vmem:[%s251 + $0xa8] sm:$0xff]
      %v303 = vld [vmem:[%s251 + $0xb0] sm:$0xff]
      %v304 = vld [vmem:[%s251 + $0xb8] sm:$0xff]
      %v305 = vld [vmem:[%s251 + $0xc0] sm:$0xff]
      %v306 = vld [vmem:[%s251 + $0xc8] sm:$0xff]
      %v307 = vld [vmem:[%s251 + $0xd0] sm:$0xff]
      %v308 = vld [vmem:[%s251 + $0xd8] sm:$0xff]
      %v309 = vld [vmem:[%s251 + $0xe0] sm:$0xff]
      %v310 = vld [vmem:[%s251 + $0xe8] sm:$0xff]
      %v311 = vld [vmem:[%s251 + $0xf0] sm:$0xff]
      %v312 = vld [vmem:[%s251 + $0xf8] sm:$0xff]
      %v313 = vld [vmem:[%s251 + $0x100] sm:$0xff]
      %v314 = vld [vmem:[%s251 + $0x108] sm:$0xff]
      %v315 = vld [vmem:[%s251 + $0x110] sm:$0xff]
      %v316 = vld [vmem:[%s251 + $0x118] sm:$0xff]
      %v317 = vld [vmem:[%s251 + $0x120] sm:$0xff]
      %v318 = vld [vmem:[%s251 + $0x128] sm:$0xff]
      %v319 = vld [vmem:[%s251 + $0x130] sm:$0xff]
      %v320 = vld [vmem:[%s251 + $0x138] sm:$0xff]
      %v321 = vld [vmem:[%s251 + $0x140] sm:$0xff]
      %v322 = vld [vmem:[%s251 + $0x148] sm:$0xff]
      %v323 = vld [vmem:[%s251 + $0x150] sm:$0xff]
      %v324 = vld [vmem:[%s251 + $0x158] sm:$0xff]
      %v325 = vld [vmem:[%s251 + $0x160] sm:$0xff]
      %v326 = vld [vmem:[%s251 + $0x168] sm:$0xff]
      %v327 = vld [vmem:[%s251 + $0x170] sm:$0xff]
      %v328 = vld [vmem:[%s251 + $0x178] sm:$0xff]
      %v329 = vld [vmem:[%s251 + $0x180] sm:$0xff]
      %v330 = vld [vmem:[%s251 + $0x188] sm:$0xff]
      %v331 = vld [vmem:[%s251 + $0x190] sm:$0xff]
      %v332 = vld [vmem:[%s251 + $0x198] sm:$0xff]
      %v333 = vld [vmem:[%s251 + $0x1a0] sm:$0xff]
      %v334 = vld [vmem:[%s251 + $0x1a8] sm:$0xff]
      %v335 = vld [vmem:[%s251 + $0x1b0] sm:$0xff]
      %v336 = vld [vmem:[%s251 + $0x1b8] sm:$0xff]
      %v337 = vld [vmem:[%s251 + $0x1c0] sm:$0xff]
      %v338 = vld [vmem:[%s251 + $0x1c8] sm:$0xff]
      %v339 = vld [vmem:[%s251 + $0x1d0] sm:$0xff]
      %v340 = vld [vmem:[%s251 + $0x1d8] sm:$0xff]
      %v341 = vld [vmem:[%s251 + $0x1e0] sm:$0xff]
      %v342 = vld [vmem:[%s251 + $0x1e8] sm:$0xff]
      %v343 = vld [vmem:[%s251 + $0x1f0] sm:$0xff]
      %v344 = vld [vmem:[%s251 + $0x1f8] sm:$0xff]
      %v345 = vld [vmem:[%s251 + $0x200] sm:$0xff]
      %v346 = vld [vmem:[%s251 + $0x208] sm:$0xff]
      %v347 = vld [vmem:[%s251 + $0x210] sm:$0xff]
      %v348 = vld [vmem:[%s251 + $0x218] sm:$0xff]
      %v349 = vld [vmem:[%s251 + $0x220] sm:$0xff]
      %v350 = vld [vmem:[%s251 + $0x228] sm:$0xff]
      %v351 = vld [vmem:[%s251 + $0x230] sm:$0xff]
      %v352 = vld [vmem:[%s251 + $0x238] sm:$0xff]
      %v353 = vld [vmem:[%s251 + $0x240] sm:$0xff]
      %v354 = vld [vmem:[%s251 + $0x248] sm:$0xff]
      %v355 = vld [vmem:[%s251 + $0x250] sm:$0xff]
      %v356 = vld [vmem:[%s251 + $0x258] sm:$0xff]
      %v357 = vld [vmem:[%s251 + $0x260] sm:$0xff]
      %v358 = vld [vmem:[%s251 + $0x268] sm:$0xff]
      %v359 = vld [vmem:[%s251 + $0x270] sm:$0xff]
      %v360 = vld [vmem:[%s251 + $0x278] sm:$0xff]
      %v361 = vld [vmem:[%s251 + $0x280] sm:$0xff]
      %v362 = vld [vmem:[%s251 + $0x288] sm:$0xff]
      %v363 = vld [vmem:[%s251 + $0x290] sm:$0xff]
      %v364 = vld [vmem:[%s251 + $0x298] sm:$0xff]
      %v365 = vld [vmem:[%s251 + $0x2a0] sm:$0xff]
      %v366 = vld [vmem:[%s251 + $0x2a8] sm:$0xff]
      %v367 = vld [vmem:[%s251 + $0x2b0] sm:$0xff]
      %v368 = vld [vmem:[%s251 + $0x2b8] sm:$0xff]
      %v369 = vld [vmem:[%s251 + $0x2c0] sm:$0xff]
      %v370 = vld [vmem:[%s251 + $0x2c8] sm:$0xff]
      %v371 = vld [vmem:[%s251 + $0x2d0] sm:$0xff]
      %v372 = vld [vmem:[%s251 + $0x2d8] sm:$0xff]
      %v373 = vld [vmem:[%s251 + $0x2e0] sm:$0xff]
      %v374 = vld [vmem:[%s251 + $0x2e8] sm:$0xff]
      %v375 = vld [vmem:[%s251 + $0x2f0] sm:$0xff]
      %v376 = vld [vmem:[%s251 + $0x2f8] sm:$0xff]
      %v377 = vld [vmem:[%s251 + $0x300] sm:$0xff]
      %v378 = vld [vmem:[%s251 + $0x308] sm:$0xff]
      %v379 = vld [vmem:[%s251 + $0x310] sm:$0xff]
      %v380 = vld [vmem:[%s251 + $0x318] sm:$0xff]
      %v381 = vld [vmem:[%s251 + $0x320] sm:$0xff]
      %v382 = vld [vmem:[%s251 + $0x328] sm:$0xff]
      %v383 = vld [vmem:[%s251 + $0x330] sm:$0xff]
      %v384 = vld [vmem:[%s251 + $0x338] sm:$0xff]
      %v385 = vld [vmem:[%s251 + $0x340] sm:$0xff]
      %v386 = vld [vmem:[%s251 + $0x348] sm:$0xff]
      %v387 = vld [vmem:[%s251 + $0x350] sm:$0xff]
      %v388 = vld [vmem:[%s251 + $0x358] sm:$0xff]
      %v389 = vld [vmem:[%s251 + $0x360] sm:$0xff]
      %v390 = vld [vmem:[%s251 + $0x368] sm:$0xff]
      %v391 = vld [vmem:[%s251 + $0x370] sm:$0xff]
      %v392 = vld [vmem:[%s251 + $0x378] sm:$0xff]
      %v393 = vld [vmem:[%s251 + $0x380] sm:$0xff]
      %v394 = vld [vmem:[%s251 + $0x388] sm:$0xff]
      %v395 = vld [vmem:[%s251 + $0x390] sm:$0xff]
      %v396 = vld [vmem:[%s251 + $0x398] sm:$0xff]
      %v397 = vld [vmem:[%s251 + $0x3a0] sm:$0xff]
      %v398 = vld [vmem:[%s251 + $0x3a8] sm:$0xff]
      %v399 = vld [vmem:[%s251 + $0x3b0] sm:$0xff]
      %v400 = vld [vmem:[%s251 + $0x3b8] sm:$0xff]
      %v401 = vld [vmem:[%s251 + $0x3c0] sm:$0xff]
      %v402 = vld [vmem:[%s251 + $0x3c8] sm:$0xff]
      %v403 = vld [vmem:[%s251 + $0x3d0] sm:$0xff]
      %v404 = vld [vmem:[%s251 + $0x3d8] sm:$0xff]
      %v405 = vld [vmem:[%s251 + $0x3e0] sm:$0xff]
      %v406 = vld [vmem:[%s251 + $0x3e8] sm:$0xff]
      %v407 = vld [vmem:[%s251 + $0x3f0] sm:$0xff]
      %v408 = vld [vmem:[%s251 + $0x3f8] sm:$0xff]
      %v409 = vld [vmem:[%s258] sm:$0xff]
      %v410 = vld [vmem:[%s258 + $0x8] sm:$0xff]
      %v411 = vld [vmem:[%s258 + $0x10] sm:$0xff]
      %v412 = vld [vmem:[%s258 + $0x18] sm:$0xff]
      %v413 = vld [vmem:[%s258 + $0x20] sm:$0xff]
      %v414 = vld [vmem:[%s258 + $0x28] sm:$0xff]
      %v415 = vld [vmem:[%s258 + $0x30] sm:$0xff]
      %v416 = vld [vmem:[%s258 + $0x38] sm:$0xff]
      %v417 = vld [vmem:[%s258 + $0x40] sm:$0xff]
      %v418 = vld [vmem:[%s258 + $0x48] sm:$0xff]
      %v419 = vld [vmem:[%s258 + $0x50] sm:$0xff]
      %v420 = vld [vmem:[%s258 + $0x58] sm:$0xff]
      %v421 = vld [vmem:[%s258 + $0x60] sm:$0xff]
      %v422 = vld [vmem:[%s258 + $0x68] sm:$0xff]
      %v423 = vld [vmem:[%s258 + $0x70] sm:$0xff]
      %v424 = vld [vmem:[%s258 + $0x78] sm:$0xff]
      %v425 = vld [vmem:[%s258 + $0x80] sm:$0xff]
      %v426 = vld [vmem:[%s258 + $0x88] sm:$0xff]
      %v427 = vld [vmem:[%s258 + $0x90] sm:$0xff]
      %v428 = vld [vmem:[%s258 + $0x98] sm:$0xff]
      %v429 = vld [vmem:[%s258 + $0xa0] sm:$0xff]
      %v430 = vld [vmem:[%s258 + $0xa8] sm:$0xff]
      %v431 = vld [vmem:[%s258 + $0xb0] sm:$0xff]
      %v432 = vld [vmem:[%s258 + $0xb8] sm:$0xff]
      %v433 = vld [vmem:[%s258 + $0xc0] sm:$0xff]
      %v434 = vld [vmem:[%s258 + $0xc8] sm:$0xff]
      %v435 = vld [vmem:[%s258 + $0xd0] sm:$0xff]
      %v436 = vld [vmem:[%s258 + $0xd8] sm:$0xff]
      %v437 = vld [vmem:[%s258 + $0xe0] sm:$0xff]
      %v438 = vld [vmem:[%s258 + $0xe8] sm:$0xff]
      %v439 = vld [vmem:[%s258 + $0xf0] sm:$0xff]
      %v440 = vld [vmem:[%s258 + $0xf8] sm:$0xff]
      %v441 = vld [vmem:[%s258 + $0x100] sm:$0xff]
      %v442 = vld [vmem:[%s258 + $0x108] sm:$0xff]
      %v443 = vld [vmem:[%s258 + $0x110] sm:$0xff]
      %v444 = vld [vmem:[%s258 + $0x118] sm:$0xff]
      %v445 = vld [vmem:[%s258 + $0x120] sm:$0xff]
      %v446 = vld [vmem:[%s258 + $0x128] sm:$0xff]
      %v447 = vld [vmem:[%s258 + $0x130] sm:$0xff]
      %v448 = vld [vmem:[%s258 + $0x138] sm:$0xff]
      %v449 = vld [vmem:[%s258 + $0x140] sm:$0xff]
      %v450 = vld [vmem:[%s258 + $0x148] sm:$0xff]
      %v451 = vld [vmem:[%s258 + $0x150] sm:$0xff]
      %v452 = vld [vmem:[%s258 + $0x158] sm:$0xff]
      %v453 = vld [vmem:[%s258 + $0x160] sm:$0xff]
      %v454 = vld [vmem:[%s258 + $0x168] sm:$0xff]
      %v455 = vld [vmem:[%s258 + $0x170] sm:$0xff]
      %v456 = vld [vmem:[%s258 + $0x178] sm:$0xff]
      %v457 = vld [vmem:[%s258 + $0x180] sm:$0xff]
      %v458 = vld [vmem:[%s258 + $0x188] sm:$0xff]
      %v459 = vld [vmem:[%s258 + $0x190] sm:$0xff]
      %v460 = vld [vmem:[%s258 + $0x198] sm:$0xff]
      %v461 = vld [vmem:[%s258 + $0x1a0] sm:$0xff]
      %v462 = vld [vmem:[%s258 + $0x1a8] sm:$0xff]
      %v463 = vld [vmem:[%s258 + $0x1b0] sm:$0xff]
      %v464 = vld [vmem:[%s258 + $0x1b8] sm:$0xff]
      %v465 = vld [vmem:[%s258 + $0x1c0] sm:$0xff]
      %v466 = vld [vmem:[%s258 + $0x1c8] sm:$0xff]
      %v467 = vld [vmem:[%s258 + $0x1d0] sm:$0xff]
      %v468 = vld [vmem:[%s258 + $0x1d8] sm:$0xff]
      %v469 = vld [vmem:[%s258 + $0x1e0] sm:$0xff]
      %v470 = vld [vmem:[%s258 + $0x1e8] sm:$0xff]
      %v471 = vld [vmem:[%s258 + $0x1f0] sm:$0xff]
      %v472 = vld [vmem:[%s258 + $0x1f8] sm:$0xff]
      %v473 = vld [vmem:[%s258 + $0x200] sm:$0xff]
      %v474 = vld [vmem:[%s258 + $0x208] sm:$0xff]
      %v475 = vld [vmem:[%s258 + $0x210] sm:$0xff]
      %v476 = vld [vmem:[%s258 + $0x218] sm:$0xff]
      %v477 = vld [vmem:[%s258 + $0x220] sm:$0xff]
      %v478 = vld [vmem:[%s258 + $0x228] sm:$0xff]
      %v479 = vld [vmem:[%s258 + $0x230] sm:$0xff]
      %v480 = vld [vmem:[%s258 + $0x238] sm:$0xff]
      %v481 = vld [vmem:[%s258 + $0x240] sm:$0xff]
      %v482 = vld [vmem:[%s258 + $0x248] sm:$0xff]
      %v483 = vld [vmem:[%s258 + $0x250] sm:$0xff]
      %v484 = vld [vmem:[%s258 + $0x258] sm:$0xff]
      %v485 = vld [vmem:[%s258 + $0x260] sm:$0xff]
      %v486 = vld [vmem:[%s258 + $0x268] sm:$0xff]
      %v487 = vld [vmem:[%s258 + $0x270] sm:$0xff]
      %v488 = vld [vmem:[%s258 + $0x278] sm:$0xff]
      %v489 = vld [vmem:[%s258 + $0x280] sm:$0xff]
      %v490 = vld [vmem:[%s258 + $0x288] sm:$0xff]
      %v491 = vld [vmem:[%s258 + $0x290] sm:$0xff]
      %v492 = vld [vmem:[%s258 + $0x298] sm:$0xff]
      %v493 = vld [vmem:[%s258 + $0x2a0] sm:$0xff]
      %v494 = vld [vmem:[%s258 + $0x2a8] sm:$0xff]
      %v495 = vld [vmem:[%s258 + $0x2b0] sm:$0xff]
      %v496 = vld [vmem:[%s258 + $0x2b8] sm:$0xff]
      %v497 = vld [vmem:[%s258 + $0x2c0] sm:$0xff]
      %v498 = vld [vmem:[%s258 + $0x2c8] sm:$0xff]
      %v499 = vld [vmem:[%s258 + $0x2d0] sm:$0xff]
      %v500 = vld [vmem:[%s258 + $0x2d8] sm:$0xff]
      %v501 = vld [vmem:[%s258 + $0x2e0] sm:$0xff]
      %v502 = vld [vmem:[%s258 + $0x2e8] sm:$0xff]
      %v503 = vld [vmem:[%s258 + $0x2f0] sm:$0xff]
      %v504 = vld [vmem:[%s258 + $0x2f8] sm:$0xff]
      %v505 = vld [vmem:[%s258 + $0x300] sm:$0xff]
      %v506 = vld [vmem:[%s258 + $0x308] sm:$0xff]
      %v507 = vld [vmem:[%s258 + $0x310] sm:$0xff]
      %v508 = vld [vmem:[%s258 + $0x318] sm:$0xff]
      %v509 = vld [vmem:[%s258 + $0x320] sm:$0xff]
      %v510 = vld [vmem:[%s258 + $0x328] sm:$0xff]
      %v511 = vld [vmem:[%s258 + $0x330] sm:$0xff]
      %v512 = vld [vmem:[%s258 + $0x338] sm:$0xff]
      %v513 = vld [vmem:[%s258 + $0x340] sm:$0xff]
      %v514 = vld [vmem:[%s258 + $0x348] sm:$0xff]
      %v515 = vld [vmem:[%s258 + $0x350] sm:$0xff]
      %v516 = vld [vmem:[%s258 + $0x358] sm:$0xff]
      %v517 = vld [vmem:[%s258 + $0x360] sm:$0xff]
      %v518 = vld [vmem:[%s258 + $0x368] sm:$0xff]
      %v519 = vld [vmem:[%s258 + $0x370] sm:$0xff]
      %v520 = vld [vmem:[%s258 + $0x378] sm:$0xff]
      %v521 = vld [vmem:[%s258 + $0x380] sm:$0xff]
      %v522 = vld [vmem:[%s258 + $0x388] sm:$0xff]
      %v523 = vld [vmem:[%s258 + $0x390] sm:$0xff]
      %v524 = vld [vmem:[%s258 + $0x398] sm:$0xff]
      %v525 = vld [vmem:[%s258 + $0x3a0] sm:$0xff]
      %v526 = vld [vmem:[%s258 + $0x3a8] sm:$0xff]
      %v527 = vld [vmem:[%s258 + $0x3b0] sm:$0xff]
      %v528 = vld [vmem:[%s258 + $0x3b8] sm:$0xff]
      %v529 = vld [vmem:[%s258 + $0x3c0] sm:$0xff]
      %v530 = vld [vmem:[%s258 + $0x3c8] sm:$0xff]
      %v531 = vld [vmem:[%s258 + $0x3d0] sm:$0xff]
      %v532 = vld [vmem:[%s258 + $0x3d8] sm:$0xff]
      %v533 = vld [vmem:[%s258 + $0x3e0] sm:$0xff]
      %v534 = vld [vmem:[%s258 + $0x3e8] sm:$0xff]
      %v535 = vld [vmem:[%s258 + $0x3f0] sm:$0xff]
      %v536 = vld [vmem:[%s258 + $0x3f8] sm:$0xff]
      %v537 = vmax.bf16 %v281, %v409
      %v538 = vmax.bf16 %v282, %v410
      %v539 = vmax.bf16 %v283, %v411
      %v540 = vmax.bf16 %v284, %v412
      %v541 = vmax.bf16 %v285, %v413
      %v542 = vmax.bf16 %v286, %v414
      %v543 = vmax.bf16 %v287, %v415
      %v544 = vmax.bf16 %v288, %v416
      %v545 = vmax.bf16 %v289, %v417
      %v546 = vmax.bf16 %v290, %v418
      %v547 = vmax.bf16 %v291, %v419
      %v548 = vmax.bf16 %v292, %v420
      %v549 = vmax.bf16 %v293, %v421
      %v550 = vmax.bf16 %v294, %v422
      %v551 = vmax.bf16 %v295, %v423
      %v552 = vmax.bf16 %v296, %v424
      %v553 = vmax.bf16 %v297, %v425
      %v554 = vmax.bf16 %v298, %v426
      %v555 = vmax.bf16 %v299, %v427
      %v556 = vmax.bf16 %v300, %v428
      %v557 = vmax.bf16 %v301, %v429
      %v558 = vmax.bf16 %v302, %v430
      %v559 = vmax.bf16 %v303, %v431
      %v560 = vmax.bf16 %v304, %v432
      %v561 = vmax.bf16 %v305, %v433
      %v562 = vmax.bf16 %v306, %v434
      %v563 = vmax.bf16 %v307, %v435
      %v564 = vmax.bf16 %v308, %v436
      %v565 = vmax.bf16 %v309, %v437
      %v566 = vmax.bf16 %v310, %v438
      %v567 = vmax.bf16 %v311, %v439
      %v568 = vmax.bf16 %v312, %v440
      %v569 = vmax.bf16 %v313, %v441
      %v570 = vmax.bf16 %v314, %v442
      %v571 = vmax.bf16 %v315, %v443
      %v572 = vmax.bf16 %v316, %v444
      %v573 = vmax.bf16 %v317, %v445
      %v574 = vmax.bf16 %v318, %v446
      %v575 = vmax.bf16 %v319, %v447
      %v576 = vmax.bf16 %v320, %v448
      %v577 = vmax.bf16 %v321, %v449
      %v578 = vmax.bf16 %v322, %v450
      %v579 = vmax.bf16 %v323, %v451
      %v580 = vmax.bf16 %v324, %v452
      %v581 = vmax.bf16 %v325, %v453
      %v582 = vmax.bf16 %v326, %v454
      %v583 = vmax.bf16 %v327, %v455
      %v584 = vmax.bf16 %v328, %v456
      %v585 = vmax.bf16 %v329, %v457
      %v586 = vmax.bf16 %v330, %v458
      %v587 = vmax.bf16 %v331, %v459
      %v588 = vmax.bf16 %v332, %v460
      %v589 = vmax.bf16 %v333, %v461
      %v590 = vmax.bf16 %v334, %v462
      %v591 = vmax.bf16 %v335, %v463
      %v592 = vmax.bf16 %v336, %v464
      %v593 = vmax.bf16 %v337, %v465
      %v594 = vmax.bf16 %v338, %v466
      %v595 = vmax.bf16 %v339, %v467
      %v596 = vmax.bf16 %v340, %v468
      %v597 = vmax.bf16 %v341, %v469
      %v598 = vmax.bf16 %v342, %v470
      %v599 = vmax.bf16 %v343, %v471
      %v600 = vmax.bf16 %v344, %v472
      %v601 = vmax.bf16 %v345, %v473
      %v602 = vmax.bf16 %v346, %v474
      %v603 = vmax.bf16 %v347, %v475
      %v604 = vmax.bf16 %v348, %v476
      %v605 = vmax.bf16 %v349, %v477
      %v606 = vmax.bf16 %v350, %v478
      %v607 = vmax.bf16 %v351, %v479
      %v608 = vmax.bf16 %v352, %v480
      %v609 = vmax.bf16 %v353, %v481
      %v610 = vmax.bf16 %v354, %v482
      %v611 = vmax.bf16 %v355, %v483
      %v612 = vmax.bf16 %v356, %v484
      %v613 = vmax.bf16 %v357, %v485
      %v614 = vmax.bf16 %v358, %v486
      %v615 = vmax.bf16 %v359, %v487
      %v616 = vmax.bf16 %v360, %v488
      %v617 = vmax.bf16 %v361, %v489
      %v618 = vmax.bf16 %v362, %v490
      %v619 = vmax.bf16 %v363, %v491
      %v620 = vmax.bf16 %v364, %v492
      %v621 = vmax.bf16 %v365, %v493
      %v622 = vmax.bf16 %v366, %v494
      %v623 = vmax.bf16 %v367, %v495
      %v624 = vmax.bf16 %v368, %v496
      %v625 = vmax.bf16 %v369, %v497
      %v626 = vmax.bf16 %v370, %v498
      %v627 = vmax.bf16 %v371, %v499
      %v628 = vmax.bf16 %v372, %v500
      %v629 = vmax.bf16 %v373, %v501
      %v630 = vmax.bf16 %v374, %v502
      %v631 = vmax.bf16 %v375, %v503
      %v632 = vmax.bf16 %v376, %v504
      %v633 = vmax.bf16 %v377, %v505
      %v634 = vmax.bf16 %v378, %v506
      %v635 = vmax.bf16 %v379, %v507
      %v636 = vmax.bf16 %v380, %v508
      %v637 = vmax.bf16 %v381, %v509
      %v638 = vmax.bf16 %v382, %v510
      %v639 = vmax.bf16 %v383, %v511
      %v640 = vmax.bf16 %v384, %v512
      %v641 = vmax.bf16 %v385, %v513
      %v642 = vmax.bf16 %v386, %v514
      %v643 = vmax.bf16 %v387, %v515
      %v644 = vmax.bf16 %v388, %v516
      %v645 = vmax.bf16 %v389, %v517
      %v646 = vmax.bf16 %v390, %v518
      %v647 = vmax.bf16 %v391, %v519
      %v648 = vmax.bf16 %v392, %v520
      %v649 = vmax.bf16 %v393, %v521
      %v650 = vmax.bf16 %v394, %v522
      %v651 = vmax.bf16 %v395, %v523
      %v652 = vmax.bf16 %v396, %v524
      %v653 = vmax.bf16 %v397, %v525
      %v654 = vmax.bf16 %v398, %v526
      %v655 = vmax.bf16 %v399, %v527
      %v656 = vmax.bf16 %v400, %v528
      %v657 = vmax.bf16 %v401, %v529
      %v658 = vmax.bf16 %v402, %v530
      %v659 = vmax.bf16 %v403, %v531
      %v660 = vmax.bf16 %v404, %v532
      %v661 = vmax.bf16 %v405, %v533
      %v662 = vmax.bf16 %v406, %v534
      %v663 = vmax.bf16 %v407, %v535
      %v664 = vmax.bf16 %v408, %v536
      %v665 = vld [vmem:[%s265] sm:$0xff]
      %v666 = vld [vmem:[%s265 + $0x8] sm:$0xff]
      %v667 = vld [vmem:[%s265 + $0x10] sm:$0xff]
      %v668 = vld [vmem:[%s265 + $0x18] sm:$0xff]
      %v669 = vld [vmem:[%s265 + $0x20] sm:$0xff]
      %v670 = vld [vmem:[%s265 + $0x28] sm:$0xff]
      %v671 = vld [vmem:[%s265 + $0x30] sm:$0xff]
      %v672 = vld [vmem:[%s265 + $0x38] sm:$0xff]
      %v673 = vld [vmem:[%s265 + $0x40] sm:$0xff]
      %v674 = vld [vmem:[%s265 + $0x48] sm:$0xff]
      %v675 = vld [vmem:[%s265 + $0x50] sm:$0xff]
      %v676 = vld [vmem:[%s265 + $0x58] sm:$0xff]
      %v677 = vld [vmem:[%s265 + $0x60] sm:$0xff]
      %v678 = vld [vmem:[%s265 + $0x68] sm:$0xff]
      %v679 = vld [vmem:[%s265 + $0x70] sm:$0xff]
      %v680 = vld [vmem:[%s265 + $0x78] sm:$0xff]
      %v681 = vld [vmem:[%s265 + $0x80] sm:$0xff]
      %v682 = vld [vmem:[%s265 + $0x88] sm:$0xff]
      %v683 = vld [vmem:[%s265 + $0x90] sm:$0xff]
      %v684 = vld [vmem:[%s265 + $0x98] sm:$0xff]
      %v685 = vld [vmem:[%s265 + $0xa0] sm:$0xff]
      %v686 = vld [vmem:[%s265 + $0xa8] sm:$0xff]
      %v687 = vld [vmem:[%s265 + $0xb0] sm:$0xff]
      %v688 = vld [vmem:[%s265 + $0xb8] sm:$0xff]
      %v689 = vld [vmem:[%s265 + $0xc0] sm:$0xff]
      %v690 = vld [vmem:[%s265 + $0xc8] sm:$0xff]
      %v691 = vld [vmem:[%s265 + $0xd0] sm:$0xff]
      %v692 = vld [vmem:[%s265 + $0xd8] sm:$0xff]
      %v693 = vld [vmem:[%s265 + $0xe0] sm:$0xff]
      %v694 = vld [vmem:[%s265 + $0xe8] sm:$0xff]
      %v695 = vld [vmem:[%s265 + $0xf0] sm:$0xff]
      %v696 = vld [vmem:[%s265 + $0xf8] sm:$0xff]
      %v697 = vld [vmem:[%s265 + $0x100] sm:$0xff]
      %v698 = vld [vmem:[%s265 + $0x108] sm:$0xff]
      %v699 = vld [vmem:[%s265 + $0x110] sm:$0xff]
      %v700 = vld [vmem:[%s265 + $0x118] sm:$0xff]
      %v701 = vld [vmem:[%s265 + $0x120] sm:$0xff]
      %v702 = vld [vmem:[%s265 + $0x128] sm:$0xff]
      %v703 = vld [vmem:[%s265 + $0x130] sm:$0xff]
      %v704 = vld [vmem:[%s265 + $0x138] sm:$0xff]
      %v705 = vld [vmem:[%s265 + $0x140] sm:$0xff]
      %v706 = vld [vmem:[%s265 + $0x148] sm:$0xff]
      %v707 = vld [vmem:[%s265 + $0x150] sm:$0xff]
      %v708 = vld [vmem:[%s265 + $0x158] sm:$0xff]
      %v709 = vld [vmem:[%s265 + $0x160] sm:$0xff]
      %v710 = vld [vmem:[%s265 + $0x168] sm:$0xff]
      %v711 = vld [vmem:[%s265 + $0x170] sm:$0xff]
      %v712 = vld [vmem:[%s265 + $0x178] sm:$0xff]
      %v713 = vld [vmem:[%s265 + $0x180] sm:$0xff]
      %v714 = vld [vmem:[%s265 + $0x188] sm:$0xff]
      %v715 = vld [vmem:[%s265 + $0x190] sm:$0xff]
      %v716 = vld [vmem:[%s265 + $0x198] sm:$0xff]
      %v717 = vld [vmem:[%s265 + $0x1a0] sm:$0xff]
      %v718 = vld [vmem:[%s265 + $0x1a8] sm:$0xff]
      %v719 = vld [vmem:[%s265 + $0x1b0] sm:$0xff]
      %v720 = vld [vmem:[%s265 + $0x1b8] sm:$0xff]
      %v721 = vld [vmem:[%s265 + $0x1c0] sm:$0xff]
      %v722 = vld [vmem:[%s265 + $0x1c8] sm:$0xff]
      %v723 = vld [vmem:[%s265 + $0x1d0] sm:$0xff]
      %v724 = vld [vmem:[%s265 + $0x1d8] sm:$0xff]
      %v725 = vld [vmem:[%s265 + $0x1e0] sm:$0xff]
      %v726 = vld [vmem:[%s265 + $0x1e8] sm:$0xff]
      %v727 = vld [vmem:[%s265 + $0x1f0] sm:$0xff]
      %v728 = vld [vmem:[%s265 + $0x1f8] sm:$0xff]
      %v729 = vld [vmem:[%s265 + $0x200] sm:$0xff]
      %v730 = vld [vmem:[%s265 + $0x208] sm:$0xff]
      %v731 = vld [vmem:[%s265 + $0x210] sm:$0xff]
      %v732 = vld [vmem:[%s265 + $0x218] sm:$0xff]
      %v733 = vld [vmem:[%s265 + $0x220] sm:$0xff]
      %v734 = vld [vmem:[%s265 + $0x228] sm:$0xff]
      %v735 = vld [vmem:[%s265 + $0x230] sm:$0xff]
      %v736 = vld [vmem:[%s265 + $0x238] sm:$0xff]
      %v737 = vld [vmem:[%s265 + $0x240] sm:$0xff]
      %v738 = vld [vmem:[%s265 + $0x248] sm:$0xff]
      %v739 = vld [vmem:[%s265 + $0x250] sm:$0xff]
      %v740 = vld [vmem:[%s265 + $0x258] sm:$0xff]
      %v741 = vld [vmem:[%s265 + $0x260] sm:$0xff]
      %v742 = vld [vmem:[%s265 + $0x268] sm:$0xff]
      %v743 = vld [vmem:[%s265 + $0x270] sm:$0xff]
      %v744 = vld [vmem:[%s265 + $0x278] sm:$0xff]
      %v745 = vld [vmem:[%s265 + $0x280] sm:$0xff]
      %v746 = vld [vmem:[%s265 + $0x288] sm:$0xff]
      %v747 = vld [vmem:[%s265 + $0x290] sm:$0xff]
      %v748 = vld [vmem:[%s265 + $0x298] sm:$0xff]
      %v749 = vld [vmem:[%s265 + $0x2a0] sm:$0xff]
      %v750 = vld [vmem:[%s265 + $0x2a8] sm:$0xff]
      %v751 = vld [vmem:[%s265 + $0x2b0] sm:$0xff]
      %v752 = vld [vmem:[%s265 + $0x2b8] sm:$0xff]
      %v753 = vld [vmem:[%s265 + $0x2c0] sm:$0xff]
      %v754 = vld [vmem:[%s265 + $0x2c8] sm:$0xff]
      %v755 = vld [vmem:[%s265 + $0x2d0] sm:$0xff]
      %v756 = vld [vmem:[%s265 + $0x2d8] sm:$0xff]
      %v757 = vld [vmem:[%s265 + $0x2e0] sm:$0xff]
      %v758 = vld [vmem:[%s265 + $0x2e8] sm:$0xff]
      %v759 = vld [vmem:[%s265 + $0x2f0] sm:$0xff]
      %v760 = vld [vmem:[%s265 + $0x2f8] sm:$0xff]
      %v761 = vld [vmem:[%s265 + $0x300] sm:$0xff]
      %v762 = vld [vmem:[%s265 + $0x308] sm:$0xff]
      %v763 = vld [vmem:[%s265 + $0x310] sm:$0xff]
      %v764 = vld [vmem:[%s265 + $0x318] sm:$0xff]
      %v765 = vld [vmem:[%s265 + $0x320] sm:$0xff]
      %v766 = vld [vmem:[%s265 + $0x328] sm:$0xff]
      %v767 = vld [vmem:[%s265 + $0x330] sm:$0xff]
      %v768 = vld [vmem:[%s265 + $0x338] sm:$0xff]
      %v769 = vld [vmem:[%s265 + $0x340] sm:$0xff]
      %v770 = vld [vmem:[%s265 + $0x348] sm:$0xff]
      %v771 = vld [vmem:[%s265 + $0x350] sm:$0xff]
      %v772 = vld [vmem:[%s265 + $0x358] sm:$0xff]
      %v773 = vld [vmem:[%s265 + $0x360] sm:$0xff]
      %v774 = vld [vmem:[%s265 + $0x368] sm:$0xff]
      %v775 = vld [vmem:[%s265 + $0x370] sm:$0xff]
      %v776 = vld [vmem:[%s265 + $0x378] sm:$0xff]
      %v777 = vld [vmem:[%s265 + $0x380] sm:$0xff]
      %v778 = vld [vmem:[%s265 + $0x388] sm:$0xff]
      %v779 = vld [vmem:[%s265 + $0x390] sm:$0xff]
      %v780 = vld [vmem:[%s265 + $0x398] sm:$0xff]
      %v781 = vld [vmem:[%s265 + $0x3a0] sm:$0xff]
      %v782 = vld [vmem:[%s265 + $0x3a8] sm:$0xff]
      %v783 = vld [vmem:[%s265 + $0x3b0] sm:$0xff]
      %v784 = vld [vmem:[%s265 + $0x3b8] sm:$0xff]
      %v785 = vld [vmem:[%s265 + $0x3c0] sm:$0xff]
      %v786 = vld [vmem:[%s265 + $0x3c8] sm:$0xff]
      %v787 = vld [vmem:[%s265 + $0x3d0] sm:$0xff]
      %v788 = vld [vmem:[%s265 + $0x3d8] sm:$0xff]
      %v789 = vld [vmem:[%s265 + $0x3e0] sm:$0xff]
      %v790 = vld [vmem:[%s265 + $0x3e8] sm:$0xff]
      %v791 = vld [vmem:[%s265 + $0x3f0] sm:$0xff]
      %v792 = vld [vmem:[%s265 + $0x3f8] sm:$0xff]
      %v793 = vld [vmem:[%s272] sm:$0xff]
      %v794 = vld [vmem:[%s272 + $0x8] sm:$0xff]
      %v795 = vld [vmem:[%s272 + $0x10] sm:$0xff]
      %v796 = vld [vmem:[%s272 + $0x18] sm:$0xff]
      %v797 = vld [vmem:[%s272 + $0x20] sm:$0xff]
      %v798 = vld [vmem:[%s272 + $0x28] sm:$0xff]
      %v799 = vld [vmem:[%s272 + $0x30] sm:$0xff]
      %v800 = vld [vmem:[%s272 + $0x38] sm:$0xff]
      %v801 = vld [vmem:[%s272 + $0x40] sm:$0xff]
      %v802 = vld [vmem:[%s272 + $0x48] sm:$0xff]
      %v803 = vld [vmem:[%s272 + $0x50] sm:$0xff]
      %v804 = vld [vmem:[%s272 + $0x58] sm:$0xff]
      %v805 = vld [vmem:[%s272 + $0x60] sm:$0xff]
      %v806 = vld [vmem:[%s272 + $0x68] sm:$0xff]
      %v807 = vld [vmem:[%s272 + $0x70] sm:$0xff]
      %v808 = vld [vmem:[%s272 + $0x78] sm:$0xff]
      %v809 = vld [vmem:[%s272 + $0x80] sm:$0xff]
      %v810 = vld [vmem:[%s272 + $0x88] sm:$0xff]
      %v811 = vld [vmem:[%s272 + $0x90] sm:$0xff]
      %v812 = vld [vmem:[%s272 + $0x98] sm:$0xff]
      %v813 = vld [vmem:[%s272 + $0xa0] sm:$0xff]
      %v814 = vld [vmem:[%s272 + $0xa8] sm:$0xff]
      %v815 = vld [vmem:[%s272 + $0xb0] sm:$0xff]
      %v816 = vld [vmem:[%s272 + $0xb8] sm:$0xff]
      %v817 = vld [vmem:[%s272 + $0xc0] sm:$0xff]
      %v818 = vld [vmem:[%s272 + $0xc8] sm:$0xff]
      %v819 = vld [vmem:[%s272 + $0xd0] sm:$0xff]
      %v820 = vld [vmem:[%s272 + $0xd8] sm:$0xff]
      %v821 = vld [vmem:[%s272 + $0xe0] sm:$0xff]
      %v822 = vld [vmem:[%s272 + $0xe8] sm:$0xff]
      %v823 = vld [vmem:[%s272 + $0xf0] sm:$0xff]
      %v824 = vld [vmem:[%s272 + $0xf8] sm:$0xff]
      %v825 = vld [vmem:[%s272 + $0x100] sm:$0xff]
      %v826 = vld [vmem:[%s272 + $0x108] sm:$0xff]
      %v827 = vld [vmem:[%s272 + $0x110] sm:$0xff]
      %v828 = vld [vmem:[%s272 + $0x118] sm:$0xff]
      %v829 = vld [vmem:[%s272 + $0x120] sm:$0xff]
      %v830 = vld [vmem:[%s272 + $0x128] sm:$0xff]
      %v831 = vld [vmem:[%s272 + $0x130] sm:$0xff]
      %v832 = vld [vmem:[%s272 + $0x138] sm:$0xff]
      %v833 = vld [vmem:[%s272 + $0x140] sm:$0xff]
      %v834 = vld [vmem:[%s272 + $0x148] sm:$0xff]
      %v835 = vld [vmem:[%s272 + $0x150] sm:$0xff]
      %v836 = vld [vmem:[%s272 + $0x158] sm:$0xff]
      %v837 = vld [vmem:[%s272 + $0x160] sm:$0xff]
      %v838 = vld [vmem:[%s272 + $0x168] sm:$0xff]
      %v839 = vld [vmem:[%s272 + $0x170] sm:$0xff]
      %v840 = vld [vmem:[%s272 + $0x178] sm:$0xff]
      %v841 = vld [vmem:[%s272 + $0x180] sm:$0xff]
      %v842 = vld [vmem:[%s272 + $0x188] sm:$0xff]
      %v843 = vld [vmem:[%s272 + $0x190] sm:$0xff]
      %v844 = vld [vmem:[%s272 + $0x198] sm:$0xff]
      %v845 = vld [vmem:[%s272 + $0x1a0] sm:$0xff]
      %v846 = vld [vmem:[%s272 + $0x1a8] sm:$0xff]
      %v847 = vld [vmem:[%s272 + $0x1b0] sm:$0xff]
      %v848 = vld [vmem:[%s272 + $0x1b8] sm:$0xff]
      %v849 = vld [vmem:[%s272 + $0x1c0] sm:$0xff]
      %v850 = vld [vmem:[%s272 + $0x1c8] sm:$0xff]
      %v851 = vld [vmem:[%s272 + $0x1d0] sm:$0xff]
      %v852 = vld [vmem:[%s272 + $0x1d8] sm:$0xff]
      %v853 = vld [vmem:[%s272 + $0x1e0] sm:$0xff]
      %v854 = vld [vmem:[%s272 + $0x1e8] sm:$0xff]
      %v855 = vld [vmem:[%s272 + $0x1f0] sm:$0xff]
      %v856 = vld [vmem:[%s272 + $0x1f8] sm:$0xff]
      %v857 = vld [vmem:[%s272 + $0x200] sm:$0xff]
      %v858 = vld [vmem:[%s272 + $0x208] sm:$0xff]
      %v859 = vld [vmem:[%s272 + $0x210] sm:$0xff]
      %v860 = vld [vmem:[%s272 + $0x218] sm:$0xff]
      %v861 = vld [vmem:[%s272 + $0x220] sm:$0xff]
      %v862 = vld [vmem:[%s272 + $0x228] sm:$0xff]
      %v863 = vld [vmem:[%s272 + $0x230] sm:$0xff]
      %v864 = vld [vmem:[%s272 + $0x238] sm:$0xff]
      %v865 = vld [vmem:[%s272 + $0x240] sm:$0xff]
      %v866 = vld [vmem:[%s272 + $0x248] sm:$0xff]
      %v867 = vld [vmem:[%s272 + $0x250] sm:$0xff]
      %v868 = vld [vmem:[%s272 + $0x258] sm:$0xff]
      %v869 = vld [vmem:[%s272 + $0x260] sm:$0xff]
      %v870 = vld [vmem:[%s272 + $0x268] sm:$0xff]
      %v871 = vld [vmem:[%s272 + $0x270] sm:$0xff]
      %v872 = vld [vmem:[%s272 + $0x278] sm:$0xff]
      %v873 = vld [vmem:[%s272 + $0x280] sm:$0xff]
      %v874 = vld [vmem:[%s272 + $0x288] sm:$0xff]
      %v875 = vld [vmem:[%s272 + $0x290] sm:$0xff]
      %v876 = vld [vmem:[%s272 + $0x298] sm:$0xff]
      %v877 = vld [vmem:[%s272 + $0x2a0] sm:$0xff]
      %v878 = vld [vmem:[%s272 + $0x2a8] sm:$0xff]
      %v879 = vld [vmem:[%s272 + $0x2b0] sm:$0xff]
      %v880 = vld [vmem:[%s272 + $0x2b8] sm:$0xff]
      %v881 = vld [vmem:[%s272 + $0x2c0] sm:$0xff]
      %v882 = vld [vmem:[%s272 + $0x2c8] sm:$0xff]
      %v883 = vld [vmem:[%s272 + $0x2d0] sm:$0xff]
      %v884 = vld [vmem:[%s272 + $0x2d8] sm:$0xff]
      %v885 = vld [vmem:[%s272 + $0x2e0] sm:$0xff]
      %v886 = vld [vmem:[%s272 + $0x2e8] sm:$0xff]
      %v887 = vld [vmem:[%s272 + $0x2f0] sm:$0xff]
      %v888 = vld [vmem:[%s272 + $0x2f8] sm:$0xff]
      %v889 = vld [vmem:[%s272 + $0x300] sm:$0xff]
      %v890 = vld [vmem:[%s272 + $0x308] sm:$0xff]
      %v891 = vld [vmem:[%s272 + $0x310] sm:$0xff]
      %v892 = vld [vmem:[%s272 + $0x318] sm:$0xff]
      %v893 = vld [vmem:[%s272 + $0x320] sm:$0xff]
      %v894 = vld [vmem:[%s272 + $0x328] sm:$0xff]
      %v895 = vld [vmem:[%s272 + $0x330] sm:$0xff]
      %v896 = vld [vmem:[%s272 + $0x338] sm:$0xff]
      %v897 = vld [vmem:[%s272 + $0x340] sm:$0xff]
      %v898 = vld [vmem:[%s272 + $0x348] sm:$0xff]
      %v899 = vld [vmem:[%s272 + $0x350] sm:$0xff]
      %v900 = vld [vmem:[%s272 + $0x358] sm:$0xff]
      %v901 = vld [vmem:[%s272 + $0x360] sm:$0xff]
      %v902 = vld [vmem:[%s272 + $0x368] sm:$0xff]
      %v903 = vld [vmem:[%s272 + $0x370] sm:$0xff]
      %v904 = vld [vmem:[%s272 + $0x378] sm:$0xff]
      %v905 = vld [vmem:[%s272 + $0x380] sm:$0xff]
      %v906 = vld [vmem:[%s272 + $0x388] sm:$0xff]
      %v907 = vld [vmem:[%s272 + $0x390] sm:$0xff]
      %v908 = vld [vmem:[%s272 + $0x398] sm:$0xff]
      %v909 = vld [vmem:[%s272 + $0x3a0] sm:$0xff]
      %v910 = vld [vmem:[%s272 + $0x3a8] sm:$0xff]
      %v911 = vld [vmem:[%s272 + $0x3b0] sm:$0xff]
      %v912 = vld [vmem:[%s272 + $0x3b8] sm:$0xff]
      %v913 = vld [vmem:[%s272 + $0x3c0] sm:$0xff]
      %v914 = vld [vmem:[%s272 + $0x3c8] sm:$0xff]
      %v915 = vld [vmem:[%s272 + $0x3d0] sm:$0xff]
      %v916 = vld [vmem:[%s272 + $0x3d8] sm:$0xff]
      %v917 = vld [vmem:[%s272 + $0x3e0] sm:$0xff]
      %v918 = vld [vmem:[%s272 + $0x3e8] sm:$0xff]
      %v919 = vld [vmem:[%s272 + $0x3f0] sm:$0xff]
      %v920 = vld [vmem:[%s272 + $0x3f8] sm:$0xff]
      %v921 = vmax.bf16 %v665, %v793
      %v922 = vmax.bf16 %v666, %v794
      %v923 = vmax.bf16 %v667, %v795
      %v924 = vmax.bf16 %v668, %v796
      %v925 = vmax.bf16 %v669, %v797
      %v926 = vmax.bf16 %v670, %v798
      %v927 = vmax.bf16 %v671, %v799
      %v928 = vmax.bf16 %v672, %v800
      %v929 = vmax.bf16 %v673, %v801
      %v930 = vmax.bf16 %v674, %v802
      %v931 = vmax.bf16 %v675, %v803
      %v932 = vmax.bf16 %v676, %v804
      %v933 = vmax.bf16 %v677, %v805
      %v934 = vmax.bf16 %v678, %v806
      %v935 = vmax.bf16 %v679, %v807
      %v936 = vmax.bf16 %v680, %v808
      %v937 = vmax.bf16 %v681, %v809
      %v938 = vmax.bf16 %v682, %v810
      %v939 = vmax.bf16 %v683, %v811
      %v940 = vmax.bf16 %v684, %v812
      %v941 = vmax.bf16 %v685, %v813
      %v942 = vmax.bf16 %v686, %v814
      %v943 = vmax.bf16 %v687, %v815
      %v944 = vmax.bf16 %v688, %v816
      %v945 = vmax.bf16 %v689, %v817
      %v946 = vmax.bf16 %v690, %v818
      %v947 = vmax.bf16 %v691, %v819
      %v948 = vmax.bf16 %v692, %v820
      %v949 = vmax.bf16 %v693, %v821
      %v950 = vmax.bf16 %v694, %v822
      %v951 = vmax.bf16 %v695, %v823
      %v952 = vmax.bf16 %v696, %v824
      %v953 = vmax.bf16 %v697, %v825
      %v954 = vmax.bf16 %v698, %v826
      %v955 = vmax.bf16 %v699, %v827
      %v956 = vmax.bf16 %v700, %v828
      %v957 = vmax.bf16 %v701, %v829
      %v958 = vmax.bf16 %v702, %v830
      %v959 = vmax.bf16 %v703, %v831
      %v960 = vmax.bf16 %v704, %v832
      %v961 = vmax.bf16 %v705, %v833
      %v962 = vmax.bf16 %v706, %v834
      %v963 = vmax.bf16 %v707, %v835
      %v964 = vmax.bf16 %v708, %v836
      %v965 = vmax.bf16 %v709, %v837
      %v966 = vmax.bf16 %v710, %v838
      %v967 = vmax.bf16 %v711, %v839
      %v968 = vmax.bf16 %v712, %v840
      %v969 = vmax.bf16 %v713, %v841
      %v970 = vmax.bf16 %v714, %v842
      %v971 = vmax.bf16 %v715, %v843
      %v972 = vmax.bf16 %v716, %v844
      %v973 = vmax.bf16 %v717, %v845
      %v974 = vmax.bf16 %v718, %v846
      %v975 = vmax.bf16 %v719, %v847
      %v976 = vmax.bf16 %v720, %v848
      %v977 = vmax.bf16 %v721, %v849
      %v978 = vmax.bf16 %v722, %v850
      %v979 = vmax.bf16 %v723, %v851
      %v980 = vmax.bf16 %v724, %v852
      %v981 = vmax.bf16 %v725, %v853
      %v982 = vmax.bf16 %v726, %v854
      %v983 = vmax.bf16 %v727, %v855
      %v984 = vmax.bf16 %v728, %v856
      %v985 = vmax.bf16 %v729, %v857
      %v986 = vmax.bf16 %v730, %v858
      %v987 = vmax.bf16 %v731, %v859
      %v988 = vmax.bf16 %v732, %v860
      %v989 = vmax.bf16 %v733, %v861
      %v990 = vmax.bf16 %v734, %v862
      %v991 = vmax.bf16 %v735, %v863
      %v992 = vmax.bf16 %v736, %v864
      %v993 = vmax.bf16 %v737, %v865
      %v994 = vmax.bf16 %v738, %v866
      %v995 = vmax.bf16 %v739, %v867
      %v996 = vmax.bf16 %v740, %v868
      %v997 = vmax.bf16 %v741, %v869
      %v998 = vmax.bf16 %v742, %v870
      %v999 = vmax.bf16 %v743, %v871
      %v1000 = vmax.bf16 %v744, %v872
      %v1001 = vmax.bf16 %v745, %v873
      %v1002 = vmax.bf16 %v746, %v874
      %v1003 = vmax.bf16 %v747, %v875
      %v1004 = vmax.bf16 %v748, %v876
      %v1005 = vmax.bf16 %v749, %v877
      %v1006 = vmax.bf16 %v750, %v878
      %v1007 = vmax.bf16 %v751, %v879
      %v1008 = vmax.bf16 %v752, %v880
      %v1009 = vmax.bf16 %v753, %v881
      %v1010 = vmax.bf16 %v754, %v882
      %v1011 = vmax.bf16 %v755, %v883
      %v1012 = vmax.bf16 %v756, %v884
      %v1013 = vmax.bf16 %v757, %v885
      %v1014 = vmax.bf16 %v758, %v886
      %v1015 = vmax.bf16 %v759, %v887
      %v1016 = vmax.bf16 %v760, %v888
      %v1017 = vmax.bf16 %v761, %v889
      %v1018 = vmax.bf16 %v762, %v890
      %v1019 = vmax.bf16 %v763, %v891
      %v1020 = vmax.bf16 %v764, %v892
      %v1021 = vmax.bf16 %v765, %v893
      %v1022 = vmax.bf16 %v766, %v894
      %v1023 = vmax.bf16 %v767, %v895
      %v1024 = vmax.bf16 %v768, %v896
      %v1025 = vmax.bf16 %v769, %v897
      %v1026 = vmax.bf16 %v770, %v898
      %v1027 = vmax.bf16 %v771, %v899
      %v1028 = vmax.bf16 %v772, %v900
      %v1029 = vmax.bf16 %v773, %v901
      %v1030 = vmax.bf16 %v774, %v902
      %v1031 = vmax.bf16 %v775, %v903
      %v1032 = vmax.bf16 %v776, %v904
      %v1033 = vmax.bf16 %v777, %v905
      %v1034 = vmax.bf16 %v778, %v906
      %v1035 = vmax.bf16 %v779, %v907
      %v1036 = vmax.bf16 %v780, %v908
      %v1037 = vmax.bf16 %v781, %v909
      %v1038 = vmax.bf16 %v782, %v910
      %v1039 = vmax.bf16 %v783, %v911
      %v1040 = vmax.bf16 %v784, %v912
      %v1041 = vmax.bf16 %v785, %v913
      %v1042 = vmax.bf16 %v786, %v914
      %v1043 = vmax.bf16 %v787, %v915
      %v1044 = vmax.bf16 %v788, %v916
      %v1045 = vmax.bf16 %v789, %v917
      %v1046 = vmax.bf16 %v790, %v918
      %v1047 = vmax.bf16 %v791, %v919
      %v1048 = vmax.bf16 %v792, %v920
      %v1049 = vmax.bf16 %v537, %v921
      %v1050 = vmax.bf16 %v538, %v922
      %v1051 = vmax.bf16 %v539, %v923
      %v1052 = vmax.bf16 %v540, %v924
      %v1053 = vmax.bf16 %v541, %v925
      %v1054 = vmax.bf16 %v542, %v926
      %v1055 = vmax.bf16 %v543, %v927
      %v1056 = vmax.bf16 %v544, %v928
      %v1057 = vmax.bf16 %v545, %v929
      %v1058 = vmax.bf16 %v546, %v930
      %v1059 = vmax.bf16 %v547, %v931
      %v1060 = vmax.bf16 %v548, %v932
      %v1061 = vmax.bf16 %v549, %v933
      %v1062 = vmax.bf16 %v550, %v934
      %v1063 = vmax.bf16 %v551, %v935
      %v1064 = vmax.bf16 %v552, %v936
      %v1065 = vmax.bf16 %v553, %v937
      %v1066 = vmax.bf16 %v554, %v938
      %v1067 = vmax.bf16 %v555, %v939
      %v1068 = vmax.bf16 %v556, %v940
      %v1069 = vmax.bf16 %v557, %v941
      %v1070 = vmax.bf16 %v558, %v942
      %v1071 = vmax.bf16 %v559, %v943
      %v1072 = vmax.bf16 %v560, %v944
      %v1073 = vmax.bf16 %v561, %v945
      %v1074 = vmax.bf16 %v562, %v946
      %v1075 = vmax.bf16 %v563, %v947
      %v1076 = vmax.bf16 %v564, %v948
      %v1077 = vmax.bf16 %v565, %v949
      %v1078 = vmax.bf16 %v566, %v950
      %v1079 = vmax.bf16 %v567, %v951
      %v1080 = vmax.bf16 %v568, %v952
      %v1081 = vmax.bf16 %v569, %v953
      %v1082 = vmax.bf16 %v570, %v954
      %v1083 = vmax.bf16 %v571, %v955
      %v1084 = vmax.bf16 %v572, %v956
      %v1085 = vmax.bf16 %v573, %v957
      %v1086 = vmax.bf16 %v574, %v958
      %v1087 = vmax.bf16 %v575, %v959
      %v1088 = vmax.bf16 %v576, %v960
      %v1089 = vmax.bf16 %v577, %v961
      %v1090 = vmax.bf16 %v578, %v962
      %v1091 = vmax.bf16 %v579, %v963
      %v1092 = vmax.bf16 %v580, %v964
      %v1093 = vmax.bf16 %v581, %v965
      %v1094 = vmax.bf16 %v582, %v966
      %v1095 = vmax.bf16 %v583, %v967
      %v1096 = vmax.bf16 %v584, %v968
      %v1097 = vmax.bf16 %v585, %v969
      %v1098 = vmax.bf16 %v586, %v970
      %v1099 = vmax.bf16 %v587, %v971
      %v1100 = vmax.bf16 %v588, %v972
      %v1101 = vmax.bf16 %v589, %v973
      %v1102 = vmax.bf16 %v590, %v974
      %v1103 = vmax.bf16 %v591, %v975
      %v1104 = vmax.bf16 %v592, %v976
      %v1105 = vmax.bf16 %v593, %v977
      %v1106 = vmax.bf16 %v594, %v978
      %v1107 = vmax.bf16 %v595, %v979
      %v1108 = vmax.bf16 %v596, %v980
      %v1109 = vmax.bf16 %v597, %v981
      %v1110 = vmax.bf16 %v598, %v982
      %v1111 = vmax.bf16 %v599, %v983
      %v1112 = vmax.bf16 %v600, %v984
      %v1113 = vmax.bf16 %v601, %v985
      %v1114 = vmax.bf16 %v602, %v986
      %v1115 = vmax.bf16 %v603, %v987
      %v1116 = vmax.bf16 %v604, %v988
      %v1117 = vmax.bf16 %v605, %v989
      %v1118 = vmax.bf16 %v606, %v990
      %v1119 = vmax.bf16 %v607, %v991
      %v1120 = vmax.bf16 %v608, %v992
      %v1121 = vmax.bf16 %v609, %v993
      %v1122 = vmax.bf16 %v610, %v994
      %v1123 = vmax.bf16 %v611, %v995
      %v1124 = vmax.bf16 %v612, %v996
      %v1125 = vmax.bf16 %v613, %v997
      %v1126 = vmax.bf16 %v614, %v998
      %v1127 = vmax.bf16 %v615, %v999
      %v1128 = vmax.bf16 %v616, %v1000
      %v1129 = vmax.bf16 %v617, %v1001
      %v1130 = vmax.bf16 %v618, %v1002
      %v1131 = vmax.bf16 %v619, %v1003
      %v1132 = vmax.bf16 %v620, %v1004
      %v1133 = vmax.bf16 %v621, %v1005
      %v1134 = vmax.bf16 %v622, %v1006
      %v1135 = vmax.bf16 %v623, %v1007
      %v1136 = vmax.bf16 %v624, %v1008
      %v1137 = vmax.bf16 %v625, %v1009
      %v1138 = vmax.bf16 %v626, %v1010
      %v1139 = vmax.bf16 %v627, %v1011
      %v1140 = vmax.bf16 %v628, %v1012
      %v1141 = vmax.bf16 %v629, %v1013
      %v1142 = vmax.bf16 %v630, %v1014
      %v1143 = vmax.bf16 %v631, %v1015
      %v1144 = vmax.bf16 %v632, %v1016
      %v1145 = vmax.bf16 %v633, %v1017
      %v1146 = vmax.bf16 %v634, %v1018
      %v1147 = vmax.bf16 %v635, %v1019
      %v1148 = vmax.bf16 %v636, %v1020
      %v1149 = vmax.bf16 %v637, %v1021
      %v1150 = vmax.bf16 %v638, %v1022
      %v1151 = vmax.bf16 %v639, %v1023
      %v1152 = vmax.bf16 %v640, %v1024
      %v1153 = vmax.bf16 %v641, %v1025
      %v1154 = vmax.bf16 %v642, %v1026
      %v1155 = vmax.bf16 %v643, %v1027
      %v1156 = vmax.bf16 %v644, %v1028
      %v1157 = vmax.bf16 %v645, %v1029
      %v1158 = vmax.bf16 %v646, %v1030
      %v1159 = vmax.bf16 %v647, %v1031
      %v1160 = vmax.bf16 %v648, %v1032
      %v1161 = vmax.bf16 %v649, %v1033
      %v1162 = vmax.bf16 %v650, %v1034
      %v1163 = vmax.bf16 %v651, %v1035
      %v1164 = vmax.bf16 %v652, %v1036
      %v1165 = vmax.bf16 %v653, %v1037
      %v1166 = vmax.bf16 %v654, %v1038
      %v1167 = vmax.bf16 %v655, %v1039
      %v1168 = vmax.bf16 %v656, %v1040
      %v1169 = vmax.bf16 %v657, %v1041
      %v1170 = vmax.bf16 %v658, %v1042
      %v1171 = vmax.bf16 %v659, %v1043
      %v1172 = vmax.bf16 %v660, %v1044
      %v1173 = vmax.bf16 %v661, %v1045
      %v1174 = vmax.bf16 %v662, %v1046
      %v1175 = vmax.bf16 %v663, %v1047
      %v1176 = vmax.bf16 %v664, %v1048
      %1177 = vst [vmem:[%s279] sm:$0xff] %v1049
      %1178 = vst [vmem:[%s279 + $0x8] sm:$0xff] %v1050
      %1179 = vst [vmem:[%s279 + $0x10] sm:$0xff] %v1051
      %1180 = vst [vmem:[%s279 + $0x18] sm:$0xff] %v1052
      %1181 = vst [vmem:[%s279 + $0x20] sm:$0xff] %v1053
      %1182 = vst [vmem:[%s279 + $0x28] sm:$0xff] %v1054
      %1183 = vst [vmem:[%s279 + $0x30] sm:$0xff] %v1055
      %1184 = vst [vmem:[%s279 + $0x38] sm:$0xff] %v1056
      %1185 = vst [vmem:[%s279 + $0x40] sm:$0xff] %v1057
      %1186 = vst [vmem:[%s279 + $0x48] sm:$0xff] %v1058
      %1187 = vst [vmem:[%s279 + $0x50] sm:$0xff] %v1059
      %1188 = vst [vmem:[%s279 + $0x58] sm:$0xff] %v1060
      %1189 = vst [vmem:[%s279 + $0x60] sm:$0xff] %v1061
      %1190 = vst [vmem:[%s279 + $0x68] sm:$0xff] %v1062
      %1191 = vst [vmem:[%s279 + $0x70] sm:$0xff] %v1063
      %1192 = vst [vmem:[%s279 + $0x78] sm:$0xff] %v1064
      %1193 = vst [vmem:[%s279 + $0x80] sm:$0xff] %v1065
      %1194 = vst [vmem:[%s279 + $0x88] sm:$0xff] %v1066
      %1195 = vst [vmem:[%s279 + $0x90] sm:$0xff] %v1067
      %1196 = vst [vmem:[%s279 + $0x98] sm:$0xff] %v1068
      %1197 = vst [vmem:[%s279 + $0xa0] sm:$0xff] %v1069
      %1198 = vst [vmem:[%s279 + $0xa8] sm:$0xff] %v1070
      %1199 = vst [vmem:[%s279 + $0xb0] sm:$0xff] %v1071
      %1200 = vst [vmem:[%s279 + $0xb8] sm:$0xff] %v1072
      %1201 = vst [vmem:[%s279 + $0xc0] sm:$0xff] %v1073
      %1202 = vst [vmem:[%s279 + $0xc8] sm:$0xff] %v1074
      %1203 = vst [vmem:[%s279 + $0xd0] sm:$0xff] %v1075
      %1204 = vst [vmem:[%s279 + $0xd8] sm:$0xff] %v1076
      %1205 = vst [vmem:[%s279 + $0xe0] sm:$0xff] %v1077
      %1206 = vst [vmem:[%s279 + $0xe8] sm:$0xff] %v1078
      %1207 = vst [vmem:[%s279 + $0xf0] sm:$0xff] %v1079
      %1208 = vst [vmem:[%s279 + $0xf8] sm:$0xff] %v1080
      %1209 = vst [vmem:[%s279 + $0x100] sm:$0xff] %v1081
      %1210 = vst [vmem:[%s279 + $0x108] sm:$0xff] %v1082
      %1211 = vst [vmem:[%s279 + $0x110] sm:$0xff] %v1083
      %1212 = vst [vmem:[%s279 + $0x118] sm:$0xff] %v1084
      %1213 = vst [vmem:[%s279 + $0x120] sm:$0xff] %v1085
      %1214 = vst [vmem:[%s279 + $0x128] sm:$0xff] %v1086
      %1215 = vst [vmem:[%s279 + $0x130] sm:$0xff] %v1087
      %1216 = vst [vmem:[%s279 + $0x138] sm:$0xff] %v1088
      %1217 = vst [vmem:[%s279 + $0x140] sm:$0xff] %v1089
      %1218 = vst [vmem:[%s279 + $0x148] sm:$0xff] %v1090
      %1219 = vst [vmem:[%s279 + $0x150] sm:$0xff] %v1091
      %1220 = vst [vmem:[%s279 + $0x158] sm:$0xff] %v1092
      %1221 = vst [vmem:[%s279 + $0x160] sm:$0xff] %v1093
      %1222 = vst [vmem:[%s279 + $0x168] sm:$0xff] %v1094
      %1223 = vst [vmem:[%s279 + $0x170] sm:$0xff] %v1095
      %1224 = vst [vmem:[%s279 + $0x178] sm:$0xff] %v1096
      %1225 = vst [vmem:[%s279 + $0x180] sm:$0xff] %v1097
      %1226 = vst [vmem:[%s279 + $0x188] sm:$0xff] %v1098
      %1227 = vst [vmem:[%s279 + $0x190] sm:$0xff] %v1099
      %1228 = vst [vmem:[%s279 + $0x198] sm:$0xff] %v1100
      %1229 = vst [vmem:[%s279 + $0x1a0] sm:$0xff] %v1101
      %1230 = vst [vmem:[%s279 + $0x1a8] sm:$0xff] %v1102
      %1231 = vst [vmem:[%s279 + $0x1b0] sm:$0xff] %v1103
      %1232 = vst [vmem:[%s279 + $0x1b8] sm:$0xff] %v1104
      %1233 = vst [vmem:[%s279 + $0x1c0] sm:$0xff] %v1105
      %1234 = vst [vmem:[%s279 + $0x1c8] sm:$0xff] %v1106
      %1235 = vst [vmem:[%s279 + $0x1d0] sm:$0xff] %v1107
      %1236 = vst [vmem:[%s279 + $0x1d8] sm:$0xff] %v1108
      %1237 = vst [vmem:[%s279 + $0x1e0] sm:$0xff] %v1109
      %1238 = vst [vmem:[%s279 + $0x1e8] sm:$0xff] %v1110
      %1239 = vst [vmem:[%s279 + $0x1f0] sm:$0xff] %v1111
      %1240 = vst [vmem:[%s279 + $0x1f8] sm:$0xff] %v1112
      %1241 = vst [vmem:[%s279 + $0x200] sm:$0xff] %v1113
      %1242 = vst [vmem:[%s279 + $0x208] sm:$0xff] %v1114
      %1243 = vst [vmem:[%s279 + $0x210] sm:$0xff] %v1115
      %1244 = vst [vmem:[%s279 + $0x218] sm:$0xff] %v1116
      %1245 = vst [vmem:[%s279 + $0x220] sm:$0xff] %v1117
      %1246 = vst [vmem:[%s279 + $0x228] sm:$0xff] %v1118
      %1247 = vst [vmem:[%s279 + $0x230] sm:$0xff] %v1119
      %1248 = vst [vmem:[%s279 + $0x238] sm:$0xff] %v1120
      %1249 = vst [vmem:[%s279 + $0x240] sm:$0xff] %v1121
      %1250 = vst [vmem:[%s279 + $0x248] sm:$0xff] %v1122
      %1251 = vst [vmem:[%s279 + $0x250] sm:$0xff] %v1123
      %1252 = vst [vmem:[%s279 + $0x258] sm:$0xff] %v1124
      %1253 = vst [vmem:[%s279 + $0x260] sm:$0xff] %v1125
      %1254 = vst [vmem:[%s279 + $0x268] sm:$0xff] %v1126
      %1255 = vst [vmem:[%s279 + $0x270] sm:$0xff] %v1127
      %1256 = vst [vmem:[%s279 + $0x278] sm:$0xff] %v1128
      %1257 = vst [vmem:[%s279 + $0x280] sm:$0xff] %v1129
      %1258 = vst [vmem:[%s279 + $0x288] sm:$0xff] %v1130
      %1259 = vst [vmem:[%s279 + $0x290] sm:$0xff] %v1131
      %1260 = vst [vmem:[%s279 + $0x298] sm:$0xff] %v1132
      %1261 = vst [vmem:[%s279 + $0x2a0] sm:$0xff] %v1133
      %1262 = vst [vmem:[%s279 + $0x2a8] sm:$0xff] %v1134
      %1263 = vst [vmem:[%s279 + $0x2b0] sm:$0xff] %v1135
      %1264 = vst [vmem:[%s279 + $0x2b8] sm:$0xff] %v1136
      %1265 = vst [vmem:[%s279 + $0x2c0] sm:$0xff] %v1137
      %1266 = vst [vmem:[%s279 + $0x2c8] sm:$0xff] %v1138
      %1267 = vst [vmem:[%s279 + $0x2d0] sm:$0xff] %v1139
      %1268 = vst [vmem:[%s279 + $0x2d8] sm:$0xff] %v1140
      %1269 = vst [vmem:[%s279 + $0x2e0] sm:$0xff] %v1141
      %1270 = vst [vmem:[%s279 + $0x2e8] sm:$0xff] %v1142
      %1271 = vst [vmem:[%s279 + $0x2f0] sm:$0xff] %v1143
      %1272 = vst [vmem:[%s279 + $0x2f8] sm:$0xff] %v1144
      %1273 = vst [vmem:[%s279 + $0x300] sm:$0xff] %v1145
      %1274 = vst [vmem:[%s279 + $0x308] sm:$0xff] %v1146
      %1275 = vst [vmem:[%s279 + $0x310] sm:$0xff] %v1147
      %1276 = vst [vmem:[%s279 + $0x318] sm:$0xff] %v1148
      %1277 = vst [vmem:[%s279 + $0x320] sm:$0xff] %v1149
      %1278 = vst [vmem:[%s279 + $0x328] sm:$0xff] %v1150
      %1279 = vst [vmem:[%s279 + $0x330] sm:$0xff] %v1151
      %1280 = vst [vmem:[%s279 + $0x338] sm:$0xff] %v1152
      %1281 = vst [vmem:[%s279 + $0x340] sm:$0xff] %v1153
      %1282 = vst [vmem:[%s279 + $0x348] sm:$0xff] %v1154
      %1283 = vst [vmem:[%s279 + $0x350] sm:$0xff] %v1155
      %1284 = vst [vmem:[%s279 + $0x358] sm:$0xff] %v1156
      %1285 = vst [vmem:[%s279 + $0x360] sm:$0xff] %v1157
      %1286 = vst [vmem:[%s279 + $0x368] sm:$0xff] %v1158
      %1287 = vst [vmem:[%s279 + $0x370] sm:$0xff] %v1159
      %1288 = vst [vmem:[%s279 + $0x378] sm:$0xff] %v1160
      %1289 = vst [vmem:[%s279 + $0x380] sm:$0xff] %v1161
      %1290 = vst [vmem:[%s279 + $0x388] sm:$0xff] %v1162
      %1291 = vst [vmem:[%s279 + $0x390] sm:$0xff] %v1163
      %1292 = vst [vmem:[%s279 + $0x398] sm:$0xff] %v1164
      %1293 = vst [vmem:[%s279 + $0x3a0] sm:$0xff] %v1165
      %1294 = vst [vmem:[%s279 + $0x3a8] sm:$0xff] %v1166
      %1295 = vst [vmem:[%s279 + $0x3b0] sm:$0xff] %v1167
      %1296 = vst [vmem:[%s279 + $0x3b8] sm:$0xff] %v1168
      %1297 = vst [vmem:[%s279 + $0x3c0] sm:$0xff] %v1169
      %1298 = vst [vmem:[%s279 + $0x3c8] sm:$0xff] %v1170
      %1299 = vst [vmem:[%s279 + $0x3d0] sm:$0xff] %v1171
      %1300 = vst [vmem:[%s279 + $0x3d8] sm:$0xff] %v1172
      %1301 = vst [vmem:[%s279 + $0x3e0] sm:$0xff] %v1173
      %1302 = vst [vmem:[%s279 + $0x3e8] sm:$0xff] %v1174
      %1303 = vst [vmem:[%s279 + $0x3f0] sm:$0xff] %v1175
      %1304 = vst [vmem:[%s279 + $0x3f8] sm:$0xff] %v1176
      %s1305 = smul.u32 64, %s15
      %p1306 = scmp.lt.s32.totalorder %s1305, 127
      %s1307 = scalar_select %p1306, %s1305, 127
      %s1308 = smul.addr %s1307, 4
      %s1309 = smul.addr %s1308, 4
      %s1310 = scalar_lea.vmem %s4, %s1309
      // Predicated region
      $region37: #{_lambda_.7} parent=35 // pred_check
        %p1311 = pneg %p137
      $region38: #{_lambda_.7} parent=35 // pred_check_branch
        %1313 = sbr.rel (%p1311) target = $region40
      $region39: #{_lambda_.7} parent=35 // pred_region
        %s1314 = smul.u32 64, %s15
      $region40: #{_lambda_.7} parent=35 // pred_fallthru
        _
    $region36: #{_lambda_.7} parent=5 // pred_fallthru
      _
    %p1315 = scmp.le.s32.totalorder 2, %s10
    // Predicated region
    $region41: #{_lambda_.7} parent=5 // pred_check
      %p1316 = pneg %p1315
    $region42: #{_lambda_.7} parent=5 // pred_check_branch
      %1318 = sbr.rel (%p1316) target = $region44
    $region43: #{_lambda_.7} parent=5 // pred_region
      %s1319 = ssub.s32 %s10, 2
      // Predicated region
      $region45: #{_lambda_.7} parent=43 // pred_check
        %p1320 = pneg %p143
      $region46: #{_lambda_.7} parent=43 // pred_check_branch
        %1322 = sbr.rel (%p1320) target = $region48
      $region47: #{_lambda_.7} parent=43 // pred_region
        %s1323 = smul.u32 64, %s16
        %p1324 = scmp.lt.s32.totalorder %s1323, 127
        %s1325 = scalar_select %p1324, %s1323, 127
        %s1326 = smul.addr %s1325, 4
        %s1327 = smul.addr %s1326, 4
        %s1328 = scalar_lea.vmem %s4, %s1327
      $region48: #{_lambda_.7} parent=43 // pred_fallthru
        _
    $region44: #{_lambda_.7} parent=5 // pred_fallthru
      _
  $region6: #{_lambda_.7} parent=0 // loop_footer
    %s14 = sadd.s32 1, %s10
  $region7: #{_lambda_.7} parent=0 // loop_footer_branch
    %9 = sbr.rel target = $region3
  $region8: #{_lambda_.7} parent=0 // loop_exit
    _

// kernel: _lambda_.8
$region0: #{_lambda_.8}
  #allocation0 [shape = 'u32[]', space=smem, size = 0x4, offset = 0x4, fixed_abs, tag = 'smem constant byte address 0x4 - core index']
  #allocation1 [shape = 'u32[144,128]{1,0:T(1,128)}', space=vmem, size = 0x12000, scoped, tag = 'internal scratch']
  #allocation2 [shape = 'f32[32,2048]{1,0:T(8,128)}', space=vmem, size = 0x40000, scoped, tag = 'scratch operand']
  %s0 = inlined_call_operand.vmem [shape: bf16[32,144], index: 0, kind: input, shape index: {}]
  %s1 = inlined_call_operand.vmem [shape: bf16[144,26624], index: 1, kind: input, shape index: {}]
  %s2 = inlined_call_operand.vmem [shape: f32[32,1], index: 2, kind: input, shape index: {}]
  %s3 = inlined_call_operand.vmem [shape: bf16[32,26624], index: 3, kind: output, shape index: {}]
  %s4 = sld [smem:[#allocation0]]
  $region95: #{_lambda_.8} parent=0
    _
  %s6 = ssub.s32 1, %s4
  %s7 = scalar_select 0, %s6, %s4
  $region1: #{_lambda_.8} parent=0
    #allocation3 [shape = 'u8[1179648]{0}', space=vmem, size = 0x120000, scoped, tag = 'input window, operand 1']
    #allocation4 [shape = 'u8[262144]{0}', space=vmem, size = 0x40000, scoped, tag = 'output window, operand 0']
    loop: start=0, step=1, limit=15
    $region2: #{_lambda_.8} parent=1 // loop_pre_header
      _
    $region3: #{_lambda_.8} parent=1 // loop_header
      %s9 = sphi 0, %s13
      %p10 = scmp.ge.s32.totalorder %s9, 15
      %s16 = sphi 0, %s35
      %s17 = sphi 0, %s31
      %s18 = sphi 0, %s27
      %s19 = sphi 0, %s16
      %s20 = sphi 0, %s17
      %s21 = sphi 0, %s18
      %s22 = sphi 0, %s19
      %s23 = sphi 0, %s20
      %s24 = sphi 0, %s21
      %s40 = sphi 0, %s42
      %s43 = sphi 0, %s40
      %s44 = sphi 0, %s43
      %s60 = sphi 0, %s44
      %s68 = sphi 0, %s70
      %s71 = sphi 0, %s68
      %s72 = sphi 0, %s71
      %s88 = sphi 0, %s72
      %s94 = sphi 0, %s96
      %s97 = sphi 0, %s94
      %s98 = sphi 0, %s97
      %s114 = sphi 0, %s98
      %s122 = sphi 0, %s124
      %s125 = sphi 0, %s122
      %s126 = sphi 0, %s125
      %s142 = sphi 0, %s126
    $region4: #{_lambda_.8} parent=1 // loop_header_branch
      %12 = sbr.rel (%p10) target = $region8
    $region5: #{_lambda_.8} parent=1 // loop_body
      %s14 = ssub.s32 %s9, 1
      %s15 = ssub.s32 %s9, 2
      %s25 = sadd.s32 1, %s18
      %p26 = scmp.ge.s32.totalorder %s25, 1
      %s27 = scalar_select %p26, 0, %s25
      %s28 = sadd.s32 1, %s17
      %s29 = scalar_select %p26, %s28, %s17
      %p30 = scmp.ge.s32.totalorder %s29, 13
      %s31 = scalar_select %p30, 0, %s29
      %s32 = sadd.s32 1, %s16
      %s33 = scalar_select %p30, %s32, %s16
      %p34 = scmp.ge.s32.totalorder %s33, 1
      %s35 = scalar_select %p34, 0, %s33
      %s36 = ssub.s32 %s16, %s35
      %s37 = ssub.s32 %s18, %s27
      %s38 = sor.u32 %s36, %s37
      %p39 = scmp.eq.s32.totalorder %s38, 0
      %s41 = sadd.s32 %s40, 1
      %s42 = scalar_select %p39, %s40, %s41
      %p45 = pneg %p39
      %p46 = scmp.eq.s32.totalorder %s9, 12
      %p47 = por %p45, %p46
      %p48 = scmp.ne.s32.totalorder %s40, %s43
      %p49 = scmp.eq.s32.totalorder %s9, 0
      %p50 = por %p48, %p49
      %p51 = scmp.ne.s32.totalorder %s40, %s43
      %p52 = scmp.eq.s32.totalorder %s14, 12
      %p53 = por %p51, %p52
      %p54 = scmp.ne.s32.totalorder %s43, %s44
      %p55 = scmp.eq.s32.totalorder %s14, 0
      %p56 = por %p54, %p55
      %p57 = scmp.ne.s32.totalorder %s43, %s44
      %p58 = scmp.eq.s32.totalorder %s15, 12
      %p59 = por %p57, %p58
      %p61 = scmp.ne.s32.totalorder %s44, %s60
      %p62 = scmp.eq.s32.totalorder %s15, 0
      %p63 = por %p61, %p62
      %s64 = ssub.s32 %s18, %s27
      %s65 = ssub.s32 %s17, %s31
      %s66 = sor.u32 %s64, %s65
      %p67 = scmp.eq.s32.totalorder %s66, 0
      %s69 = sadd.s32 %s68, 1
      %s70 = scalar_select %p67, %s68, %s69
      %p73 = pneg %p67
      %p74 = scmp.eq.s32.totalorder %s9, 12
      %p75 = por %p73, %p74
      %p76 = scmp.ne.s32.totalorder %s68, %s71
      %p77 = scmp.eq.s32.totalorder %s9, 0
      %p78 = por %p76, %p77
      %p79 = scmp.ne.s32.totalorder %s68, %s71
      %p80 = scmp.eq.s32.totalorder %s14, 12
      %p81 = por %p79, %p80
      %p82 = scmp.ne.s32.totalorder %s71, %s72
      %p83 = scmp.eq.s32.totalorder %s14, 0
      %p84 = por %p82, %p83
      %p85 = scmp.ne.s32.totalorder %s71, %s72
      %p86 = scmp.eq.s32.totalorder %s15, 12
      %p87 = por %p85, %p86
      %p89 = scmp.ne.s32.totalorder %s72, %s88
      %p90 = scmp.eq.s32.totalorder %s15, 0
      %p91 = por %p89, %p90
      %s92 = ssub.s32 %s16, %s35
      %p93 = scmp.eq.s32.totalorder %s92, 0
      %s95 = sadd.s32 %s94, 1
      %s96 = scalar_select %p93, %s94, %s95
      %p99 = pneg %p93
      %p100 = scmp.eq.s32.totalorder %s9, 12
      %p101 = por %p99, %p100
      %p102 = scmp.ne.s32.totalorder %s94, %s97
      %p103 = scmp.eq.s32.totalorder %s9, 0
      %p104 = por %p102, %p103
      %p105 = scmp.ne.s32.totalorder %s94, %s97
      %p106 = scmp.eq.s32.totalorder %s14, 12
      %p107 = por %p105, %p106
      %p108 = scmp.ne.s32.totalorder %s97, %s98
      %p109 = scmp.eq.s32.totalorder %s14, 0
      %p110 = por %p108, %p109
      %p111 = scmp.ne.s32.totalorder %s97, %s98
      %p112 = scmp.eq.s32.totalorder %s15, 12
      %p113 = por %p111, %p112
      %p115 = scmp.ne.s32.totalorder %s98, %s114
      %p116 = scmp.eq.s32.totalorder %s15, 0
      %p117 = por %p115, %p116
      %s118 = ssub.s32 %s16, %s35
      %s119 = ssub.s32 %s17, %s31
      %s120 = sor.u32 %s118, %s119
      %p121 = scmp.eq.s32.totalorder %s120, 0
      %s123 = sadd.s32 %s122, 1
      %s124 = scalar_select %p121, %s122, %s123
      %p127 = pneg %p121
      %p128 = scmp.eq.s32.totalorder %s9, 12
      %p129 = por %p127, %p128
      %p130 = scmp.ne.s32.totalorder %s122, %s125
      %p131 = scmp.eq.s32.totalorder %s9, 0
      %p132 = por %p130, %p131
      %p133 = scmp.ne.s32.totalorder %s122, %s125
      %p134 = scmp.eq.s32.totalorder %s14, 12
      %p135 = por %p133, %p134
      %p136 = scmp.ne.s32.totalorder %s125, %s126
      %p137 = scmp.eq.s32.totalorder %s14, 0
      %p138 = por %p136, %p137
      %p139 = scmp.ne.s32.totalorder %s125, %s126
      %p140 = scmp.eq.s32.totalorder %s15, 12
      %p141 = por %p139, %p140
      %p143 = scmp.ne.s32.totalorder %s126, %s142
      %p144 = scmp.eq.s32.totalorder %s15, 0
      %p145 = por %p143, %p144
      %p146 = scmp.le.s32.totalorder 1, %s9
      %p147 = scmp.lt.s32.totalorder %s9, 14
      %p148 = pnand %p146, %p147
      %p149 = pneg %p148
      // Predicated region
      $region9: #{_lambda_.8} parent=5 // pred_check
        _
      $region10: #{_lambda_.8} parent=5 // pred_check_branch
        %151 = sbr.rel (%p148) target = $region12
      $region11: #{_lambda_.8} parent=5 // pred_region
        %s152 = ssub.s32 %s9, 1
        // Predicated region
        $region13: #{_lambda_.8} parent=11 // pred_check
          %p153 = pneg %p56
        $region14: #{_lambda_.8} parent=11 // pred_check_branch
          %155 = sbr.rel (%p153) target = $region16
        $region15: #{_lambda_.8} parent=11 // pred_region
          %s156 = smul.u32 4, %s19
          %s157 = smul.u32 2, %s21
          %p158 = scmp.lt.s32.totalorder %s156, 3
          %s159 = scalar_select %p158, %s156, 3
          %p160 = scmp.lt.s32.totalorder %s157, 1
          %s161 = scalar_select %p160, %s157, 1
          %s162 = smul.addr %s159, 2
          %s163 = sadd.s32 %s161, %s162
          %s164 = smul.addr %s163, 4
          %s165 = scalar_lea.vmem %s0, %s164
          %s166 = smul.u32 4, %s19
          %s167 = smul.u32 2, %s21
        $region16: #{_lambda_.8} parent=11 // pred_fallthru
          _
        // Predicated region
        $region17: #{_lambda_.8} parent=11 // pred_check
          %p168 = pneg %p110
        $region18: #{_lambda_.8} parent=11 // pred_check_branch
          %170 = sbr.rel (%p168) target = $region20
        $region19: #{_lambda_.8} parent=11 // pred_region
          %s171 = smul.u32 4, %s19
          %p172 = scmp.lt.s32.totalorder %s171, 3
          %s173 = scalar_select %p172, %s171, 3
          %s174 = smul.addr %s173, 8
          %s175 = scalar_lea.vmem %s2, %s174
          %s176 = smul.u32 4, %s19
        $region20: #{_lambda_.8} parent=11 // pred_fallthru
          _
      $region12: #{_lambda_.8} parent=5 // pred_fallthru
        _
      %p177 = scmp.lt.s32.totalorder %s9, 13
      // Predicated region
      $region21: #{_lambda_.8} parent=5 // pred_check
        %p178 = pneg %p177
      $region22: #{_lambda_.8} parent=5 // pred_check_branch
        %180 = sbr.rel (%p178) target = $region24
      $region23: #{_lambda_.8} parent=5 // pred_region
        // Predicated region
        $region25: #{_lambda_.8} parent=23 // pred_check
          %p181 = pneg %p78
        $region26: #{_lambda_.8} parent=23 // pred_check_branch
          %183 = sbr.rel (%p181) target = $region28
        $region27: #{_lambda_.8} parent=23 // pred_region
          %s184 = sand.u32 %s68, 1
          %s185 = sand.u32 %s68, 1
          %s186 = smul.addr %s185, 1152
          %s187 = scalar_lea.vmem [#allocation3], %s186
          %s188 = smul.u32 18, %s18
          %s189 = smul.u32 16, %s17
          %s190 = smul.addr %s188, 208
          %s191 = sadd.s32 %s189, %s190
          %s192 = smul.addr %s191, 4
          %s193 = scalar_lea.vmem %s1, %s192
          // Predicated region
          $region29: #{_lambda_.8} parent=27 // pred_check
            _
          $region30: #{_lambda_.8} parent=27 // pred_check_branch
            %195 = sbr.rel (0) target = $region32
          $region31: #{_lambda_.8} parent=27 // pred_region
            // Predicated region
            $region33: #{_lambda_.8} parent=31 // pred_check
              _
            $region34: #{_lambda_.8} parent=31 // pred_check_branch
              %197 = sbr.rel (0) target = $region36
            $region35: #{_lambda_.8} parent=31 // pred_region
              loop: start=0, step=1, limit=1
              $region37: #{_lambda_.8} parent=35 // loop_pre_header
                _
              $region38: #{_lambda_.8} parent=35 // loop_header
                %s199 = sphi 0, %s203
                %p200 = scmp.ge.s32.totalorder %s199, 1
                %s204 = sphi %s193, %s193
                %s205 = sphi %s187, %s187
              $region39: #{_lambda_.8} parent=35 // loop_header_branch
                %202 = sbr.rel (%p200) target = $region43
              $region40: #{_lambda_.8} parent=35 // loop_body
                %v206 = vld [vmem:[%s204] sm:$0xff]
                %207 = vst [vmem:[%s205] sm:$0xff] %v206
                %v208 = vld [vmem:[%s204 + $0x8] sm:$0xff]
                %209 = vst [vmem:[%s205 + $0x8] sm:$0xff] %v208
                %v210 = vld [vmem:[%s204 + $0x10] sm:$0xff]
                %211 = vst [vmem:[%s205 + $0x10] sm:$0xff] %v210
                %v212 = vld [vmem:[%s204 + $0x18] sm:$0xff]
                %213 = vst [vmem:[%s205 + $0x18] sm:$0xff] %v212
                %v214 = vld [vmem:[%s204 + $0x20] sm:$0xff]
                %215 = vst [vmem:[%s205 + $0x20] sm:$0xff] %v214
                %v216 = vld [vmem:[%s204 + $0x28] sm:$0xff]
                %217 = vst [vmem:[%s205 + $0x28] sm:$0xff] %v216
                %v218 = vld [vmem:[%s204 + $0x30] sm:$0xff]
                %219 = vst [vmem:[%s205 + $0x30] sm:$0xff] %v218
                %v220 = vld [vmem:[%s204 + $0x38] sm:$0xff]
                %221 = vst [vmem:[%s205 + $0x38] sm:$0xff] %v220
                %v222 = vld [vmem:[%s204 + $0x340] sm:$0xff]
                %223 = vst [vmem:[%s205 + $0x40] sm:$0xff] %v222
                %v224 = vld [vmem:[%s204 + $0x348] sm:$0xff]
                %225 = vst [vmem:[%s205 + $0x48] sm:$0xff] %v224
                %v226 = vld [vmem:[%s204 + $0x350] sm:$0xff]
                %227 = vst [vmem:[%s205 + $0x50] sm:$0xff] %v226
                %v228 = vld [vmem:[%s204 + $0x358] sm:$0xff]
                %229 = vst [vmem:[%s205 + $0x58] sm:$0xff] %v228
                %v230 = vld [vmem:[%s204 + $0x360] sm:$0xff]
                %231 = vst [vmem:[%s205 + $0x60] sm:$0xff] %v230
                %v232 = vld [vmem:[%s204 + $0x368] sm:$0xff]
                %233 = vst [vmem:[%s205 + $0x68] sm:$0xff] %v232
                %v234 = vld [vmem:[%s204 + $0x370] sm:$0xff]
                %235 = vst [vmem:[%s205 + $0x70] sm:$0xff] %v234
                %v236 = vld [vmem:[%s204 + $0x378] sm:$0xff]
                %237 = vst [vmem:[%s205 + $0x78] sm:$0xff] %v236
                %v238 = vld [vmem:[%s204 + $0x680] sm:$0xff]
                %239 = vst [vmem:[%s205 + $0x80] sm:$0xff] %v238
                %v240 = vld [vmem:[%s204 + $0x688] sm:$0xff]
                %241 = vst [vmem:[%s205 + $0x88] sm:$0xff] %v240
                %v242 = vld [vmem:[%s204 + $0x690] sm:$0xff]
                %243 = vst [vmem:[%s205 + $0x90] sm:$0xff] %v242
                %v244 = vld [vmem:[%s204 + $0x698] sm:$0xff]
                %245 = vst [vmem:[%s205 + $0x98] sm:$0xff] %v244
                %v246 = vld [vmem:[%s204 + $0x6a0] sm:$0xff]
                %247 = vst [vmem:[%s205 + $0xa0] sm:$0xff] %v246
                %v248 = vld [vmem:[%s204 + $0x6a8] sm:$0xff]
                %249 = vst [vmem:[%s205 + $0xa8] sm:$0xff] %v248
                %v250 = vld [vmem:[%s204 + $0x6b0] sm:$0xff]
                %251 = vst [vmem:[%s205 + $0xb0] sm:$0xff] %v250
                %v252 = vld [vmem:[%s204 + $0x6b8] sm:$0xff]
                %253 = vst [vmem:[%s205 + $0xb8] sm:$0xff] %v252
                %v254 = vld [vmem:[%s204 + $0x9c0] sm:$0xff]
                %255 = vst [vmem:[%s205 + $0xc0] sm:$0xff] %v254
                %v256 = vld [vmem:[%s204 + $0x9c8] sm:$0xff]
                %257 = vst [vmem:[%s205 + $0xc8] sm:$0xff] %v256
                %v258 = vld [vmem:[%s204 + $0x9d0] sm:$0xff]
                %259 = vst [vmem:[%s205 + $0xd0] sm:$0xff] %v258
                %v260 = vld [vmem:[%s204 + $0x9d8] sm:$0xff]
                %261 = vst [vmem:[%s205 + $0xd8] sm:$0xff] %v260
                %v262 = vld [vmem:[%s204 + $0x9e0] sm:$0xff]
                %263 = vst [vmem:[%s205 + $0xe0] sm:$0xff] %v262
                %v264 = vld [vmem:[%s204 + $0x9e8] sm:$0xff]
                %265 = vst [vmem:[%s205 + $0xe8] sm:$0xff] %v264
                %v266 = vld [vmem:[%s204 + $0x9f0] sm:$0xff]
                %267 = vst [vmem:[%s205 + $0xf0] sm:$0xff] %v266
                %v268 = vld [vmem:[%s204 + $0x9f8] sm:$0xff]
                %269 = vst [vmem:[%s205 + $0xf8] sm:$0xff] %v268
                %v270 = vld [vmem:[%s204 + $0xd00] sm:$0xff]
                %271 = vst [vmem:[%s205 + $0x100] sm:$0xff] %v270
                %v272 = vld [vmem:[%s204 + $0xd08] sm:$0xff]
                %273 = vst [vmem:[%s205 + $0x108] sm:$0xff] %v272
                %v274 = vld [vmem:[%s204 + $0xd10] sm:$0xff]
                %275 = vst [vmem:[%s205 + $0x110] sm:$0xff] %v274
                %v276 = vld [vmem:[%s204 + $0xd18] sm:$0xff]
                %277 = vst [vmem:[%s205 + $0x118] sm:$0xff] %v276
                %v278 = vld [vmem:[%s204 + $0xd20] sm:$0xff]
                %279 = vst [vmem:[%s205 + $0x120] sm:$0xff] %v278
                %v280 = vld [vmem:[%s204 + $0xd28] sm:$0xff]
                %281 = vst [vmem:[%s205 + $0x128] sm:$0xff] %v280
                %v282 = vld [vmem:[%s204 + $0xd30] sm:$0xff]
                %283 = vst [vmem:[%s205 + $0x130] sm:$0xff] %v282
                %v284 = vld [vmem:[%s204 + $0xd38] sm:$0xff]
                %285 = vst [vmem:[%s205 + $0x138] sm:$0xff] %v284
                %v286 = vld [vmem:[%s204 + $0x1040] sm:$0xff]
                %287 = vst [vmem:[%s205 + $0x140] sm:$0xff] %v286
                %v288 = vld [vmem:[%s204 + $0x1048] sm:$0xff]
                %289 = vst [vmem:[%s205 + $0x148] sm:$0xff] %v288
                %v290 = vld [vmem:[%s204 + $0x1050] sm:$0xff]
                %291 = vst [vmem:[%s205 + $0x150] sm:$0xff] %v290
                %v292 = vld [vmem:[%s204 + $0x1058] sm:$0xff]
                %293 = vst [vmem:[%s205 + $0x158] sm:$0xff] %v292
                %v294 = vld [vmem:[%s204 + $0x1060] sm:$0xff]
                %295 = vst [vmem:[%s205 + $0x160] sm:$0xff] %v294
                %v296 = vld [vmem:[%s204 + $0x1068] sm:$0xff]
                %297 = vst [vmem:[%s205 + $0x168] sm:$0xff] %v296
                %v298 = vld [vmem:[%s204 + $0x1070] sm:$0xff]
                %299 = vst [vmem:[%s205 + $0x170] sm:$0xff] %v298
                %v300 = vld [vmem:[%s204 + $0x1078] sm:$0xff]
                %301 = vst [vmem:[%s205 + $0x178] sm:$0xff] %v300
                %v302 = vld [vmem:[%s204 + $0x1380] sm:$0xff]
                %303 = vst [vmem:[%s205 + $0x180] sm:$0xff] %v302
                %v304 = vld [vmem:[%s204 + $0x1388] sm:$0xff]
                %305 = vst [vmem:[%s205 + $0x188] sm:$0xff] %v304
                %v306 = vld [vmem:[%s204 + $0x1390] sm:$0xff]
                %307 = vst [vmem:[%s205 + $0x190] sm:$0xff] %v306
                %v308 = vld [vmem:[%s204 + $0x1398] sm:$0xff]
                %309 = vst [vmem:[%s205 + $0x198] sm:$0xff] %v308
                %v310 = vld [vmem:[%s204 + $0x13a0] sm:$0xff]
                %311 = vst [vmem:[%s205 + $0x1a0] sm:$0xff] %v310
                %v312 = vld [vmem:[%s204 + $0x13a8] sm:$0xff]
                %313 = vst [vmem:[%s205 + $0x1a8] sm:$0xff] %v312
                %v314 = vld [vmem:[%s204 + $0x13b0] sm:$0xff]
                %315 = vst [vmem:[%s205 + $0x1b0] sm:$0xff] %v314
                %v316 = vld [vmem:[%s204 + $0x13b8] sm:$0xff]
                %317 = vst [vmem:[%s205 + $0x1b8] sm:$0xff] %v316
                %v318 = vld [vmem:[%s204 + $0x16c0] sm:$0xff]
                %319 = vst [vmem:[%s205 + $0x1c0] sm:$0xff] %v318
                %v320 = vld [vmem:[%s204 + $0x16c8] sm:$0xff]
                %321 = vst [vmem:[%s205 + $0x1c8] sm:$0xff] %v320
                %v322 = vld [vmem:[%s204 + $0x16d0] sm:$0xff]
                %323 = vst [vmem:[%s205 + $0x1d0] sm:$0xff] %v322
                %v324 = vld [vmem:[%s204 + $0x16d8] sm:$0xff]
                %325 = vst [vmem:[%s205 + $0x1d8] sm:$0xff] %v324
                %v326 = vld [vmem:[%s204 + $0x16e0] sm:$0xff]
                %327 = vst [vmem:[%s205 + $0x1e0] sm:$0xff] %v326
                %v328 = vld [vmem:[%s204 + $0x16e8] sm:$0xff]
                %329 = vst [vmem:[%s205 + $0x1e8] sm:$0xff] %v328
                %v330 = vld [vmem:[%s204 + $0x16f0] sm:$0xff]
                %331 = vst [vmem:[%s205 + $0x1f0] sm:$0xff] %v330
                %v332 = vld [vmem:[%s204 + $0x16f8] sm:$0xff]
                %333 = vst [vmem:[%s205 + $0x1f8] sm:$0xff] %v332
                %v334 = vld [vmem:[%s204 + $0x1a00] sm:$0xff]
                %335 = vst [vmem:[%s205 + $0x200] sm:$0xff] %v334
                %v336 = vld [vmem:[%s204 + $0x1a08] sm:$0xff]
                %337 = vst [vmem:[%s205 + $0x208] sm:$0xff] %v336
                %v338 = vld [vmem:[%s204 + $0x1a10] sm:$0xff]
                %339 = vst [vmem:[%s205 + $0x210] sm:$0xff] %v338
                %v340 = vld [vmem:[%s204 + $0x1a18] sm:$0xff]
                %341 = vst [vmem:[%s205 + $0x218] sm:$0xff] %v340
                %v342 = vld [vmem:[%s204 + $0x1a20] sm:$0xff]
                %343 = vst [vmem:[%s205 + $0x220] sm:$0xff] %v342
                %v344 = vld [vmem:[%s204 + $0x1a28] sm:$0xff]
                %345 = vst [vmem:[%s205 + $0x228] sm:$0xff] %v344
                %v346 = vld [vmem:[%s204 + $0x1a30] sm:$0xff]
                %347 = vst [vmem:[%s205 + $0x230] sm:$0xff] %v346
                %v348 = vld [vmem:[%s204 + $0x1a38] sm:$0xff]
                %349 = vst [vmem:[%s205 + $0x238] sm:$0xff] %v348
                %v350 = vld [vmem:[%s204 + $0x1d40] sm:$0xff]
                %351 = vst [vmem:[%s205 + $0x240] sm:$0xff] %v350
                %v352 = vld [vmem:[%s204 + $0x1d48] sm:$0xff]
                %353 = vst [vmem:[%s205 + $0x248] sm:$0xff] %v352
                %v354 = vld [vmem:[%s204 + $0x1d50] sm:$0xff]
                %355 = vst [vmem:[%s205 + $0x250] sm:$0xff] %v354
                %v356 = vld [vmem:[%s204 + $0x1d58] sm:$0xff]
                %357 = vst [vmem:[%s205 + $0x258] sm:$0xff] %v356
                %v358 = vld [vmem:[%s204 + $0x1d60] sm:$0xff]
                %359 = vst [vmem:[%s205 + $0x260] sm:$0xff] %v358
                %v360 = vld [vmem:[%s204 + $0x1d68] sm:$0xff]
                %361 = vst [vmem:[%s205 + $0x268] sm:$0xff] %v360
                %v362 = vld [vmem:[%s204 + $0x1d70] sm:$0xff]
                %363 = vst [vmem:[%s205 + $0x270] sm:$0xff] %v362
                %v364 = vld [vmem:[%s204 + $0x1d78] sm:$0xff]
                %365 = vst [vmem:[%s205 + $0x278] sm:$0xff] %v364
                %v366 = vld [vmem:[%s204 + $0x2080] sm:$0xff]
                %367 = vst [vmem:[%s205 + $0x280] sm:$0xff] %v366
                %v368 = vld [vmem:[%s204 + $0x2088] sm:$0xff]
                %369 = vst [vmem:[%s205 + $0x288] sm:$0xff] %v368
                %v370 = vld [vmem:[%s204 + $0x2090] sm:$0xff]
                %371 = vst [vmem:[%s205 + $0x290] sm:$0xff] %v370
                %v372 = vld [vmem:[%s204 + $0x2098] sm:$0xff]
                %373 = vst [vmem:[%s205 + $0x298] sm:$0xff] %v372
                %v374 = vld [vmem:[%s204 + $0x20a0] sm:$0xff]
                %375 = vst [vmem:[%s205 + $0x2a0] sm:$0xff] %v374
                %v376 = vld [vmem:[%s204 + $0x20a8] sm:$0xff]
                %377 = vst [vmem:[%s205 + $0x2a8] sm:$0xff] %v376
                %v378 = vld [vmem:[%s204 + $0x20b0] sm:$0xff]
                %379 = vst [vmem:[%s205 + $0x2b0] sm:$0xff] %v378
                %v380 = vld [vmem:[%s204 + $0x20b8] sm:$0xff]
                %381 = vst [vmem:[%s205 + $0x2b8] sm:$0xff] %v380
                %v382 = vld [vmem:[%s204 + $0x23c0] sm:$0xff]
                %383 = vst [vmem:[%s205 + $0x2c0] sm:$0xff] %v382
                %v384 = vld [vmem:[%s204 + $0x23c8] sm:$0xff]
                %385 = vst [vmem:[%s205 + $0x2c8] sm:$0xff] %v384
                %v386 = vld [vmem:[%s204 + $0x23d0] sm:$0xff]
                %387 = vst [vmem:[%s205 + $0x2d0] sm:$0xff] %v386
                %v388 = vld [vmem:[%s204 + $0x23d8] sm:$0xff]
                %389 = vst [vmem:[%s205 + $0x2d8] sm:$0xff] %v388
                %v390 = vld [vmem:[%s204 + $0x23e0] sm:$0xff]
                %391 = vst [vmem:[%s205 + $0x2e0] sm:$0xff] %v390
                %v392 = vld [vmem:[%s204 + $0x23e8] sm:$0xff]
                %393 = vst [vmem:[%s205 + $0x2e8] sm:$0xff] %v392
                %v394 = vld [vmem:[%s204 + $0x23f0] sm:$0xff]
                %395 = vst [vmem:[%s205 + $0x2f0] sm:$0xff] %v394
                %v396 = vld [vmem:[%s204 + $0x23f8] sm:$0xff]
                %397 = vst [vmem:[%s205 + $0x2f8] sm:$0xff] %v396
                %v398 = vld [vmem:[%s204 + $0x2700] sm:$0xff]
                %399 = vst [vmem:[%s205 + $0x300] sm:$0xff] %v398
                %v400 = vld [vmem:[%s204 + $0x2708] sm:$0xff]
                %401 = vst [vmem:[%s205 + $0x308] sm:$0xff] %v400
                %v402 = vld [vmem:[%s204 + $0x2710] sm:$0xff]
                %403 = vst [vmem:[%s205 + $0x310] sm:$0xff] %v402
                %v404 = vld [vmem:[%s204 + $0x2718] sm:$0xff]
                %405 = vst [vmem:[%s205 + $0x318] sm:$0xff] %v404
                %v406 = vld [vmem:[%s204 + $0x2720] sm:$0xff]
                %407 = vst [vmem:[%s205 + $0x320] sm:$0xff] %v406
                %v408 = vld [vmem:[%s204 + $0x2728] sm:$0xff]
                %409 = vst [vmem:[%s205 + $0x328] sm:$0xff] %v408
                %v410 = vld [vmem:[%s204 + $0x2730] sm:$0xff]
                %411 = vst [vmem:[%s205 + $0x330] sm:$0xff] %v410
                %v412 = vld [vmem:[%s204 + $0x2738] sm:$0xff]
                %413 = vst [vmem:[%s205 + $0x338] sm:$0xff] %v412
                %v414 = vld [vmem:[%s204 + $0x2a40] sm:$0xff]
                %415 = vst [vmem:[%s205 + $0x340] sm:$0xff] %v414
                %v416 = vld [vmem:[%s204 + $0x2a48] sm:$0xff]
                %417 = vst [vmem:[%s205 + $0x348] sm:$0xff] %v416
                %v418 = vld [vmem:[%s204 + $0x2a50] sm:$0xff]
                %419 = vst [vmem:[%s205 + $0x350] sm:$0xff] %v418
                %v420 = vld [vmem:[%s204 + $0x2a58] sm:$0xff]
                %421 = vst [vmem:[%s205 + $0x358] sm:$0xff] %v420
                %v422 = vld [vmem:[%s204 + $0x2a60] sm:$0xff]
                %423 = vst [vmem:[%s205 + $0x360] sm:$0xff] %v422
                %v424 = vld [vmem:[%s204 + $0x2a68] sm:$0xff]
                %425 = vst [vmem:[%s205 + $0x368] sm:$0xff] %v424
                %v426 = vld [vmem:[%s204 + $0x2a70] sm:$0xff]
                %427 = vst [vmem:[%s205 + $0x370] sm:$0xff] %v426
                %v428 = vld [vmem:[%s204 + $0x2a78] sm:$0xff]
                %429 = vst [vmem:[%s205 + $0x378] sm:$0xff] %v428
                %v430 = vld [vmem:[%s204 + $0x2d80] sm:$0xff]
                %431 = vst [vmem:[%s205 + $0x380] sm:$0xff] %v430
                %v432 = vld [vmem:[%s204 + $0x2d88] sm:$0xff]
                %433 = vst [vmem:[%s205 + $0x388] sm:$0xff] %v432
                %v434 = vld [vmem:[%s204 + $0x2d90] sm:$0xff]
                %435 = vst [vmem:[%s205 + $0x390] sm:$0xff] %v434
                %v436 = vld [vmem:[%s204 + $0x2d98] sm:$0xff]
                %437 = vst [vmem:[%s205 + $0x398] sm:$0xff] %v436
                %v438 = vld [vmem:[%s204 + $0x2da0] sm:$0xff]
                %439 = vst [vmem:[%s205 + $0x3a0] sm:$0xff] %v438
                %v440 = vld [vmem:[%s204 + $0x2da8] sm:$0xff]
                %441 = vst [vmem:[%s205 + $0x3a8] sm:$0xff] %v440
                %v442 = vld [vmem:[%s204 + $0x2db0] sm:$0xff]
                %443 = vst [vmem:[%s205 + $0x3b0] sm:$0xff] %v442
                %v444 = vld [vmem:[%s204 + $0x2db8] sm:$0xff]
                %445 = vst [vmem:[%s205 + $0x3b8] sm:$0xff] %v444
                %v446 = vld [vmem:[%s204 + $0x30c0] sm:$0xff]
                %447 = vst [vmem:[%s205 + $0x3c0] sm:$0xff] %v446
                %v448 = vld [vmem:[%s204 + $0x30c8] sm:$0xff]
                %449 = vst [vmem:[%s205 + $0x3c8] sm:$0xff] %v448
                %v450 = vld [vmem:[%s204 + $0x30d0] sm:$0xff]
                %451 = vst [vmem:[%s205 + $0x3d0] sm:$0xff] %v450
                %v452 = vld [vmem:[%s204 + $0x30d8] sm:$0xff]
                %453 = vst [vmem:[%s205 + $0x3d8] sm:$0xff] %v452
                %v454 = vld [vmem:[%s204 + $0x30e0] sm:$0xff]
                %455 = vst [vmem:[%s205 + $0x3e0] sm:$0xff] %v454
                %v456 = vld [vmem:[%s204 + $0x30e8] sm:$0xff]
                %457 = vst [vmem:[%s205 + $0x3e8] sm:$0xff] %v456
                %v458 = vld [vmem:[%s204 + $0x30f0] sm:$0xff]
                %459 = vst [vmem:[%s205 + $0x3f0] sm:$0xff] %v458
                %v460 = vld [vmem:[%s204 + $0x30f8] sm:$0xff]
                %461 = vst [vmem:[%s205 + $0x3f8] sm:$0xff] %v460
                %v462 = vld [vmem:[%s204 + $0x3400] sm:$0xff]
                %463 = vst [vmem:[%s205 + $0x400] sm:$0xff] %v462
                %v464 = vld [vmem:[%s204 + $0x3408] sm:$0xff]
                %465 = vst [vmem:[%s205 + $0x408] sm:$0xff] %v464
                %v466 = vld [vmem:[%s204 + $0x3410] sm:$0xff]
                %467 = vst [vmem:[%s205 + $0x410] sm:$0xff] %v466
                %v468 = vld [vmem:[%s204 + $0x3418] sm:$0xff]
                %469 = vst [vmem:[%s205 + $0x418] sm:$0xff] %v468
                %v470 = vld [vmem:[%s204 + $0x3420] sm:$0xff]
                %471 = vst [vmem:[%s205 + $0x420] sm:$0xff] %v470
                %v472 = vld [vmem:[%s204 + $0x3428] sm:$0xff]
                %473 = vst [vmem:[%s205 + $0x428] sm:$0xff] %v472
                %v474 = vld [vmem:[%s204 + $0x3430] sm:$0xff]
                %475 = vst [vmem:[%s205 + $0x430] sm:$0xff] %v474
                %v476 = vld [vmem:[%s204 + $0x3438] sm:$0xff]
                %477 = vst [vmem:[%s205 + $0x438] sm:$0xff] %v476
                %v478 = vld [vmem:[%s204 + $0x3740] sm:$0xff]
                %479 = vst [vmem:[%s205 + $0x440] sm:$0xff] %v478
                %v480 = vld [vmem:[%s204 + $0x3748] sm:$0xff]
                %481 = vst [vmem:[%s205 + $0x448] sm:$0xff] %v480
                %v482 = vld [vmem:[%s204 + $0x3750] sm:$0xff]
                %483 = vst [vmem:[%s205 + $0x450] sm:$0xff] %v482
                %v484 = vld [vmem:[%s204 + $0x3758] sm:$0xff]
                %485 = vst [vmem:[%s205 + $0x458] sm:$0xff] %v484
                %v486 = vld [vmem:[%s204 + $0x3760] sm:$0xff]
                %487 = vst [vmem:[%s205 + $0x460] sm:$0xff] %v486
                %v488 = vld [vmem:[%s204 + $0x3768] sm:$0xff]
                %489 = vst [vmem:[%s205 + $0x468] sm:$0xff] %v488
                %v490 = vld [vmem:[%s204 + $0x3770] sm:$0xff]
                %491 = vst [vmem:[%s205 + $0x470] sm:$0xff] %v490
                %v492 = vld [vmem:[%s204 + $0x3778] sm:$0xff]
                %493 = vst [vmem:[%s205 + $0x478] sm:$0xff] %v492
              $region41: #{_lambda_.8} parent=35 // loop_footer
                %s203 = sadd.s32 1, %s199
              $region42: #{_lambda_.8} parent=35 // loop_footer_branch
                %198 = sbr.rel target = $region38
              $region43: #{_lambda_.8} parent=35 // loop_exit
                _
            $region36: #{_lambda_.8} parent=31 // pred_fallthru
              _
            // Predicated region
            $region44: #{_lambda_.8} parent=31 // pred_check
              _
            $region45: #{_lambda_.8} parent=31 // pred_check_branch
              %495 = sbr.rel target = $region47
            $region46: #{_lambda_.8} parent=31 // pred_region
              _
            $region47: #{_lambda_.8} parent=31 // pred_fallthru
              _
          $region32: #{_lambda_.8} parent=27 // pred_fallthru
            _
          %496 = vnop
        $region28: #{_lambda_.8} parent=23 // pred_fallthru
          _
      $region24: #{_lambda_.8} parent=5 // pred_fallthru
        _
      %p497 = scmp.le.s32.totalorder 1, %s9
      %p498 = scmp.lt.s32.totalorder %s9, 14
      %p499 = pnand %p497, %p498
      %p500 = pneg %p499
      // Predicated region
      $region48: #{_lambda_.8} parent=5 // pred_check
        _
      $region49: #{_lambda_.8} parent=5 // pred_check_branch
        %502 = sbr.rel (%p499) target = $region51
      $region50: #{_lambda_.8} parent=5 // pred_region
        %s503 = ssub.s32 %s9, 1
        %s504 = sand.u32 %s71, 1
        %s505 = sand.u32 %s71, 1
        %s506 = smul.addr %s505, 1152
        %s507 = scalar_lea.vmem [#allocation3], %s506
        // Predicated region
        $region52: #{_lambda_.8} parent=50 // pred_check
          %p508 = pneg %p84
        $region53: #{_lambda_.8} parent=50 // pred_check_branch
          %510 = sbr.rel (%p508) target = $region55
        $region54: #{_lambda_.8} parent=50 // pred_region
          _
        $region55: #{_lambda_.8} parent=50 // pred_fallthru
          _
        %s511 = smul.u32 4, %s19
        %s512 = smul.u32 2, %s21
        %p513 = scmp.lt.s32.totalorder %s511, 3
        %s514 = scalar_select %p513, %s511, 3
        %p515 = scmp.lt.s32.totalorder %s512, 1
        %s516 = scalar_select %p515, %s512, 1
        %s517 = smul.addr %s514, 2
        %s518 = sadd.s32 %s516, %s517
        %s519 = smul.addr %s518, 4
        %s520 = scalar_lea.vmem %s0, %s519
        %p521 = pneg %p56
        %p522 = pneg %p53
        %s523 = sand.u32 %s71, 1
        %s524 = sand.u32 %s71, 1
        %s525 = smul.addr %s524, 1152
        %s526 = scalar_lea.vmem [#allocation3], %s525
        %p527 = pneg %p84
        %p528 = pneg %p81
        %s529 = smul.u32 4, %s19
        %p530 = scmp.lt.s32.totalorder %s529, 3
        %s531 = scalar_select %p530, %s529, 3
        %s532 = smul.addr %s531, 8
        %s533 = scalar_lea.vmem %s2, %s532
        %p534 = pneg %p110
        %p535 = pneg %p107
        %p536 = pneg %p138
        %p537 = pneg %p135
        %s538 = sand.u32 %s125, 1
        %s539 = sand.u32 %s125, 1
        %s540 = smul.addr %s539, 256
        %s541 = scalar_lea.vmem [#allocation4], %s540
        %s542 = smul.u32 4, %s19
        %s543 = smul.u32 2, %s21
        %p544 = scmp.lt.s32.totalorder %s542, 3
        %s545 = scalar_select %p544, %s542, 3
        %p546 = scmp.lt.s32.totalorder %s543, 1
        %s547 = scalar_select %p546, %s543, 1
        %s548 = smul.addr %s545, 2
        %s549 = sadd.s32 %s547, %s548
        %s550 = smul.addr %s549, 4
        %s551 = scalar_lea.vmem %s0, %s550
        %s552 = smul.u32 4, %s19
        %s553 = smul.u32 2, %s21
        %s554 = smul.u32 18, %s21
        %s555 = smul.u32 16, %s20
        %s556 = smul.u32 4, %s19
        %p557 = scmp.lt.s32.totalorder %s556, 3
        %s558 = scalar_select %p557, %s556, 3
        %s559 = smul.addr %s558, 8
        %s560 = scalar_lea.vmem %s2, %s559
        %s561 = smul.u32 4, %s19
        %s562 = smul.u32 4, %s19
        %s563 = smul.u32 16, %s20
        %p565 = scmp.eq.s32.totalorder %s21, 0
        // Predicated region
        $region56: #{_lambda_.8} parent=50 // pred_check
          %p566 = pneg %p565
        $region57: #{_lambda_.8} parent=50 // pred_check_branch
          %568 = sbr.rel (%p566) target = $region59
        $region58: #{_lambda_.8} parent=50 // pred_region
          %569 = vst [vmem:[#allocation2] sm:$0xff] 0.0
          %570 = vst [vmem:[#allocation2 + $0x8] sm:$0xff] 0.0
          %571 = vst [vmem:[#allocation2 + $0x10] sm:$0xff] 0.0
          %572 = vst [vmem:[#allocation2 + $0x18] sm:$0xff] 0.0
          %573 = vst [vmem:[#allocation2 + $0x20] sm:$0xff] 0.0
          %574 = vst [vmem:[#allocation2 + $0x28] sm:$0xff] 0.0
          %575 = vst [vmem:[#allocation2 + $0x30] sm:$0xff] 0.0
          %576 = vst [vmem:[#allocation2 + $0x38] sm:$0xff] 0.0
          %577 = vst [vmem:[#allocation2 + $0x40] sm:$0xff] 0.0
          %578 = vst [vmem:[#allocation2 + $0x48] sm:$0xff] 0.0
          %579 = vst [vmem:[#allocation2 + $0x50] sm:$0xff] 0.0
          %580 = vst [vmem:[#allocation2 + $0x58] sm:$0xff] 0.0
          %581 = vst [vmem:[#allocation2 + $0x60] sm:$0xff] 0.0
          %582 = vst [vmem:[#allocation2 + $0x68] sm:$0xff] 0.0
          %583 = vst [vmem:[#allocation2 + $0x70] sm:$0xff] 0.0
          %584 = vst [vmem:[#allocation2 + $0x78] sm:$0xff] 0.0
          %585 = vst [vmem:[#allocation2 + $0x80] sm:$0xff] 0.0
          %586 = vst [vmem:[#allocation2 + $0x88] sm:$0xff] 0.0
          %587 = vst [vmem:[#allocation2 + $0x90] sm:$0xff] 0.0
          %588 = vst [vmem:[#allocation2 + $0x98] sm:$0xff] 0.0
          %589 = vst [vmem:[#allocation2 + $0xa0] sm:$0xff] 0.0
          %590 = vst [vmem:[#allocation2 + $0xa8] sm:$0xff] 0.0
          %591 = vst [vmem:[#allocation2 + $0xb0] sm:$0xff] 0.0
          %592 = vst [vmem:[#allocation2 + $0xb8] sm:$0xff] 0.0
          %593 = vst [vmem:[#allocation2 + $0xc0] sm:$0xff] 0.0
          %594 = vst [vmem:[#allocation2 + $0xc8] sm:$0xff] 0.0
          %595 = vst [vmem:[#allocation2 + $0xd0] sm:$0xff] 0.0
          %596 = vst [vmem:[#allocation2 + $0xd8] sm:$0xff] 0.0
          %597 = vst [vmem:[#allocation2 + $0xe0] sm:$0xff] 0.0
          %598 = vst [vmem:[#allocation2 + $0xe8] sm:$0xff] 0.0
          %599 = vst [vmem:[#allocation2 + $0xf0] sm:$0xff] 0.0
          %600 = vst [vmem:[#allocation2 + $0xf8] sm:$0xff] 0.0
          %601 = vst [vmem:[#allocation2 + $0x100] sm:$0xff] 0.0
          %602 = vst [vmem:[#allocation2 + $0x108] sm:$0xff] 0.0
          %603 = vst [vmem:[#allocation2 + $0x110] sm:$0xff] 0.0
          %604 = vst [vmem:[#allocation2 + $0x118] sm:$0xff] 0.0
          %605 = vst [vmem:[#allocation2 + $0x120] sm:$0xff] 0.0
          %606 = vst [vmem:[#allocation2 + $0x128] sm:$0xff] 0.0
          %607 = vst [vmem:[#allocation2 + $0x130] sm:$0xff] 0.0
          %608 = vst [vmem:[#allocation2 + $0x138] sm:$0xff] 0.0
          %609 = vst [vmem:[#allocation2 + $0x140] sm:$0xff] 0.0
          %610 = vst [vmem:[#allocation2 + $0x148] sm:$0xff] 0.0
          %611 = vst [vmem:[#allocation2 + $0x150] sm:$0xff] 0.0
          %612 = vst [vmem:[#allocation2 + $0x158] sm:$0xff] 0.0
          %613 = vst [vmem:[#allocation2 + $0x160] sm:$0xff] 0.0
          %614 = vst [vmem:[#allocation2 + $0x168] sm:$0xff] 0.0
          %615 = vst [vmem:[#allocation2 + $0x170] sm:$0xff] 0.0
          %616 = vst [vmem:[#allocation2 + $0x178] sm:$0xff] 0.0
          %617 = vst [vmem:[#allocation2 + $0x180] sm:$0xff] 0.0
          %618 = vst [vmem:[#allocation2 + $0x188] sm:$0xff] 0.0
          %619 = vst [vmem:[#allocation2 + $0x190] sm:$0xff] 0.0
          %620 = vst [vmem:[#allocation2 + $0x198] sm:$0xff] 0.0
          %621 = vst [vmem:[#allocation2 + $0x1a0] sm:$0xff] 0.0
          %622 = vst [vmem:[#allocation2 + $0x1a8] sm:$0xff] 0.0
          %623 = vst [vmem:[#allocation2 + $0x1b0] sm:$0xff] 0.0
          %624 = vst [vmem:[#allocation2 + $0x1b8] sm:$0xff] 0.0
          %625 = vst [vmem:[#allocation2 + $0x1c0] sm:$0xff] 0.0
          %626 = vst [vmem:[#allocation2 + $0x1c8] sm:$0xff] 0.0
          %627 = vst [vmem:[#allocation2 + $0x1d0] sm:$0xff] 0.0
          %628 = vst [vmem:[#allocation2 + $0x1d8] sm:$0xff] 0.0
          %629 = vst [vmem:[#allocation2 + $0x1e0] sm:$0xff] 0.0
          %630 = vst [vmem:[#allocation2 + $0x1e8] sm:$0xff] 0.0
          %631 = vst [vmem:[#allocation2 + $0x1f0] sm:$0xff] 0.0
          %632 = vst [vmem:[#allocation2 + $0x1f8] sm:$0xff] 0.0
        $region59: #{_lambda_.8} parent=50 // pred_fallthru
          _
        %v633 = vld [vmem:[#allocation2] sm:$0xff]
        %v634 = vld [vmem:[#allocation2 + $0x8] sm:$0xff]
        %v635 = vld [vmem:[#allocation2 + $0x10] sm:$0xff]
        %v636 = vld [vmem:[#allocation2 + $0x18] sm:$0xff]
        %v637 = vld [vmem:[#allocation2 + $0x20] sm:$0xff]
        %v638 = vld [vmem:[#allocation2 + $0x28] sm:$0xff]
        %v639 = vld [vmem:[#allocation2 + $0x30] sm:$0xff]
        %v640 = vld [vmem:[#allocation2 + $0x38] sm:$0xff]
        %v641 = vld [vmem:[#allocation2 + $0x40] sm:$0xff]
        %v642 = vld [vmem:[#allocation2 + $0x48] sm:$0xff]
        %v643 = vld [vmem:[#allocation2 + $0x50] sm:$0xff]
        %v644 = vld [vmem:[#allocation2 + $0x58] sm:$0xff]
        %v645 = vld [vmem:[#allocation2 + $0x60] sm:$0xff]
        %v646 = vld [vmem:[#allocation2 + $0x68] sm:$0xff]
        %v647 = vld [vmem:[#allocation2 + $0x70] sm:$0xff]
        %v648 = vld [vmem:[#allocation2 + $0x78] sm:$0xff]
        %v649 = vld [vmem:[#allocation2 + $0x80] sm:$0xff]
        %v650 = vld [vmem:[#allocation2 + $0x88] sm:$0xff]
        %v651 = vld [vmem:[#allocation2 + $0x90] sm:$0xff]
        %v652 = vld [vmem:[#allocation2 + $0x98] sm:$0xff]
        %v653 = vld [vmem:[#allocation2 + $0xa0] sm:$0xff]
        %v654 = vld [vmem:[#allocation2 + $0xa8] sm:$0xff]
        %v655 = vld [vmem:[#allocation2 + $0xb0] sm:$0xff]
        %v656 = vld [vmem:[#allocation2 + $0xb8] sm:$0xff]
        %v657 = vld [vmem:[#allocation2 + $0xc0] sm:$0xff]
        %v658 = vld [vmem:[#allocation2 + $0xc8] sm:$0xff]
        %v659 = vld [vmem:[#allocation2 + $0xd0] sm:$0xff]
        %v660 = vld [vmem:[#allocation2 + $0xd8] sm:$0xff]
        %v661 = vld [vmem:[#allocation2 + $0xe0] sm:$0xff]
        %v662 = vld [vmem:[#allocation2 + $0xe8] sm:$0xff]
        %v663 = vld [vmem:[#allocation2 + $0xf0] sm:$0xff]
        %v664 = vld [vmem:[#allocation2 + $0xf8] sm:$0xff]
        %v665 = vld [vmem:[#allocation2 + $0x100] sm:$0xff]
        %v666 = vld [vmem:[#allocation2 + $0x108] sm:$0xff]
        %v667 = vld [vmem:[#allocation2 + $0x110] sm:$0xff]
        %v668 = vld [vmem:[#allocation2 + $0x118] sm:$0xff]
        %v669 = vld [vmem:[#allocation2 + $0x120] sm:$0xff]
        %v670 = vld [vmem:[#allocation2 + $0x128] sm:$0xff]
        %v671 = vld [vmem:[#allocation2 + $0x130] sm:$0xff]
        %v672 = vld [vmem:[#allocation2 + $0x138] sm:$0xff]
        %v673 = vld [vmem:[#allocation2 + $0x140] sm:$0xff]
        %v674 = vld [vmem:[#allocation2 + $0x148] sm:$0xff]
        %v675 = vld [vmem:[#allocation2 + $0x150] sm:$0xff]
        %v676 = vld [vmem:[#allocation2 + $0x158] sm:$0xff]
        %v677 = vld [vmem:[#allocation2 + $0x160] sm:$0xff]
        %v678 = vld [vmem:[#allocation2 + $0x168] sm:$0xff]
        %v679 = vld [vmem:[#allocation2 + $0x170] sm:$0xff]
        %v680 = vld [vmem:[#allocation2 + $0x178] sm:$0xff]
        %v681 = vld [vmem:[#allocation2 + $0x180] sm:$0xff]
        %v682 = vld [vmem:[#allocation2 + $0x188] sm:$0xff]
        %v683 = vld [vmem:[#allocation2 + $0x190] sm:$0xff]
        %v684 = vld [vmem:[#allocation2 + $0x198] sm:$0xff]
        %v685 = vld [vmem:[#allocation2 + $0x1a0] sm:$0xff]
        %v686 = vld [vmem:[#allocation2 + $0x1a8] sm:$0xff]
        %v687 = vld [vmem:[#allocation2 + $0x1b0] sm:$0xff]
        %v688 = vld [vmem:[#allocation2 + $0x1b8] sm:$0xff]
        %v689 = vld [vmem:[#allocation2 + $0x1c0] sm:$0xff]
        %v690 = vld [vmem:[#allocation2 + $0x1c8] sm:$0xff]
        %v691 = vld [vmem:[#allocation2 + $0x1d0] sm:$0xff]
        %v692 = vld [vmem:[#allocation2 + $0x1d8] sm:$0xff]
        %v693 = vld [vmem:[#allocation2 + $0x1e0] sm:$0xff]
        %v694 = vld [vmem:[#allocation2 + $0x1e8] sm:$0xff]
        %v695 = vld [vmem:[#allocation2 + $0x1f0] sm:$0xff]
        %v696 = vld [vmem:[#allocation2 + $0x1f8] sm:$0xff]
        %v697 = vld [vmem:[%s551] sm:$0xff]
        %v698 = vld [vmem:[%s551 + $0x8] sm:$0xff]
        %v699 = vld [vmem:[%s551 + $0x10] sm:$0xff]
        %v700 = vld [vmem:[%s551 + $0x18] sm:$0xff]
        %v701 = vld [vmem:[%s507] sm:$0xff]
        %v702 = vld [vmem:[%s507 + $0x8] sm:$0xff]
        %v703 = vld [vmem:[%s507 + $0x10] sm:$0xff]
        %v704 = vld [vmem:[%s507 + $0x18] sm:$0xff]
        %v705 = vld [vmem:[%s507 + $0x20] sm:$0xff]
        %v706 = vld [vmem:[%s507 + $0x28] sm:$0xff]
        %v707 = vld [vmem:[%s507 + $0x30] sm:$0xff]
        %v708 = vld [vmem:[%s507 + $0x38] sm:$0xff]
        %v709 = vld [vmem:[%s507 + $0x40] sm:$0xff]
        %v710 = vld [vmem:[%s507 + $0x48] sm:$0xff]
        %v711 = vld [vmem:[%s507 + $0x50] sm:$0xff]
        %v712 = vld [vmem:[%s507 + $0x58] sm:$0xff]
        %v713 = vld [vmem:[%s507 + $0x60] sm:$0xff]
        %v714 = vld [vmem:[%s507 + $0x68] sm:$0xff]
        %v715 = vld [vmem:[%s507 + $0x70] sm:$0xff]
        %v716 = vld [vmem:[%s507 + $0x78] sm:$0xff]
        %v717 = vld [vmem:[%s507 + $0x80] sm:$0xff]
        %v718 = vld [vmem:[%s507 + $0x88] sm:$0xff]
        %v719 = vld [vmem:[%s507 + $0x90] sm:$0xff]
        %v720 = vld [vmem:[%s507 + $0x98] sm:$0xff]
        %v721 = vld [vmem:[%s507 + $0xa0] sm:$0xff]
        %v722 = vld [vmem:[%s507 + $0xa8] sm:$0xff]
        %v723 = vld [vmem:[%s507 + $0xb0] sm:$0xff]
        %v724 = vld [vmem:[%s507 + $0xb8] sm:$0xff]
        %v725 = vld [vmem:[%s507 + $0xc0] sm:$0xff]
        %v726 = vld [vmem:[%s507 + $0xc8] sm:$0xff]
        %v727 = vld [vmem:[%s507 + $0xd0] sm:$0xff]
        %v728 = vld [vmem:[%s507 + $0xd8] sm:$0xff]
        %v729 = vld [vmem:[%s507 + $0xe0] sm:$0xff]
        %v730 = vld [vmem:[%s507 + $0xe8] sm:$0xff]
        %v731 = vld [vmem:[%s507 + $0xf0] sm:$0xff]
        %v732 = vld [vmem:[%s507 + $0xf8] sm:$0xff]
        %v733 = vld [vmem:[%s507 + $0x100] sm:$0xff]
        %v734 = vld [vmem:[%s507 + $0x108] sm:$0xff]
        %v735 = vld [vmem:[%s507 + $0x110] sm:$0xff]
        %v736 = vld [vmem:[%s507 + $0x118] sm:$0xff]
        %v737 = vld [vmem:[%s507 + $0x120] sm:$0xff]
        %v738 = vld [vmem:[%s507 + $0x128] sm:$0xff]
        %v739 = vld [vmem:[%s507 + $0x130] sm:$0xff]
        %v740 = vld [vmem:[%s507 + $0x138] sm:$0xff]
        %v741 = vld [vmem:[%s507 + $0x140] sm:$0xff]
        %v742 = vld [vmem:[%s507 + $0x148] sm:$0xff]
        %v743 = vld [vmem:[%s507 + $0x150] sm:$0xff]
        %v744 = vld [vmem:[%s507 + $0x158] sm:$0xff]
        %v745 = vld [vmem:[%s507 + $0x160] sm:$0xff]
        %v746 = vld [vmem:[%s507 + $0x168] sm:$0xff]
        %v747 = vld [vmem:[%s507 + $0x170] sm:$0xff]
        %v748 = vld [vmem:[%s507 + $0x178] sm:$0xff]
        %v749 = vld [vmem:[%s507 + $0x180] sm:$0xff]
        %v750 = vld [vmem:[%s507 + $0x188] sm:$0xff]
        %v751 = vld [vmem:[%s507 + $0x190] sm:$0xff]
        %v752 = vld [vmem:[%s507 + $0x198] sm:$0xff]
        %v753 = vld [vmem:[%s507 + $0x1a0] sm:$0xff]
        %v754 = vld [vmem:[%s507 + $0x1a8] sm:$0xff]
        %v755 = vld [vmem:[%s507 + $0x1b0] sm:$0xff]
        %v756 = vld [vmem:[%s507 + $0x1b8] sm:$0xff]
        %v757 = vld [vmem:[%s507 + $0x1c0] sm:$0xff]
        %v758 = vld [vmem:[%s507 + $0x1c8] sm:$0xff]
        %v759 = vld [vmem:[%s507 + $0x1d0] sm:$0xff]
        %v760 = vld [vmem:[%s507 + $0x1d8] sm:$0xff]
        %v761 = vld [vmem:[%s507 + $0x1e0] sm:$0xff]
        %v762 = vld [vmem:[%s507 + $0x1e8] sm:$0xff]
        %v763 = vld [vmem:[%s507 + $0x1f0] sm:$0xff]
        %v764 = vld [vmem:[%s507 + $0x1f8] sm:$0xff]
        %v765 = vld [vmem:[%s507 + $0x200] sm:$0xff]
        %v766 = vld [vmem:[%s507 + $0x208] sm:$0xff]
        %v767 = vld [vmem:[%s507 + $0x210] sm:$0xff]
        %v768 = vld [vmem:[%s507 + $0x218] sm:$0xff]
        %v769 = vld [vmem:[%s507 + $0x220] sm:$0xff]
        %v770 = vld [vmem:[%s507 + $0x228] sm:$0xff]
        %v771 = vld [vmem:[%s507 + $0x230] sm:$0xff]
        %v772 = vld [vmem:[%s507 + $0x238] sm:$0xff]
        %v773 = vld [vmem:[%s507 + $0x240] sm:$0xff]
        %v774 = vld [vmem:[%s507 + $0x248] sm:$0xff]
        %v775 = vld [vmem:[%s507 + $0x250] sm:$0xff]
        %v776 = vld [vmem:[%s507 + $0x258] sm:$0xff]
        %v777 = vld [vmem:[%s507 + $0x260] sm:$0xff]
        %v778 = vld [vmem:[%s507 + $0x268] sm:$0xff]
        %v779 = vld [vmem:[%s507 + $0x270] sm:$0xff]
        %v780 = vld [vmem:[%s507 + $0x278] sm:$0xff]
        %v781 = vld [vmem:[%s507 + $0x280] sm:$0xff]
        %v782 = vld [vmem:[%s507 + $0x288] sm:$0xff]
        %v783 = vld [vmem:[%s507 + $0x290] sm:$0xff]
        %v784 = vld [vmem:[%s507 + $0x298] sm:$0xff]
        %v785 = vld [vmem:[%s507 + $0x2a0] sm:$0xff]
        %v786 = vld [vmem:[%s507 + $0x2a8] sm:$0xff]
        %v787 = vld [vmem:[%s507 + $0x2b0] sm:$0xff]
        %v788 = vld [vmem:[%s507 + $0x2b8] sm:$0xff]
        %v789 = vld [vmem:[%s507 + $0x2c0] sm:$0xff]
        %v790 = vld [vmem:[%s507 + $0x2c8] sm:$0xff]
        %v791 = vld [vmem:[%s507 + $0x2d0] sm:$0xff]
        %v792 = vld [vmem:[%s507 + $0x2d8] sm:$0xff]
        %v793 = vld [vmem:[%s507 + $0x2e0] sm:$0xff]
        %v794 = vld [vmem:[%s507 + $0x2e8] sm:$0xff]
        %v795 = vld [vmem:[%s507 + $0x2f0] sm:$0xff]
        %v796 = vld [vmem:[%s507 + $0x2f8] sm:$0xff]
        %v797 = vld [vmem:[%s507 + $0x300] sm:$0xff]
        %v798 = vld [vmem:[%s507 + $0x308] sm:$0xff]
        %v799 = vld [vmem:[%s507 + $0x310] sm:$0xff]
        %v800 = vld [vmem:[%s507 + $0x318] sm:$0xff]
        %v801 = vld [vmem:[%s507 + $0x320] sm:$0xff]
        %v802 = vld [vmem:[%s507 + $0x328] sm:$0xff]
        %v803 = vld [vmem:[%s507 + $0x330] sm:$0xff]
        %v804 = vld [vmem:[%s507 + $0x338] sm:$0xff]
        %v805 = vld [vmem:[%s507 + $0x340] sm:$0xff]
        %v806 = vld [vmem:[%s507 + $0x348] sm:$0xff]
        %v807 = vld [vmem:[%s507 + $0x350] sm:$0xff]
        %v808 = vld [vmem:[%s507 + $0x358] sm:$0xff]
        %v809 = vld [vmem:[%s507 + $0x360] sm:$0xff]
        %v810 = vld [vmem:[%s507 + $0x368] sm:$0xff]
        %v811 = vld [vmem:[%s507 + $0x370] sm:$0xff]
        %v812 = vld [vmem:[%s507 + $0x378] sm:$0xff]
        %v813 = vld [vmem:[%s507 + $0x380] sm:$0xff]
        %v814 = vld [vmem:[%s507 + $0x388] sm:$0xff]
        %v815 = vld [vmem:[%s507 + $0x390] sm:$0xff]
        %v816 = vld [vmem:[%s507 + $0x398] sm:$0xff]
        %v817 = vld [vmem:[%s507 + $0x3a0] sm:$0xff]
        %v818 = vld [vmem:[%s507 + $0x3a8] sm:$0xff]
        %v819 = vld [vmem:[%s507 + $0x3b0] sm:$0xff]
        %v820 = vld [vmem:[%s507 + $0x3b8] sm:$0xff]
        %v821 = vld [vmem:[%s507 + $0x3c0] sm:$0xff]
        %v822 = vld [vmem:[%s507 + $0x3c8] sm:$0xff]
        %v823 = vld [vmem:[%s507 + $0x3d0] sm:$0xff]
        %v824 = vld [vmem:[%s507 + $0x3d8] sm:$0xff]
        %v825 = vld [vmem:[%s507 + $0x3e0] sm:$0xff]
        %v826 = vld [vmem:[%s507 + $0x3e8] sm:$0xff]
        %v827 = vld [vmem:[%s507 + $0x3f0] sm:$0xff]
        %v828 = vld [vmem:[%s507 + $0x3f8] sm:$0xff]
        %v829 = vld [vmem:[%s507 + $0x400] sm:$0xff]
        %v830 = vld [vmem:[%s507 + $0x408] sm:$0xff]
        %v831 = vld [vmem:[%s507 + $0x410] sm:$0xff]
        %v832 = vld [vmem:[%s507 + $0x418] sm:$0xff]
        %v833 = vld [vmem:[%s507 + $0x420] sm:$0xff]
        %v834 = vld [vmem:[%s507 + $0x428] sm:$0xff]
        %v835 = vld [vmem:[%s507 + $0x430] sm:$0xff]
        %v836 = vld [vmem:[%s507 + $0x438] sm:$0xff]
        %v837 = vld [vmem:[%s507 + $0x440] sm:$0xff]
        %v838 = vld [vmem:[%s507 + $0x448] sm:$0xff]
        %v839 = vld [vmem:[%s507 + $0x450] sm:$0xff]
        %v840 = vld [vmem:[%s507 + $0x458] sm:$0xff]
        %v841 = vld [vmem:[%s507 + $0x460] sm:$0xff]
        %v842 = vld [vmem:[%s507 + $0x468] sm:$0xff]
        %v843 = vld [vmem:[%s507 + $0x470] sm:$0xff]
        %v844 = vld [vmem:[%s507 + $0x478] sm:$0xff]
        %v849 = vunpack.c.l.b16 %v697
        %v850 = vunpack.c.h.b16 %v697
        %v851 = vunpack.c.l.b16 %v698
        %v852 = vunpack.c.h.b16 %v698
        %v853 = vunpack.c.l.b16 %v699
        %v854 = vunpack.c.h.b16 %v699
        %v855 = vunpack.c.l.b16 %v700
        %v856 = vunpack.c.h.b16 %v700
        %v857 = vpack.c.b16 %v851, %v849
        %v858 = vpack.c.b16 %v852, %v850
        %v859 = vpack.c.b16 %v855, %v853
        %v860 = vpack.c.b16 %v856, %v854
        %v1007 = vunpack.c.l.b16 %v701
        %v1008 = vunpack.c.h.b16 %v701
        %v1009 = vunpack.c.l.b16 %v702
        %v1010 = vunpack.c.h.b16 %v702
        %v1011 = vunpack.c.l.b16 %v703
        %v1012 = vunpack.c.h.b16 %v703
        %v1013 = vunpack.c.l.b16 %v704
        %v1014 = vunpack.c.h.b16 %v704
        %v1015 = vunpack.c.l.b16 %v705
        %v1016 = vunpack.c.h.b16 %v705
        %v1017 = vunpack.c.l.b16 %v706
        %v1018 = vunpack.c.h.b16 %v706
        %v1019 = vunpack.c.l.b16 %v707
        %v1020 = vunpack.c.h.b16 %v707
        %v1021 = vunpack.c.l.b16 %v708
        %v1022 = vunpack.c.h.b16 %v708
        %v1023 = vunpack.c.l.b16 %v709
        %v1024 = vunpack.c.h.b16 %v709
        %v1025 = vunpack.c.l.b16 %v710
        %v1026 = vunpack.c.h.b16 %v710
        %v1027 = vunpack.c.l.b16 %v711
        %v1028 = vunpack.c.h.b16 %v711
        %v1029 = vunpack.c.l.b16 %v712
        %v1030 = vunpack.c.h.b16 %v712
        %v1031 = vunpack.c.l.b16 %v713
        %v1032 = vunpack.c.h.b16 %v713
        %v1033 = vunpack.c.l.b16 %v714
        %v1034 = vunpack.c.h.b16 %v714
        %v1035 = vunpack.c.l.b16 %v715
        %v1036 = vunpack.c.h.b16 %v715
        %v1037 = vunpack.c.l.b16 %v716
        %v1038 = vunpack.c.h.b16 %v716
        %v1039 = vunpack.c.l.b16 %v717
        %v1040 = vunpack.c.h.b16 %v717
        %v1041 = vunpack.c.l.b16 %v718
        %v1042 = vunpack.c.h.b16 %v718
        %v1043 = vunpack.c.l.b16 %v719
        %v1044 = vunpack.c.h.b16 %v719
        %v1045 = vunpack.c.l.b16 %v720
        %v1046 = vunpack.c.h.b16 %v720
        %v1047 = vunpack.c.l.b16 %v721
        %v1048 = vunpack.c.h.b16 %v721
        %v1049 = vunpack.c.l.b16 %v722
        %v1050 = vunpack.c.h.b16 %v722
        %v1051 = vunpack.c.l.b16 %v723
        %v1052 = vunpack.c.h.b16 %v723
        %v1053 = vunpack.c.l.b16 %v724
        %v1054 = vunpack.c.h.b16 %v724
        %v1055 = vunpack.c.l.b16 %v725
        %v1056 = vunpack.c.h.b16 %v725
        %v1057 = vunpack.c.l.b16 %v726
        %v1058 = vunpack.c.h.b16 %v726
        %v1059 = vunpack.c.l.b16 %v727
        %v1060 = vunpack.c.h.b16 %v727
        %v1061 = vunpack.c.l.b16 %v728
        %v1062 = vunpack.c.h.b16 %v728
        %v1063 = vunpack.c.l.b16 %v729
        %v1064 = vunpack.c.h.b16 %v729
        %v1065 = vunpack.c.l.b16 %v730
        %v1066 = vunpack.c.h.b16 %v730
        %v1067 = vunpack.c.l.b16 %v731
        %v1068 = vunpack.c.h.b16 %v731
        %v1069 = vunpack.c.l.b16 %v732
        %v1070 = vunpack.c.h.b16 %v732
        %v1071 = vunpack.c.l.b16 %v733
        %v1072 = vunpack.c.h.b16 %v733
        %v1073 = vunpack.c.l.b16 %v734
        %v1074 = vunpack.c.h.b16 %v734
        %v1075 = vunpack.c.l.b16 %v735
        %v1076 = vunpack.c.h.b16 %v735
        %v1077 = vunpack.c.l.b16 %v736
        %v1078 = vunpack.c.h.b16 %v736
        %v1079 = vunpack.c.l.b16 %v737
        %v1080 = vunpack.c.h.b16 %v737
        %v1081 = vunpack.c.l.b16 %v738
        %v1082 = vunpack.c.h.b16 %v738
        %v1083 = vunpack.c.l.b16 %v739
        %v1084 = vunpack.c.h.b16 %v739
        %v1085 = vunpack.c.l.b16 %v740
        %v1086 = vunpack.c.h.b16 %v740
        %v1087 = vunpack.c.l.b16 %v741
        %v1088 = vunpack.c.h.b16 %v741
        %v1089 = vunpack.c.l.b16 %v742
        %v1090 = vunpack.c.h.b16 %v742
        %v1091 = vunpack.c.l.b16 %v743
        %v1092 = vunpack.c.h.b16 %v743
        %v1093 = vunpack.c.l.b16 %v744
        %v1094 = vunpack.c.h.b16 %v744
        %v1095 = vunpack.c.l.b16 %v745
        %v1096 = vunpack.c.h.b16 %v745
        %v1097 = vunpack.c.l.b16 %v746
        %v1098 = vunpack.c.h.b16 %v746
        %v1099 = vunpack.c.l.b16 %v747
        %v1100 = vunpack.c.h.b16 %v747
        %v1101 = vunpack.c.l.b16 %v748
        %v1102 = vunpack.c.h.b16 %v748
        %v1103 = vunpack.c.l.b16 %v749
        %v1104 = vunpack.c.h.b16 %v749
        %v1105 = vunpack.c.l.b16 %v750
        %v1106 = vunpack.c.h.b16 %v750
        %v1107 = vunpack.c.l.b16 %v751
        %v1108 = vunpack.c.h.b16 %v751
        %v1109 = vunpack.c.l.b16 %v752
        %v1110 = vunpack.c.h.b16 %v752
        %v1111 = vunpack.c.l.b16 %v753
        %v1112 = vunpack.c.h.b16 %v753
        %v1113 = vunpack.c.l.b16 %v754
        %v1114 = vunpack.c.h.b16 %v754
        %v1115 = vunpack.c.l.b16 %v755
        %v1116 = vunpack.c.h.b16 %v755
        %v1117 = vunpack.c.l.b16 %v756
        %v1118 = vunpack.c.h.b16 %v756
        %v1119 = vunpack.c.l.b16 %v757
        %v1120 = vunpack.c.h.b16 %v757
        %v1121 = vunpack.c.l.b16 %v758
        %v1122 = vunpack.c.h.b16 %v758
        %v1123 = vunpack.c.l.b16 %v759
        %v1124 = vunpack.c.h.b16 %v759
        %v1125 = vunpack.c.l.b16 %v760
        %v1126 = vunpack.c.h.b16 %v760
        %v1127 = vunpack.c.l.b16 %v761
        %v1128 = vunpack.c.h.b16 %v761
        %v1129 = vunpack.c.l.b16 %v762
        %v1130 = vunpack.c.h.b16 %v762
        %v1131 = vunpack.c.l.b16 %v763
        %v1132 = vunpack.c.h.b16 %v763
        %v1133 = vunpack.c.l.b16 %v764
        %v1134 = vunpack.c.h.b16 %v764
        %v1135 = vunpack.c.l.b16 %v765
        %v1136 = vunpack.c.h.b16 %v765
        %v1137 = vunpack.c.l.b16 %v766
        %v1138 = vunpack.c.h.b16 %v766
        %v1139 = vunpack.c.l.b16 %v767
        %v1140 = vunpack.c.h.b16 %v767
        %v1141 = vunpack.c.l.b16 %v768
        %v1142 = vunpack.c.h.b16 %v768
        %v1143 = vunpack.c.l.b16 %v769
        %v1144 = vunpack.c.h.b16 %v769
        %v1145 = vunpack.c.l.b16 %v770
        %v1146 = vunpack.c.h.b16 %v770
        %v1147 = vunpack.c.l.b16 %v771
        %v1148 = vunpack.c.h.b16 %v771
        %v1149 = vunpack.c.l.b16 %v772
        %v1150 = vunpack.c.h.b16 %v772
        %v1151 = vunpack.c.l.b16 %v773
        %v1152 = vunpack.c.h.b16 %v773
        %v1153 = vunpack.c.l.b16 %v774
        %v1154 = vunpack.c.h.b16 %v774
        %v1155 = vunpack.c.l.b16 %v775
        %v1156 = vunpack.c.h.b16 %v775
        %v1157 = vunpack.c.l.b16 %v776
        %v1158 = vunpack.c.h.b16 %v776
        %v1159 = vunpack.c.l.b16 %v777
        %v1160 = vunpack.c.h.b16 %v777
        %v1161 = vunpack.c.l.b16 %v778
        %v1162 = vunpack.c.h.b16 %v778
        %v1163 = vunpack.c.l.b16 %v779
        %v1164 = vunpack.c.h.b16 %v779
        %v1165 = vunpack.c.l.b16 %v780
        %v1166 = vunpack.c.h.b16 %v780
        %v1167 = vunpack.c.l.b16 %v781
        %v1168 = vunpack.c.h.b16 %v781
        %v1169 = vunpack.c.l.b16 %v782
        %v1170 = vunpack.c.h.b16 %v782
        %v1171 = vunpack.c.l.b16 %v783
        %v1172 = vunpack.c.h.b16 %v783
        %v1173 = vunpack.c.l.b16 %v784
        %v1174 = vunpack.c.h.b16 %v784
        %v1175 = vunpack.c.l.b16 %v785
        %v1176 = vunpack.c.h.b16 %v785
        %v1177 = vunpack.c.l.b16 %v786
        %v1178 = vunpack.c.h.b16 %v786
        %v1179 = vunpack.c.l.b16 %v787
        %v1180 = vunpack.c.h.b16 %v787
        %v1181 = vunpack.c.l.b16 %v788
        %v1182 = vunpack.c.h.b16 %v788
        %v1183 = vunpack.c.l.b16 %v789
        %v1184 = vunpack.c.h.b16 %v789
        %v1185 = vunpack.c.l.b16 %v790
        %v1186 = vunpack.c.h.b16 %v790
        %v1187 = vunpack.c.l.b16 %v791
        %v1188 = vunpack.c.h.b16 %v791
        %v1189 = vunpack.c.l.b16 %v792
        %v1190 = vunpack.c.h.b16 %v792
        %v1191 = vunpack.c.l.b16 %v793
        %v1192 = vunpack.c.h.b16 %v793
        %v1193 = vunpack.c.l.b16 %v794
        %v1194 = vunpack.c.h.b16 %v794
        %v1195 = vunpack.c.l.b16 %v795
        %v1196 = vunpack.c.h.b16 %v795
        %v1197 = vunpack.c.l.b16 %v796
        %v1198 = vunpack.c.h.b16 %v796
        %v1199 = vunpack.c.l.b16 %v797
        %v1200 = vunpack.c.h.b16 %v797
        %v1201 = vunpack.c.l.b16 %v798
        %v1202 = vunpack.c.h.b16 %v798
        %v1203 = vunpack.c.l.b16 %v799
        %v1204 = vunpack.c.h.b16 %v799
        %v1205 = vunpack.c.l.b16 %v800
        %v1206 = vunpack.c.h.b16 %v800
        %v1207 = vunpack.c.l.b16 %v801
        %v1208 = vunpack.c.h.b16 %v801
        %v1209 = vunpack.c.l.b16 %v802
        %v1210 = vunpack.c.h.b16 %v802
        %v1211 = vunpack.c.l.b16 %v803
        %v1212 = vunpack.c.h.b16 %v803
        %v1213 = vunpack.c.l.b16 %v804
        %v1214 = vunpack.c.h.b16 %v804
        %v1215 = vunpack.c.l.b16 %v805
        %v1216 = vunpack.c.h.b16 %v805
        %v1217 = vunpack.c.l.b16 %v806
        %v1218 = vunpack.c.h.b16 %v806
        %v1219 = vunpack.c.l.b16 %v807
        %v1220 = vunpack.c.h.b16 %v807
        %v1221 = vunpack.c.l.b16 %v808
        %v1222 = vunpack.c.h.b16 %v808
        %v1223 = vunpack.c.l.b16 %v809
        %v1224 = vunpack.c.h.b16 %v809
        %v1225 = vunpack.c.l.b16 %v810
        %v1226 = vunpack.c.h.b16 %v810
        %v1227 = vunpack.c.l.b16 %v811
        %v1228 = vunpack.c.h.b16 %v811
        %v1229 = vunpack.c.l.b16 %v812
        %v1230 = vunpack.c.h.b16 %v812
        %v1231 = vunpack.c.l.b16 %v813
        %v1232 = vunpack.c.h.b16 %v813
        %v1233 = vunpack.c.l.b16 %v814
        %v1234 = vunpack.c.h.b16 %v814
        %v1235 = vunpack.c.l.b16 %v815
        %v1236 = vunpack.c.h.b16 %v815
        %v1237 = vunpack.c.l.b16 %v816
        %v1238 = vunpack.c.h.b16 %v816
        %v1239 = vunpack.c.l.b16 %v817
        %v1240 = vunpack.c.h.b16 %v817
        %v1241 = vunpack.c.l.b16 %v818
        %v1242 = vunpack.c.h.b16 %v818
        %v1243 = vunpack.c.l.b16 %v819
        %v1244 = vunpack.c.h.b16 %v819
        %v1245 = vunpack.c.l.b16 %v820
        %v1246 = vunpack.c.h.b16 %v820
        %v1247 = vunpack.c.l.b16 %v821
        %v1248 = vunpack.c.h.b16 %v821
        %v1249 = vunpack.c.l.b16 %v822
        %v1250 = vunpack.c.h.b16 %v822
        %v1251 = vunpack.c.l.b16 %v823
        %v1252 = vunpack.c.h.b16 %v823
        %v1253 = vunpack.c.l.b16 %v824
        %v1254 = vunpack.c.h.b16 %v824
        %v1255 = vunpack.c.l.b16 %v825
        %v1256 = vunpack.c.h.b16 %v825
        %v1257 = vunpack.c.l.b16 %v826
        %v1258 = vunpack.c.h.b16 %v826
        %v1259 = vunpack.c.l.b16 %v827
        %v1260 = vunpack.c.h.b16 %v827
        %v1261 = vunpack.c.l.b16 %v828
        %v1262 = vunpack.c.h.b16 %v828
        %v1263 = vunpack.c.l.b16 %v829
        %v1264 = vunpack.c.h.b16 %v829
        %v1265 = vunpack.c.l.b16 %v830
        %v1266 = vunpack.c.h.b16 %v830
        %v1267 = vunpack.c.l.b16 %v831
        %v1268 = vunpack.c.h.b16 %v831
        %v1269 = vunpack.c.l.b16 %v832
        %v1270 = vunpack.c.h.b16 %v832
        %v1271 = vunpack.c.l.b16 %v833
        %v1272 = vunpack.c.h.b16 %v833
        %v1273 = vunpack.c.l.b16 %v834
        %v1274 = vunpack.c.h.b16 %v834
        %v1275 = vunpack.c.l.b16 %v835
        %v1276 = vunpack.c.h.b16 %v835
        %v1277 = vunpack.c.l.b16 %v836
        %v1278 = vunpack.c.h.b16 %v836
        %v1279 = vunpack.c.l.b16 %v837
        %v1280 = vunpack.c.h.b16 %v837
        %v1281 = vunpack.c.l.b16 %v838
        %v1282 = vunpack.c.h.b16 %v838
        %v1283 = vunpack.c.l.b16 %v839
        %v1284 = vunpack.c.h.b16 %v839
        %v1285 = vunpack.c.l.b16 %v840
        %v1286 = vunpack.c.h.b16 %v840
        %v1287 = vunpack.c.l.b16 %v841
        %v1288 = vunpack.c.h.b16 %v841
        %v1289 = vunpack.c.l.b16 %v842
        %v1290 = vunpack.c.h.b16 %v842
        %v1291 = vunpack.c.l.b16 %v843
        %v1292 = vunpack.c.h.b16 %v843
        %v1293 = vunpack.c.l.b16 %v844
        %v1294 = vunpack.c.h.b16 %v844
        %v1295 = vpack.c.b16 %v1023, %v1007
        %v1296 = vpack.c.b16 %v1024, %v1008
        %v1297 = vpack.c.b16 %v1025, %v1009
        %v1298 = vpack.c.b16 %v1026, %v1010
        %v1299 = vpack.c.b16 %v1027, %v1011
        %v1300 = vpack.c.b16 %v1028, %v1012
        %v1301 = vpack.c.b16 %v1029, %v1013
        %v1302 = vpack.c.b16 %v1030, %v1014
        %v1303 = vpack.c.b16 %v1031, %v1015
        %v1304 = vpack.c.b16 %v1032, %v1016
        %v1305 = vpack.c.b16 %v1033, %v1017
        %v1306 = vpack.c.b16 %v1034, %v1018
        %v1307 = vpack.c.b16 %v1035, %v1019
        %v1308 = vpack.c.b16 %v1036, %v1020
        %v1309 = vpack.c.b16 %v1037, %v1021
        %v1310 = vpack.c.b16 %v1038, %v1022
        %v1311 = vpack.c.b16 %v1055, %v1039
        %v1312 = vpack.c.b16 %v1056, %v1040
        %v1313 = vpack.c.b16 %v1057, %v1041
        %v1314 = vpack.c.b16 %v1058, %v1042
        %v1315 = vpack.c.b16 %v1059, %v1043
        %v1316 = vpack.c.b16 %v1060, %v1044
        %v1317 = vpack.c.b16 %v1061, %v1045
        %v1318 = vpack.c.b16 %v1062, %v1046
        %v1319 = vpack.c.b16 %v1063, %v1047
        %v1320 = vpack.c.b16 %v1064, %v1048
        %v1321 = vpack.c.b16 %v1065, %v1049
        %v1322 = vpack.c.b16 %v1066, %v1050
        %v1323 = vpack.c.b16 %v1067, %v1051
        %v1324 = vpack.c.b16 %v1068, %v1052
        %v1325 = vpack.c.b16 %v1069, %v1053
        %v1326 = vpack.c.b16 %v1070, %v1054
        %v1327 = vpack.c.b16 %v1087, %v1071
        %v1328 = vpack.c.b16 %v1088, %v1072
        %v1329 = vpack.c.b16 %v1089, %v1073
        %v1330 = vpack.c.b16 %v1090, %v1074
        %v1331 = vpack.c.b16 %v1091, %v1075
        %v1332 = vpack.c.b16 %v1092, %v1076
        %v1333 = vpack.c.b16 %v1093, %v1077
        %v1334 = vpack.c.b16 %v1094, %v1078
        %v1335 = vpack.c.b16 %v1095, %v1079
        %v1336 = vpack.c.b16 %v1096, %v1080
        %v1337 = vpack.c.b16 %v1097, %v1081
        %v1338 = vpack.c.b16 %v1098, %v1082
        %v1339 = vpack.c.b16 %v1099, %v1083
        %v1340 = vpack.c.b16 %v1100, %v1084
        %v1341 = vpack.c.b16 %v1101, %v1085
        %v1342 = vpack.c.b16 %v1102, %v1086
        %v1343 = vpack.c.b16 %v1119, %v1103
        %v1344 = vpack.c.b16 %v1120, %v1104
        %v1345 = vpack.c.b16 %v1121, %v1105
        %v1346 = vpack.c.b16 %v1122, %v1106
        %v1347 = vpack.c.b16 %v1123, %v1107
        %v1348 = vpack.c.b16 %v1124, %v1108
        %v1349 = vpack.c.b16 %v1125, %v1109
        %v1350 = vpack.c.b16 %v1126, %v1110
        %v1351 = vpack.c.b16 %v1127, %v1111
        %v1352 = vpack.c.b16 %v1128, %v1112
        %v1353 = vpack.c.b16 %v1129, %v1113
        %v1354 = vpack.c.b16 %v1130, %v1114
        %v1355 = vpack.c.b16 %v1131, %v1115
        %v1356 = vpack.c.b16 %v1132, %v1116
        %v1357 = vpack.c.b16 %v1133, %v1117
        %v1358 = vpack.c.b16 %v1134, %v1118
        %v1359 = vpack.c.b16 %v1151, %v1135
        %v1360 = vpack.c.b16 %v1152, %v1136
        %v1361 = vpack.c.b16 %v1153, %v1137
        %v1362 = vpack.c.b16 %v1154, %v1138
        %v1363 = vpack.c.b16 %v1155, %v1139
        %v1364 = vpack.c.b16 %v1156, %v1140
        %v1365 = vpack.c.b16 %v1157, %v1141
        %v1366 = vpack.c.b16 %v1158, %v1142
        %v1367 = vpack.c.b16 %v1159, %v1143
        %v1368 = vpack.c.b16 %v1160, %v1144
        %v1369 = vpack.c.b16 %v1161, %v1145
        %v1370 = vpack.c.b16 %v1162, %v1146
        %v1371 = vpack.c.b16 %v1163, %v1147
        %v1372 = vpack.c.b16 %v1164, %v1148
        %v1373 = vpack.c.b16 %v1165, %v1149
        %v1374 = vpack.c.b16 %v1166, %v1150
        %v1375 = vpack.c.b16 %v1183, %v1167
        %v1376 = vpack.c.b16 %v1184, %v1168
        %v1377 = vpack.c.b16 %v1185, %v1169
        %v1378 = vpack.c.b16 %v1186, %v1170
        %v1379 = vpack.c.b16 %v1187, %v1171
        %v1380 = vpack.c.b16 %v1188, %v1172
        %v1381 = vpack.c.b16 %v1189, %v1173
        %v1382 = vpack.c.b16 %v1190, %v1174
        %v1383 = vpack.c.b16 %v1191, %v1175
        %v1384 = vpack.c.b16 %v1192, %v1176
        %v1385 = vpack.c.b16 %v1193, %v1177
        %v1386 = vpack.c.b16 %v1194, %v1178
        %v1387 = vpack.c.b16 %v1195, %v1179
        %v1388 = vpack.c.b16 %v1196, %v1180
        %v1389 = vpack.c.b16 %v1197, %v1181
        %v1390 = vpack.c.b16 %v1198, %v1182
        %v1391 = vpack.c.b16 %v1215, %v1199
        %v1392 = vpack.c.b16 %v1216, %v1200
        %v1393 = vpack.c.b16 %v1217, %v1201
        %v1394 = vpack.c.b16 %v1218, %v1202
        %v1395 = vpack.c.b16 %v1219, %v1203
        %v1396 = vpack.c.b16 %v1220, %v1204
        %v1397 = vpack.c.b16 %v1221, %v1205
        %v1398 = vpack.c.b16 %v1222, %v1206
        %v1399 = vpack.c.b16 %v1223, %v1207
        %v1400 = vpack.c.b16 %v1224, %v1208
        %v1401 = vpack.c.b16 %v1225, %v1209
        %v1402 = vpack.c.b16 %v1226, %v1210
        %v1403 = vpack.c.b16 %v1227, %v1211
        %v1404 = vpack.c.b16 %v1228, %v1212
        %v1405 = vpack.c.b16 %v1229, %v1213
        %v1406 = vpack.c.b16 %v1230, %v1214
        %v1407 = vpack.c.b16 %v1247, %v1231
        %v1408 = vpack.c.b16 %v1248, %v1232
        %v1409 = vpack.c.b16 %v1249, %v1233
        %v1410 = vpack.c.b16 %v1250, %v1234
        %v1411 = vpack.c.b16 %v1251, %v1235
        %v1412 = vpack.c.b16 %v1252, %v1236
        %v1413 = vpack.c.b16 %v1253, %v1237
        %v1414 = vpack.c.b16 %v1254, %v1238
        %v1415 = vpack.c.b16 %v1255, %v1239
        %v1416 = vpack.c.b16 %v1256, %v1240
        %v1417 = vpack.c.b16 %v1257, %v1241
        %v1418 = vpack.c.b16 %v1258, %v1242
        %v1419 = vpack.c.b16 %v1259, %v1243
        %v1420 = vpack.c.b16 %v1260, %v1244
        %v1421 = vpack.c.b16 %v1261, %v1245
        %v1422 = vpack.c.b16 %v1262, %v1246
        %v1423 = vpack.c.b16 %v1279, %v1263
        %v1424 = vpack.c.b16 %v1280, %v1264
        %v1425 = vpack.c.b16 %v1281, %v1265
        %v1426 = vpack.c.b16 %v1282, %v1266
        %v1427 = vpack.c.b16 %v1283, %v1267
        %v1428 = vpack.c.b16 %v1284, %v1268
        %v1429 = vpack.c.b16 %v1285, %v1269
        %v1430 = vpack.c.b16 %v1286, %v1270
        %v1431 = vpack.c.b16 %v1287, %v1271
        %v1432 = vpack.c.b16 %v1288, %v1272
        %v1433 = vpack.c.b16 %v1289, %v1273
        %v1434 = vpack.c.b16 %v1290, %v1274
        %v1435 = vpack.c.b16 %v1291, %v1275
        %v1436 = vpack.c.b16 %v1292, %v1276
        %v1437 = vpack.c.b16 %v1293, %v1277
        %v1438 = vpack.c.b16 %v1294, %v1278
        %vm1583 = vcmask 130048
        %v1585 = vsel %vm1583, %v858, 0
        %v1588 = vsel %vm1583, %v860, 0
        %1590 = vmatprep.subr.bf16.mxu0 %v1296
        %1591 = vmatpush1.bf16.msra.mxu0 %v1295
        %1592 = vmatprep.subr.bf16.mxu0 %v1312
        %1593 = vmatpush1.bf16.msra.mxu0 %v1311
        %1594 = vmatprep.subr.bf16.mxu0 %v1328
        %1595 = vmatpush1.bf16.msra.mxu0 %v1327
        %1596 = vmatprep.subr.bf16.mxu0 %v1344
        %1597 = vmatpush1.bf16.msra.mxu0 %v1343
        %1598 = vmatprep.subr.bf16.mxu0 %v1360
        %1599 = vmatpush1.bf16.msra.mxu0 %v1359
        %1600 = vmatprep.subr.bf16.mxu0 %v1376
        %1601 = vmatpush1.bf16.msra.mxu0 %v1375
        %1602 = vmatprep.subr.bf16.mxu0 %v1392
        %1603 = vmatpush1.bf16.msra.mxu0 %v1391
        %1604 = vmatprep.subr.bf16.mxu0 %v1408
        %1605 = vmatpush1.bf16.msra.mxu0 %v1407
        %1606 = vmatprep.subr.bf16.mxu0 %v1424
        %1607 = vmatpush1.bf16.msra.mxu0 %v1423
        %1608 = vmatprep.subr.bf16.mxu0 0
        %1609 = vmatpush1.bf16.msra.mxu0 0
        %1610 = vmatprep.subr.bf16.mxu0 0
        %1611 = vmatpush1.bf16.msra.mxu0 0
        %1612 = vmatprep.subr.bf16.mxu0 0
        %1613 = vmatpush1.bf16.msra.mxu0 0
        %1614 = vmatprep.subr.bf16.mxu0 0
        %1615 = vmatpush1.bf16.msra.mxu0 0
        %1616 = vmatprep.subr.bf16.mxu0 0
        %1617 = vmatpush1.bf16.msra.mxu0 0
        %1618 = vmatprep.subr.bf16.mxu0 0
        %1619 = vmatpush1.bf16.msra.mxu0 0
        %1620 = vmatprep.subr.bf16.mxu0 0
        %1621 = vmatpush1.bf16.msra.mxu0 0
        %1622 = vmatprep.mubr.bf16.mxu0 %v1585
        %1623 = vmatmul.mubr.bf16.gmra.mrb[0].mxu0 %v857
        %v1624 = vpop.f32.mrb[0].mxu0
        %v1625 = vadd.f32 0.0, %v1624
        %v1626 = vpop.f32.mrb[0].mxu0
        %v1627 = vadd.f32 0.0, %v1626
        %v1628 = vpop.f32.mrb[0].mxu0
        %v1629 = vadd.f32 0.0, %v1628
        %v1630 = vpop.f32.mrb[0].mxu0
        %v1631 = vadd.f32 0.0, %v1630
        %1632 = vmatprep.mubr.bf16.mxu0 %v1588
        %1633 = vmatmul.mubr.bf16.gmra.mrb[0].mxu0 %v859
        %v1634 = vpop.f32.mrb[0].mxu0
        %v1635 = vadd.f32 0.0, %v1634
        %v1636 = vpop.f32.mrb[0].mxu0
        %v1637 = vadd.f32 0.0, %v1636
        %v1638 = vpop.f32.mrb[0].mxu0
        %v1639 = vadd.f32 0.0, %v1638
        %v1640 = vpop.f32.mrb[0].mxu0
        %v1641 = vadd.f32 0.0, %v1640
        %1642 = vdwg.mxu0
        %1643 = vmatprep.subr.bf16.mxu0 %v1298
        %1644 = vmatpush1.bf16.msra.mxu0 %v1297
        %1645 = vmatprep.subr.bf16.mxu0 %v1314
        %1646 = vmatpush1.bf16.msra.mxu0 %v1313
        %1647 = vmatprep.subr.bf16.mxu0 %v1330
        %1648 = vmatpush1.bf16.msra.mxu0 %v1329
        %1649 = vmatprep.subr.bf16.mxu0 %v1346
        %1650 = vmatpush1.bf16.msra.mxu0 %v1345
        %1651 = vmatprep.subr.bf16.mxu0 %v1362
        %1652 = vmatpush1.bf16.msra.mxu0 %v1361
        %1653 = vmatprep.subr.bf16.mxu0 %v1378
        %1654 = vmatpush1.bf16.msra.mxu0 %v1377
        %1655 = vmatprep.subr.bf16.mxu0 %v1394
        %1656 = vmatpush1.bf16.msra.mxu0 %v1393
        %1657 = vmatprep.subr.bf16.mxu0 %v1410
        %1658 = vmatpush1.bf16.msra.mxu0 %v1409
        %1659 = vmatprep.subr.bf16.mxu0 %v1426
        %1660 = vmatpush1.bf16.msra.mxu0 %v1425
        %1661 = vmatprep.subr.bf16.mxu0 0
        %1662 = vmatpush1.bf16.msra.mxu0 0
        %1663 = vmatprep.subr.bf16.mxu0 0
        %1664 = vmatpush1.bf16.msra.mxu0 0
        %1665 = vmatprep.subr.bf16.mxu0 0
        %1666 = vmatpush1.bf16.msra.mxu0 0
        %1667 = vmatprep.subr.bf16.mxu0 0
        %1668 = vmatpush1.bf16.msra.mxu0 0
        %1669 = vmatprep.subr.bf16.mxu0 0
        %1670 = vmatpush1.bf16.msra.mxu0 0
        %1671 = vmatprep.subr.bf16.mxu0 0
        %1672 = vmatpush1.bf16.msra.mxu0 0
        %1673 = vmatprep.subr.bf16.mxu0 0
        %1674 = vmatpush1.bf16.msra.mxu0 0
        %1675 = vmatprep.mubr.bf16.mxu0 %v1585
        %1676 = vmatmul.mubr.bf16.gmra.mrb[0].mxu0 %v857
        %v1677 = vpop.f32.mrb[0].mxu0
        %v1678 = vadd.f32 0.0, %v1677
        %v1679 = vpop.f32.mrb[0].mxu0
        %v1680 = vadd.f32 0.0, %v1679
        %v1681 = vpop.f32.mrb[0].mxu0
        %v1682 = vadd.f32 0.0, %v1681
        %v1683 = vpop.f32.mrb[0].mxu0
        %v1684 = vadd.f32 0.0, %v1683
        %1685 = vmatprep.mubr.bf16.mxu0 %v1588
        %1686 = vmatmul.mubr.bf16.gmra.mrb[0].mxu0 %v859
        %v1687 = vpop.f32.mrb[0].mxu0
        %v1688 = vadd.f32 0.0, %v1687
        %v1689 = vpop.f32.mrb[0].mxu0
        %v1690 = vadd.f32 0.0, %v1689
        %v1691 = vpop.f32.mrb[0].mxu0
        %v1692 = vadd.f32 0.0, %v1691
        %v1693 = vpop.f32.mrb[0].mxu0
        %v1694 = vadd.f32 0.0, %v1693
        %1695 = vdwg.mxu0
        %1696 = vmatprep.subr.bf16.mxu0 %v1300
        %1697 = vmatpush1.bf16.msra.mxu0 %v1299
        %1698 = vmatprep.subr.bf16.mxu0 %v1316
        %1699 = vmatpush1.bf16.msra.mxu0 %v1315
        %1700 = vmatprep.subr.bf16.mxu0 %v1332
        %1701 = vmatpush1.bf16.msra.mxu0 %v1331
        %1702 = vmatprep.subr.bf16.mxu0 %v1348
        %1703 = vmatpush1.bf16.msra.mxu0 %v1347
        %1704 = vmatprep.subr.bf16.mxu0 %v1364
        %1705 = vmatpush1.bf16.msra.mxu0 %v1363
        %1706 = vmatprep.subr.bf16.mxu0 %v1380
        %1707 = vmatpush1.bf16.msra.mxu0 %v1379
        %1708 = vmatprep.subr.bf16.mxu0 %v1396
        %1709 = vmatpush1.bf16.msra.mxu0 %v1395
        %1710 = vmatprep.subr.bf16.mxu0 %v1412
        %1711 = vmatpush1.bf16.msra.mxu0 %v1411
        %1712 = vmatprep.subr.bf16.mxu0 %v1428
        %1713 = vmatpush1.bf16.msra.mxu0 %v1427
        %1714 = vmatprep.subr.bf16.mxu0 0
        %1715 = vmatpush1.bf16.msra.mxu0 0
        %1716 = vmatprep.subr.bf16.mxu0 0
        %1717 = vmatpush1.bf16.msra.mxu0 0
        %1718 = vmatprep.subr.bf16.mxu0 0
        %1719 = vmatpush1.bf16.msra.mxu0 0
        %1720 = vmatprep.subr.bf16.mxu0 0
        %1721 = vmatpush1.bf16.msra.mxu0 0
        %1722 = vmatprep.subr.bf16.mxu0 0
        %1723 = vmatpush1.bf16.msra.mxu0 0
        %1724 = vmatprep.subr.bf16.mxu0 0
        %1725 = vmatpush1.bf16.msra.mxu0 0
        %1726 = vmatprep.subr.bf16.mxu0 0
        %1727 = vmatpush1.bf16.msra.mxu0 0
        %1728 = vmatprep.mubr.bf16.mxu0 %v1585
        %1729 = vmatmul.mubr.bf16.gmra.mrb[0].mxu0 %v857
        %v1730 = vpop.f32.mrb[0].mxu0
        %v1731 = vadd.f32 0.0, %v1730
        %v1732 = vpop.f32.mrb[0].mxu0
        %v1733 = vadd.f32 0.0, %v1732
        %v1734 = vpop.f32.mrb[0].mxu0
        %v1735 = vadd.f32 0.0, %v1734
        %v1736 = vpop.f32.mrb[0].mxu0
        %v1737 = vadd.f32 0.0, %v1736
        %1738 = vmatprep.mubr.bf16.mxu0 %v1588
        %1739 = vmatmul.mubr.bf16.gmra.mrb[0].mxu0 %v859
        %v1740 = vpop.f32.mrb[0].mxu0
        %v1741 = vadd.f32 0.0, %v1740
        %v1742 = vpop.f32.mrb[0].mxu0
        %v1743 = vadd.f32 0.0, %v1742
        %v1744 = vpop.f32.mrb[0].mxu0
        %v1745 = vadd.f32 0.0, %v1744
        %v1746 = vpop.f32.mrb[0].mxu0
        %v1747 = vadd.f32 0.0, %v1746
        %1748 = vdwg.mxu0
        %1749 = vmatprep.subr.bf16.mxu0 %v1302
        %1750 = vmatpush1.bf16.msra.mxu0 %v1301
        %1751 = vmatprep.subr.bf16.mxu0 %v1318
        %1752 = vmatpush1.bf16.msra.mxu0 %v1317
        %1753 = vmatprep.subr.bf16.mxu0 %v1334
        %1754 = vmatpush1.bf16.msra.mxu0 %v1333
        %1755 = vmatprep.subr.bf16.mxu0 %v1350
        %1756 = vmatpush1.bf16.msra.mxu0 %v1349
        %1757 = vmatprep.subr.bf16.mxu0 %v1366
        %1758 = vmatpush1.bf16.msra.mxu0 %v1365
        %1759 = vmatprep.subr.bf16.mxu0 %v1382
        %1760 = vmatpush1.bf16.msra.mxu0 %v1381
        %1761 = vmatprep.subr.bf16.mxu0 %v1398
        %1762 = vmatpush1.bf16.msra.mxu0 %v1397
        %1763 = vmatprep.subr.bf16.mxu0 %v1414
        %1764 = vmatpush1.bf16.msra.mxu0 %v1413
        %1765 = vmatprep.subr.bf16.mxu0 %v1430
        %1766 = vmatpush1.bf16.msra.mxu0 %v1429
        %1767 = vmatprep.subr.bf16.mxu0 0
        %1768 = vmatpush1.bf16.msra.mxu0 0
        %1769 = vmatprep.subr.bf16.mxu0 0
        %1770 = vmatpush1.bf16.msra.mxu0 0
        %1771 = vmatprep.subr.bf16.mxu0 0
        %1772 = vmatpush1.bf16.msra.mxu0 0
        %1773 = vmatprep.subr.bf16.mxu0 0
        %1774 = vmatpush1.bf16.msra.mxu0 0
        %1775 = vmatprep.subr.bf16.mxu0 0
        %1776 = vmatpush1.bf16.msra.mxu0 0
        %1777 = vmatprep.subr.bf16.mxu0 0
        %1778 = vmatpush1.bf16.msra.mxu0 0
        %1779 = vmatprep.subr.bf16.mxu0 0
        %1780 = vmatpush1.bf16.msra.mxu0 0
        %1781 = vmatprep.mubr.bf16.mxu0 %v1585
        %1782 = vmatmul.mubr.bf16.gmra.mrb[0].mxu0 %v857
        %v1783 = vpop.f32.mrb[0].mxu0
        %v1784 = vadd.f32 0.0, %v1783
        %v1785 = vpop.f32.mrb[0].mxu0
        %v1786 = vadd.f32 0.0, %v1785
        %v1787 = vpop.f32.mrb[0].mxu0
        %v1788 = vadd.f32 0.0, %v1787
        %v1789 = vpop.f32.mrb[0].mxu0
        %v1790 = vadd.f32 0.0, %v1789
        %1791 = vmatprep.mubr.bf16.mxu0 %v1588
        %1792 = vmatmul.mubr.bf16.gmra.mrb[0].mxu0 %v859
        %v1793 = vpop.f32.mrb[0].mxu0
        %v1794 = vadd.f32 0.0, %v1793
        %v1795 = vpop.f32.mrb[0].mxu0
        %v1796 = vadd.f32 0.0, %v1795
        %v1797 = vpop.f32.mrb[0].mxu0
        %v1798 = vadd.f32 0.0, %v1797
        %v1799 = vpop.f32.mrb[0].mxu0
        %v1800 = vadd.f32 0.0, %v1799
        %1801 = vdwg.mxu0
        %1802 = vmatprep.subr.bf16.mxu0 %v1304
        %1803 = vmatpush1.bf16.msra.mxu0 %v1303
        %1804 = vmatprep.subr.bf16.mxu0 %v1320
        %1805 = vmatpush1.bf16.msra.mxu0 %v1319
        %1806 = vmatprep.subr.bf16.mxu0 %v1336
        %1807 = vmatpush1.bf16.msra.mxu0 %v1335
        %1808 = vmatprep.subr.bf16.mxu0 %v1352
        %1809 = vmatpush1.bf16.msra.mxu0 %v1351
        %1810 = vmatprep.subr.bf16.mxu0 %v1368
        %1811 = vmatpush1.bf16.msra.mxu0 %v1367
        %1812 = vmatprep.subr.bf16.mxu0 %v1384
        %1813 = vmatpush1.bf16.msra.mxu0 %v1383
        %1814 = vmatprep.subr.bf16.mxu0 %v1400
        %1815 = vmatpush1.bf16.msra.mxu0 %v1399
        %1816 = vmatprep.subr.bf16.mxu0 %v1416
        %1817 = vmatpush1.bf16.msra.mxu0 %v1415
        %1818 = vmatprep.subr.bf16.mxu0 %v1432
        %1819 = vmatpush1.bf16.msra.mxu0 %v1431
        %1820 = vmatprep.subr.bf16.mxu0 0
        %1821 = vmatpush1.bf16.msra.mxu0 0
        %1822 = vmatprep.subr.bf16.mxu0 0
        %1823 = vmatpush1.bf16.msra.mxu0 0
        %1824 = vmatprep.subr.bf16.mxu0 0
        %1825 = vmatpush1.bf16.msra.mxu0 0
        %1826 = vmatprep.subr.bf16.mxu0 0
        %1827 = vmatpush1.bf16.msra.mxu0 0
        %1828 = vmatprep.subr.bf16.mxu0 0
        %1829 = vmatpush1.bf16.msra.mxu0 0
        %1830 = vmatprep.subr.bf16.mxu0 0
        %1831 = vmatpush1.bf16.msra.mxu0 0
        %1832 = vmatprep.subr.bf16.mxu0 0
        %1833 = vmatpush1.bf16.msra.mxu0 0
        %1834 = vmatprep.mubr.bf16.mxu0 %v1585
        %1835 = vmatmul.mubr.bf16.gmra.mrb[0].mxu0 %v857
        %v1836 = vpop.f32.mrb[0].mxu0
        %v1837 = vadd.f32 0.0, %v1836
        %v1838 = vpop.f32.mrb[0].mxu0
        %v1839 = vadd.f32 0.0, %v1838
        %v1840 = vpop.f32.mrb[0].mxu0
        %v1841 = vadd.f32 0.0, %v1840
        %v1842 = vpop.f32.mrb[0].mxu0
        %v1843 = vadd.f32 0.0, %v1842
        %1844 = vmatprep.mubr.bf16.mxu0 %v1588
        %1845 = vmatmul.mubr.bf16.gmra.mrb[0].mxu0 %v859
        %v1846 = vpop.f32.mrb[0].mxu0
        %v1847 = vadd.f32 0.0, %v1846
        %v1848 = vpop.f32.mrb[0].mxu0
        %v1849 = vadd.f32 0.0, %v1848
        %v1850 = vpop.f32.mrb[0].mxu0
        %v1851 = vadd.f32 0.0, %v1850
        %v1852 = vpop.f32.mrb[0].mxu0
        %v1853 = vadd.f32 0.0, %v1852
        %1854 = vdwg.mxu0
        %1855 = vmatprep.subr.bf16.mxu0 %v1306
        %1856 = vmatpush1.bf16.msra.mxu0 %v1305
        %1857 = vmatprep.subr.bf16.mxu0 %v1322
        %1858 = vmatpush1.bf16.msra.mxu0 %v1321
        %1859 = vmatprep.subr.bf16.mxu0 %v1338
        %1860 = vmatpush1.bf16.msra.mxu0 %v1337
        %1861 = vmatprep.subr.bf16.mxu0 %v1354
        %1862 = vmatpush1.bf16.msra.mxu0 %v1353
        %1863 = vmatprep.subr.bf16.mxu0 %v1370
        %1864 = vmatpush1.bf16.msra.mxu0 %v1369
        %1865 = vmatprep.subr.bf16.mxu0 %v1386
        %1866 = vmatpush1.bf16.msra.mxu0 %v1385
        %1867 = vmatprep.subr.bf16.mxu0 %v1402
        %1868 = vmatpush1.bf16.msra.mxu0 %v1401
        %1869 = vmatprep.subr.bf16.mxu0 %v1418
        %1870 = vmatpush1.bf16.msra.mxu0 %v1417
        %1871 = vmatprep.subr.bf16.mxu0 %v1434
        %1872 = vmatpush1.bf16.msra.mxu0 %v1433
        %1873 = vmatprep.subr.bf16.mxu0 0
        %1874 = vmatpush1.bf16.msra.mxu0 0
        %1875 = vmatprep.subr.bf16.mxu0 0
        %1876 = vmatpush1.bf16.msra.mxu0 0
        %1877 = vmatprep.subr.bf16.mxu0 0
        %1878 = vmatpush1.bf16.msra.mxu0 0
        %1879 = vmatprep.subr.bf16.mxu0 0
        %1880 = vmatpush1.bf16.msra.mxu0 0
        %1881 = vmatprep.subr.bf16.mxu0 0
        %1882 = vmatpush1.bf16.msra.mxu0 0
        %1883 = vmatprep.subr.bf16.mxu0 0
        %1884 = vmatpush1.bf16.msra.mxu0 0
        %1885 = vmatprep.subr.bf16.mxu0 0
        %1886 = vmatpush1.bf16.msra.mxu0 0
        %1887 = vmatprep.mubr.bf16.mxu0 %v1585
        %1888 = vmatmul.mubr.bf16.gmra.mrb[0].mxu0 %v857
        %v1889 = vpop.f32.mrb[0].mxu0
        %v1890 = vadd.f32 0.0, %v1889
        %v1891 = vpop.f32.mrb[0].mxu0
        %v1892 = vadd.f32 0.0, %v1891
        %v1893 = vpop.f32.mrb[0].mxu0
        %v1894 = vadd.f32 0.0, %v1893
        %v1895 = vpop.f32.mrb[0].mxu0
        %v1896 = vadd.f32 0.0, %v1895
        %1897 = vmatprep.mubr.bf16.mxu0 %v1588
        %1898 = vmatmul.mubr.bf16.gmra.mrb[0].mxu0 %v859
        %v1899 = vpop.f32.mrb[0].mxu0
        %v1900 = vadd.f32 0.0, %v1899
        %v1901 = vpop.f32.mrb[0].mxu0
        %v1902 = vadd.f32 0.0, %v1901
        %v1903 = vpop.f32.mrb[0].mxu0
        %v1904 = vadd.f32 0.0, %v1903
        %v1905 = vpop.f32.mrb[0].mxu0
        %v1906 = vadd.f32 0.0, %v1905
        %1907 = vdwg.mxu0
        %1908 = vmatprep.subr.bf16.mxu0 %v1308
        %1909 = vmatpush1.bf16.msra.mxu0 %v1307
        %1910 = vmatprep.subr.bf16.mxu0 %v1324
        %1911 = vmatpush1.bf16.msra.mxu0 %v1323
        %1912 = vmatprep.subr.bf16.mxu0 %v1340
        %1913 = vmatpush1.bf16.msra.mxu0 %v1339
        %1914 = vmatprep.subr.bf16.mxu0 %v1356
        %1915 = vmatpush1.bf16.msra.mxu0 %v1355
        %1916 = vmatprep.subr.bf16.mxu0 %v1372
        %1917 = vmatpush1.bf16.msra.mxu0 %v1371
        %1918 = vmatprep.subr.bf16.mxu0 %v1388
        %1919 = vmatpush1.bf16.msra.mxu0 %v1387
        %1920 = vmatprep.subr.bf16.mxu0 %v1404
        %1921 = vmatpush1.bf16.msra.mxu0 %v1403
        %1922 = vmatprep.subr.bf16.mxu0 %v1420
        %1923 = vmatpush1.bf16.msra.mxu0 %v1419
        %1924 = vmatprep.subr.bf16.mxu0 %v1436
        %1925 = vmatpush1.bf16.msra.mxu0 %v1435
        %1926 = vmatprep.subr.bf16.mxu0 0
        %1927 = vmatpush1.bf16.msra.mxu0 0
        %1928 = vmatprep.subr.bf16.mxu0 0
        %1929 = vmatpush1.bf16.msra.mxu0 0
        %1930 = vmatprep.subr.bf16.mxu0 0
        %1931 = vmatpush1.bf16.msra.mxu0 0
        %1932 = vmatprep.subr.bf16.mxu0 0
        %1933 = vmatpush1.bf16.msra.mxu0 0
        %1934 = vmatprep.subr.bf16.mxu0 0
        %1935 = vmatpush1.bf16.msra.mxu0 0
        %1936 = vmatprep.subr.bf16.mxu0 0
        %1937 = vmatpush1.bf16.msra.mxu0 0
        %1938 = vmatprep.subr.bf16.mxu0 0
        %1939 = vmatpush1.bf16.msra.mxu0 0
        %1940 = vmatprep.mubr.bf16.mxu0 %v1585
        %1941 = vmatmul.mubr.bf16.gmra.mrb[0].mxu0 %v857
        %v1942 = vpop.f32.mrb[0].mxu0
        %v1943 = vadd.f32 0.0, %v1942
        %v1944 = vpop.f32.mrb[0].mxu0
        %v1945 = vadd.f32 0.0, %v1944
        %v1946 = vpop.f32.mrb[0].mxu0
        %v1947 = vadd.f32 0.0, %v1946
        %v1948 = vpop.f32.mrb[0].mxu0
        %v1949 = vadd.f32 0.0, %v1948
        %1950 = vmatprep.mubr.bf16.mxu0 %v1588
        %1951 = vmatmul.mubr.bf16.gmra.mrb[0].mxu0 %v859
        %v1952 = vpop.f32.mrb[0].mxu0
        %v1953 = vadd.f32 0.0, %v1952
        %v1954 = vpop.f32.mrb[0].mxu0
        %v1955 = vadd.f32 0.0, %v1954
        %v1956 = vpop.f32.mrb[0].mxu0
        %v1957 = vadd.f32 0.0, %v1956
        %v1958 = vpop.f32.mrb[0].mxu0
        %v1959 = vadd.f32 0.0, %v1958
        %1960 = vdwg.mxu0
        %1961 = vmatprep.subr.bf16.mxu0 %v1310
        %1962 = vmatpush1.bf16.msra.mxu0 %v1309
        %1963 = vmatprep.subr.bf16.mxu0 %v1326
        %1964 = vmatpush1.bf16.msra.mxu0 %v1325
        %1965 = vmatprep.subr.bf16.mxu0 %v1342
        %1966 = vmatpush1.bf16.msra.mxu0 %v1341
        %1967 = vmatprep.subr.bf16.mxu0 %v1358
        %1968 = vmatpush1.bf16.msra.mxu0 %v1357
        %1969 = vmatprep.subr.bf16.mxu0 %v1374
        %1970 = vmatpush1.bf16.msra.mxu0 %v1373
        %1971 = vmatprep.subr.bf16.mxu0 %v1390
        %1972 = vmatpush1.bf16.msra.mxu0 %v1389
        %1973 = vmatprep.subr.bf16.mxu0 %v1406
        %1974 = vmatpush1.bf16.msra.mxu0 %v1405
        %1975 = vmatprep.subr.bf16.mxu0 %v1422
        %1976 = vmatpush1.bf16.msra.mxu0 %v1421
        %1977 = vmatprep.subr.bf16.mxu0 %v1438
        %1978 = vmatpush1.bf16.msra.mxu0 %v1437
        %1979 = vmatprep.subr.bf16.mxu0 0
        %1980 = vmatpush1.bf16.msra.mxu0 0
        %1981 = vmatprep.subr.bf16.mxu0 0
        %1982 = vmatpush1.bf16.msra.mxu0 0
        %1983 = vmatprep.subr.bf16.mxu0 0
        %1984 = vmatpush1.bf16.msra.mxu0 0
        %1985 = vmatprep.subr.bf16.mxu0 0
        %1986 = vmatpush1.bf16.msra.mxu0 0
        %1987 = vmatprep.subr.bf16.mxu0 0
        %1988 = vmatpush1.bf16.msra.mxu0 0
        %1989 = vmatprep.subr.bf16.mxu0 0
        %1990 = vmatpush1.bf16.msra.mxu0 0
        %1991 = vmatprep.subr.bf16.mxu0 0
        %1992 = vmatpush1.bf16.msra.mxu0 0
        %1993 = vmatprep.mubr.bf16.mxu0 %v1585
        %1994 = vmatmul.mubr.bf16.gmra.mrb[0].mxu0 %v857
        %v1995 = vpop.f32.mrb[0].mxu0
        %v1996 = vadd.f32 0.0, %v1995
        %v1997 = vpop.f32.mrb[0].mxu0
        %v1998 = vadd.f32 0.0, %v1997
        %v1999 = vpop.f32.mrb[0].mxu0
        %v2000 = vadd.f32 0.0, %v1999
        %v2001 = vpop.f32.mrb[0].mxu0
        %v2002 = vadd.f32 0.0, %v2001
        %2003 = vmatprep.mubr.bf16.mxu0 %v1588
        %2004 = vmatmul.mubr.bf16.gmra.mrb[0].mxu0 %v859
        %v2005 = vpop.f32.mrb[0].mxu0
        %v2006 = vadd.f32 0.0, %v2005
        %v2007 = vpop.f32.mrb[0].mxu0
        %v2008 = vadd.f32 0.0, %v2007
        %v2009 = vpop.f32.mrb[0].mxu0
        %v2010 = vadd.f32 0.0, %v2009
        %v2011 = vpop.f32.mrb[0].mxu0
        %v2012 = vadd.f32 0.0, %v2011
        %2013 = vdwg.mxu0
        %v2014 = vadd.f32 %v633, %v1625
        %v2015 = vadd.f32 %v634, %v1627
        %v2016 = vadd.f32 %v635, %v1678
        %v2017 = vadd.f32 %v636, %v1680
        %v2018 = vadd.f32 %v637, %v1731
        %v2019 = vadd.f32 %v638, %v1733
        %v2020 = vadd.f32 %v639, %v1784
        %v2021 = vadd.f32 %v640, %v1786
        %v2022 = vadd.f32 %v641, %v1837
        %v2023 = vadd.f32 %v642, %v1839
        %v2024 = vadd.f32 %v643, %v1890
        %v2025 = vadd.f32 %v644, %v1892
        %v2026 = vadd.f32 %v645, %v1943
        %v2027 = vadd.f32 %v646, %v1945
        %v2028 = vadd.f32 %v647, %v1996
        %v2029 = vadd.f32 %v648, %v1998
        %v2030 = vadd.f32 %v649, %v1629
        %v2031 = vadd.f32 %v650, %v1631
        %v2032 = vadd.f32 %v651, %v1682
        %v2033 = vadd.f32 %v652, %v1684
        %v2034 = vadd.f32 %v653, %v1735
        %v2035 = vadd.f32 %v654, %v1737
        %v2036 = vadd.f32 %v655, %v1788
        %v2037 = vadd.f32 %v656, %v1790
        %v2038 = vadd.f32 %v657, %v1841
        %v2039 = vadd.f32 %v658, %v1843
        %v2040 = vadd.f32 %v659, %v1894
        %v2041 = vadd.f32 %v660, %v1896
        %v2042 = vadd.f32 %v661, %v1947
        %v2043 = vadd.f32 %v662, %v1949
        %v2044 = vadd.f32 %v663, %v2000
        %v2045 = vadd.f32 %v664, %v2002
        %v2046 = vadd.f32 %v665, %v1635
        %v2047 = vadd.f32 %v666, %v1637
        %v2048 = vadd.f32 %v667, %v1688
        %v2049 = vadd.f32 %v668, %v1690
        %v2050 = vadd.f32 %v669, %v1741
        %v2051 = vadd.f32 %v670, %v1743
        %v2052 = vadd.f32 %v671, %v1794
        %v2053 = vadd.f32 %v672, %v1796
        %v2054 = vadd.f32 %v673, %v1847
        %v2055 = vadd.f32 %v674, %v1849
        %v2056 = vadd.f32 %v675, %v1900
        %v2057 = vadd.f32 %v676, %v1902
        %v2058 = vadd.f32 %v677, %v1953
        %v2059 = vadd.f32 %v678, %v1955
        %v2060 = vadd.f32 %v679, %v2006
        %v2061 = vadd.f32 %v680, %v2008
        %v2062 = vadd.f32 %v681, %v1639
        %v2063 = vadd.f32 %v682, %v1641
        %v2064 = vadd.f32 %v683, %v1692
        %v2065 = vadd.f32 %v684, %v1694
        %v2066 = vadd.f32 %v685, %v1745
        %v2067 = vadd.f32 %v686, %v1747
        %v2068 = vadd.f32 %v687, %v1798
        %v2069 = vadd.f32 %v688, %v1800
        %v2070 = vadd.f32 %v689, %v1851
        %v2071 = vadd.f32 %v690, %v1853
        %v2072 = vadd.f32 %v691, %v1904
        %v2073 = vadd.f32 %v692, %v1906
        %v2074 = vadd.f32 %v693, %v1957
        %v2075 = vadd.f32 %v694, %v1959
        %v2076 = vadd.f32 %v695, %v2010
        %v2077 = vadd.f32 %v696, %v2012
        %2078 = vst [vmem:[#allocation2] sm:$0xff] %v2014
        %2079 = vst [vmem:[#allocation2 + $0x8] sm:$0xff] %v2015
        %2080 = vst [vmem:[#allocation2 + $0x10] sm:$0xff] %v2016
        %2081 = vst [vmem:[#allocation2 + $0x18] sm:$0xff] %v2017
        %2082 = vst [vmem:[#allocation2 + $0x20] sm:$0xff] %v2018
        %2083 = vst [vmem:[#allocation2 + $0x28] sm:$0xff] %v2019
        %2084 = vst [vmem:[#allocation2 + $0x30] sm:$0xff] %v2020
        %2085 = vst [vmem:[#allocation2 + $0x38] sm:$0xff] %v2021
        %2086 = vst [vmem:[#allocation2 + $0x40] sm:$0xff] %v2022
        %2087 = vst [vmem:[#allocation2 + $0x48] sm:$0xff] %v2023
        %2088 = vst [vmem:[#allocation2 + $0x50] sm:$0xff] %v2024
        %2089 = vst [vmem:[#allocation2 + $0x58] sm:$0xff] %v2025
        %2090 = vst [vmem:[#allocation2 + $0x60] sm:$0xff] %v2026
        %2091 = vst [vmem:[#allocation2 + $0x68] sm:$0xff] %v2027
        %2092 = vst [vmem:[#allocation2 + $0x70] sm:$0xff] %v2028
        %2093 = vst [vmem:[#allocation2 + $0x78] sm:$0xff] %v2029
        %2094 = vst [vmem:[#allocation2 + $0x80] sm:$0xff] %v2030
        %2095 = vst [vmem:[#allocation2 + $0x88] sm:$0xff] %v2031
        %2096 = vst [vmem:[#allocation2 + $0x90] sm:$0xff] %v2032
        %2097 = vst [vmem:[#allocation2 + $0x98] sm:$0xff] %v2033
        %2098 = vst [vmem:[#allocation2 + $0xa0] sm:$0xff] %v2034
        %2099 = vst [vmem:[#allocation2 + $0xa8] sm:$0xff] %v2035
        %2100 = vst [vmem:[#allocation2 + $0xb0] sm:$0xff] %v2036
        %2101 = vst [vmem:[#allocation2 + $0xb8] sm:$0xff] %v2037
        %2102 = vst [vmem:[#allocation2 + $0xc0] sm:$0xff] %v2038
        %2103 = vst [vmem:[#allocation2 + $0xc8] sm:$0xff] %v2039
        %2104 = vst [vmem:[#allocation2 + $0xd0] sm:$0xff] %v2040
        %2105 = vst [vmem:[#allocation2 + $0xd8] sm:$0xff] %v2041
        %2106 = vst [vmem:[#allocation2 + $0xe0] sm:$0xff] %v2042
        %2107 = vst [vmem:[#allocation2 + $0xe8] sm:$0xff] %v2043
        %2108 = vst [vmem:[#allocation2 + $0xf0] sm:$0xff] %v2044
        %2109 = vst [vmem:[#allocation2 + $0xf8] sm:$0xff] %v2045
        %2110 = vst [vmem:[#allocation2 + $0x100] sm:$0xff] %v2046
        %2111 = vst [vmem:[#allocation2 + $0x108] sm:$0xff] %v2047
        %2112 = vst [vmem:[#allocation2 + $0x110] sm:$0xff] %v2048
        %2113 = vst [vmem:[#allocation2 + $0x118] sm:$0xff] %v2049
        %2114 = vst [vmem:[#allocation2 + $0x120] sm:$0xff] %v2050
        %2115 = vst [vmem:[#allocation2 + $0x128] sm:$0xff] %v2051
        %2116 = vst [vmem:[#allocation2 + $0x130] sm:$0xff] %v2052
        %2117 = vst [vmem:[#allocation2 + $0x138] sm:$0xff] %v2053
        %2118 = vst [vmem:[#allocation2 + $0x140] sm:$0xff] %v2054
        %2119 = vst [vmem:[#allocation2 + $0x148] sm:$0xff] %v2055
        %2120 = vst [vmem:[#allocation2 + $0x150] sm:$0xff] %v2056
        %2121 = vst [vmem:[#allocation2 + $0x158] sm:$0xff] %v2057
        %2122 = vst [vmem:[#allocation2 + $0x160] sm:$0xff] %v2058
        %2123 = vst [vmem:[#allocation2 + $0x168] sm:$0xff] %v2059
        %2124 = vst [vmem:[#allocation2 + $0x170] sm:$0xff] %v2060
        %2125 = vst [vmem:[#allocation2 + $0x178] sm:$0xff] %v2061
        %2126 = vst [vmem:[#allocation2 + $0x180] sm:$0xff] %v2062
        %2127 = vst [vmem:[#allocation2 + $0x188] sm:$0xff] %v2063
        %2128 = vst [vmem:[#allocation2 + $0x190] sm:$0xff] %v2064
        %2129 = vst [vmem:[#allocation2 + $0x198] sm:$0xff] %v2065
        %2130 = vst [vmem:[#allocation2 + $0x1a0] sm:$0xff] %v2066
        %2131 = vst [vmem:[#allocation2 + $0x1a8] sm:$0xff] %v2067
        %2132 = vst [vmem:[#allocation2 + $0x1b0] sm:$0xff] %v2068
        %2133 = vst [vmem:[#allocation2 + $0x1b8] sm:$0xff] %v2069
        %2134 = vst [vmem:[#allocation2 + $0x1c0] sm:$0xff] %v2070
        %2135 = vst [vmem:[#allocation2 + $0x1c8] sm:$0xff] %v2071
        %2136 = vst [vmem:[#allocation2 + $0x1d0] sm:$0xff] %v2072
        %2137 = vst [vmem:[#allocation2 + $0x1d8] sm:$0xff] %v2073
        %2138 = vst [vmem:[#allocation2 + $0x1e0] sm:$0xff] %v2074
        %2139 = vst [vmem:[#allocation2 + $0x1e8] sm:$0xff] %v2075
        %2140 = vst [vmem:[#allocation2 + $0x1f0] sm:$0xff] %v2076
        %2141 = vst [vmem:[#allocation2 + $0x1f8] sm:$0xff] %v2077
        // Predicated region
        $region60: #{_lambda_.8} parent=50 // pred_check
          %p2142 = pneg %p565
        $region61: #{_lambda_.8} parent=50 // pred_check_branch
          %2144 = sbr.rel (%p2142) target = $region63
        $region62: #{_lambda_.8} parent=50 // pred_region
          %v2145 = vld [vmem:[#allocation2] sm:$0xff]
          %v2146 = vld [vmem:[#allocation2 + $0x8] sm:$0xff]
          %v2147 = vld [vmem:[#allocation2 + $0x10] sm:$0xff]
          %v2148 = vld [vmem:[#allocation2 + $0x18] sm:$0xff]
          %v2149 = vld [vmem:[#allocation2 + $0x20] sm:$0xff]
          %v2150 = vld [vmem:[#allocation2 + $0x28] sm:$0xff]
          %v2151 = vld [vmem:[#allocation2 + $0x30] sm:$0xff]
          %v2152 = vld [vmem:[#allocation2 + $0x38] sm:$0xff]
          %v2153 = vld [vmem:[#allocation2 + $0x40] sm:$0xff]
          %v2154 = vld [vmem:[#allocation2 + $0x48] sm:$0xff]
          %v2155 = vld [vmem:[#allocation2 + $0x50] sm:$0xff]
          %v2156 = vld [vmem:[#allocation2 + $0x58] sm:$0xff]
          %v2157 = vld [vmem:[#allocation2 + $0x60] sm:$0xff]
          %v2158 = vld [vmem:[#allocation2 + $0x68] sm:$0xff]
          %v2159 = vld [vmem:[#allocation2 + $0x70] sm:$0xff]
          %v2160 = vld [vmem:[#allocation2 + $0x78] sm:$0xff]
          %v2161 = vld [vmem:[#allocation2 + $0x80] sm:$0xff]
          %v2162 = vld [vmem:[#allocation2 + $0x88] sm:$0xff]
          %v2163 = vld [vmem:[#allocation2 + $0x90] sm:$0xff]
          %v2164 = vld [vmem:[#allocation2 + $0x98] sm:$0xff]
          %v2165 = vld [vmem:[#allocation2 + $0xa0] sm:$0xff]
          %v2166 = vld [vmem:[#allocation2 + $0xa8] sm:$0xff]
          %v2167 = vld [vmem:[#allocation2 + $0xb0] sm:$0xff]
          %v2168 = vld [vmem:[#allocation2 + $0xb8] sm:$0xff]
          %v2169 = vld [vmem:[#allocation2 + $0xc0] sm:$0xff]
          %v2170 = vld [vmem:[#allocation2 + $0xc8] sm:$0xff]
          %v2171 = vld [vmem:[#allocation2 + $0xd0] sm:$0xff]
          %v2172 = vld [vmem:[#allocation2 + $0xd8] sm:$0xff]
          %v2173 = vld [vmem:[#allocation2 + $0xe0] sm:$0xff]
          %v2174 = vld [vmem:[#allocation2 + $0xe8] sm:$0xff]
          %v2175 = vld [vmem:[#allocation2 + $0xf0] sm:$0xff]
          %v2176 = vld [vmem:[#allocation2 + $0xf8] sm:$0xff]
          %v2177 = vld [vmem:[#allocation2 + $0x100] sm:$0xff]
          %v2178 = vld [vmem:[#allocation2 + $0x108] sm:$0xff]
          %v2179 = vld [vmem:[#allocation2 + $0x110] sm:$0xff]
          %v2180 = vld [vmem:[#allocation2 + $0x118] sm:$0xff]
          %v2181 = vld [vmem:[#allocation2 + $0x120] sm:$0xff]
          %v2182 = vld [vmem:[#allocation2 + $0x128] sm:$0xff]
          %v2183 = vld [vmem:[#allocation2 + $0x130] sm:$0xff]
          %v2184 = vld [vmem:[#allocation2 + $0x138] sm:$0xff]
          %v2185 = vld [vmem:[#allocation2 + $0x140] sm:$0xff]
          %v2186 = vld [vmem:[#allocation2 + $0x148] sm:$0xff]
          %v2187 = vld [vmem:[#allocation2 + $0x150] sm:$0xff]
          %v2188 = vld [vmem:[#allocation2 + $0x158] sm:$0xff]
          %v2189 = vld [vmem:[#allocation2 + $0x160] sm:$0xff]
          %v2190 = vld [vmem:[#allocation2 + $0x168] sm:$0xff]
          %v2191 = vld [vmem:[#allocation2 + $0x170] sm:$0xff]
          %v2192 = vld [vmem:[#allocation2 + $0x178] sm:$0xff]
          %v2193 = vld [vmem:[#allocation2 + $0x180] sm:$0xff]
          %v2194 = vld [vmem:[#allocation2 + $0x188] sm:$0xff]
          %v2195 = vld [vmem:[#allocation2 + $0x190] sm:$0xff]
          %v2196 = vld [vmem:[#allocation2 + $0x198] sm:$0xff]
          %v2197 = vld [vmem:[#allocation2 + $0x1a0] sm:$0xff]
          %v2198 = vld [vmem:[#allocation2 + $0x1a8] sm:$0xff]
          %v2199 = vld [vmem:[#allocation2 + $0x1b0] sm:$0xff]
          %v2200 = vld [vmem:[#allocation2 + $0x1b8] sm:$0xff]
          %v2201 = vld [vmem:[#allocation2 + $0x1c0] sm:$0xff]
          %v2202 = vld [vmem:[#allocation2 + $0x1c8] sm:$0xff]
          %v2203 = vld [vmem:[#allocation2 + $0x1d0] sm:$0xff]
          %v2204 = vld [vmem:[#allocation2 + $0x1d8] sm:$0xff]
          %v2205 = vld [vmem:[#allocation2 + $0x1e0] sm:$0xff]
          %v2206 = vld [vmem:[#allocation2 + $0x1e8] sm:$0xff]
          %v2207 = vld [vmem:[#allocation2 + $0x1f0] sm:$0xff]
          %v2208 = vld [vmem:[#allocation2 + $0x1f8] sm:$0xff]
          %v2209 = vld [vmem:[%s560] sm:$0xff]
          %v2210 = vld [vmem:[%s560 + $0x8] sm:$0xff]
          %v2211 = vld [vmem:[%s560 + $0x10] sm:$0xff]
          %v2212 = vld [vmem:[%s560 + $0x18] sm:$0xff]
          %2214 = vset.pattern.permute.xlu0 0
          %2215 = vperm.xlu0 %2214, %v2209
          %v2216 = vpop.permute.xlu0 %2215
          %2219 = vset.pattern.permute.xlu0 0
          %2220 = vperm.xlu0 %2219, %v2210
          %v2221 = vpop.permute.xlu0 %2220
          %2224 = vset.pattern.permute.xlu0 0
          %2225 = vperm.xlu0 %2224, %v2211
          %v2226 = vpop.permute.xlu0 %2225
          %2229 = vset.pattern.permute.xlu0 0
          %2230 = vperm.xlu0 %2229, %v2212
          %v2231 = vpop.permute.xlu0 %2230
          %v2233 = vadd.f32 %v2145, %v2216
          %v2234 = vadd.f32 %v2146, %v2216
          %v2235 = vadd.f32 %v2147, %v2216
          %v2236 = vadd.f32 %v2148, %v2216
          %v2237 = vadd.f32 %v2149, %v2216
          %v2238 = vadd.f32 %v2150, %v2216
          %v2239 = vadd.f32 %v2151, %v2216
          %v2240 = vadd.f32 %v2152, %v2216
          %v2241 = vadd.f32 %v2153, %v2216
          %v2242 = vadd.f32 %v2154, %v2216
          %v2243 = vadd.f32 %v2155, %v2216
          %v2244 = vadd.f32 %v2156, %v2216
          %v2245 = vadd.f32 %v2157, %v2216
          %v2246 = vadd.f32 %v2158, %v2216
          %v2247 = vadd.f32 %v2159, %v2216
          %v2248 = vadd.f32 %v2160, %v2216
          %v2249 = vadd.f32 %v2161, %v2221
          %v2250 = vadd.f32 %v2162, %v2221
          %v2251 = vadd.f32 %v2163, %v2221
          %v2252 = vadd.f32 %v2164, %v2221
          %v2253 = vadd.f32 %v2165, %v2221
          %v2254 = vadd.f32 %v2166, %v2221
          %v2255 = vadd.f32 %v2167, %v2221
          %v2256 = vadd.f32 %v2168, %v2221
          %v2257 = vadd.f32 %v2169, %v2221
          %v2258 = vadd.f32 %v2170, %v2221
          %v2259 = vadd.f32 %v2171, %v2221
          %v2260 = vadd.f32 %v2172, %v2221
          %v2261 = vadd.f32 %v2173, %v2221
          %v2262 = vadd.f32 %v2174, %v2221
          %v2263 = vadd.f32 %v2175, %v2221
          %v2264 = vadd.f32 %v2176, %v2221
          %v2265 = vadd.f32 %v2177, %v2226
          %v2266 = vadd.f32 %v2178, %v2226
          %v2267 = vadd.f32 %v2179, %v2226
          %v2268 = vadd.f32 %v2180, %v2226
          %v2269 = vadd.f32 %v2181, %v2226
          %v2270 = vadd.f32 %v2182, %v2226
          %v2271 = vadd.f32 %v2183, %v2226
          %v2272 = vadd.f32 %v2184, %v2226
          %v2273 = vadd.f32 %v2185, %v2226
          %v2274 = vadd.f32 %v2186, %v2226
          %v2275 = vadd.f32 %v2187, %v2226
          %v2276 = vadd.f32 %v2188, %v2226
          %v2277 = vadd.f32 %v2189, %v2226
          %v2278 = vadd.f32 %v2190, %v2226
          %v2279 = vadd.f32 %v2191, %v2226
          %v2280 = vadd.f32 %v2192, %v2226
          %v2281 = vadd.f32 %v2193, %v2231
          %v2282 = vadd.f32 %v2194, %v2231
          %v2283 = vadd.f32 %v2195, %v2231
          %v2284 = vadd.f32 %v2196, %v2231
          %v2285 = vadd.f32 %v2197, %v2231
          %v2286 = vadd.f32 %v2198, %v2231
          %v2287 = vadd.f32 %v2199, %v2231
          %v2288 = vadd.f32 %v2200, %v2231
          %v2289 = vadd.f32 %v2201, %v2231
          %v2290 = vadd.f32 %v2202, %v2231
          %v2291 = vadd.f32 %v2203, %v2231
          %v2292 = vadd.f32 %v2204, %v2231
          %v2293 = vadd.f32 %v2205, %v2231
          %v2294 = vadd.f32 %v2206, %v2231
          %v2295 = vadd.f32 %v2207, %v2231
          %v2296 = vadd.f32 %v2208, %v2231
          %v2297 = vmax.f32 %v2233, 0.0
          %v2298 = vmax.f32 %v2234, 0.0
          %v2299 = vmax.f32 %v2235, 0.0
          %v2300 = vmax.f32 %v2236, 0.0
          %v2301 = vmax.f32 %v2237, 0.0
          %v2302 = vmax.f32 %v2238, 0.0
          %v2303 = vmax.f32 %v2239, 0.0
          %v2304 = vmax.f32 %v2240, 0.0
          %v2305 = vmax.f32 %v2241, 0.0
          %v2306 = vmax.f32 %v2242, 0.0
          %v2307 = vmax.f32 %v2243, 0.0
          %v2308 = vmax.f32 %v2244, 0.0
          %v2309 = vmax.f32 %v2245, 0.0
          %v2310 = vmax.f32 %v2246, 0.0
          %v2311 = vmax.f32 %v2247, 0.0
          %v2312 = vmax.f32 %v2248, 0.0
          %v2313 = vmax.f32 %v2249, 0.0
          %v2314 = vmax.f32 %v2250, 0.0
          %v2315 = vmax.f32 %v2251, 0.0
          %v2316 = vmax.f32 %v2252, 0.0
          %v2317 = vmax.f32 %v2253, 0.0
          %v2318 = vmax.f32 %v2254, 0.0
          %v2319 = vmax.f32 %v2255, 0.0
          %v2320 = vmax.f32 %v2256, 0.0
          %v2321 = vmax.f32 %v2257, 0.0
          %v2322 = vmax.f32 %v2258, 0.0
          %v2323 = vmax.f32 %v2259, 0.0
          %v2324 = vmax.f32 %v2260, 0.0
          %v2325 = vmax.f32 %v2261, 0.0
          %v2326 = vmax.f32 %v2262, 0.0
          %v2327 = vmax.f32 %v2263, 0.0
          %v2328 = vmax.f32 %v2264, 0.0
          %v2329 = vmax.f32 %v2265, 0.0
          %v2330 = vmax.f32 %v2266, 0.0
          %v2331 = vmax.f32 %v2267, 0.0
          %v2332 = vmax.f32 %v2268, 0.0
          %v2333 = vmax.f32 %v2269, 0.0
          %v2334 = vmax.f32 %v2270, 0.0
          %v2335 = vmax.f32 %v2271, 0.0
          %v2336 = vmax.f32 %v2272, 0.0
          %v2337 = vmax.f32 %v2273, 0.0
          %v2338 = vmax.f32 %v2274, 0.0
          %v2339 = vmax.f32 %v2275, 0.0
          %v2340 = vmax.f32 %v2276, 0.0
          %v2341 = vmax.f32 %v2277, 0.0
          %v2342 = vmax.f32 %v2278, 0.0
          %v2343 = vmax.f32 %v2279, 0.0
          %v2344 = vmax.f32 %v2280, 0.0
          %v2345 = vmax.f32 %v2281, 0.0
          %v2346 = vmax.f32 %v2282, 0.0
          %v2347 = vmax.f32 %v2283, 0.0
          %v2348 = vmax.f32 %v2284, 0.0
          %v2349 = vmax.f32 %v2285, 0.0
          %v2350 = vmax.f32 %v2286, 0.0
          %v2351 = vmax.f32 %v2287, 0.0
          %v2352 = vmax.f32 %v2288, 0.0
          %v2353 = vmax.f32 %v2289, 0.0
          %v2354 = vmax.f32 %v2290, 0.0
          %v2355 = vmax.f32 %v2291, 0.0
          %v2356 = vmax.f32 %v2292, 0.0
          %v2357 = vmax.f32 %v2293, 0.0
          %v2358 = vmax.f32 %v2294, 0.0
          %v2359 = vmax.f32 %v2295, 0.0
          %v2360 = vmax.f32 %v2296, 0.0
          %v2361 = vpack.c.bf16 %v2313, %v2297
          %v2362 = vpack.c.bf16 %v2314, %v2298
          %v2363 = vpack.c.bf16 %v2315, %v2299
          %v2364 = vpack.c.bf16 %v2316, %v2300
          %v2365 = vpack.c.bf16 %v2317, %v2301
          %v2366 = vpack.c.bf16 %v2318, %v2302
          %v2367 = vpack.c.bf16 %v2319, %v2303
          %v2368 = vpack.c.bf16 %v2320, %v2304
          %v2369 = vpack.c.bf16 %v2321, %v2305
          %v2370 = vpack.c.bf16 %v2322, %v2306
          %v2371 = vpack.c.bf16 %v2323, %v2307
          %v2372 = vpack.c.bf16 %v2324, %v2308
          %v2373 = vpack.c.bf16 %v2325, %v2309
          %v2374 = vpack.c.bf16 %v2326, %v2310
          %v2375 = vpack.c.bf16 %v2327, %v2311
          %v2376 = vpack.c.bf16 %v2328, %v2312
          %v2377 = vpack.c.bf16 %v2345, %v2329
          %v2378 = vpack.c.bf16 %v2346, %v2330
          %v2379 = vpack.c.bf16 %v2347, %v2331
          %v2380 = vpack.c.bf16 %v2348, %v2332
          %v2381 = vpack.c.bf16 %v2349, %v2333
          %v2382 = vpack.c.bf16 %v2350, %v2334
          %v2383 = vpack.c.bf16 %v2351, %v2335
          %v2384 = vpack.c.bf16 %v2352, %v2336
          %v2385 = vpack.c.bf16 %v2353, %v2337
          %v2386 = vpack.c.bf16 %v2354, %v2338
          %v2387 = vpack.c.bf16 %v2355, %v2339
          %v2388 = vpack.c.bf16 %v2356, %v2340
          %v2389 = vpack.c.bf16 %v2357, %v2341
          %v2390 = vpack.c.bf16 %v2358, %v2342
          %v2391 = vpack.c.bf16 %v2359, %v2343
          %v2392 = vpack.c.bf16 %v2360, %v2344
          %v2425 = vunpack.c.l.b16 %v2361
          %v2426 = vunpack.c.l.b16 %v2362
          %v2427 = vunpack.c.l.b16 %v2363
          %v2428 = vunpack.c.l.b16 %v2364
          %v2429 = vunpack.c.l.b16 %v2365
          %v2430 = vunpack.c.l.b16 %v2366
          %v2431 = vunpack.c.l.b16 %v2367
          %v2432 = vunpack.c.l.b16 %v2368
          %v2433 = vunpack.c.l.b16 %v2369
          %v2434 = vunpack.c.l.b16 %v2370
          %v2435 = vunpack.c.l.b16 %v2371
          %v2436 = vunpack.c.l.b16 %v2372
          %v2437 = vunpack.c.l.b16 %v2373
          %v2438 = vunpack.c.l.b16 %v2374
          %v2439 = vunpack.c.l.b16 %v2375
          %v2440 = vunpack.c.l.b16 %v2376
          %v2441 = vunpack.c.h.b16 %v2361
          %v2442 = vunpack.c.h.b16 %v2362
          %v2443 = vunpack.c.h.b16 %v2363
          %v2444 = vunpack.c.h.b16 %v2364
          %v2445 = vunpack.c.h.b16 %v2365
          %v2446 = vunpack.c.h.b16 %v2366
          %v2447 = vunpack.c.h.b16 %v2367
          %v2448 = vunpack.c.h.b16 %v2368
          %v2449 = vunpack.c.h.b16 %v2369
          %v2450 = vunpack.c.h.b16 %v2370
          %v2451 = vunpack.c.h.b16 %v2371
          %v2452 = vunpack.c.h.b16 %v2372
          %v2453 = vunpack.c.h.b16 %v2373
          %v2454 = vunpack.c.h.b16 %v2374
          %v2455 = vunpack.c.h.b16 %v2375
          %v2456 = vunpack.c.h.b16 %v2376
          %v2457 = vunpack.c.l.b16 %v2377
          %v2458 = vunpack.c.l.b16 %v2378
          %v2459 = vunpack.c.l.b16 %v2379
          %v2460 = vunpack.c.l.b16 %v2380
          %v2461 = vunpack.c.l.b16 %v2381
          %v2462 = vunpack.c.l.b16 %v2382
          %v2463 = vunpack.c.l.b16 %v2383
          %v2464 = vunpack.c.l.b16 %v2384
          %v2465 = vunpack.c.l.b16 %v2385
          %v2466 = vunpack.c.l.b16 %v2386
          %v2467 = vunpack.c.l.b16 %v2387
          %v2468 = vunpack.c.l.b16 %v2388
          %v2469 = vunpack.c.l.b16 %v2389
          %v2470 = vunpack.c.l.b16 %v2390
          %v2471 = vunpack.c.l.b16 %v2391
          %v2472 = vunpack.c.l.b16 %v2392
          %v2473 = vunpack.c.h.b16 %v2377
          %v2474 = vunpack.c.h.b16 %v2378
          %v2475 = vunpack.c.h.b16 %v2379
          %v2476 = vunpack.c.h.b16 %v2380
          %v2477 = vunpack.c.h.b16 %v2381
          %v2478 = vunpack.c.h.b16 %v2382
          %v2479 = vunpack.c.h.b16 %v2383
          %v2480 = vunpack.c.h.b16 %v2384
          %v2481 = vunpack.c.h.b16 %v2385
          %v2482 = vunpack.c.h.b16 %v2386
          %v2483 = vunpack.c.h.b16 %v2387
          %v2484 = vunpack.c.h.b16 %v2388
          %v2485 = vunpack.c.h.b16 %v2389
          %v2486 = vunpack.c.h.b16 %v2390
          %v2487 = vunpack.c.h.b16 %v2391
          %v2488 = vunpack.c.h.b16 %v2392
          %v2489 = vpack.c.b16 %v2426, %v2425
          %v2490 = vpack.c.b16 %v2428, %v2427
          %v2491 = vpack.c.b16 %v2430, %v2429
          %v2492 = vpack.c.b16 %v2432, %v2431
          %v2493 = vpack.c.b16 %v2434, %v2433
          %v2494 = vpack.c.b16 %v2436, %v2435
          %v2495 = vpack.c.b16 %v2438, %v2437
          %v2496 = vpack.c.b16 %v2440, %v2439
          %v2497 = vpack.c.b16 %v2442, %v2441
          %v2498 = vpack.c.b16 %v2444, %v2443
          %v2499 = vpack.c.b16 %v2446, %v2445
          %v2500 = vpack.c.b16 %v2448, %v2447
          %v2501 = vpack.c.b16 %v2450, %v2449
          %v2502 = vpack.c.b16 %v2452, %v2451
          %v2503 = vpack.c.b16 %v2454, %v2453
          %v2504 = vpack.c.b16 %v2456, %v2455
          %v2505 = vpack.c.b16 %v2458, %v2457
          %v2506 = vpack.c.b16 %v2460, %v2459
          %v2507 = vpack.c.b16 %v2462, %v2461
          %v2508 = vpack.c.b16 %v2464, %v2463
          %v2509 = vpack.c.b16 %v2466, %v2465
          %v2510 = vpack.c.b16 %v2468, %v2467
          %v2511 = vpack.c.b16 %v2470, %v2469
          %v2512 = vpack.c.b16 %v2472, %v2471
          %v2513 = vpack.c.b16 %v2474, %v2473
          %v2514 = vpack.c.b16 %v2476, %v2475
          %v2515 = vpack.c.b16 %v2478, %v2477
          %v2516 = vpack.c.b16 %v2480, %v2479
          %v2517 = vpack.c.b16 %v2482, %v2481
          %v2518 = vpack.c.b16 %v2484, %v2483
          %v2519 = vpack.c.b16 %v2486, %v2485
          %v2520 = vpack.c.b16 %v2488, %v2487
          %2553 = vst [vmem:[%s541] sm:$0xff] %v2489
          %2554 = vst [vmem:[%s541 + $0x8] sm:$0xff] %v2490
          %2555 = vst [vmem:[%s541 + $0x10] sm:$0xff] %v2491
          %2556 = vst [vmem:[%s541 + $0x18] sm:$0xff] %v2492
          %2557 = vst [vmem:[%s541 + $0x20] sm:$0xff] %v2493
          %2558 = vst [vmem:[%s541 + $0x28] sm:$0xff] %v2494
          %2559 = vst [vmem:[%s541 + $0x30] sm:$0xff] %v2495
          %2560 = vst [vmem:[%s541 + $0x38] sm:$0xff] %v2496
          %2561 = vst [vmem:[%s541 + $0x40] sm:$0xff] %v2497
          %2562 = vst [vmem:[%s541 + $0x48] sm:$0xff] %v2498
          %2563 = vst [vmem:[%s541 + $0x50] sm:$0xff] %v2499
          %2564 = vst [vmem:[%s541 + $0x58] sm:$0xff] %v2500
          %2565 = vst [vmem:[%s541 + $0x60] sm:$0xff] %v2501
          %2566 = vst [vmem:[%s541 + $0x68] sm:$0xff] %v2502
          %2567 = vst [vmem:[%s541 + $0x70] sm:$0xff] %v2503
          %2568 = vst [vmem:[%s541 + $0x78] sm:$0xff] %v2504
          %2569 = vst [vmem:[%s541 + $0x80] sm:$0xff] %v2505
          %2570 = vst [vmem:[%s541 + $0x88] sm:$0xff] %v2506
          %2571 = vst [vmem:[%s541 + $0x90] sm:$0xff] %v2507
          %2572 = vst [vmem:[%s541 + $0x98] sm:$0xff] %v2508
          %2573 = vst [vmem:[%s541 + $0xa0] sm:$0xff] %v2509
          %2574 = vst [vmem:[%s541 + $0xa8] sm:$0xff] %v2510
          %2575 = vst [vmem:[%s541 + $0xb0] sm:$0xff] %v2511
          %2576 = vst [vmem:[%s541 + $0xb8] sm:$0xff] %v2512
          %2577 = vst [vmem:[%s541 + $0xc0] sm:$0xff] %v2513
          %2578 = vst [vmem:[%s541 + $0xc8] sm:$0xff] %v2514
          %2579 = vst [vmem:[%s541 + $0xd0] sm:$0xff] %v2515
          %2580 = vst [vmem:[%s541 + $0xd8] sm:$0xff] %v2516
          %2581 = vst [vmem:[%s541 + $0xe0] sm:$0xff] %v2517
          %2582 = vst [vmem:[%s541 + $0xe8] sm:$0xff] %v2518
          %2583 = vst [vmem:[%s541 + $0xf0] sm:$0xff] %v2519
          %2584 = vst [vmem:[%s541 + $0xf8] sm:$0xff] %v2520
        $region63: #{_lambda_.8} parent=50 // pred_fallthru
          _
        %s2585 = sand.u32 %s125, 1
        %s2586 = sand.u32 %s125, 1
        %s2587 = smul.addr %s2586, 256
        %s2588 = scalar_lea.vmem [#allocation4], %s2587
        // Predicated region
        $region64: #{_lambda_.8} parent=50 // pred_check
          %p2589 = pneg %p135
        $region65: #{_lambda_.8} parent=50 // pred_check_branch
          %2591 = sbr.rel (%p2589) target = $region67
        $region66: #{_lambda_.8} parent=50 // pred_region
          %s2592 = smul.u32 4, %s19
          %s2593 = smul.u32 16, %s20
          %s2594 = smul.addr %s2592, 208
          %s2595 = sadd.s32 %s2593, %s2594
          %s2596 = smul.addr %s2595, 4
          %s2597 = scalar_lea.vmem %s3, %s2596
          // Predicated region
          $region68: #{_lambda_.8} parent=66 // pred_check
            _
          $region69: #{_lambda_.8} parent=66 // pred_check_branch
            %2599 = sbr.rel (0) target = $region71
          $region70: #{_lambda_.8} parent=66 // pred_region
            // Predicated region
            $region72: #{_lambda_.8} parent=70 // pred_check
              _
            $region73: #{_lambda_.8} parent=70 // pred_check_branch
              %2601 = sbr.rel (0) target = $region75
            $region74: #{_lambda_.8} parent=70 // pred_region
              loop: start=0, step=1, limit=1
              $region76: #{_lambda_.8} parent=74 // loop_pre_header
                _
              $region77: #{_lambda_.8} parent=74 // loop_header
                %s2603 = sphi 0, %s2607
                %p2604 = scmp.ge.s32.totalorder %s2603, 1
                %s2608 = sphi %s2588, %s2588
                %s2609 = sphi %s2597, %s2597
              $region78: #{_lambda_.8} parent=74 // loop_header_branch
                %2606 = sbr.rel (%p2604) target = $region82
              $region79: #{_lambda_.8} parent=74 // loop_body
                %v2610 = vld [vmem:[%s2608] sm:$0xff]
                %2611 = vst [vmem:[%s2609] sm:$0xff] %v2610
                %v2612 = vld [vmem:[%s2608 + $0x8] sm:$0xff]
                %2613 = vst [vmem:[%s2609 + $0x8] sm:$0xff] %v2612
                %v2614 = vld [vmem:[%s2608 + $0x10] sm:$0xff]
                %2615 = vst [vmem:[%s2609 + $0x10] sm:$0xff] %v2614
                %v2616 = vld [vmem:[%s2608 + $0x18] sm:$0xff]
                %2617 = vst [vmem:[%s2609 + $0x18] sm:$0xff] %v2616
                %v2618 = vld [vmem:[%s2608 + $0x20] sm:$0xff]
                %2619 = vst [vmem:[%s2609 + $0x20] sm:$0xff] %v2618
                %v2620 = vld [vmem:[%s2608 + $0x28] sm:$0xff]
                %2621 = vst [vmem:[%s2609 + $0x28] sm:$0xff] %v2620
                %v2622 = vld [vmem:[%s2608 + $0x30] sm:$0xff]
                %2623 = vst [vmem:[%s2609 + $0x30] sm:$0xff] %v2622
                %v2624 = vld [vmem:[%s2608 + $0x38] sm:$0xff]
                %2625 = vst [vmem:[%s2609 + $0x38] sm:$0xff] %v2624
                %v2626 = vld [vmem:[%s2608 + $0x40] sm:$0xff]
                %2627 = vst [vmem:[%s2609 + $0x340] sm:$0xff] %v2626
                %v2628 = vld [vmem:[%s2608 + $0x48] sm:$0xff]
                %2629 = vst [vmem:[%s2609 + $0x348] sm:$0xff] %v2628
                %v2630 = vld [vmem:[%s2608 + $0x50] sm:$0xff]
                %2631 = vst [vmem:[%s2609 + $0x350] sm:$0xff] %v2630
                %v2632 = vld [vmem:[%s2608 + $0x58] sm:$0xff]
                %2633 = vst [vmem:[%s2609 + $0x358] sm:$0xff] %v2632
                %v2634 = vld [vmem:[%s2608 + $0x60] sm:$0xff]
                %2635 = vst [vmem:[%s2609 + $0x360] sm:$0xff] %v2634
                %v2636 = vld [vmem:[%s2608 + $0x68] sm:$0xff]
                %2637 = vst [vmem:[%s2609 + $0x368] sm:$0xff] %v2636
                %v2638 = vld [vmem:[%s2608 + $0x70] sm:$0xff]
                %2639 = vst [vmem:[%s2609 + $0x370] sm:$0xff] %v2638
                %v2640 = vld [vmem:[%s2608 + $0x78] sm:$0xff]
                %2641 = vst [vmem:[%s2609 + $0x378] sm:$0xff] %v2640
                %v2642 = vld [vmem:[%s2608 + $0x80] sm:$0xff]
                %2643 = vst [vmem:[%s2609 + $0x680] sm:$0xff] %v2642
                %v2644 = vld [vmem:[%s2608 + $0x88] sm:$0xff]
                %2645 = vst [vmem:[%s2609 + $0x688] sm:$0xff] %v2644
                %v2646 = vld [vmem:[%s2608 + $0x90] sm:$0xff]
                %2647 = vst [vmem:[%s2609 + $0x690] sm:$0xff] %v2646
                %v2648 = vld [vmem:[%s2608 + $0x98] sm:$0xff]
                %2649 = vst [vmem:[%s2609 + $0x698] sm:$0xff] %v2648
                %v2650 = vld [vmem:[%s2608 + $0xa0] sm:$0xff]
                %2651 = vst [vmem:[%s2609 + $0x6a0] sm:$0xff] %v2650
                %v2652 = vld [vmem:[%s2608 + $0xa8] sm:$0xff]
                %2653 = vst [vmem:[%s2609 + $0x6a8] sm:$0xff] %v2652
                %v2654 = vld [vmem:[%s2608 + $0xb0] sm:$0xff]
                %2655 = vst [vmem:[%s2609 + $0x6b0] sm:$0xff] %v2654
                %v2656 = vld [vmem:[%s2608 + $0xb8] sm:$0xff]
                %2657 = vst [vmem:[%s2609 + $0x6b8] sm:$0xff] %v2656
                %v2658 = vld [vmem:[%s2608 + $0xc0] sm:$0xff]
                %2659 = vst [vmem:[%s2609 + $0x9c0] sm:$0xff] %v2658
                %v2660 = vld [vmem:[%s2608 + $0xc8] sm:$0xff]
                %2661 = vst [vmem:[%s2609 + $0x9c8] sm:$0xff] %v2660
                %v2662 = vld [vmem:[%s2608 + $0xd0] sm:$0xff]
                %2663 = vst [vmem:[%s2609 + $0x9d0] sm:$0xff] %v2662
                %v2664 = vld [vmem:[%s2608 + $0xd8] sm:$0xff]
                %2665 = vst [vmem:[%s2609 + $0x9d8] sm:$0xff] %v2664
                %v2666 = vld [vmem:[%s2608 + $0xe0] sm:$0xff]
                %2667 = vst [vmem:[%s2609 + $0x9e0] sm:$0xff] %v2666
                %v2668 = vld [vmem:[%s2608 + $0xe8] sm:$0xff]
                %2669 = vst [vmem:[%s2609 + $0x9e8] sm:$0xff] %v2668
                %v2670 = vld [vmem:[%s2608 + $0xf0] sm:$0xff]
                %2671 = vst [vmem:[%s2609 + $0x9f0] sm:$0xff] %v2670
                %v2672 = vld [vmem:[%s2608 + $0xf8] sm:$0xff]
                %2673 = vst [vmem:[%s2609 + $0x9f8] sm:$0xff] %v2672
              $region80: #{_lambda_.8} parent=74 // loop_footer
                %s2607 = sadd.s32 1, %s2603
              $region81: #{_lambda_.8} parent=74 // loop_footer_branch
                %2602 = sbr.rel target = $region77
              $region82: #{_lambda_.8} parent=74 // loop_exit
                _
            $region75: #{_lambda_.8} parent=70 // pred_fallthru
              _
            // Predicated region
            $region83: #{_lambda_.8} parent=70 // pred_check
              _
            $region84: #{_lambda_.8} parent=70 // pred_check_branch
              %2675 = sbr.rel target = $region86
            $region85: #{_lambda_.8} parent=70 // pred_region
              _
            $region86: #{_lambda_.8} parent=70 // pred_fallthru
              _
          $region71: #{_lambda_.8} parent=66 // pred_fallthru
            _
          %2676 = vnop
        $region67: #{_lambda_.8} parent=50 // pred_fallthru
          _
      $region51: #{_lambda_.8} parent=5 // pred_fallthru
        _
      %p2677 = scmp.le.s32.totalorder 2, %s9
      // Predicated region
      $region87: #{_lambda_.8} parent=5 // pred_check
        %p2678 = pneg %p2677
      $region88: #{_lambda_.8} parent=5 // pred_check_branch
        %2680 = sbr.rel (%p2678) target = $region90
      $region89: #{_lambda_.8} parent=5 // pred_region
        %s2681 = ssub.s32 %s9, 2
        // Predicated region
        $region91: #{_lambda_.8} parent=89 // pred_check
          %p2682 = pneg %p141
        $region92: #{_lambda_.8} parent=89 // pred_check_branch
          %2684 = sbr.rel (%p2682) target = $region94
        $region93: #{_lambda_.8} parent=89 // pred_region
          %s2685 = sand.u32 %s126, 1
          %s2686 = sand.u32 %s126, 1
          %s2687 = smul.addr %s2686, 256
          %s2688 = scalar_lea.vmem [#allocation4], %s2687
        $region94: #{_lambda_.8} parent=89 // pred_fallthru
          _
      $region90: #{_lambda_.8} parent=5 // pred_fallthru
        _
    $region6: #{_lambda_.8} parent=1 // loop_footer
      %s13 = sadd.s32 1, %s9
    $region7: #{_lambda_.8} parent=1 // loop_footer_branch
      %8 = sbr.rel target = $region3
    $region8: #{_lambda_.8} parent=1 // loop_exit
      _

// kernel: _lambda_.9
$region0: #{_lambda_.9}
  #allocation0 [shape = 'u32[]', space=smem, size = 0x4, offset = 0x4, fixed_abs, tag = 'smem constant byte address 0x4 - core index']
  #allocation1 [shape = 'u32[144,128]{1,0:T(1,128)}', space=vmem, size = 0x12000, scoped, tag = 'internal scratch']
  %s0 = inlined_call_operand.vmem [shape: bf16[512,512], index: 0, kind: input, shape index: {}]
  %s1 = inlined_call_operand.vmem [shape: bf16[512,512], index: 1, kind: input, shape index: {}]
  %s2 = inlined_call_operand.vmem [shape: bf16[512,512], index: 2, kind: input, shape index: {}]
  %s3 = inlined_call_operand.vmem [shape: bf16[512,512], index: 3, kind: input, shape index: {}]
  %s4 = inlined_call_operand.vmem [shape: bf16[512,512], index: 4, kind: output, shape index: {}]
  %s5 = sld [smem:[#allocation0]]
  $region26: #{_lambda_.9} parent=0
    _
  %s7 = ssub.s32 1, %s5
  %s8 = scalar_select 0, %s7, %s5
  // Predicated region
  $region2: #{_lambda_.9} parent=0 // pred_check
    _
  $region3: #{_lambda_.9} parent=0 // pred_check_branch
    %10 = sbr.rel (0) target = $region5
  $region4: #{_lambda_.9} parent=0 // pred_region
    _
  $region5: #{_lambda_.9} parent=0 // pred_fallthru
    _
  // Predicated region
  $region6: #{_lambda_.9} parent=0 // pred_check
    _
  $region7: #{_lambda_.9} parent=0 // pred_check_branch
    %12 = sbr.rel (0) target = $region9
  $region8: #{_lambda_.9} parent=0 // pred_region
    _
  $region9: #{_lambda_.9} parent=0 // pred_fallthru
    _
  // Predicated region
  $region10: #{_lambda_.9} parent=0 // pred_check
    _
  $region11: #{_lambda_.9} parent=0 // pred_check_branch
    %14 = sbr.rel (0) target = $region13
  $region12: #{_lambda_.9} parent=0 // pred_region
    _
  $region13: #{_lambda_.9} parent=0 // pred_fallthru
    _
  // Predicated region
  $region14: #{_lambda_.9} parent=0 // pred_check
    _
  $region15: #{_lambda_.9} parent=0 // pred_check_branch
    %16 = sbr.rel (0) target = $region17
  $region16: #{_lambda_.9} parent=0 // pred_region
    _
  $region17: #{_lambda_.9} parent=0 // pred_fallthru
    _
  %v17 = vld [vmem:[%s0] sm:$0xff]
  %v18 = vld [vmem:[%s0 + $0x8] sm:$0xff]
  %v19 = vld [vmem:[%s0 + $0x10] sm:$0xff]
  %v20 = vld [vmem:[%s0 + $0x18] sm:$0xff]
  %v21 = vld [vmem:[%s0 + $0x20] sm:$0xff]
  %v22 = vld [vmem:[%s0 + $0x28] sm:$0xff]
  %v23 = vld [vmem:[%s0 + $0x30] sm:$0xff]
  %v24 = vld [vmem:[%s0 + $0x38] sm:$0xff]
  %v25 = vld [vmem:[%s0 + $0x40] sm:$0xff]
  %v26 = vld [vmem:[%s0 + $0x48] sm:$0xff]
  %v27 = vld [vmem:[%s0 + $0x50] sm:$0xff]
  %v28 = vld [vmem:[%s0 + $0x58] sm:$0xff]
  %v29 = vld [vmem:[%s0 + $0x60] sm:$0xff]
  %v30 = vld [vmem:[%s0 + $0x68] sm:$0xff]
  %v31 = vld [vmem:[%s0 + $0x70] sm:$0xff]
  %v32 = vld [vmem:[%s0 + $0x78] sm:$0xff]
  %v33 = vld [vmem:[%s0 + $0x80] sm:$0xff]
  %v34 = vld [vmem:[%s0 + $0x88] sm:$0xff]
  %v35 = vld [vmem:[%s0 + $0x90] sm:$0xff]
  %v36 = vld [vmem:[%s0 + $0x98] sm:$0xff]
  %v37 = vld [vmem:[%s0 + $0xa0] sm:$0xff]
  %v38 = vld [vmem:[%s0 + $0xa8] sm:$0xff]
  %v39 = vld [vmem:[%s0 + $0xb0] sm:$0xff]
  %v40 = vld [vmem:[%s0 + $0xb8] sm:$0xff]
  %v41 = vld [vmem:[%s0 + $0xc0] sm:$0xff]
  %v42 = vld [vmem:[%s0 + $0xc8] sm:$0xff]
  %v43 = vld [vmem:[%s0 + $0xd0] sm:$0xff]
  %v44 = vld [vmem:[%s0 + $0xd8] sm:$0xff]
  %v45 = vld [vmem:[%s0 + $0xe0] sm:$0xff]
  %v46 = vld [vmem:[%s0 + $0xe8] sm:$0xff]
  %v47 = vld [vmem:[%s0 + $0xf0] sm:$0xff]
  %v48 = vld [vmem:[%s0 + $0xf8] sm:$0xff]
  %v49 = vld [vmem:[%s0 + $0x100] sm:$0xff]
  %v50 = vld [vmem:[%s0 + $0x108] sm:$0xff]
  %v51 = vld [vmem:[%s0 + $0x110] sm:$0xff]
  %v52 = vld [vmem:[%s0 + $0x118] sm:$0xff]
  %v53 = vld [vmem:[%s0 + $0x120] sm:$0xff]
  %v54 = vld [vmem:[%s0 + $0x128] sm:$0xff]
  %v55 = vld [vmem:[%s0 + $0x130] sm:$0xff]
  %v56 = vld [vmem:[%s0 + $0x138] sm:$0xff]
  %v57 = vld [vmem:[%s0 + $0x140] sm:$0xff]
  %v58 = vld [vmem:[%s0 + $0x148] sm:$0xff]
  %v59 = vld [vmem:[%s0 + $0x150] sm:$0xff]
  %v60 = vld [vmem:[%s0 + $0x158] sm:$0xff]
  %v61 = vld [vmem:[%s0 + $0x160] sm:$0xff]
  %v62 = vld [vmem:[%s0 + $0x168] sm:$0xff]
  %v63 = vld [vmem:[%s0 + $0x170] sm:$0xff]
  %v64 = vld [vmem:[%s0 + $0x178] sm:$0xff]
  %v65 = vld [vmem:[%s0 + $0x180] sm:$0xff]
  %v66 = vld [vmem:[%s0 + $0x188] sm:$0xff]
  %v67 = vld [vmem:[%s0 + $0x190] sm:$0xff]
  %v68 = vld [vmem:[%s0 + $0x198] sm:$0xff]
  %v69 = vld [vmem:[%s0 + $0x1a0] sm:$0xff]
  %v70 = vld [vmem:[%s0 + $0x1a8] sm:$0xff]
  %v71 = vld [vmem:[%s0 + $0x1b0] sm:$0xff]
  %v72 = vld [vmem:[%s0 + $0x1b8] sm:$0xff]
  %v73 = vld [vmem:[%s0 + $0x1c0] sm:$0xff]
  %v74 = vld [vmem:[%s0 + $0x1c8] sm:$0xff]
  %v75 = vld [vmem:[%s0 + $0x1d0] sm:$0xff]
  %v76 = vld [vmem:[%s0 + $0x1d8] sm:$0xff]
  %v77 = vld [vmem:[%s0 + $0x1e0] sm:$0xff]
  %v78 = vld [vmem:[%s0 + $0x1e8] sm:$0xff]
  %v79 = vld [vmem:[%s0 + $0x1f0] sm:$0xff]
  %v80 = vld [vmem:[%s0 + $0x1f8] sm:$0xff]
  %v81 = vld [vmem:[%s0 + $0x200] sm:$0xff]
  %v82 = vld [vmem:[%s0 + $0x208] sm:$0xff]
  %v83 = vld [vmem:[%s0 + $0x210] sm:$0xff]
  %v84 = vld [vmem:[%s0 + $0x218] sm:$0xff]
  %v85 = vld [vmem:[%s0 + $0x220] sm:$0xff]
  %v86 = vld [vmem:[%s0 + $0x228] sm:$0xff]
  %v87 = vld [vmem:[%s0 + $0x230] sm:$0xff]
  %v88 = vld [vmem:[%s0 + $0x238] sm:$0xff]
  %v89 = vld [vmem:[%s0 + $0x240] sm:$0xff]
  %v90 = vld [vmem:[%s0 + $0x248] sm:$0xff]
  %v91 = vld [vmem:[%s0 + $0x250] sm:$0xff]
  %v92 = vld [vmem:[%s0 + $0x258] sm:$0xff]
  %v93 = vld [vmem:[%s0 + $0x260] sm:$0xff]
  %v94 = vld [vmem:[%s0 + $0x268] sm:$0xff]
  %v95 = vld [vmem:[%s0 + $0x270] sm:$0xff]
  %v96 = vld [vmem:[%s0 + $0x278] sm:$0xff]
  %v97 = vld [vmem:[%s0 + $0x280] sm:$0xff]
  %v98 = vld [vmem:[%s0 + $0x288] sm:$0xff]
  %v99 = vld [vmem:[%s0 + $0x290] sm:$0xff]
  %v100 = vld [vmem:[%s0 + $0x298] sm:$0xff]
  %v101 = vld [vmem:[%s0 + $0x2a0] sm:$0xff]
  %v102 = vld [vmem:[%s0 + $0x2a8] sm:$0xff]
  %v103 = vld [vmem:[%s0 + $0x2b0] sm:$0xff]
  %v104 = vld [vmem:[%s0 + $0x2b8] sm:$0xff]
  %v105 = vld [vmem:[%s0 + $0x2c0] sm:$0xff]
  %v106 = vld [vmem:[%s0 + $0x2c8] sm:$0xff]
  %v107 = vld [vmem:[%s0 + $0x2d0] sm:$0xff]
  %v108 = vld [vmem:[%s0 + $0x2d8] sm:$0xff]
  %v109 = vld [vmem:[%s0 + $0x2e0] sm:$0xff]
  %v110 = vld [vmem:[%s0 + $0x2e8] sm:$0xff]
  %v111 = vld [vmem:[%s0 + $0x2f0] sm:$0xff]
  %v112 = vld [vmem:[%s0 + $0x2f8] sm:$0xff]
  %v113 = vld [vmem:[%s0 + $0x300] sm:$0xff]
  %v114 = vld [vmem:[%s0 + $0x308] sm:$0xff]
  %v115 = vld [vmem:[%s0 + $0x310] sm:$0xff]
  %v116 = vld [vmem:[%s0 + $0x318] sm:$0xff]
  %v117 = vld [vmem:[%s0 + $0x320] sm:$0xff]
  %v118 = vld [vmem:[%s0 + $0x328] sm:$0xff]
  %v119 = vld [vmem:[%s0 + $0x330] sm:$0xff]
  %v120 = vld [vmem:[%s0 + $0x338] sm:$0xff]
  %v121 = vld [vmem:[%s0 + $0x340] sm:$0xff]
  %v122 = vld [vmem:[%s0 + $0x348] sm:$0xff]
  %v123 = vld [vmem:[%s0 + $0x350] sm:$0xff]
  %v124 = vld [vmem:[%s0 + $0x358] sm:$0xff]
  %v125 = vld [vmem:[%s0 + $0x360] sm:$0xff]
  %v126 = vld [vmem:[%s0 + $0x368] sm:$0xff]
  %v127 = vld [vmem:[%s0 + $0x370] sm:$0xff]
  %v128 = vld [vmem:[%s0 + $0x378] sm:$0xff]
  %v129 = vld [vmem:[%s0 + $0x380] sm:$0xff]
  %v130 = vld [vmem:[%s0 + $0x388] sm:$0xff]
  %v131 = vld [vmem:[%s0 + $0x390] sm:$0xff]
  %v132 = vld [vmem:[%s0 + $0x398] sm:$0xff]
  %v133 = vld [vmem:[%s0 + $0x3a0] sm:$0xff]
  %v134 = vld [vmem:[%s0 + $0x3a8] sm:$0xff]
  %v135 = vld [vmem:[%s0 + $0x3b0] sm:$0xff]
  %v136 = vld [vmem:[%s0 + $0x3b8] sm:$0xff]
  %v137 = vld [vmem:[%s0 + $0x3c0] sm:$0xff]
  %v138 = vld [vmem:[%s0 + $0x3c8] sm:$0xff]
  %v139 = vld [vmem:[%s0 + $0x3d0] sm:$0xff]
  %v140 = vld [vmem:[%s0 + $0x3d8] sm:$0xff]
  %v141 = vld [vmem:[%s0 + $0x3e0] sm:$0xff]
  %v142 = vld [vmem:[%s0 + $0x3e8] sm:$0xff]
  %v143 = vld [vmem:[%s0 + $0x3f0] sm:$0xff]
  %v144 = vld [vmem:[%s0 + $0x3f8] sm:$0xff]
  %v145 = vld [vmem:[%s1] sm:$0xff]
  %v146 = vld [vmem:[%s1 + $0x8] sm:$0xff]
  %v147 = vld [vmem:[%s1 + $0x10] sm:$0xff]
  %v148 = vld [vmem:[%s1 + $0x18] sm:$0xff]
  %v149 = vld [vmem:[%s1 + $0x20] sm:$0xff]
  %v150 = vld [vmem:[%s1 + $0x28] sm:$0xff]
  %v151 = vld [vmem:[%s1 + $0x30] sm:$0xff]
  %v152 = vld [vmem:[%s1 + $0x38] sm:$0xff]
  %v153 = vld [vmem:[%s1 + $0x40] sm:$0xff]
  %v154 = vld [vmem:[%s1 + $0x48] sm:$0xff]
  %v155 = vld [vmem:[%s1 + $0x50] sm:$0xff]
  %v156 = vld [vmem:[%s1 + $0x58] sm:$0xff]
  %v157 = vld [vmem:[%s1 + $0x60] sm:$0xff]
  %v158 = vld [vmem:[%s1 + $0x68] sm:$0xff]
  %v159 = vld [vmem:[%s1 + $0x70] sm:$0xff]
  %v160 = vld [vmem:[%s1 + $0x78] sm:$0xff]
  %v161 = vld [vmem:[%s1 + $0x80] sm:$0xff]
  %v162 = vld [vmem:[%s1 + $0x88] sm:$0xff]
  %v163 = vld [vmem:[%s1 + $0x90] sm:$0xff]
  %v164 = vld [vmem:[%s1 + $0x98] sm:$0xff]
  %v165 = vld [vmem:[%s1 + $0xa0] sm:$0xff]
  %v166 = vld [vmem:[%s1 + $0xa8] sm:$0xff]
  %v167 = vld [vmem:[%s1 + $0xb0] sm:$0xff]
  %v168 = vld [vmem:[%s1 + $0xb8] sm:$0xff]
  %v169 = vld [vmem:[%s1 + $0xc0] sm:$0xff]
  %v170 = vld [vmem:[%s1 + $0xc8] sm:$0xff]
  %v171 = vld [vmem:[%s1 + $0xd0] sm:$0xff]
  %v172 = vld [vmem:[%s1 + $0xd8] sm:$0xff]
  %v173 = vld [vmem:[%s1 + $0xe0] sm:$0xff]
  %v174 = vld [vmem:[%s1 + $0xe8] sm:$0xff]
  %v175 = vld [vmem:[%s1 + $0xf0] sm:$0xff]
  %v176 = vld [vmem:[%s1 + $0xf8] sm:$0xff]
  %v177 = vld [vmem:[%s1 + $0x100] sm:$0xff]
  %v178 = vld [vmem:[%s1 + $0x108] sm:$0xff]
  %v179 = vld [vmem:[%s1 + $0x110] sm:$0xff]
  %v180 = vld [vmem:[%s1 + $0x118] sm:$0xff]
  %v181 = vld [vmem:[%s1 + $0x120] sm:$0xff]
  %v182 = vld [vmem:[%s1 + $0x128] sm:$0xff]
  %v183 = vld [vmem:[%s1 + $0x130] sm:$0xff]
  %v184 = vld [vmem:[%s1 + $0x138] sm:$0xff]
  %v185 = vld [vmem:[%s1 + $0x140] sm:$0xff]
  %v186 = vld [vmem:[%s1 + $0x148] sm:$0xff]
  %v187 = vld [vmem:[%s1 + $0x150] sm:$0xff]
  %v188 = vld [vmem:[%s1 + $0x158] sm:$0xff]
  %v189 = vld [vmem:[%s1 + $0x160] sm:$0xff]
  %v190 = vld [vmem:[%s1 + $0x168] sm:$0xff]
  %v191 = vld [vmem:[%s1 + $0x170] sm:$0xff]
  %v192 = vld [vmem:[%s1 + $0x178] sm:$0xff]
  %v193 = vld [vmem:[%s1 + $0x180] sm:$0xff]
  %v194 = vld [vmem:[%s1 + $0x188] sm:$0xff]
  %v195 = vld [vmem:[%s1 + $0x190] sm:$0xff]
  %v196 = vld [vmem:[%s1 + $0x198] sm:$0xff]
  %v197 = vld [vmem:[%s1 + $0x1a0] sm:$0xff]
  %v198 = vld [vmem:[%s1 + $0x1a8] sm:$0xff]
  %v199 = vld [vmem:[%s1 + $0x1b0] sm:$0xff]
  %v200 = vld [vmem:[%s1 + $0x1b8] sm:$0xff]
  %v201 = vld [vmem:[%s1 + $0x1c0] sm:$0xff]
  %v202 = vld [vmem:[%s1 + $0x1c8] sm:$0xff]
  %v203 = vld [vmem:[%s1 + $0x1d0] sm:$0xff]
  %v204 = vld [vmem:[%s1 + $0x1d8] sm:$0xff]
  %v205 = vld [vmem:[%s1 + $0x1e0] sm:$0xff]
  %v206 = vld [vmem:[%s1 + $0x1e8] sm:$0xff]
  %v207 = vld [vmem:[%s1 + $0x1f0] sm:$0xff]
  %v208 = vld [vmem:[%s1 + $0x1f8] sm:$0xff]
  %v209 = vld [vmem:[%s1 + $0x200] sm:$0xff]
  %v210 = vld [vmem:[%s1 + $0x208] sm:$0xff]
  %v211 = vld [vmem:[%s1 + $0x210] sm:$0xff]
  %v212 = vld [vmem:[%s1 + $0x218] sm:$0xff]
  %v213 = vld [vmem:[%s1 + $0x220] sm:$0xff]
  %v214 = vld [vmem:[%s1 + $0x228] sm:$0xff]
  %v215 = vld [vmem:[%s1 + $0x230] sm:$0xff]
  %v216 = vld [vmem:[%s1 + $0x238] sm:$0xff]
  %v217 = vld [vmem:[%s1 + $0x240] sm:$0xff]
  %v218 = vld [vmem:[%s1 + $0x248] sm:$0xff]
  %v219 = vld [vmem:[%s1 + $0x250] sm:$0xff]
  %v220 = vld [vmem:[%s1 + $0x258] sm:$0xff]
  %v221 = vld [vmem:[%s1 + $0x260] sm:$0xff]
  %v222 = vld [vmem:[%s1 + $0x268] sm:$0xff]
  %v223 = vld [vmem:[%s1 + $0x270] sm:$0xff]
  %v224 = vld [vmem:[%s1 + $0x278] sm:$0xff]
  %v225 = vld [vmem:[%s1 + $0x280] sm:$0xff]
  %v226 = vld [vmem:[%s1 + $0x288] sm:$0xff]
  %v227 = vld [vmem:[%s1 + $0x290] sm:$0xff]
  %v228 = vld [vmem:[%s1 + $0x298] sm:$0xff]
  %v229 = vld [vmem:[%s1 + $0x2a0] sm:$0xff]
  %v230 = vld [vmem:[%s1 + $0x2a8] sm:$0xff]
  %v231 = vld [vmem:[%s1 + $0x2b0] sm:$0xff]
  %v232 = vld [vmem:[%s1 + $0x2b8] sm:$0xff]
  %v233 = vld [vmem:[%s1 + $0x2c0] sm:$0xff]
  %v234 = vld [vmem:[%s1 + $0x2c8] sm:$0xff]
  %v235 = vld [vmem:[%s1 + $0x2d0] sm:$0xff]
  %v236 = vld [vmem:[%s1 + $0x2d8] sm:$0xff]
  %v237 = vld [vmem:[%s1 + $0x2e0] sm:$0xff]
  %v238 = vld [vmem:[%s1 + $0x2e8] sm:$0xff]
  %v239 = vld [vmem:[%s1 + $0x2f0] sm:$0xff]
  %v240 = vld [vmem:[%s1 + $0x2f8] sm:$0xff]
  %v241 = vld [vmem:[%s1 + $0x300] sm:$0xff]
  %v242 = vld [vmem:[%s1 + $0x308] sm:$0xff]
  %v243 = vld [vmem:[%s1 + $0x310] sm:$0xff]
  %v244 = vld [vmem:[%s1 + $0x318] sm:$0xff]
  %v245 = vld [vmem:[%s1 + $0x320] sm:$0xff]
  %v246 = vld [vmem:[%s1 + $0x328] sm:$0xff]
  %v247 = vld [vmem:[%s1 + $0x330] sm:$0xff]
  %v248 = vld [vmem:[%s1 + $0x338] sm:$0xff]
  %v249 = vld [vmem:[%s1 + $0x340] sm:$0xff]
  %v250 = vld [vmem:[%s1 + $0x348] sm:$0xff]
  %v251 = vld [vmem:[%s1 + $0x350] sm:$0xff]
  %v252 = vld [vmem:[%s1 + $0x358] sm:$0xff]
  %v253 = vld [vmem:[%s1 + $0x360] sm:$0xff]
  %v254 = vld [vmem:[%s1 + $0x368] sm:$0xff]
  %v255 = vld [vmem:[%s1 + $0x370] sm:$0xff]
  %v256 = vld [vmem:[%s1 + $0x378] sm:$0xff]
  %v257 = vld [vmem:[%s1 + $0x380] sm:$0xff]
  %v258 = vld [vmem:[%s1 + $0x388] sm:$0xff]
  %v259 = vld [vmem:[%s1 + $0x390] sm:$0xff]
  %v260 = vld [vmem:[%s1 + $0x398] sm:$0xff]
  %v261 = vld [vmem:[%s1 + $0x3a0] sm:$0xff]
  %v262 = vld [vmem:[%s1 + $0x3a8] sm:$0xff]
  %v263 = vld [vmem:[%s1 + $0x3b0] sm:$0xff]
  %v264 = vld [vmem:[%s1 + $0x3b8] sm:$0xff]
  %v265 = vld [vmem:[%s1 + $0x3c0] sm:$0xff]
  %v266 = vld [vmem:[%s1 + $0x3c8] sm:$0xff]
  %v267 = vld [vmem:[%s1 + $0x3d0] sm:$0xff]
  %v268 = vld [vmem:[%s1 + $0x3d8] sm:$0xff]
  %v269 = vld [vmem:[%s1 + $0x3e0] sm:$0xff]
  %v270 = vld [vmem:[%s1 + $0x3e8] sm:$0xff]
  %v271 = vld [vmem:[%s1 + $0x3f0] sm:$0xff]
  %v272 = vld [vmem:[%s1 + $0x3f8] sm:$0xff]
  %v273 = vmax.bf16 %v17, %v145
  %v274 = vmax.bf16 %v18, %v146
  %v275 = vmax.bf16 %v19, %v147
  %v276 = vmax.bf16 %v20, %v148
  %v277 = vmax.bf16 %v21, %v149
  %v278 = vmax.bf16 %v22, %v150
  %v279 = vmax.bf16 %v23, %v151
  %v280 = vmax.bf16 %v24, %v152
  %v281 = vmax.bf16 %v25, %v153
  %v282 = vmax.bf16 %v26, %v154
  %v283 = vmax.bf16 %v27, %v155
  %v284 = vmax.bf16 %v28, %v156
  %v285 = vmax.bf16 %v29, %v157
  %v286 = vmax.bf16 %v30, %v158
  %v287 = vmax.bf16 %v31, %v159
  %v288 = vmax.bf16 %v32, %v160
  %v289 = vmax.bf16 %v33, %v161
  %v290 = vmax.bf16 %v34, %v162
  %v291 = vmax.bf16 %v35, %v163
  %v292 = vmax.bf16 %v36, %v164
  %v293 = vmax.bf16 %v37, %v165
  %v294 = vmax.bf16 %v38, %v166
  %v295 = vmax.bf16 %v39, %v167
  %v296 = vmax.bf16 %v40, %v168
  %v297 = vmax.bf16 %v41, %v169
  %v298 = vmax.bf16 %v42, %v170
  %v299 = vmax.bf16 %v43, %v171
  %v300 = vmax.bf16 %v44, %v172
  %v301 = vmax.bf16 %v45, %v173
  %v302 = vmax.bf16 %v46, %v174
  %v303 = vmax.bf16 %v47, %v175
  %v304 = vmax.bf16 %v48, %v176
  %v305 = vmax.bf16 %v49, %v177
  %v306 = vmax.bf16 %v50, %v178
  %v307 = vmax.bf16 %v51, %v179
  %v308 = vmax.bf16 %v52, %v180
  %v309 = vmax.bf16 %v53, %v181
  %v310 = vmax.bf16 %v54, %v182
  %v311 = vmax.bf16 %v55, %v183
  %v312 = vmax.bf16 %v56, %v184
  %v313 = vmax.bf16 %v57, %v185
  %v314 = vmax.bf16 %v58, %v186
  %v315 = vmax.bf16 %v59, %v187
  %v316 = vmax.bf16 %v60, %v188
  %v317 = vmax.bf16 %v61, %v189
  %v318 = vmax.bf16 %v62, %v190
  %v319 = vmax.bf16 %v63, %v191
  %v320 = vmax.bf16 %v64, %v192
  %v321 = vmax.bf16 %v65, %v193
  %v322 = vmax.bf16 %v66, %v194
  %v323 = vmax.bf16 %v67, %v195
  %v324 = vmax.bf16 %v68, %v196
  %v325 = vmax.bf16 %v69, %v197
  %v326 = vmax.bf16 %v70, %v198
  %v327 = vmax.bf16 %v71, %v199
  %v328 = vmax.bf16 %v72, %v200
  %v329 = vmax.bf16 %v73, %v201
  %v330 = vmax.bf16 %v74, %v202
  %v331 = vmax.bf16 %v75, %v203
  %v332 = vmax.bf16 %v76, %v204
  %v333 = vmax.bf16 %v77, %v205
  %v334 = vmax.bf16 %v78, %v206
  %v335 = vmax.bf16 %v79, %v207
  %v336 = vmax.bf16 %v80, %v208
  %v337 = vmax.bf16 %v81, %v209
  %v338 = vmax.bf16 %v82, %v210
  %v339 = vmax.bf16 %v83, %v211
  %v340 = vmax.bf16 %v84, %v212
  %v341 = vmax.bf16 %v85, %v213
  %v342 = vmax.bf16 %v86, %v214
  %v343 = vmax.bf16 %v87, %v215
  %v344 = vmax.bf16 %v88, %v216
  %v345 = vmax.bf16 %v89, %v217
  %v346 = vmax.bf16 %v90, %v218
  %v347 = vmax.bf16 %v91, %v219
  %v348 = vmax.bf16 %v92, %v220
  %v349 = vmax.bf16 %v93, %v221
  %v350 = vmax.bf16 %v94, %v222
  %v351 = vmax.bf16 %v95, %v223
  %v352 = vmax.bf16 %v96, %v224
  %v353 = vmax.bf16 %v97, %v225
  %v354 = vmax.bf16 %v98, %v226
  %v355 = vmax.bf16 %v99, %v227
  %v356 = vmax.bf16 %v100, %v228
  %v357 = vmax.bf16 %v101, %v229
  %v358 = vmax.bf16 %v102, %v230
  %v359 = vmax.bf16 %v103, %v231
  %v360 = vmax.bf16 %v104, %v232
  %v361 = vmax.bf16 %v105, %v233
  %v362 = vmax.bf16 %v106, %v234
  %v363 = vmax.bf16 %v107, %v235
  %v364 = vmax.bf16 %v108, %v236
  %v365 = vmax.bf16 %v109, %v237
  %v366 = vmax.bf16 %v110, %v238
  %v367 = vmax.bf16 %v111, %v239
  %v368 = vmax.bf16 %v112, %v240
  %v369 = vmax.bf16 %v113, %v241
  %v370 = vmax.bf16 %v114, %v242
  %v371 = vmax.bf16 %v115, %v243
  %v372 = vmax.bf16 %v116, %v244
  %v373 = vmax.bf16 %v117, %v245
  %v374 = vmax.bf16 %v118, %v246
  %v375 = vmax.bf16 %v119, %v247
  %v376 = vmax.bf16 %v120, %v248
  %v377 = vmax.bf16 %v121, %v249
  %v378 = vmax.bf16 %v122, %v250
  %v379 = vmax.bf16 %v123, %v251
  %v380 = vmax.bf16 %v124, %v252
  %v381 = vmax.bf16 %v125, %v253
  %v382 = vmax.bf16 %v126, %v254
  %v383 = vmax.bf16 %v127, %v255
  %v384 = vmax.bf16 %v128, %v256
  %v385 = vmax.bf16 %v129, %v257
  %v386 = vmax.bf16 %v130, %v258
  %v387 = vmax.bf16 %v131, %v259
  %v388 = vmax.bf16 %v132, %v260
  %v389 = vmax.bf16 %v133, %v261
  %v390 = vmax.bf16 %v134, %v262
  %v391 = vmax.bf16 %v135, %v263
  %v392 = vmax.bf16 %v136, %v264
  %v393 = vmax.bf16 %v137, %v265
  %v394 = vmax.bf16 %v138, %v266
  %v395 = vmax.bf16 %v139, %v267
  %v396 = vmax.bf16 %v140, %v268
  %v397 = vmax.bf16 %v141, %v269
  %v398 = vmax.bf16 %v142, %v270
  %v399 = vmax.bf16 %v143, %v271
  %v400 = vmax.bf16 %v144, %v272
  %v401 = vld [vmem:[%s2] sm:$0xff]
  %v402 = vld [vmem:[%s2 + $0x8] sm:$0xff]
  %v403 = vld [vmem:[%s2 + $0x10] sm:$0xff]
  %v404 = vld [vmem:[%s2 + $0x18] sm:$0xff]
  %v405 = vld [vmem:[%s2 + $0x20] sm:$0xff]
  %v406 = vld [vmem:[%s2 + $0x28] sm:$0xff]
  %v407 = vld [vmem:[%s2 + $0x30] sm:$0xff]
  %v408 = vld [vmem:[%s2 + $0x38] sm:$0xff]
  %v409 = vld [vmem:[%s2 + $0x40] sm:$0xff]
  %v410 = vld [vmem:[%s2 + $0x48] sm:$0xff]
  %v411 = vld [vmem:[%s2 + $0x50] sm:$0xff]
  %v412 = vld [vmem:[%s2 + $0x58] sm:$0xff]
  %v413 = vld [vmem:[%s2 + $0x60] sm:$0xff]
  %v414 = vld [vmem:[%s2 + $0x68] sm:$0xff]
  %v415 = vld [vmem:[%s2 + $0x70] sm:$0xff]
  %v416 = vld [vmem:[%s2 + $0x78] sm:$0xff]
  %v417 = vld [vmem:[%s2 + $0x80] sm:$0xff]
  %v418 = vld [vmem:[%s2 + $0x88] sm:$0xff]
  %v419 = vld [vmem:[%s2 + $0x90] sm:$0xff]
  %v420 = vld [vmem:[%s2 + $0x98] sm:$0xff]
  %v421 = vld [vmem:[%s2 + $0xa0] sm:$0xff]
  %v422 = vld [vmem:[%s2 + $0xa8] sm:$0xff]
  %v423 = vld [vmem:[%s2 + $0xb0] sm:$0xff]
  %v424 = vld [vmem:[%s2 + $0xb8] sm:$0xff]
  %v425 = vld [vmem:[%s2 + $0xc0] sm:$0xff]
  %v426 = vld [vmem:[%s2 + $0xc8] sm:$0xff]
  %v427 = vld [vmem:[%s2 + $0xd0] sm:$0xff]
  %v428 = vld [vmem:[%s2 + $0xd8] sm:$0xff]
  %v429 = vld [vmem:[%s2 + $0xe0] sm:$0xff]
  %v430 = vld [vmem:[%s2 + $0xe8] sm:$0xff]
  %v431 = vld [vmem:[%s2 + $0xf0] sm:$0xff]
  %v432 = vld [vmem:[%s2 + $0xf8] sm:$0xff]
  %v433 = vld [vmem:[%s2 + $0x100] sm:$0xff]
  %v434 = vld [vmem:[%s2 + $0x108] sm:$0xff]
  %v435 = vld [vmem:[%s2 + $0x110] sm:$0xff]
  %v436 = vld [vmem:[%s2 + $0x118] sm:$0xff]
  %v437 = vld [vmem:[%s2 + $0x120] sm:$0xff]
  %v438 = vld [vmem:[%s2 + $0x128] sm:$0xff]
  %v439 = vld [vmem:[%s2 + $0x130] sm:$0xff]
  %v440 = vld [vmem:[%s2 + $0x138] sm:$0xff]
  %v441 = vld [vmem:[%s2 + $0x140] sm:$0xff]
  %v442 = vld [vmem:[%s2 + $0x148] sm:$0xff]
  %v443 = vld [vmem:[%s2 + $0x150] sm:$0xff]
  %v444 = vld [vmem:[%s2 + $0x158] sm:$0xff]
  %v445 = vld [vmem:[%s2 + $0x160] sm:$0xff]
  %v446 = vld [vmem:[%s2 + $0x168] sm:$0xff]
  %v447 = vld [vmem:[%s2 + $0x170] sm:$0xff]
  %v448 = vld [vmem:[%s2 + $0x178] sm:$0xff]
  %v449 = vld [vmem:[%s2 + $0x180] sm:$0xff]
  %v450 = vld [vmem:[%s2 + $0x188] sm:$0xff]
  %v451 = vld [vmem:[%s2 + $0x190] sm:$0xff]
  %v452 = vld [vmem:[%s2 + $0x198] sm:$0xff]
  %v453 = vld [vmem:[%s2 + $0x1a0] sm:$0xff]
  %v454 = vld [vmem:[%s2 + $0x1a8] sm:$0xff]
  %v455 = vld [vmem:[%s2 + $0x1b0] sm:$0xff]
  %v456 = vld [vmem:[%s2 + $0x1b8] sm:$0xff]
  %v457 = vld [vmem:[%s2 + $0x1c0] sm:$0xff]
  %v458 = vld [vmem:[%s2 + $0x1c8] sm:$0xff]
  %v459 = vld [vmem:[%s2 + $0x1d0] sm:$0xff]
  %v460 = vld [vmem:[%s2 + $0x1d8] sm:$0xff]
  %v461 = vld [vmem:[%s2 + $0x1e0] sm:$0xff]
  %v462 = vld [vmem:[%s2 + $0x1e8] sm:$0xff]
  %v463 = vld [vmem:[%s2 + $0x1f0] sm:$0xff]
  %v464 = vld [vmem:[%s2 + $0x1f8] sm:$0xff]
  %v465 = vld [vmem:[%s2 + $0x200] sm:$0xff]
  %v466 = vld [vmem:[%s2 + $0x208] sm:$0xff]
  %v467 = vld [vmem:[%s2 + $0x210] sm:$0xff]
  %v468 = vld [vmem:[%s2 + $0x218] sm:$0xff]
  %v469 = vld [vmem:[%s2 + $0x220] sm:$0xff]
  %v470 = vld [vmem:[%s2 + $0x228] sm:$0xff]
  %v471 = vld [vmem:[%s2 + $0x230] sm:$0xff]
  %v472 = vld [vmem:[%s2 + $0x238] sm:$0xff]
  %v473 = vld [vmem:[%s2 + $0x240] sm:$0xff]
  %v474 = vld [vmem:[%s2 + $0x248] sm:$0xff]
  %v475 = vld [vmem:[%s2 + $0x250] sm:$0xff]
  %v476 = vld [vmem:[%s2 + $0x258] sm:$0xff]
  %v477 = vld [vmem:[%s2 + $0x260] sm:$0xff]
  %v478 = vld [vmem:[%s2 + $0x268] sm:$0xff]
  %v479 = vld [vmem:[%s2 + $0x270] sm:$0xff]
  %v480 = vld [vmem:[%s2 + $0x278] sm:$0xff]
  %v481 = vld [vmem:[%s2 + $0x280] sm:$0xff]
  %v482 = vld [vmem:[%s2 + $0x288] sm:$0xff]
  %v483 = vld [vmem:[%s2 + $0x290] sm:$0xff]
  %v484 = vld [vmem:[%s2 + $0x298] sm:$0xff]
  %v485 = vld [vmem:[%s2 + $0x2a0] sm:$0xff]
  %v486 = vld [vmem:[%s2 + $0x2a8] sm:$0xff]
  %v487 = vld [vmem:[%s2 + $0x2b0] sm:$0xff]
  %v488 = vld [vmem:[%s2 + $0x2b8] sm:$0xff]
  %v489 = vld [vmem:[%s2 + $0x2c0] sm:$0xff]
  %v490 = vld [vmem:[%s2 + $0x2c8] sm:$0xff]
  %v491 = vld [vmem:[%s2 + $0x2d0] sm:$0xff]
  %v492 = vld [vmem:[%s2 + $0x2d8] sm:$0xff]
  %v493 = vld [vmem:[%s2 + $0x2e0] sm:$0xff]
  %v494 = vld [vmem:[%s2 + $0x2e8] sm:$0xff]
  %v495 = vld [vmem:[%s2 + $0x2f0] sm:$0xff]
  %v496 = vld [vmem:[%s2 + $0x2f8] sm:$0xff]
  %v497 = vld [vmem:[%s2 + $0x300] sm:$0xff]
  %v498 = vld [vmem:[%s2 + $0x308] sm:$0xff]
  %v499 = vld [vmem:[%s2 + $0x310] sm:$0xff]
  %v500 = vld [vmem:[%s2 + $0x318] sm:$0xff]
  %v501 = vld [vmem:[%s2 + $0x320] sm:$0xff]
  %v502 = vld [vmem:[%s2 + $0x328] sm:$0xff]
  %v503 = vld [vmem:[%s2 + $0x330] sm:$0xff]
  %v504 = vld [vmem:[%s2 + $0x338] sm:$0xff]
  %v505 = vld [vmem:[%s2 + $0x340] sm:$0xff]
  %v506 = vld [vmem:[%s2 + $0x348] sm:$0xff]
  %v507 = vld [vmem:[%s2 + $0x350] sm:$0xff]
  %v508 = vld [vmem:[%s2 + $0x358] sm:$0xff]
  %v509 = vld [vmem:[%s2 + $0x360] sm:$0xff]
  %v510 = vld [vmem:[%s2 + $0x368] sm:$0xff]
  %v511 = vld [vmem:[%s2 + $0x370] sm:$0xff]
  %v512 = vld [vmem:[%s2 + $0x378] sm:$0xff]
  %v513 = vld [vmem:[%s2 + $0x380] sm:$0xff]
  %v514 = vld [vmem:[%s2 + $0x388] sm:$0xff]
  %v515 = vld [vmem:[%s2 + $0x390] sm:$0xff]
  %v516 = vld [vmem:[%s2 + $0x398] sm:$0xff]
  %v517 = vld [vmem:[%s2 + $0x3a0] sm:$0xff]
  %v518 = vld [vmem:[%s2 + $0x3a8] sm:$0xff]
  %v519 = vld [vmem:[%s2 + $0x3b0] sm:$0xff]
  %v520 = vld [vmem:[%s2 + $0x3b8] sm:$0xff]
  %v521 = vld [vmem:[%s2 + $0x3c0] sm:$0xff]
  %v522 = vld [vmem:[%s2 + $0x3c8] sm:$0xff]
  %v523 = vld [vmem:[%s2 + $0x3d0] sm:$0xff]
  %v524 = vld [vmem:[%s2 + $0x3d8] sm:$0xff]
  %v525 = vld [vmem:[%s2 + $0x3e0] sm:$0xff]
  %v526 = vld [vmem:[%s2 + $0x3e8] sm:$0xff]
  %v527 = vld [vmem:[%s2 + $0x3f0] sm:$0xff]
  %v528 = vld [vmem:[%s2 + $0x3f8] sm:$0xff]
  %v529 = vld [vmem:[%s3] sm:$0xff]
  %v530 = vld [vmem:[%s3 + $0x8] sm:$0xff]
  %v531 = vld [vmem:[%s3 + $0x10] sm:$0xff]
  %v532 = vld [vmem:[%s3 + $0x18] sm:$0xff]
  %v533 = vld [vmem:[%s3 + $0x20] sm:$0xff]
  %v534 = vld [vmem:[%s3 + $0x28] sm:$0xff]
  %v535 = vld [vmem:[%s3 + $0x30] sm:$0xff]
  %v536 = vld [vmem:[%s3 + $0x38] sm:$0xff]
  %v537 = vld [vmem:[%s3 + $0x40] sm:$0xff]
  %v538 = vld [vmem:[%s3 + $0x48] sm:$0xff]
  %v539 = vld [vmem:[%s3 + $0x50] sm:$0xff]
  %v540 = vld [vmem:[%s3 + $0x58] sm:$0xff]
  %v541 = vld [vmem:[%s3 + $0x60] sm:$0xff]
  %v542 = vld [vmem:[%s3 + $0x68] sm:$0xff]
  %v543 = vld [vmem:[%s3 + $0x70] sm:$0xff]
  %v544 = vld [vmem:[%s3 + $0x78] sm:$0xff]
  %v545 = vld [vmem:[%s3 + $0x80] sm:$0xff]
  %v546 = vld [vmem:[%s3 + $0x88] sm:$0xff]
  %v547 = vld [vmem:[%s3 + $0x90] sm:$0xff]
  %v548 = vld [vmem:[%s3 + $0x98] sm:$0xff]
  %v549 = vld [vmem:[%s3 + $0xa0] sm:$0xff]
  %v550 = vld [vmem:[%s3 + $0xa8] sm:$0xff]
  %v551 = vld [vmem:[%s3 + $0xb0] sm:$0xff]
  %v552 = vld [vmem:[%s3 + $0xb8] sm:$0xff]
  %v553 = vld [vmem:[%s3 + $0xc0] sm:$0xff]
  %v554 = vld [vmem:[%s3 + $0xc8] sm:$0xff]
  %v555 = vld [vmem:[%s3 + $0xd0] sm:$0xff]
  %v556 = vld [vmem:[%s3 + $0xd8] sm:$0xff]
  %v557 = vld [vmem:[%s3 + $0xe0] sm:$0xff]
  %v558 = vld [vmem:[%s3 + $0xe8] sm:$0xff]
  %v559 = vld [vmem:[%s3 + $0xf0] sm:$0xff]
  %v560 = vld [vmem:[%s3 + $0xf8] sm:$0xff]
  %v561 = vld [vmem:[%s3 + $0x100] sm:$0xff]
  %v562 = vld [vmem:[%s3 + $0x108] sm:$0xff]
  %v563 = vld [vmem:[%s3 + $0x110] sm:$0xff]
  %v564 = vld [vmem:[%s3 + $0x118] sm:$0xff]
  %v565 = vld [vmem:[%s3 + $0x120] sm:$0xff]
  %v566 = vld [vmem:[%s3 + $0x128] sm:$0xff]
  %v567 = vld [vmem:[%s3 + $0x130] sm:$0xff]
  %v568 = vld [vmem:[%s3 + $0x138] sm:$0xff]
  %v569 = vld [vmem:[%s3 + $0x140] sm:$0xff]
  %v570 = vld [vmem:[%s3 + $0x148] sm:$0xff]
  %v571 = vld [vmem:[%s3 + $0x150] sm:$0xff]
  %v572 = vld [vmem:[%s3 + $0x158] sm:$0xff]
  %v573 = vld [vmem:[%s3 + $0x160] sm:$0xff]
  %v574 = vld [vmem:[%s3 + $0x168] sm:$0xff]
  %v575 = vld [vmem:[%s3 + $0x170] sm:$0xff]
  %v576 = vld [vmem:[%s3 + $0x178] sm:$0xff]
  %v577 = vld [vmem:[%s3 + $0x180] sm:$0xff]
  %v578 = vld [vmem:[%s3 + $0x188] sm:$0xff]
  %v579 = vld [vmem:[%s3 + $0x190] sm:$0xff]
  %v580 = vld [vmem:[%s3 + $0x198] sm:$0xff]
  %v581 = vld [vmem:[%s3 + $0x1a0] sm:$0xff]
  %v582 = vld [vmem:[%s3 + $0x1a8] sm:$0xff]
  %v583 = vld [vmem:[%s3 + $0x1b0] sm:$0xff]
  %v584 = vld [vmem:[%s3 + $0x1b8] sm:$0xff]
  %v585 = vld [vmem:[%s3 + $0x1c0] sm:$0xff]
  %v586 = vld [vmem:[%s3 + $0x1c8] sm:$0xff]
  %v587 = vld [vmem:[%s3 + $0x1d0] sm:$0xff]
  %v588 = vld [vmem:[%s3 + $0x1d8] sm:$0xff]
  %v589 = vld [vmem:[%s3 + $0x1e0] sm:$0xff]
  %v590 = vld [vmem:[%s3 + $0x1e8] sm:$0xff]
  %v591 = vld [vmem:[%s3 + $0x1f0] sm:$0xff]
  %v592 = vld [vmem:[%s3 + $0x1f8] sm:$0xff]
  %v593 = vld [vmem:[%s3 + $0x200] sm:$0xff]
  %v594 = vld [vmem:[%s3 + $0x208] sm:$0xff]
  %v595 = vld [vmem:[%s3 + $0x210] sm:$0xff]
  %v596 = vld [vmem:[%s3 + $0x218] sm:$0xff]
  %v597 = vld [vmem:[%s3 + $0x220] sm:$0xff]
  %v598 = vld [vmem:[%s3 + $0x228] sm:$0xff]
  %v599 = vld [vmem:[%s3 + $0x230] sm:$0xff]
  %v600 = vld [vmem:[%s3 + $0x238] sm:$0xff]
  %v601 = vld [vmem:[%s3 + $0x240] sm:$0xff]
  %v602 = vld [vmem:[%s3 + $0x248] sm:$0xff]
  %v603 = vld [vmem:[%s3 + $0x250] sm:$0xff]
  %v604 = vld [vmem:[%s3 + $0x258] sm:$0xff]
  %v605 = vld [vmem:[%s3 + $0x260] sm:$0xff]
  %v606 = vld [vmem:[%s3 + $0x268] sm:$0xff]
  %v607 = vld [vmem:[%s3 + $0x270] sm:$0xff]
  %v608 = vld [vmem:[%s3 + $0x278] sm:$0xff]
  %v609 = vld [vmem:[%s3 + $0x280] sm:$0xff]
  %v610 = vld [vmem:[%s3 + $0x288] sm:$0xff]
  %v611 = vld [vmem:[%s3 + $0x290] sm:$0xff]
  %v612 = vld [vmem:[%s3 + $0x298] sm:$0xff]
  %v613 = vld [vmem:[%s3 + $0x2a0] sm:$0xff]
  %v614 = vld [vmem:[%s3 + $0x2a8] sm:$0xff]
  %v615 = vld [vmem:[%s3 + $0x2b0] sm:$0xff]
  %v616 = vld [vmem:[%s3 + $0x2b8] sm:$0xff]
  %v617 = vld [vmem:[%s3 + $0x2c0] sm:$0xff]
  %v618 = vld [vmem:[%s3 + $0x2c8] sm:$0xff]
  %v619 = vld [vmem:[%s3 + $0x2d0] sm:$0xff]
  %v620 = vld [vmem:[%s3 + $0x2d8] sm:$0xff]
  %v621 = vld [vmem:[%s3 + $0x2e0] sm:$0xff]
  %v622 = vld [vmem:[%s3 + $0x2e8] sm:$0xff]
  %v623 = vld [vmem:[%s3 + $0x2f0] sm:$0xff]
  %v624 = vld [vmem:[%s3 + $0x2f8] sm:$0xff]
  %v625 = vld [vmem:[%s3 + $0x300] sm:$0xff]
  %v626 = vld [vmem:[%s3 + $0x308] sm:$0xff]
  %v627 = vld [vmem:[%s3 + $0x310] sm:$0xff]
  %v628 = vld [vmem:[%s3 + $0x318] sm:$0xff]
  %v629 = vld [vmem:[%s3 + $0x320] sm:$0xff]
  %v630 = vld [vmem:[%s3 + $0x328] sm:$0xff]
  %v631 = vld [vmem:[%s3 + $0x330] sm:$0xff]
  %v632 = vld [vmem:[%s3 + $0x338] sm:$0xff]
  %v633 = vld [vmem:[%s3 + $0x340] sm:$0xff]
  %v634 = vld [vmem:[%s3 + $0x348] sm:$0xff]
  %v635 = vld [vmem:[%s3 + $0x350] sm:$0xff]
  %v636 = vld [vmem:[%s3 + $0x358] sm:$0xff]
  %v637 = vld [vmem:[%s3 + $0x360] sm:$0xff]
  %v638 = vld [vmem:[%s3 + $0x368] sm:$0xff]
  %v639 = vld [vmem:[%s3 + $0x370] sm:$0xff]
  %v640 = vld [vmem:[%s3 + $0x378] sm:$0xff]
  %v641 = vld [vmem:[%s3 + $0x380] sm:$0xff]
  %v642 = vld [vmem:[%s3 + $0x388] sm:$0xff]
  %v643 = vld [vmem:[%s3 + $0x390] sm:$0xff]
  %v644 = vld [vmem:[%s3 + $0x398] sm:$0xff]
  %v645 = vld [vmem:[%s3 + $0x3a0] sm:$0xff]
  %v646 = vld [vmem:[%s3 + $0x3a8] sm:$0xff]
  %v647 = vld [vmem:[%s3 + $0x3b0] sm:$0xff]
  %v648 = vld [vmem:[%s3 + $0x3b8] sm:$0xff]
  %v649 = vld [vmem:[%s3 + $0x3c0] sm:$0xff]
  %v650 = vld [vmem:[%s3 + $0x3c8] sm:$0xff]
  %v651 = vld [vmem:[%s3 + $0x3d0] sm:$0xff]
  %v652 = vld [vmem:[%s3 + $0x3d8] sm:$0xff]
  %v653 = vld [vmem:[%s3 + $0x3e0] sm:$0xff]
  %v654 = vld [vmem:[%s3 + $0x3e8] sm:$0xff]
  %v655 = vld [vmem:[%s3 + $0x3f0] sm:$0xff]
  %v656 = vld [vmem:[%s3 + $0x3f8] sm:$0xff]
  %v657 = vmax.bf16 %v401, %v529
  %v658 = vmax.bf16 %v402, %v530
  %v659 = vmax.bf16 %v403, %v531
  %v660 = vmax.bf16 %v404, %v532
  %v661 = vmax.bf16 %v405, %v533
  %v662 = vmax.bf16 %v406, %v534
  %v663 = vmax.bf16 %v407, %v535
  %v664 = vmax.bf16 %v408, %v536
  %v665 = vmax.bf16 %v409, %v537
  %v666 = vmax.bf16 %v410, %v538
  %v667 = vmax.bf16 %v411, %v539
  %v668 = vmax.bf16 %v412, %v540
  %v669 = vmax.bf16 %v413, %v541
  %v670 = vmax.bf16 %v414, %v542
  %v671 = vmax.bf16 %v415, %v543
  %v672 = vmax.bf16 %v416, %v544
  %v673 = vmax.bf16 %v417, %v545
  %v674 = vmax.bf16 %v418, %v546
  %v675 = vmax.bf16 %v419, %v547
  %v676 = vmax.bf16 %v420, %v548
  %v677 = vmax.bf16 %v421, %v549
  %v678 = vmax.bf16 %v422, %v550
  %v679 = vmax.bf16 %v423, %v551
  %v680 = vmax.bf16 %v424, %v552
  %v681 = vmax.bf16 %v425, %v553
  %v682 = vmax.bf16 %v426, %v554
  %v683 = vmax.bf16 %v427, %v555
  %v684 = vmax.bf16 %v428, %v556
  %v685 = vmax.bf16 %v429, %v557
  %v686 = vmax.bf16 %v430, %v558
  %v687 = vmax.bf16 %v431, %v559
  %v688 = vmax.bf16 %v432, %v560
  %v689 = vmax.bf16 %v433, %v561
  %v690 = vmax.bf16 %v434, %v562
  %v691 = vmax.bf16 %v435, %v563
  %v692 = vmax.bf16 %v436, %v564
  %v693 = vmax.bf16 %v437, %v565
  %v694 = vmax.bf16 %v438, %v566
  %v695 = vmax.bf16 %v439, %v567
  %v696 = vmax.bf16 %v440, %v568
  %v697 = vmax.bf16 %v441, %v569
  %v698 = vmax.bf16 %v442, %v570
  %v699 = vmax.bf16 %v443, %v571
  %v700 = vmax.bf16 %v444, %v572
  %v701 = vmax.bf16 %v445, %v573
  %v702 = vmax.bf16 %v446, %v574
  %v703 = vmax.bf16 %v447, %v575
  %v704 = vmax.bf16 %v448, %v576
  %v705 = vmax.bf16 %v449, %v577
  %v706 = vmax.bf16 %v450, %v578
  %v707 = vmax.bf16 %v451, %v579
  %v708 = vmax.bf16 %v452, %v580
  %v709 = vmax.bf16 %v453, %v581
  %v710 = vmax.bf16 %v454, %v582
  %v711 = vmax.bf16 %v455, %v583
  %v712 = vmax.bf16 %v456, %v584
  %v713 = vmax.bf16 %v457, %v585
  %v714 = vmax.bf16 %v458, %v586
  %v715 = vmax.bf16 %v459, %v587
  %v716 = vmax.bf16 %v460, %v588
  %v717 = vmax.bf16 %v461, %v589
  %v718 = vmax.bf16 %v462, %v590
  %v719 = vmax.bf16 %v463, %v591
  %v720 = vmax.bf16 %v464, %v592
  %v721 = vmax.bf16 %v465, %v593
  %v722 = vmax.bf16 %v466, %v594
  %v723 = vmax.bf16 %v467, %v595
  %v724 = vmax.bf16 %v468, %v596
  %v725 = vmax.bf16 %v469, %v597
  %v726 = vmax.bf16 %v470, %v598
  %v727 = vmax.bf16 %v471, %v599
  %v728 = vmax.bf16 %v472, %v600
  %v729 = vmax.bf16 %v473, %v601
  %v730 = vmax.bf16 %v474, %v602
  %v731 = vmax.bf16 %v475, %v603
  %v732 = vmax.bf16 %v476, %v604
  %v733 = vmax.bf16 %v477, %v605
  %v734 = vmax.bf16 %v478, %v606
  %v735 = vmax.bf16 %v479, %v607
  %v736 = vmax.bf16 %v480, %v608
  %v737 = vmax.bf16 %v481, %v609
  %v738 = vmax.bf16 %v482, %v610
  %v739 = vmax.bf16 %v483, %v611
  %v740 = vmax.bf16 %v484, %v612
  %v741 = vmax.bf16 %v485, %v613
  %v742 = vmax.bf16 %v486, %v614
  %v743 = vmax.bf16 %v487, %v615
  %v744 = vmax.bf16 %v488, %v616
  %v745 = vmax.bf16 %v489, %v617
  %v746 = vmax.bf16 %v490, %v618
  %v747 = vmax.bf16 %v491, %v619
  %v748 = vmax.bf16 %v492, %v620
  %v749 = vmax.bf16 %v493, %v621
  %v750 = vmax.bf16 %v494, %v622
  %v751 = vmax.bf16 %v495, %v623
  %v752 = vmax.bf16 %v496, %v624
  %v753 = vmax.bf16 %v497, %v625
  %v754 = vmax.bf16 %v498, %v626
  %v755 = vmax.bf16 %v499, %v627
  %v756 = vmax.bf16 %v500, %v628
  %v757 = vmax.bf16 %v501, %v629
  %v758 = vmax.bf16 %v502, %v630
  %v759 = vmax.bf16 %v503, %v631
  %v760 = vmax.bf16 %v504, %v632
  %v761 = vmax.bf16 %v505, %v633
  %v762 = vmax.bf16 %v506, %v634
  %v763 = vmax.bf16 %v507, %v635
  %v764 = vmax.bf16 %v508, %v636
  %v765 = vmax.bf16 %v509, %v637
  %v766 = vmax.bf16 %v510, %v638
  %v767 = vmax.bf16 %v511, %v639
  %v768 = vmax.bf16 %v512, %v640
  %v769 = vmax.bf16 %v513, %v641
  %v770 = vmax.bf16 %v514, %v642
  %v771 = vmax.bf16 %v515, %v643
  %v772 = vmax.bf16 %v516, %v644
  %v773 = vmax.bf16 %v517, %v645
  %v774 = vmax.bf16 %v518, %v646
  %v775 = vmax.bf16 %v519, %v647
  %v776 = vmax.bf16 %v520, %v648
  %v777 = vmax.bf16 %v521, %v649
  %v778 = vmax.bf16 %v522, %v650
  %v779 = vmax.bf16 %v523, %v651
  %v780 = vmax.bf16 %v524, %v652
  %v781 = vmax.bf16 %v525, %v653
  %v782 = vmax.bf16 %v526, %v654
  %v783 = vmax.bf16 %v527, %v655
  %v784 = vmax.bf16 %v528, %v656
  %v785 = vmax.bf16 %v273, %v657
  %v786 = vmax.bf16 %v274, %v658
  %v787 = vmax.bf16 %v275, %v659
  %v788 = vmax.bf16 %v276, %v660
  %v789 = vmax.bf16 %v277, %v661
  %v790 = vmax.bf16 %v278, %v662
  %v791 = vmax.bf16 %v279, %v663
  %v792 = vmax.bf16 %v280, %v664
  %v793 = vmax.bf16 %v281, %v665
  %v794 = vmax.bf16 %v282, %v666
  %v795 = vmax.bf16 %v283, %v667
  %v796 = vmax.bf16 %v284, %v668
  %v797 = vmax.bf16 %v285, %v669
  %v798 = vmax.bf16 %v286, %v670
  %v799 = vmax.bf16 %v287, %v671
  %v800 = vmax.bf16 %v288, %v672
  %v801 = vmax.bf16 %v289, %v673
  %v802 = vmax.bf16 %v290, %v674
  %v803 = vmax.bf16 %v291, %v675
  %v804 = vmax.bf16 %v292, %v676
  %v805 = vmax.bf16 %v293, %v677
  %v806 = vmax.bf16 %v294, %v678
  %v807 = vmax.bf16 %v295, %v679
  %v808 = vmax.bf16 %v296, %v680
  %v809 = vmax.bf16 %v297, %v681
  %v810 = vmax.bf16 %v298, %v682
  %v811 = vmax.bf16 %v299, %v683
  %v812 = vmax.bf16 %v300, %v684
  %v813 = vmax.bf16 %v301, %v685
  %v814 = vmax.bf16 %v302, %v686
  %v815 = vmax.bf16 %v303, %v687
  %v816 = vmax.bf16 %v304, %v688
  %v817 = vmax.bf16 %v305, %v689
  %v818 = vmax.bf16 %v306, %v690
  %v819 = vmax.bf16 %v307, %v691
  %v820 = vmax.bf16 %v308, %v692
  %v821 = vmax.bf16 %v309, %v693
  %v822 = vmax.bf16 %v310, %v694
  %v823 = vmax.bf16 %v311, %v695
  %v824 = vmax.bf16 %v312, %v696
  %v825 = vmax.bf16 %v313, %v697
  %v826 = vmax.bf16 %v314, %v698
  %v827 = vmax.bf16 %v315, %v699
  %v828 = vmax.bf16 %v316, %v700
  %v829 = vmax.bf16 %v317, %v701
  %v830 = vmax.bf16 %v318, %v702
  %v831 = vmax.bf16 %v319, %v703
  %v832 = vmax.bf16 %v320, %v704
  %v833 = vmax.bf16 %v321, %v705
  %v834 = vmax.bf16 %v322, %v706
  %v835 = vmax.bf16 %v323, %v707
  %v836 = vmax.bf16 %v324, %v708
  %v837 = vmax.bf16 %v325, %v709
  %v838 = vmax.bf16 %v326, %v710
  %v839 = vmax.bf16 %v327, %v711
  %v840 = vmax.bf16 %v328, %v712
  %v841 = vmax.bf16 %v329, %v713
  %v842 = vmax.bf16 %v330, %v714
  %v843 = vmax.bf16 %v331, %v715
  %v844 = vmax.bf16 %v332, %v716
  %v845 = vmax.bf16 %v333, %v717
  %v846 = vmax.bf16 %v334, %v718
  %v847 = vmax.bf16 %v335, %v719
  %v848 = vmax.bf16 %v336, %v720
  %v849 = vmax.bf16 %v337, %v721
  %v850 = vmax.bf16 %v338, %v722
  %v851 = vmax.bf16 %v339, %v723
  %v852 = vmax.bf16 %v340, %v724
  %v853 = vmax.bf16 %v341, %v725
  %v854 = vmax.bf16 %v342, %v726
  %v855 = vmax.bf16 %v343, %v727
  %v856 = vmax.bf16 %v344, %v728
  %v857 = vmax.bf16 %v345, %v729
  %v858 = vmax.bf16 %v346, %v730
  %v859 = vmax.bf16 %v347, %v731
  %v860 = vmax.bf16 %v348, %v732
  %v861 = vmax.bf16 %v349, %v733
  %v862 = vmax.bf16 %v350, %v734
  %v863 = vmax.bf16 %v351, %v735
  %v864 = vmax.bf16 %v352, %v736
  %v865 = vmax.bf16 %v353, %v737
  %v866 = vmax.bf16 %v354, %v738
  %v867 = vmax.bf16 %v355, %v739
  %v868 = vmax.bf16 %v356, %v740
  %v869 = vmax.bf16 %v357, %v741
  %v870 = vmax.bf16 %v358, %v742
  %v871 = vmax.bf16 %v359, %v743
  %v872 = vmax.bf16 %v360, %v744
  %v873 = vmax.bf16 %v361, %v745
  %v874 = vmax.bf16 %v362, %v746
  %v875 = vmax.bf16 %v363, %v747
  %v876 = vmax.bf16 %v364, %v748
  %v877 = vmax.bf16 %v365, %v749
  %v878 = vmax.bf16 %v366, %v750
  %v879 = vmax.bf16 %v367, %v751
  %v880 = vmax.bf16 %v368, %v752
  %v881 = vmax.bf16 %v369, %v753
  %v882 = vmax.bf16 %v370, %v754
  %v883 = vmax.bf16 %v371, %v755
  %v884 = vmax.bf16 %v372, %v756
  %v885 = vmax.bf16 %v373, %v757
  %v886 = vmax.bf16 %v374, %v758
  %v887 = vmax.bf16 %v375, %v759
  %v888 = vmax.bf16 %v376, %v760
  %v889 = vmax.bf16 %v377, %v761
  %v890 = vmax.bf16 %v378, %v762
  %v891 = vmax.bf16 %v379, %v763
  %v892 = vmax.bf16 %v380, %v764
  %v893 = vmax.bf16 %v381, %v765
  %v894 = vmax.bf16 %v382, %v766
  %v895 = vmax.bf16 %v383, %v767
  %v896 = vmax.bf16 %v384, %v768
  %v897 = vmax.bf16 %v385, %v769
  %v898 = vmax.bf16 %v386, %v770
  %v899 = vmax.bf16 %v387, %v771
  %v900 = vmax.bf16 %v388, %v772
  %v901 = vmax.bf16 %v389, %v773
  %v902 = vmax.bf16 %v390, %v774
  %v903 = vmax.bf16 %v391, %v775
  %v904 = vmax.bf16 %v392, %v776
  %v905 = vmax.bf16 %v393, %v777
  %v906 = vmax.bf16 %v394, %v778
  %v907 = vmax.bf16 %v395, %v779
  %v908 = vmax.bf16 %v396, %v780
  %v909 = vmax.bf16 %v397, %v781
  %v910 = vmax.bf16 %v398, %v782
  %v911 = vmax.bf16 %v399, %v783
  %v912 = vmax.bf16 %v400, %v784
  %913 = vst [vmem:[%s4] sm:$0xff] %v785
  %914 = vst [vmem:[%s4 + $0x8] sm:$0xff] %v786
  %915 = vst [vmem:[%s4 + $0x10] sm:$0xff] %v787
  %916 = vst [vmem:[%s4 + $0x18] sm:$0xff] %v788
  %917 = vst [vmem:[%s4 + $0x20] sm:$0xff] %v789
  %918 = vst [vmem:[%s4 + $0x28] sm:$0xff] %v790
  %919 = vst [vmem:[%s4 + $0x30] sm:$0xff] %v791
  %920 = vst [vmem:[%s4 + $0x38] sm:$0xff] %v792
  %921 = vst [vmem:[%s4 + $0x40] sm:$0xff] %v793
  %922 = vst [vmem:[%s4 + $0x48] sm:$0xff] %v794
  %923 = vst [vmem:[%s4 + $0x50] sm:$0xff] %v795
  %924 = vst [vmem:[%s4 + $0x58] sm:$0xff] %v796
  %925 = vst [vmem:[%s4 + $0x60] sm:$0xff] %v797
  %926 = vst [vmem:[%s4 + $0x68] sm:$0xff] %v798
  %927 = vst [vmem:[%s4 + $0x70] sm:$0xff] %v799
  %928 = vst [vmem:[%s4 + $0x78] sm:$0xff] %v800
  %929 = vst [vmem:[%s4 + $0x80] sm:$0xff] %v801
  %930 = vst [vmem:[%s4 + $0x88] sm:$0xff] %v802
  %931 = vst [vmem:[%s4 + $0x90] sm:$0xff] %v803
  %932 = vst [vmem:[%s4 + $0x98] sm:$0xff] %v804
  %933 = vst [vmem:[%s4 + $0xa0] sm:$0xff] %v805
  %934 = vst [vmem:[%s4 + $0xa8] sm:$0xff] %v806
  %935 = vst [vmem:[%s4 + $0xb0] sm:$0xff] %v807
  %936 = vst [vmem:[%s4 + $0xb8] sm:$0xff] %v808
  %937 = vst [vmem:[%s4 + $0xc0] sm:$0xff] %v809
  %938 = vst [vmem:[%s4 + $0xc8] sm:$0xff] %v810
  %939 = vst [vmem:[%s4 + $0xd0] sm:$0xff] %v811
  %940 = vst [vmem:[%s4 + $0xd8] sm:$0xff] %v812
  %941 = vst [vmem:[%s4 + $0xe0] sm:$0xff] %v813
  %942 = vst [vmem:[%s4 + $0xe8] sm:$0xff] %v814
  %943 = vst [vmem:[%s4 + $0xf0] sm:$0xff] %v815
  %944 = vst [vmem:[%s4 + $0xf8] sm:$0xff] %v816
  %945 = vst [vmem:[%s4 + $0x100] sm:$0xff] %v817
  %946 = vst [vmem:[%s4 + $0x108] sm:$0xff] %v818
  %947 = vst [vmem:[%s4 + $0x110] sm:$0xff] %v819
  %948 = vst [vmem:[%s4 + $0x118] sm:$0xff] %v820
  %949 = vst [vmem:[%s4 + $0x120] sm:$0xff] %v821
  %950 = vst [vmem:[%s4 + $0x128] sm:$0xff] %v822
  %951 = vst [vmem:[%s4 + $0x130] sm:$0xff] %v823
  %952 = vst [vmem:[%s4 + $0x138] sm:$0xff] %v824
  %953 = vst [vmem:[%s4 + $0x140] sm:$0xff] %v825
  %954 = vst [vmem:[%s4 + $0x148] sm:$0xff] %v826
  %955 = vst [vmem:[%s4 + $0x150] sm:$0xff] %v827
  %956 = vst [vmem:[%s4 + $0x158] sm:$0xff] %v828
  %957 = vst [vmem:[%s4 + $0x160] sm:$0xff] %v829
  %958 = vst [vmem:[%s4 + $0x168] sm:$0xff] %v830
  %959 = vst [vmem:[%s4 + $0x170] sm:$0xff] %v831
  %960 = vst [vmem:[%s4 + $0x178] sm:$0xff] %v832
  %961 = vst [vmem:[%s4 + $0x180] sm:$0xff] %v833
  %962 = vst [vmem:[%s4 + $0x188] sm:$0xff] %v834
  %963 = vst [vmem:[%s4 + $0x190] sm:$0xff] %v835
  %964 = vst [vmem:[%s4 + $0x198] sm:$0xff] %v836
  %965 = vst [vmem:[%s4 + $0x1a0] sm:$0xff] %v837
  %966 = vst [vmem:[%s4 + $0x1a8] sm:$0xff] %v838
  %967 = vst [vmem:[%s4 + $0x1b0] sm:$0xff] %v839
  %968 = vst [vmem:[%s4 + $0x1b8] sm:$0xff] %v840
  %969 = vst [vmem:[%s4 + $0x1c0] sm:$0xff] %v841
  %970 = vst [vmem:[%s4 + $0x1c8] sm:$0xff] %v842
  %971 = vst [vmem:[%s4 + $0x1d0] sm:$0xff] %v843
  %972 = vst [vmem:[%s4 + $0x1d8] sm:$0xff] %v844
  %973 = vst [vmem:[%s4 + $0x1e0] sm:$0xff] %v845
  %974 = vst [vmem:[%s4 + $0x1e8] sm:$0xff] %v846
  %975 = vst [vmem:[%s4 + $0x1f0] sm:$0xff] %v847
  %976 = vst [vmem:[%s4 + $0x1f8] sm:$0xff] %v848
  %977 = vst [vmem:[%s4 + $0x200] sm:$0xff] %v849
  %978 = vst [vmem:[%s4 + $0x208] sm:$0xff] %v850
  %979 = vst [vmem:[%s4 + $0x210] sm:$0xff] %v851
  %980 = vst [vmem:[%s4 + $0x218] sm:$0xff] %v852
  %981 = vst [vmem:[%s4 + $0x220] sm:$0xff] %v853
  %982 = vst [vmem:[%s4 + $0x228] sm:$0xff] %v854
  %983 = vst [vmem:[%s4 + $0x230] sm:$0xff] %v855
  %984 = vst [vmem:[%s4 + $0x238] sm:$0xff] %v856
  %985 = vst [vmem:[%s4 + $0x240] sm:$0xff] %v857
  %986 = vst [vmem:[%s4 + $0x248] sm:$0xff] %v858
  %987 = vst [vmem:[%s4 + $0x250] sm:$0xff] %v859
  %988 = vst [vmem:[%s4 + $0x258] sm:$0xff] %v860
  %989 = vst [vmem:[%s4 + $0x260] sm:$0xff] %v861
  %990 = vst [vmem:[%s4 + $0x268] sm:$0xff] %v862
  %991 = vst [vmem:[%s4 + $0x270] sm:$0xff] %v863
  %992 = vst [vmem:[%s4 + $0x278] sm:$0xff] %v864
  %993 = vst [vmem:[%s4 + $0x280] sm:$0xff] %v865
  %994 = vst [vmem:[%s4 + $0x288] sm:$0xff] %v866
  %995 = vst [vmem:[%s4 + $0x290] sm:$0xff] %v867
  %996 = vst [vmem:[%s4 + $0x298] sm:$0xff] %v868
  %997 = vst [vmem:[%s4 + $0x2a0] sm:$0xff] %v869
  %998 = vst [vmem:[%s4 + $0x2a8] sm:$0xff] %v870
  %999 = vst [vmem:[%s4 + $0x2b0] sm:$0xff] %v871
  %1000 = vst [vmem:[%s4 + $0x2b8] sm:$0xff] %v872
  %1001 = vst [vmem:[%s4 + $0x2c0] sm:$0xff] %v873
  %1002 = vst [vmem:[%s4 + $0x2c8] sm:$0xff] %v874
  %1003 = vst [vmem:[%s4 + $0x2d0] sm:$0xff] %v875
  %1004 = vst [vmem:[%s4 + $0x2d8] sm:$0xff] %v876
  %1005 = vst [vmem:[%s4 + $0x2e0] sm:$0xff] %v877
  %1006 = vst [vmem:[%s4 + $0x2e8] sm:$0xff] %v878
  %1007 = vst [vmem:[%s4 + $0x2f0] sm:$0xff] %v879
  %1008 = vst [vmem:[%s4 + $0x2f8] sm:$0xff] %v880
  %1009 = vst [vmem:[%s4 + $0x300] sm:$0xff] %v881
  %1010 = vst [vmem:[%s4 + $0x308] sm:$0xff] %v882
  %1011 = vst [vmem:[%s4 + $0x310] sm:$0xff] %v883
  %1012 = vst [vmem:[%s4 + $0x318] sm:$0xff] %v884
  %1013 = vst [vmem:[%s4 + $0x320] sm:$0xff] %v885
  %1014 = vst [vmem:[%s4 + $0x328] sm:$0xff] %v886
  %1015 = vst [vmem:[%s4 + $0x330] sm:$0xff] %v887
  %1016 = vst [vmem:[%s4 + $0x338] sm:$0xff] %v888
  %1017 = vst [vmem:[%s4 + $0x340] sm:$0xff] %v889
  %1018 = vst [vmem:[%s4 + $0x348] sm:$0xff] %v890
  %1019 = vst [vmem:[%s4 + $0x350] sm:$0xff] %v891
  %1020 = vst [vmem:[%s4 + $0x358] sm:$0xff] %v892
  %1021 = vst [vmem:[%s4 + $0x360] sm:$0xff] %v893
  %1022 = vst [vmem:[%s4 + $0x368] sm:$0xff] %v894
  %1023 = vst [vmem:[%s4 + $0x370] sm:$0xff] %v895
  %1024 = vst [vmem:[%s4 + $0x378] sm:$0xff] %v896
  %1025 = vst [vmem:[%s4 + $0x380] sm:$0xff] %v897
  %1026 = vst [vmem:[%s4 + $0x388] sm:$0xff] %v898
  %1027 = vst [vmem:[%s4 + $0x390] sm:$0xff] %v899
  %1028 = vst [vmem:[%s4 + $0x398] sm:$0xff] %v900
  %1029 = vst [vmem:[%s4 + $0x3a0] sm:$0xff] %v901
  %1030 = vst [vmem:[%s4 + $0x3a8] sm:$0xff] %v902
  %1031 = vst [vmem:[%s4 + $0x3b0] sm:$0xff] %v903
  %1032 = vst [vmem:[%s4 + $0x3b8] sm:$0xff] %v904
  %1033 = vst [vmem:[%s4 + $0x3c0] sm:$0xff] %v905
  %1034 = vst [vmem:[%s4 + $0x3c8] sm:$0xff] %v906
  %1035 = vst [vmem:[%s4 + $0x3d0] sm:$0xff] %v907
  %1036 = vst [vmem:[%s4 + $0x3d8] sm:$0xff] %v908
  %1037 = vst [vmem:[%s4 + $0x3e0] sm:$0xff] %v909
  %1038 = vst [vmem:[%s4 + $0x3e8] sm:$0xff] %v910
  %1039 = vst [vmem:[%s4 + $0x3f0] sm:$0xff] %v911
  %1040 = vst [vmem:[%s4 + $0x3f8] sm:$0xff] %v912
  // Predicated region
  $region18: #{_lambda_.9} parent=0 // pred_check
    _
  $region19: #{_lambda_.9} parent=0 // pred_check_branch
    %1042 = sbr.rel (0) target = $region21
  $region20: #{_lambda_.9} parent=0 // pred_region
    _
  $region21: #{_lambda_.9} parent=0 // pred_fallthru
    _
  // Predicated region
  $region22: #{_lambda_.9} parent=0 // pred_check
    _
  $region23: #{_lambda_.9} parent=0 // pred_check_branch
    %1044 = sbr.rel (0) target = $region25
  $region24: #{_lambda_.9} parent=0 // pred_region
    _
  $region25: #{_lambda_.9} parent=0 // pred_fallthru
    _

// kernel: _lambda_.10
$region0: #{_lambda_.10}
  #allocation0 [shape = 'u32[]', space=smem, size = 0x4, offset = 0x4, fixed_abs, tag = 'smem constant byte address 0x4 - core index']
  #allocation1 [shape = 'u32[144,128]{1,0:T(1,128)}', space=vmem, size = 0x12000, scoped, tag = 'internal scratch']
  #allocation2 [shape = 'f32[8,128]{1,0:T(8,128)}', space=vmem, size = 0x1000, scoped, tag = 'scratch operand']
  %s0 = inlined_call_operand.vmem [shape: bf16[8,100352], index: 0, kind: input, shape index: {}]
  %s1 = inlined_call_operand.vmem [shape: bf16[100352,128], index: 1, kind: input, shape index: {}]
  %s2 = inlined_call_operand.vmem [shape: f32[1,128], index: 2, kind: input, shape index: {}]
  %s3 = inlined_call_operand.vmem [shape: bf16[8,128], index: 3, kind: output, shape index: {}]
  %s4 = sld [smem:[#allocation0]]
  $region53: #{_lambda_.10} parent=0
    _
  %s6 = ssub.s32 1, %s4
  %s7 = scalar_select 0, %s6, %s4
  loop: start=0, step=1, limit=51
  $region2: #{_lambda_.10} parent=0 // loop_pre_header
    _
  $region3: #{_lambda_.10} parent=0 // loop_header
    %s9 = sphi 0, %s13
    %p10 = scmp.ge.s32.totalorder %s9, 51
    %s16 = sphi 0, %s35
    %s17 = sphi 0, %s31
    %s18 = sphi 0, %s27
    %s19 = sphi 0, %s16
    %s20 = sphi 0, %s17
    %s21 = sphi 0, %s18
    %s22 = sphi 0, %s19
    %s23 = sphi 0, %s20
    %s24 = sphi 0, %s21
    %s40 = sphi 0, %s42
    %s43 = sphi 0, %s40
    %s44 = sphi 0, %s43
    %s60 = sphi 0, %s44
    %s68 = sphi 0, %s70
    %s71 = sphi 0, %s68
    %s72 = sphi 0, %s71
    %s88 = sphi 0, %s72
    %s94 = sphi 0, %s96
    %s97 = sphi 0, %s94
    %s98 = sphi 0, %s97
    %s114 = sphi 0, %s98
    %s122 = sphi 0, %s124
    %s125 = sphi 0, %s122
    %s126 = sphi 0, %s125
    %s142 = sphi 0, %s126
  $region4: #{_lambda_.10} parent=0 // loop_header_branch
    %12 = sbr.rel (%p10) target = $region8
  $region5: #{_lambda_.10} parent=0 // loop_body
    %s14 = ssub.s32 %s9, 1
    %s15 = ssub.s32 %s9, 2
    %s25 = sadd.s32 1, %s18
    %p26 = scmp.ge.s32.totalorder %s25, 49
    %s27 = scalar_select %p26, 0, %s25
    %s28 = sadd.s32 1, %s17
    %s29 = scalar_select %p26, %s28, %s17
    %p30 = scmp.ge.s32.totalorder %s29, 1
    %s31 = scalar_select %p30, 0, %s29
    %s32 = sadd.s32 1, %s16
    %s33 = scalar_select %p30, %s32, %s16
    %p34 = scmp.ge.s32.totalorder %s33, 1
    %s35 = scalar_select %p34, 0, %s33
    %s36 = ssub.s32 %s16, %s35
    %s37 = ssub.s32 %s18, %s27
    %s38 = sor.u32 %s36, %s37
    %p39 = scmp.eq.s32.totalorder %s38, 0
    %s41 = sadd.s32 %s40, 1
    %s42 = scalar_select %p39, %s40, %s41
    %p45 = pneg %p39
    %p46 = scmp.eq.s32.totalorder %s9, 48
    %p47 = por %p45, %p46
    %p48 = scmp.ne.s32.totalorder %s40, %s43
    %p49 = scmp.eq.s32.totalorder %s9, 0
    %p50 = por %p48, %p49
    %p51 = scmp.ne.s32.totalorder %s40, %s43
    %p52 = scmp.eq.s32.totalorder %s14, 48
    %p53 = por %p51, %p52
    %p54 = scmp.ne.s32.totalorder %s43, %s44
    %p55 = scmp.eq.s32.totalorder %s14, 0
    %p56 = por %p54, %p55
    %p57 = scmp.ne.s32.totalorder %s43, %s44
    %p58 = scmp.eq.s32.totalorder %s15, 48
    %p59 = por %p57, %p58
    %p61 = scmp.ne.s32.totalorder %s44, %s60
    %p62 = scmp.eq.s32.totalorder %s15, 0
    %p63 = por %p61, %p62
    %s64 = ssub.s32 %s18, %s27
    %s65 = ssub.s32 %s17, %s31
    %s66 = sor.u32 %s64, %s65
    %p67 = scmp.eq.s32.totalorder %s66, 0
    %s69 = sadd.s32 %s68, 1
    %s70 = scalar_select %p67, %s68, %s69
    %p73 = pneg %p67
    %p74 = scmp.eq.s32.totalorder %s9, 48
    %p75 = por %p73, %p74
    %p76 = scmp.ne.s32.totalorder %s68, %s71
    %p77 = scmp.eq.s32.totalorder %s9, 0
    %p78 = por %p76, %p77
    %p79 = scmp.ne.s32.totalorder %s68, %s71
    %p80 = scmp.eq.s32.totalorder %s14, 48
    %p81 = por %p79, %p80
    %p82 = scmp.ne.s32.totalorder %s71, %s72
    %p83 = scmp.eq.s32.totalorder %s14, 0
    %p84 = por %p82, %p83
    %p85 = scmp.ne.s32.totalorder %s71, %s72
    %p86 = scmp.eq.s32.totalorder %s15, 48
    %p87 = por %p85, %p86
    %p89 = scmp.ne.s32.totalorder %s72, %s88
    %p90 = scmp.eq.s32.totalorder %s15, 0
    %p91 = por %p89, %p90
    %s92 = ssub.s32 %s17, %s31
    %p93 = scmp.eq.s32.totalorder %s92, 0
    %s95 = sadd.s32 %s94, 1
    %s96 = scalar_select %p93, %s94, %s95
    %p99 = pneg %p93
    %p100 = scmp.eq.s32.totalorder %s9, 48
    %p101 = por %p99, %p100
    %p102 = scmp.ne.s32.totalorder %s94, %s97
    %p103 = scmp.eq.s32.totalorder %s9, 0
    %p104 = por %p102, %p103
    %p105 = scmp.ne.s32.totalorder %s94, %s97
    %p106 = scmp.eq.s32.totalorder %s14, 48
    %p107 = por %p105, %p106
    %p108 = scmp.ne.s32.totalorder %s97, %s98
    %p109 = scmp.eq.s32.totalorder %s14, 0
    %p110 = por %p108, %p109
    %p111 = scmp.ne.s32.totalorder %s97, %s98
    %p112 = scmp.eq.s32.totalorder %s15, 48
    %p113 = por %p111, %p112
    %p115 = scmp.ne.s32.totalorder %s98, %s114
    %p116 = scmp.eq.s32.totalorder %s15, 0
    %p117 = por %p115, %p116
    %s118 = ssub.s32 %s16, %s35
    %s119 = ssub.s32 %s17, %s31
    %s120 = sor.u32 %s118, %s119
    %p121 = scmp.eq.s32.totalorder %s120, 0
    %s123 = sadd.s32 %s122, 1
    %s124 = scalar_select %p121, %s122, %s123
    %p127 = pneg %p121
    %p128 = scmp.eq.s32.totalorder %s9, 48
    %p129 = por %p127, %p128
    %p130 = scmp.ne.s32.totalorder %s122, %s125
    %p131 = scmp.eq.s32.totalorder %s9, 0
    %p132 = por %p130, %p131
    %p133 = scmp.ne.s32.totalorder %s122, %s125
    %p134 = scmp.eq.s32.totalorder %s14, 48
    %p135 = por %p133, %p134
    %p136 = scmp.ne.s32.totalorder %s125, %s126
    %p137 = scmp.eq.s32.totalorder %s14, 0
    %p138 = por %p136, %p137
    %p139 = scmp.ne.s32.totalorder %s125, %s126
    %p140 = scmp.eq.s32.totalorder %s15, 48
    %p141 = por %p139, %p140
    %p143 = scmp.ne.s32.totalorder %s126, %s142
    %p144 = scmp.eq.s32.totalorder %s15, 0
    %p145 = por %p143, %p144
    %p146 = scmp.le.s32.totalorder 1, %s9
    %p147 = scmp.lt.s32.totalorder %s9, 50
    %p148 = pnand %p146, %p147
    %p149 = pneg %p148
    // Predicated region
    $region9: #{_lambda_.10} parent=5 // pred_check
      _
    $region10: #{_lambda_.10} parent=5 // pred_check_branch
      %151 = sbr.rel (%p148) target = $region12
    $region11: #{_lambda_.10} parent=5 // pred_region
      %s152 = ssub.s32 %s9, 1
      // Predicated region
      $region13: #{_lambda_.10} parent=11 // pred_check
        %p153 = pneg %p110
      $region14: #{_lambda_.10} parent=11 // pred_check_branch
        %155 = sbr.rel (%p153) target = $region16
      $region15: #{_lambda_.10} parent=11 // pred_region
        %p156 = scmp.lt.s32.totalorder %s20, 0
        %s157 = scalar_select %p156, %s20, 0
        %s158 = scalar_lea.vmem %s2, %s157
      $region16: #{_lambda_.10} parent=11 // pred_fallthru
        _
    $region12: #{_lambda_.10} parent=5 // pred_fallthru
      _
    %p159 = scmp.lt.s32.totalorder %s9, 49
    // Predicated region
    $region17: #{_lambda_.10} parent=5 // pred_check
      %p160 = pneg %p159
    $region18: #{_lambda_.10} parent=5 // pred_check_branch
      %162 = sbr.rel (%p160) target = $region20
    $region19: #{_lambda_.10} parent=5 // pred_region
      // Predicated region
      $region21: #{_lambda_.10} parent=19 // pred_check
        %p163 = pneg %p50
      $region22: #{_lambda_.10} parent=19 // pred_check_branch
        %165 = sbr.rel (%p163) target = $region24
      $region23: #{_lambda_.10} parent=19 // pred_region
        %s166 = smul.u32 16, %s18
        %p167 = scmp.lt.s32.totalorder %s16, 0
        %s168 = scalar_select %p167, %s16, 0
        %p169 = scmp.lt.s32.totalorder %s166, 783
        %s170 = scalar_select %p169, %s166, 783
        %s171 = smul.addr %s168, 784
        %s172 = sadd.s32 %s170, %s171
        %s173 = smul.addr %s172, 4
        %s174 = scalar_lea.vmem %s0, %s173
        %s175 = smul.u32 16, %s18
      $region24: #{_lambda_.10} parent=19 // pred_fallthru
        _
      // Predicated region
      $region25: #{_lambda_.10} parent=19 // pred_check
        %p176 = pneg %p78
      $region26: #{_lambda_.10} parent=19 // pred_check_branch
        %178 = sbr.rel (%p176) target = $region28
      $region27: #{_lambda_.10} parent=19 // pred_region
        %s179 = smul.u32 256, %s18
        %p180 = scmp.lt.s32.totalorder %s179, 12543
        %s181 = scalar_select %p180, %s179, 12543
        %p182 = scmp.lt.s32.totalorder %s17, 0
        %s183 = scalar_select %p182, %s17, 0
        %s184 = sadd.s32 %s183, %s181
        %s185 = smul.addr %s184, 4
        %s186 = scalar_lea.vmem %s1, %s185
        %s187 = smul.u32 256, %s18
      $region28: #{_lambda_.10} parent=19 // pred_fallthru
        _
    $region20: #{_lambda_.10} parent=5 // pred_fallthru
      _
    %p188 = scmp.le.s32.totalorder 1, %s9
    %p189 = scmp.lt.s32.totalorder %s9, 50
    %p190 = pnand %p188, %p189
    %p191 = pneg %p190
    // Predicated region
    $region29: #{_lambda_.10} parent=5 // pred_check
      _
    $region30: #{_lambda_.10} parent=5 // pred_check_branch
      %193 = sbr.rel (%p190) target = $region32
    $region31: #{_lambda_.10} parent=5 // pred_region
      %s194 = ssub.s32 %s9, 1
      %s195 = smul.u32 16, %s21
      %p196 = scmp.lt.s32.totalorder %s19, 0
      %s197 = scalar_select %p196, %s19, 0
      %p198 = scmp.lt.s32.totalorder %s195, 783
      %s199 = scalar_select %p198, %s195, 783
      %s200 = smul.addr %s197, 784
      %s201 = sadd.s32 %s199, %s200
      %s202 = smul.addr %s201, 4
      %s203 = scalar_lea.vmem %s0, %s202
      %p204 = pneg %p56
      %p205 = pneg %p53
      %s206 = smul.u32 256, %s21
      %p207 = scmp.lt.s32.totalorder %s206, 12543
      %s208 = scalar_select %p207, %s206, 12543
      %p209 = scmp.lt.s32.totalorder %s20, 0
      %s210 = scalar_select %p209, %s20, 0
      %s211 = sadd.s32 %s210, %s208
      %s212 = smul.addr %s211, 4
      %s213 = scalar_lea.vmem %s1, %s212
      %p214 = pneg %p84
      %p215 = pneg %p81
      %p216 = scmp.lt.s32.totalorder %s20, 0
      %s217 = scalar_select %p216, %s20, 0
      %s218 = scalar_lea.vmem %s2, %s217
      %p219 = pneg %p110
      %p220 = pneg %p107
      %p221 = pneg %p138
      %p222 = pneg %p135
      %p223 = scmp.lt.s32.totalorder %s19, 0
      %s224 = scalar_select %p223, %s19, 0
      %p225 = scmp.lt.s32.totalorder %s20, 0
      %s226 = scalar_select %p225, %s20, 0
      %s227 = sadd.s32 %s226, %s224
      %s228 = smul.addr %s227, 4
      %s229 = scalar_lea.vmem %s3, %s228
      %s230 = smul.u32 16, %s21
      %p231 = scmp.lt.s32.totalorder %s19, 0
      %s232 = scalar_select %p231, %s19, 0
      %p233 = scmp.lt.s32.totalorder %s230, 783
      %s234 = scalar_select %p233, %s230, 783
      %s235 = smul.addr %s232, 784
      %s236 = sadd.s32 %s234, %s235
      %s237 = smul.addr %s236, 4
      %s238 = scalar_lea.vmem %s0, %s237
      %s239 = smul.u32 16, %s21
      %s240 = smul.u32 256, %s21
      %p241 = scmp.lt.s32.totalorder %s240, 12543
      %s242 = scalar_select %p241, %s240, 12543
      %p243 = scmp.lt.s32.totalorder %s20, 0
      %s244 = scalar_select %p243, %s20, 0
      %s245 = sadd.s32 %s244, %s242
      %s246 = smul.addr %s245, 4
      %s247 = scalar_lea.vmem %s1, %s246
      %s248 = smul.u32 256, %s21
      %p249 = scmp.lt.s32.totalorder %s20, 0
      %s250 = scalar_select %p249, %s20, 0
      %s251 = scalar_lea.vmem %s2, %s250
      %p252 = scmp.lt.s32.totalorder %s19, 0
      %s253 = scalar_select %p252, %s19, 0
      %p254 = scmp.lt.s32.totalorder %s20, 0
      %s255 = scalar_select %p254, %s20, 0
      %s256 = sadd.s32 %s255, %s253
      %s257 = smul.addr %s256, 4
      %s258 = scalar_lea.vmem %s3, %s257
      %p260 = scmp.eq.s32.totalorder %s21, 0
      // Predicated region
      $region33: #{_lambda_.10} parent=31 // pred_check
        %p261 = pneg %p260
      $region34: #{_lambda_.10} parent=31 // pred_check_branch
        %263 = sbr.rel (%p261) target = $region36
      $region35: #{_lambda_.10} parent=31 // pred_region
        %264 = vst [vmem:[#allocation2] sm:$0xff] 0.0
      $region36: #{_lambda_.10} parent=31 // pred_fallthru
        _
      %v265 = vld [vmem:[#allocation2] sm:$0xff]
      %v266 = vld [vmem:[%s238] sm:$0xff]
      %v267 = vld [vmem:[%s238 + $0x8] sm:$0xff]
      %v268 = vld [vmem:[%s238 + $0x10] sm:$0xff]
      %v269 = vld [vmem:[%s238 + $0x18] sm:$0xff]
      %v270 = vld [vmem:[%s238 + $0x20] sm:$0xff]
      %v271 = vld [vmem:[%s238 + $0x28] sm:$0xff]
      %v272 = vld [vmem:[%s238 + $0x30] sm:$0xff]
      %v273 = vld [vmem:[%s238 + $0x38] sm:$0xff]
      %v274 = vld [vmem:[%s247] sm:$0xf]
      %v275 = vld [vmem:[%s247 + $0x4] sm:$0xf]
      %v276 = vld [vmem:[%s247 + $0x8] sm:$0xf]
      %v277 = vld [vmem:[%s247 + $0xc] sm:$0xf]
      %v278 = vld [vmem:[%s247 + $0x10] sm:$0xf]
      %v279 = vld [vmem:[%s247 + $0x14] sm:$0xf]
      %v280 = vld [vmem:[%s247 + $0x18] sm:$0xf]
      %v281 = vld [vmem:[%s247 + $0x1c] sm:$0xf]
      %v282 = vld [vmem:[%s247 + $0x20] sm:$0xf]
      %v283 = vld [vmem:[%s247 + $0x24] sm:$0xf]
      %v284 = vld [vmem:[%s247 + $0x28] sm:$0xf]
      %v285 = vld [vmem:[%s247 + $0x2c] sm:$0xf]
      %v286 = vld [vmem:[%s247 + $0x30] sm:$0xf]
      %v287 = vld [vmem:[%s247 + $0x34] sm:$0xf]
      %v288 = vld [vmem:[%s247 + $0x38] sm:$0xf]
      %v289 = vld [vmem:[%s247 + $0x3c] sm:$0xf]
      %v290 = vld [vmem:[%s247 + $0x40] sm:$0xf]
      %v291 = vld [vmem:[%s247 + $0x44] sm:$0xf]
      %v292 = vld [vmem:[%s247 + $0x48] sm:$0xf]
      %v293 = vld [vmem:[%s247 + $0x4c] sm:$0xf]
      %v294 = vld [vmem:[%s247 + $0x50] sm:$0xf]
      %v295 = vld [vmem:[%s247 + $0x54] sm:$0xf]
      %v296 = vld [vmem:[%s247 + $0x58] sm:$0xf]
      %v297 = vld [vmem:[%s247 + $0x5c] sm:$0xf]
      %v298 = vld [vmem:[%s247 + $0x60] sm:$0xf]
      %v299 = vld [vmem:[%s247 + $0x64] sm:$0xf]
      %v300 = vld [vmem:[%s247 + $0x68] sm:$0xf]
      %v301 = vld [vmem:[%s247 + $0x6c] sm:$0xf]
      %v302 = vld [vmem:[%s247 + $0x70] sm:$0xf]
      %v303 = vld [vmem:[%s247 + $0x74] sm:$0xf]
      %v304 = vld [vmem:[%s247 + $0x78] sm:$0xf]
      %v305 = vld [vmem:[%s247 + $0x7c] sm:$0xf]
      %v306 = vld [vmem:[%s247 + $0x80] sm:$0xf]
      %v307 = vld [vmem:[%s247 + $0x84] sm:$0xf]
      %v308 = vld [vmem:[%s247 + $0x88] sm:$0xf]
      %v309 = vld [vmem:[%s247 + $0x8c] sm:$0xf]
      %v310 = vld [vmem:[%s247 + $0x90] sm:$0xf]
      %v311 = vld [vmem:[%s247 + $0x94] sm:$0xf]
      %v312 = vld [vmem:[%s247 + $0x98] sm:$0xf]
      %v313 = vld [vmem:[%s247 + $0x9c] sm:$0xf]
      %v314 = vld [vmem:[%s247 + $0xa0] sm:$0xf]
      %v315 = vld [vmem:[%s247 + $0xa4] sm:$0xf]
      %v316 = vld [vmem:[%s247 + $0xa8] sm:$0xf]
      %v317 = vld [vmem:[%s247 + $0xac] sm:$0xf]
      %v318 = vld [vmem:[%s247 + $0xb0] sm:$0xf]
      %v319 = vld [vmem:[%s247 + $0xb4] sm:$0xf]
      %v320 = vld [vmem:[%s247 + $0xb8] sm:$0xf]
      %v321 = vld [vmem:[%s247 + $0xbc] sm:$0xf]
      %v322 = vld [vmem:[%s247 + $0xc0] sm:$0xf]
      %v323 = vld [vmem:[%s247 + $0xc4] sm:$0xf]
      %v324 = vld [vmem:[%s247 + $0xc8] sm:$0xf]
      %v325 = vld [vmem:[%s247 + $0xcc] sm:$0xf]
      %v326 = vld [vmem:[%s247 + $0xd0] sm:$0xf]
      %v327 = vld [vmem:[%s247 + $0xd4] sm:$0xf]
      %v328 = vld [vmem:[%s247 + $0xd8] sm:$0xf]
      %v329 = vld [vmem:[%s247 + $0xdc] sm:$0xf]
      %v330 = vld [vmem:[%s247 + $0xe0] sm:$0xf]
      %v331 = vld [vmem:[%s247 + $0xe4] sm:$0xf]
      %v332 = vld [vmem:[%s247 + $0xe8] sm:$0xf]
      %v333 = vld [vmem:[%s247 + $0xec] sm:$0xf]
      %v334 = vld [vmem:[%s247 + $0xf0] sm:$0xf]
      %v335 = vld [vmem:[%s247 + $0xf4] sm:$0xf]
      %v336 = vld [vmem:[%s247 + $0xf8] sm:$0xf]
      %v337 = vld [vmem:[%s247 + $0xfc] sm:$0xf]
      %v338 = vld [vmem:[%s247 + $0x100] sm:$0xf]
      %v339 = vld [vmem:[%s247 + $0x104] sm:$0xf]
      %v340 = vld [vmem:[%s247 + $0x108] sm:$0xf]
      %v341 = vld [vmem:[%s247 + $0x10c] sm:$0xf]
      %v342 = vld [vmem:[%s247 + $0x110] sm:$0xf]
      %v343 = vld [vmem:[%s247 + $0x114] sm:$0xf]
      %v344 = vld [vmem:[%s247 + $0x118] sm:$0xf]
      %v345 = vld [vmem:[%s247 + $0x11c] sm:$0xf]
      %v346 = vld [vmem:[%s247 + $0x120] sm:$0xf]
      %v347 = vld [vmem:[%s247 + $0x124] sm:$0xf]
      %v348 = vld [vmem:[%s247 + $0x128] sm:$0xf]
      %v349 = vld [vmem:[%s247 + $0x12c] sm:$0xf]
      %v350 = vld [vmem:[%s247 + $0x130] sm:$0xf]
      %v351 = vld [vmem:[%s247 + $0x134] sm:$0xf]
      %v352 = vld [vmem:[%s247 + $0x138] sm:$0xf]
      %v353 = vld [vmem:[%s247 + $0x13c] sm:$0xf]
      %v354 = vld [vmem:[%s247 + $0x140] sm:$0xf]
      %v355 = vld [vmem:[%s247 + $0x144] sm:$0xf]
      %v356 = vld [vmem:[%s247 + $0x148] sm:$0xf]
      %v357 = vld [vmem:[%s247 + $0x14c] sm:$0xf]
      %v358 = vld [vmem:[%s247 + $0x150] sm:$0xf]
      %v359 = vld [vmem:[%s247 + $0x154] sm:$0xf]
      %v360 = vld [vmem:[%s247 + $0x158] sm:$0xf]
      %v361 = vld [vmem:[%s247 + $0x15c] sm:$0xf]
      %v362 = vld [vmem:[%s247 + $0x160] sm:$0xf]
      %v363 = vld [vmem:[%s247 + $0x164] sm:$0xf]
      %v364 = vld [vmem:[%s247 + $0x168] sm:$0xf]
      %v365 = vld [vmem:[%s247 + $0x16c] sm:$0xf]
      %v366 = vld [vmem:[%s247 + $0x170] sm:$0xf]
      %v367 = vld [vmem:[%s247 + $0x174] sm:$0xf]
      %v368 = vld [vmem:[%s247 + $0x178] sm:$0xf]
      %v369 = vld [vmem:[%s247 + $0x17c] sm:$0xf]
      %v370 = vld [vmem:[%s247 + $0x180] sm:$0xf]
      %v371 = vld [vmem:[%s247 + $0x184] sm:$0xf]
      %v372 = vld [vmem:[%s247 + $0x188] sm:$0xf]
      %v373 = vld [vmem:[%s247 + $0x18c] sm:$0xf]
      %v374 = vld [vmem:[%s247 + $0x190] sm:$0xf]
      %v375 = vld [vmem:[%s247 + $0x194] sm:$0xf]
      %v376 = vld [vmem:[%s247 + $0x198] sm:$0xf]
      %v377 = vld [vmem:[%s247 + $0x19c] sm:$0xf]
      %v378 = vld [vmem:[%s247 + $0x1a0] sm:$0xf]
      %v379 = vld [vmem:[%s247 + $0x1a4] sm:$0xf]
      %v380 = vld [vmem:[%s247 + $0x1a8] sm:$0xf]
      %v381 = vld [vmem:[%s247 + $0x1ac] sm:$0xf]
      %v382 = vld [vmem:[%s247 + $0x1b0] sm:$0xf]
      %v383 = vld [vmem:[%s247 + $0x1b4] sm:$0xf]
      %v384 = vld [vmem:[%s247 + $0x1b8] sm:$0xf]
      %v385 = vld [vmem:[%s247 + $0x1bc] sm:$0xf]
      %v386 = vld [vmem:[%s247 + $0x1c0] sm:$0xf]
      %v387 = vld [vmem:[%s247 + $0x1c4] sm:$0xf]
      %v388 = vld [vmem:[%s247 + $0x1c8] sm:$0xf]
      %v389 = vld [vmem:[%s247 + $0x1cc] sm:$0xf]
      %v390 = vld [vmem:[%s247 + $0x1d0] sm:$0xf]
      %v391 = vld [vmem:[%s247 + $0x1d4] sm:$0xf]
      %v392 = vld [vmem:[%s247 + $0x1d8] sm:$0xf]
      %v393 = vld [vmem:[%s247 + $0x1dc] sm:$0xf]
      %v394 = vld [vmem:[%s247 + $0x1e0] sm:$0xf]
      %v395 = vld [vmem:[%s247 + $0x1e4] sm:$0xf]
      %v396 = vld [vmem:[%s247 + $0x1e8] sm:$0xf]
      %v397 = vld [vmem:[%s247 + $0x1ec] sm:$0xf]
      %v398 = vld [vmem:[%s247 + $0x1f0] sm:$0xf]
      %v399 = vld [vmem:[%s247 + $0x1f4] sm:$0xf]
      %v400 = vld [vmem:[%s247 + $0x1f8] sm:$0xf]
      %v401 = vld [vmem:[%s247 + $0x1fc] sm:$0xf]
      %v402 = vld [vmem:[%s247 + $0x200] sm:$0xf]
      %v403 = vld [vmem:[%s247 + $0x204] sm:$0xf]
      %v404 = vld [vmem:[%s247 + $0x208] sm:$0xf]
      %v405 = vld [vmem:[%s247 + $0x20c] sm:$0xf]
      %v406 = vld [vmem:[%s247 + $0x210] sm:$0xf]
      %v407 = vld [vmem:[%s247 + $0x214] sm:$0xf]
      %v408 = vld [vmem:[%s247 + $0x218] sm:$0xf]
      %v409 = vld [vmem:[%s247 + $0x21c] sm:$0xf]
      %v410 = vld [vmem:[%s247 + $0x220] sm:$0xf]
      %v411 = vld [vmem:[%s247 + $0x224] sm:$0xf]
      %v412 = vld [vmem:[%s247 + $0x228] sm:$0xf]
      %v413 = vld [vmem:[%s247 + $0x22c] sm:$0xf]
      %v414 = vld [vmem:[%s247 + $0x230] sm:$0xf]
      %v415 = vld [vmem:[%s247 + $0x234] sm:$0xf]
      %v416 = vld [vmem:[%s247 + $0x238] sm:$0xf]
      %v417 = vld [vmem:[%s247 + $0x23c] sm:$0xf]
      %v418 = vld [vmem:[%s247 + $0x240] sm:$0xf]
      %v419 = vld [vmem:[%s247 + $0x244] sm:$0xf]
      %v420 = vld [vmem:[%s247 + $0x248] sm:$0xf]
      %v421 = vld [vmem:[%s247 + $0x24c] sm:$0xf]
      %v422 = vld [vmem:[%s247 + $0x250] sm:$0xf]
      %v423 = vld [vmem:[%s247 + $0x254] sm:$0xf]
      %v424 = vld [vmem:[%s247 + $0x258] sm:$0xf]
      %v425 = vld [vmem:[%s247 + $0x25c] sm:$0xf]
      %v426 = vld [vmem:[%s247 + $0x260] sm:$0xf]
      %v427 = vld [vmem:[%s247 + $0x264] sm:$0xf]
      %v428 = vld [vmem:[%s247 + $0x268] sm:$0xf]
      %v429 = vld [vmem:[%s247 + $0x26c] sm:$0xf]
      %v430 = vld [vmem:[%s247 + $0x270] sm:$0xf]
      %v431 = vld [vmem:[%s247 + $0x274] sm:$0xf]
      %v432 = vld [vmem:[%s247 + $0x278] sm:$0xf]
      %v433 = vld [vmem:[%s247 + $0x27c] sm:$0xf]
      %v434 = vld [vmem:[%s247 + $0x280] sm:$0xf]
      %v435 = vld [vmem:[%s247 + $0x284] sm:$0xf]
      %v436 = vld [vmem:[%s247 + $0x288] sm:$0xf]
      %v437 = vld [vmem:[%s247 + $0x28c] sm:$0xf]
      %v438 = vld [vmem:[%s247 + $0x290] sm:$0xf]
      %v439 = vld [vmem:[%s247 + $0x294] sm:$0xf]
      %v440 = vld [vmem:[%s247 + $0x298] sm:$0xf]
      %v441 = vld [vmem:[%s247 + $0x29c] sm:$0xf]
      %v442 = vld [vmem:[%s247 + $0x2a0] sm:$0xf]
      %v443 = vld [vmem:[%s247 + $0x2a4] sm:$0xf]
      %v444 = vld [vmem:[%s247 + $0x2a8] sm:$0xf]
      %v445 = vld [vmem:[%s247 + $0x2ac] sm:$0xf]
      %v446 = vld [vmem:[%s247 + $0x2b0] sm:$0xf]
      %v447 = vld [vmem:[%s247 + $0x2b4] sm:$0xf]
      %v448 = vld [vmem:[%s247 + $0x2b8] sm:$0xf]
      %v449 = vld [vmem:[%s247 + $0x2bc] sm:$0xf]
      %v450 = vld [vmem:[%s247 + $0x2c0] sm:$0xf]
      %v451 = vld [vmem:[%s247 + $0x2c4] sm:$0xf]
      %v452 = vld [vmem:[%s247 + $0x2c8] sm:$0xf]
      %v453 = vld [vmem:[%s247 + $0x2cc] sm:$0xf]
      %v454 = vld [vmem:[%s247 + $0x2d0] sm:$0xf]
      %v455 = vld [vmem:[%s247 + $0x2d4] sm:$0xf]
      %v456 = vld [vmem:[%s247 + $0x2d8] sm:$0xf]
      %v457 = vld [vmem:[%s247 + $0x2dc] sm:$0xf]
      %v458 = vld [vmem:[%s247 + $0x2e0] sm:$0xf]
      %v459 = vld [vmem:[%s247 + $0x2e4] sm:$0xf]
      %v460 = vld [vmem:[%s247 + $0x2e8] sm:$0xf]
      %v461 = vld [vmem:[%s247 + $0x2ec] sm:$0xf]
      %v462 = vld [vmem:[%s247 + $0x2f0] sm:$0xf]
      %v463 = vld [vmem:[%s247 + $0x2f4] sm:$0xf]
      %v464 = vld [vmem:[%s247 + $0x2f8] sm:$0xf]
      %v465 = vld [vmem:[%s247 + $0x2fc] sm:$0xf]
      %v466 = vld [vmem:[%s247 + $0x300] sm:$0xf]
      %v467 = vld [vmem:[%s247 + $0x304] sm:$0xf]
      %v468 = vld [vmem:[%s247 + $0x308] sm:$0xf]
      %v469 = vld [vmem:[%s247 + $0x30c] sm:$0xf]
      %v470 = vld [vmem:[%s247 + $0x310] sm:$0xf]
      %v471 = vld [vmem:[%s247 + $0x314] sm:$0xf]
      %v472 = vld [vmem:[%s247 + $0x318] sm:$0xf]
      %v473 = vld [vmem:[%s247 + $0x31c] sm:$0xf]
      %v474 = vld [vmem:[%s247 + $0x320] sm:$0xf]
      %v475 = vld [vmem:[%s247 + $0x324] sm:$0xf]
      %v476 = vld [vmem:[%s247 + $0x328] sm:$0xf]
      %v477 = vld [vmem:[%s247 + $0x32c] sm:$0xf]
      %v478 = vld [vmem:[%s247 + $0x330] sm:$0xf]
      %v479 = vld [vmem:[%s247 + $0x334] sm:$0xf]
      %v480 = vld [vmem:[%s247 + $0x338] sm:$0xf]
      %v481 = vld [vmem:[%s247 + $0x33c] sm:$0xf]
      %v482 = vld [vmem:[%s247 + $0x340] sm:$0xf]
      %v483 = vld [vmem:[%s247 + $0x344] sm:$0xf]
      %v484 = vld [vmem:[%s247 + $0x348] sm:$0xf]
      %v485 = vld [vmem:[%s247 + $0x34c] sm:$0xf]
      %v486 = vld [vmem:[%s247 + $0x350] sm:$0xf]
      %v487 = vld [vmem:[%s247 + $0x354] sm:$0xf]
      %v488 = vld [vmem:[%s247 + $0x358] sm:$0xf]
      %v489 = vld [vmem:[%s247 + $0x35c] sm:$0xf]
      %v490 = vld [vmem:[%s247 + $0x360] sm:$0xf]
      %v491 = vld [vmem:[%s247 + $0x364] sm:$0xf]
      %v492 = vld [vmem:[%s247 + $0x368] sm:$0xf]
      %v493 = vld [vmem:[%s247 + $0x36c] sm:$0xf]
      %v494 = vld [vmem:[%s247 + $0x370] sm:$0xf]
      %v495 = vld [vmem:[%s247 + $0x374] sm:$0xf]
      %v496 = vld [vmem:[%s247 + $0x378] sm:$0xf]
      %v497 = vld [vmem:[%s247 + $0x37c] sm:$0xf]
      %v498 = vld [vmem:[%s247 + $0x380] sm:$0xf]
      %v499 = vld [vmem:[%s247 + $0x384] sm:$0xf]
      %v500 = vld [vmem:[%s247 + $0x388] sm:$0xf]
      %v501 = vld [vmem:[%s247 + $0x38c] sm:$0xf]
      %v502 = vld [vmem:[%s247 + $0x390] sm:$0xf]
      %v503 = vld [vmem:[%s247 + $0x394] sm:$0xf]
      %v504 = vld [vmem:[%s247 + $0x398] sm:$0xf]
      %v505 = vld [vmem:[%s247 + $0x39c] sm:$0xf]
      %v506 = vld [vmem:[%s247 + $0x3a0] sm:$0xf]
      %v507 = vld [vmem:[%s247 + $0x3a4] sm:$0xf]
      %v508 = vld [vmem:[%s247 + $0x3a8] sm:$0xf]
      %v509 = vld [vmem:[%s247 + $0x3ac] sm:$0xf]
      %v510 = vld [vmem:[%s247 + $0x3b0] sm:$0xf]
      %v511 = vld [vmem:[%s247 + $0x3b4] sm:$0xf]
      %v512 = vld [vmem:[%s247 + $0x3b8] sm:$0xf]
      %v513 = vld [vmem:[%s247 + $0x3bc] sm:$0xf]
      %v514 = vld [vmem:[%s247 + $0x3c0] sm:$0xf]
      %v515 = vld [vmem:[%s247 + $0x3c4] sm:$0xf]
      %v516 = vld [vmem:[%s247 + $0x3c8] sm:$0xf]
      %v517 = vld [vmem:[%s247 + $0x3cc] sm:$0xf]
      %v518 = vld [vmem:[%s247 + $0x3d0] sm:$0xf]
      %v519 = vld [vmem:[%s247 + $0x3d4] sm:$0xf]
      %v520 = vld [vmem:[%s247 + $0x3d8] sm:$0xf]
      %v521 = vld [vmem:[%s247 + $0x3dc] sm:$0xf]
      %v522 = vld [vmem:[%s247 + $0x3e0] sm:$0xf]
      %v523 = vld [vmem:[%s247 + $0x3e4] sm:$0xf]
      %v524 = vld [vmem:[%s247 + $0x3e8] sm:$0xf]
      %v525 = vld [vmem:[%s247 + $0x3ec] sm:$0xf]
      %v526 = vld [vmem:[%s247 + $0x3f0] sm:$0xf]
      %v527 = vld [vmem:[%s247 + $0x3f4] sm:$0xf]
      %v528 = vld [vmem:[%s247 + $0x3f8] sm:$0xf]
      %v529 = vld [vmem:[%s247 + $0x3fc] sm:$0xf]
      %v538 = vunpack.c.l.b16 %v266
      %v539 = vunpack.c.h.b16 %v266
      %v540 = vunpack.c.l.b16 %v267
      %v541 = vunpack.c.h.b16 %v267
      %v542 = vunpack.c.l.b16 %v268
      %v543 = vunpack.c.h.b16 %v268
      %v544 = vunpack.c.l.b16 %v269
      %v545 = vunpack.c.h.b16 %v269
      %v546 = vunpack.c.l.b16 %v270
      %v547 = vunpack.c.h.b16 %v270
      %v548 = vunpack.c.l.b16 %v271
      %v549 = vunpack.c.h.b16 %v271
      %v550 = vunpack.c.l.b16 %v272
      %v551 = vunpack.c.h.b16 %v272
      %v552 = vunpack.c.l.b16 %v273
      %v553 = vunpack.c.h.b16 %v273
      %v554 = vpack.c.b16 %v538, %v538
      %v555 = vpack.c.b16 %v539, %v539
      %v556 = vpack.c.b16 %v540, %v540
      %v557 = vpack.c.b16 %v541, %v541
      %v558 = vpack.c.b16 %v542, %v542
      %v559 = vpack.c.b16 %v543, %v543
      %v560 = vpack.c.b16 %v544, %v544
      %v561 = vpack.c.b16 %v545, %v545
      %v562 = vpack.c.b16 %v546, %v546
      %v563 = vpack.c.b16 %v547, %v547
      %v564 = vpack.c.b16 %v548, %v548
      %v565 = vpack.c.b16 %v549, %v549
      %v566 = vpack.c.b16 %v550, %v550
      %v567 = vpack.c.b16 %v551, %v551
      %v568 = vpack.c.b16 %v552, %v552
      %v569 = vpack.c.b16 %v553, %v553
      %v842 = vunpack.c.l.b16 %v274
      %v843 = vunpack.c.l.b16 %v275
      %v844 = vunpack.c.l.b16 %v276
      %v845 = vunpack.c.l.b16 %v277
      %v846 = vunpack.c.l.b16 %v278
      %v847 = vunpack.c.l.b16 %v279
      %v848 = vunpack.c.l.b16 %v280
      %v849 = vunpack.c.l.b16 %v281
      %v850 = vunpack.c.l.b16 %v282
      %v851 = vunpack.c.l.b16 %v283
      %v852 = vunpack.c.l.b16 %v284
      %v853 = vunpack.c.l.b16 %v285
      %v854 = vunpack.c.l.b16 %v286
      %v855 = vunpack.c.l.b16 %v287
      %v856 = vunpack.c.l.b16 %v288
      %v857 = vunpack.c.l.b16 %v289
      %v858 = vunpack.c.l.b16 %v290
      %v859 = vunpack.c.l.b16 %v291
      %v860 = vunpack.c.l.b16 %v292
      %v861 = vunpack.c.l.b16 %v293
      %v862 = vunpack.c.l.b16 %v294
      %v863 = vunpack.c.l.b16 %v295
      %v864 = vunpack.c.l.b16 %v296
      %v865 = vunpack.c.l.b16 %v297
      %v866 = vunpack.c.l.b16 %v298
      %v867 = vunpack.c.l.b16 %v299
      %v868 = vunpack.c.l.b16 %v300
      %v869 = vunpack.c.l.b16 %v301
      %v870 = vunpack.c.l.b16 %v302
      %v871 = vunpack.c.l.b16 %v303
      %v872 = vunpack.c.l.b16 %v304
      %v873 = vunpack.c.l.b16 %v305
      %v874 = vunpack.c.l.b16 %v306
      %v875 = vunpack.c.l.b16 %v307
      %v876 = vunpack.c.l.b16 %v308
      %v877 = vunpack.c.l.b16 %v309
      %v878 = vunpack.c.l.b16 %v310
      %v879 = vunpack.c.l.b16 %v311
      %v880 = vunpack.c.l.b16 %v312
      %v881 = vunpack.c.l.b16 %v313
      %v882 = vunpack.c.l.b16 %v314
      %v883 = vunpack.c.l.b16 %v315
      %v884 = vunpack.c.l.b16 %v316
      %v885 = vunpack.c.l.b16 %v317
      %v886 = vunpack.c.l.b16 %v318
      %v887 = vunpack.c.l.b16 %v319
      %v888 = vunpack.c.l.b16 %v320
      %v889 = vunpack.c.l.b16 %v321
      %v890 = vunpack.c.l.b16 %v322
      %v891 = vunpack.c.l.b16 %v323
      %v892 = vunpack.c.l.b16 %v324
      %v893 = vunpack.c.l.b16 %v325
      %v894 = vunpack.c.l.b16 %v326
      %v895 = vunpack.c.l.b16 %v327
      %v896 = vunpack.c.l.b16 %v328
      %v897 = vunpack.c.l.b16 %v329
      %v898 = vunpack.c.l.b16 %v330
      %v899 = vunpack.c.l.b16 %v331
      %v900 = vunpack.c.l.b16 %v332
      %v901 = vunpack.c.l.b16 %v333
      %v902 = vunpack.c.l.b16 %v334
      %v903 = vunpack.c.l.b16 %v335
      %v904 = vunpack.c.l.b16 %v336
      %v905 = vunpack.c.l.b16 %v337
      %v906 = vunpack.c.l.b16 %v338
      %v907 = vunpack.c.l.b16 %v339
      %v908 = vunpack.c.l.b16 %v340
      %v909 = vunpack.c.l.b16 %v341
      %v910 = vunpack.c.l.b16 %v342
      %v911 = vunpack.c.l.b16 %v343
      %v912 = vunpack.c.l.b16 %v344
      %v913 = vunpack.c.l.b16 %v345
      %v914 = vunpack.c.l.b16 %v346
      %v915 = vunpack.c.l.b16 %v347
      %v916 = vunpack.c.l.b16 %v348
      %v917 = vunpack.c.l.b16 %v349
      %v918 = vunpack.c.l.b16 %v350
      %v919 = vunpack.c.l.b16 %v351
      %v920 = vunpack.c.l.b16 %v352
      %v921 = vunpack.c.l.b16 %v353
      %v922 = vunpack.c.l.b16 %v354
      %v923 = vunpack.c.l.b16 %v355
      %v924 = vunpack.c.l.b16 %v356
      %v925 = vunpack.c.l.b16 %v357
      %v926 = vunpack.c.l.b16 %v358
      %v927 = vunpack.c.l.b16 %v359
      %v928 = vunpack.c.l.b16 %v360
      %v929 = vunpack.c.l.b16 %v361
      %v930 = vunpack.c.l.b16 %v362
      %v931 = vunpack.c.l.b16 %v363
      %v932 = vunpack.c.l.b16 %v364
      %v933 = vunpack.c.l.b16 %v365
      %v934 = vunpack.c.l.b16 %v366
      %v935 = vunpack.c.l.b16 %v367
      %v936 = vunpack.c.l.b16 %v368
      %v937 = vunpack.c.l.b16 %v369
      %v938 = vunpack.c.l.b16 %v370
      %v939 = vunpack.c.l.b16 %v371
      %v940 = vunpack.c.l.b16 %v372
      %v941 = vunpack.c.l.b16 %v373
      %v942 = vunpack.c.l.b16 %v374
      %v943 = vunpack.c.l.b16 %v375
      %v944 = vunpack.c.l.b16 %v376
      %v945 = vunpack.c.l.b16 %v377
      %v946 = vunpack.c.l.b16 %v378
      %v947 = vunpack.c.l.b16 %v379
      %v948 = vunpack.c.l.b16 %v380
      %v949 = vunpack.c.l.b16 %v381
      %v950 = vunpack.c.l.b16 %v382
      %v951 = vunpack.c.l.b16 %v383
      %v952 = vunpack.c.l.b16 %v384
      %v953 = vunpack.c.l.b16 %v385
      %v954 = vunpack.c.l.b16 %v386
      %v955 = vunpack.c.l.b16 %v387
      %v956 = vunpack.c.l.b16 %v388
      %v957 = vunpack.c.l.b16 %v389
      %v958 = vunpack.c.l.b16 %v390
      %v959 = vunpack.c.l.b16 %v391
      %v960 = vunpack.c.l.b16 %v392
      %v961 = vunpack.c.l.b16 %v393
      %v962 = vunpack.c.l.b16 %v394
      %v963 = vunpack.c.l.b16 %v395
      %v964 = vunpack.c.l.b16 %v396
      %v965 = vunpack.c.l.b16 %v397
      %v966 = vunpack.c.l.b16 %v398
      %v967 = vunpack.c.l.b16 %v399
      %v968 = vunpack.c.l.b16 %v400
      %v969 = vunpack.c.l.b16 %v401
      %v970 = vunpack.c.l.b16 %v402
      %v971 = vunpack.c.l.b16 %v403
      %v972 = vunpack.c.l.b16 %v404
      %v973 = vunpack.c.l.b16 %v405
      %v974 = vunpack.c.l.b16 %v406
      %v975 = vunpack.c.l.b16 %v407
      %v976 = vunpack.c.l.b16 %v408
      %v977 = vunpack.c.l.b16 %v409
      %v978 = vunpack.c.l.b16 %v410
      %v979 = vunpack.c.l.b16 %v411
      %v980 = vunpack.c.l.b16 %v412
      %v981 = vunpack.c.l.b16 %v413
      %v982 = vunpack.c.l.b16 %v414
      %v983 = vunpack.c.l.b16 %v415
      %v984 = vunpack.c.l.b16 %v416
      %v985 = vunpack.c.l.b16 %v417
      %v986 = vunpack.c.l.b16 %v418
      %v987 = vunpack.c.l.b16 %v419
      %v988 = vunpack.c.l.b16 %v420
      %v989 = vunpack.c.l.b16 %v421
      %v990 = vunpack.c.l.b16 %v422
      %v991 = vunpack.c.l.b16 %v423
      %v992 = vunpack.c.l.b16 %v424
      %v993 = vunpack.c.l.b16 %v425
      %v994 = vunpack.c.l.b16 %v426
      %v995 = vunpack.c.l.b16 %v427
      %v996 = vunpack.c.l.b16 %v428
      %v997 = vunpack.c.l.b16 %v429
      %v998 = vunpack.c.l.b16 %v430
      %v999 = vunpack.c.l.b16 %v431
      %v1000 = vunpack.c.l.b16 %v432
      %v1001 = vunpack.c.l.b16 %v433
      %v1002 = vunpack.c.l.b16 %v434
      %v1003 = vunpack.c.l.b16 %v435
      %v1004 = vunpack.c.l.b16 %v436
      %v1005 = vunpack.c.l.b16 %v437
      %v1006 = vunpack.c.l.b16 %v438
      %v1007 = vunpack.c.l.b16 %v439
      %v1008 = vunpack.c.l.b16 %v440
      %v1009 = vunpack.c.l.b16 %v441
      %v1010 = vunpack.c.l.b16 %v442
      %v1011 = vunpack.c.l.b16 %v443
      %v1012 = vunpack.c.l.b16 %v444
      %v1013 = vunpack.c.l.b16 %v445
      %v1014 = vunpack.c.l.b16 %v446
      %v1015 = vunpack.c.l.b16 %v447
      %v1016 = vunpack.c.l.b16 %v448
      %v1017 = vunpack.c.l.b16 %v449
      %v1018 = vunpack.c.l.b16 %v450
      %v1019 = vunpack.c.l.b16 %v451
      %v1020 = vunpack.c.l.b16 %v452
      %v1021 = vunpack.c.l.b16 %v453
      %v1022 = vunpack.c.l.b16 %v454
      %v1023 = vunpack.c.l.b16 %v455
      %v1024 = vunpack.c.l.b16 %v456
      %v1025 = vunpack.c.l.b16 %v457
      %v1026 = vunpack.c.l.b16 %v458
      %v1027 = vunpack.c.l.b16 %v459
      %v1028 = vunpack.c.l.b16 %v460
      %v1029 = vunpack.c.l.b16 %v461
      %v1030 = vunpack.c.l.b16 %v462
      %v1031 = vunpack.c.l.b16 %v463
      %v1032 = vunpack.c.l.b16 %v464
      %v1033 = vunpack.c.l.b16 %v465
      %v1034 = vunpack.c.l.b16 %v466
      %v1035 = vunpack.c.l.b16 %v467
      %v1036 = vunpack.c.l.b16 %v468
      %v1037 = vunpack.c.l.b16 %v469
      %v1038 = vunpack.c.l.b16 %v470
      %v1039 = vunpack.c.l.b16 %v471
      %v1040 = vunpack.c.l.b16 %v472
      %v1041 = vunpack.c.l.b16 %v473
      %v1042 = vunpack.c.l.b16 %v474
      %v1043 = vunpack.c.l.b16 %v475
      %v1044 = vunpack.c.l.b16 %v476
      %v1045 = vunpack.c.l.b16 %v477
      %v1046 = vunpack.c.l.b16 %v478
      %v1047 = vunpack.c.l.b16 %v479
      %v1048 = vunpack.c.l.b16 %v480
      %v1049 = vunpack.c.l.b16 %v481
      %v1050 = vunpack.c.l.b16 %v482
      %v1051 = vunpack.c.l.b16 %v483
      %v1052 = vunpack.c.l.b16 %v484
      %v1053 = vunpack.c.l.b16 %v485
      %v1054 = vunpack.c.l.b16 %v486
      %v1055 = vunpack.c.l.b16 %v487
      %v1056 = vunpack.c.l.b16 %v488
      %v1057 = vunpack.c.l.b16 %v489
      %v1058 = vunpack.c.l.b16 %v490
      %v1059 = vunpack.c.l.b16 %v491
      %v1060 = vunpack.c.l.b16 %v492
      %v1061 = vunpack.c.l.b16 %v493
      %v1062 = vunpack.c.l.b16 %v494
      %v1063 = vunpack.c.l.b16 %v495
      %v1064 = vunpack.c.l.b16 %v496
      %v1065 = vunpack.c.l.b16 %v497
      %v1066 = vunpack.c.l.b16 %v498
      %v1067 = vunpack.c.l.b16 %v499
      %v1068 = vunpack.c.l.b16 %v500
      %v1069 = vunpack.c.l.b16 %v501
      %v1070 = vunpack.c.l.b16 %v502
      %v1071 = vunpack.c.l.b16 %v503
      %v1072 = vunpack.c.l.b16 %v504
      %v1073 = vunpack.c.l.b16 %v505
      %v1074 = vunpack.c.l.b16 %v506
      %v1075 = vunpack.c.l.b16 %v507
      %v1076 = vunpack.c.l.b16 %v508
      %v1077 = vunpack.c.l.b16 %v509
      %v1078 = vunpack.c.l.b16 %v510
      %v1079 = vunpack.c.l.b16 %v511
      %v1080 = vunpack.c.l.b16 %v512
      %v1081 = vunpack.c.l.b16 %v513
      %v1082 = vunpack.c.l.b16 %v514
      %v1083 = vunpack.c.l.b16 %v515
      %v1084 = vunpack.c.l.b16 %v516
      %v1085 = vunpack.c.l.b16 %v517
      %v1086 = vunpack.c.l.b16 %v518
      %v1087 = vunpack.c.l.b16 %v519
      %v1088 = vunpack.c.l.b16 %v520
      %v1089 = vunpack.c.l.b16 %v521
      %v1090 = vunpack.c.l.b16 %v522
      %v1091 = vunpack.c.l.b16 %v523
      %v1092 = vunpack.c.l.b16 %v524
      %v1093 = vunpack.c.l.b16 %v525
      %v1094 = vunpack.c.l.b16 %v526
      %v1095 = vunpack.c.l.b16 %v527
      %v1096 = vunpack.c.l.b16 %v528
      %v1097 = vunpack.c.l.b16 %v529
      %v1098 = vpack.c.b16 %v843, %v842
      %v1099 = vpack.c.b16 %v845, %v844
      %v1100 = vpack.c.b16 %v847, %v846
      %v1101 = vpack.c.b16 %v849, %v848
      %v1102 = vpack.c.b16 %v851, %v850
      %v1103 = vpack.c.b16 %v853, %v852
      %v1104 = vpack.c.b16 %v855, %v854
      %v1105 = vpack.c.b16 %v857, %v856
      %v1106 = vpack.c.b16 %v859, %v858
      %v1107 = vpack.c.b16 %v861, %v860
      %v1108 = vpack.c.b16 %v863, %v862
      %v1109 = vpack.c.b16 %v865, %v864
      %v1110 = vpack.c.b16 %v867, %v866
      %v1111 = vpack.c.b16 %v869, %v868
      %v1112 = vpack.c.b16 %v871, %v870
      %v1113 = vpack.c.b16 %v873, %v872
      %v1114 = vpack.c.b16 %v875, %v874
      %v1115 = vpack.c.b16 %v877, %v876
      %v1116 = vpack.c.b16 %v879, %v878
      %v1117 = vpack.c.b16 %v881, %v880
      %v1118 = vpack.c.b16 %v883, %v882
      %v1119 = vpack.c.b16 %v885, %v884
      %v1120 = vpack.c.b16 %v887, %v886
      %v1121 = vpack.c.b16 %v889, %v888
      %v1122 = vpack.c.b16 %v891, %v890
      %v1123 = vpack.c.b16 %v893, %v892
      %v1124 = vpack.c.b16 %v895, %v894
      %v1125 = vpack.c.b16 %v897, %v896
      %v1126 = vpack.c.b16 %v899, %v898
      %v1127 = vpack.c.b16 %v901, %v900
      %v1128 = vpack.c.b16 %v903, %v902
      %v1129 = vpack.c.b16 %v905, %v904
      %v1130 = vpack.c.b16 %v907, %v906
      %v1131 = vpack.c.b16 %v909, %v908
      %v1132 = vpack.c.b16 %v911, %v910
      %v1133 = vpack.c.b16 %v913, %v912
      %v1134 = vpack.c.b16 %v915, %v914
      %v1135 = vpack.c.b16 %v917, %v916
      %v1136 = vpack.c.b16 %v919, %v918
      %v1137 = vpack.c.b16 %v921, %v920
      %v1138 = vpack.c.b16 %v923, %v922
      %v1139 = vpack.c.b16 %v925, %v924
      %v1140 = vpack.c.b16 %v927, %v926
      %v1141 = vpack.c.b16 %v929, %v928
      %v1142 = vpack.c.b16 %v931, %v930
      %v1143 = vpack.c.b16 %v933, %v932
      %v1144 = vpack.c.b16 %v935, %v934
      %v1145 = vpack.c.b16 %v937, %v936
      %v1146 = vpack.c.b16 %v939, %v938
      %v1147 = vpack.c.b16 %v941, %v940
      %v1148 = vpack.c.b16 %v943, %v942
      %v1149 = vpack.c.b16 %v945, %v944
      %v1150 = vpack.c.b16 %v947, %v946
      %v1151 = vpack.c.b16 %v949, %v948
      %v1152 = vpack.c.b16 %v951, %v950
      %v1153 = vpack.c.b16 %v953, %v952
      %v1154 = vpack.c.b16 %v955, %v954
      %v1155 = vpack.c.b16 %v957, %v956
      %v1156 = vpack.c.b16 %v959, %v958
      %v1157 = vpack.c.b16 %v961, %v960
      %v1158 = vpack.c.b16 %v963, %v962
      %v1159 = vpack.c.b16 %v965, %v964
      %v1160 = vpack.c.b16 %v967, %v966
      %v1161 = vpack.c.b16 %v969, %v968
      %v1162 = vpack.c.b16 %v971, %v970
      %v1163 = vpack.c.b16 %v973, %v972
      %v1164 = vpack.c.b16 %v975, %v974
      %v1165 = vpack.c.b16 %v977, %v976
      %v1166 = vpack.c.b16 %v979, %v978
      %v1167 = vpack.c.b16 %v981, %v980
      %v1168 = vpack.c.b16 %v983, %v982
      %v1169 = vpack.c.b16 %v985, %v984
      %v1170 = vpack.c.b16 %v987, %v986
      %v1171 = vpack.c.b16 %v989, %v988
      %v1172 = vpack.c.b16 %v991, %v990
      %v1173 = vpack.c.b16 %v993, %v992
      %v1174 = vpack.c.b16 %v995, %v994
      %v1175 = vpack.c.b16 %v997, %v996
      %v1176 = vpack.c.b16 %v999, %v998
      %v1177 = vpack.c.b16 %v1001, %v1000
      %v1178 = vpack.c.b16 %v1003, %v1002
      %v1179 = vpack.c.b16 %v1005, %v1004
      %v1180 = vpack.c.b16 %v1007, %v1006
      %v1181 = vpack.c.b16 %v1009, %v1008
      %v1182 = vpack.c.b16 %v1011, %v1010
      %v1183 = vpack.c.b16 %v1013, %v1012
      %v1184 = vpack.c.b16 %v1015, %v1014
      %v1185 = vpack.c.b16 %v1017, %v1016
      %v1186 = vpack.c.b16 %v1019, %v1018
      %v1187 = vpack.c.b16 %v1021, %v1020
      %v1188 = vpack.c.b16 %v1023, %v1022
      %v1189 = vpack.c.b16 %v1025, %v1024
      %v1190 = vpack.c.b16 %v1027, %v1026
      %v1191 = vpack.c.b16 %v1029, %v1028
      %v1192 = vpack.c.b16 %v1031, %v1030
      %v1193 = vpack.c.b16 %v1033, %v1032
      %v1194 = vpack.c.b16 %v1035, %v1034
      %v1195 = vpack.c.b16 %v1037, %v1036
      %v1196 = vpack.c.b16 %v1039, %v1038
      %v1197 = vpack.c.b16 %v1041, %v1040
      %v1198 = vpack.c.b16 %v1043, %v1042
      %v1199 = vpack.c.b16 %v1045, %v1044
      %v1200 = vpack.c.b16 %v1047, %v1046
      %v1201 = vpack.c.b16 %v1049, %v1048
      %v1202 = vpack.c.b16 %v1051, %v1050
      %v1203 = vpack.c.b16 %v1053, %v1052
      %v1204 = vpack.c.b16 %v1055, %v1054
      %v1205 = vpack.c.b16 %v1057, %v1056
      %v1206 = vpack.c.b16 %v1059, %v1058
      %v1207 = vpack.c.b16 %v1061, %v1060
      %v1208 = vpack.c.b16 %v1063, %v1062
      %v1209 = vpack.c.b16 %v1065, %v1064
      %v1210 = vpack.c.b16 %v1067, %v1066
      %v1211 = vpack.c.b16 %v1069, %v1068
      %v1212 = vpack.c.b16 %v1071, %v1070
      %v1213 = vpack.c.b16 %v1073, %v1072
      %v1214 = vpack.c.b16 %v1075, %v1074
      %v1215 = vpack.c.b16 %v1077, %v1076
      %v1216 = vpack.c.b16 %v1079, %v1078
      %v1217 = vpack.c.b16 %v1081, %v1080
      %v1218 = vpack.c.b16 %v1083, %v1082
      %v1219 = vpack.c.b16 %v1085, %v1084
      %v1220 = vpack.c.b16 %v1087, %v1086
      %v1221 = vpack.c.b16 %v1089, %v1088
      %v1222 = vpack.c.b16 %v1091, %v1090
      %v1223 = vpack.c.b16 %v1093, %v1092
      %v1224 = vpack.c.b16 %v1095, %v1094
      %v1225 = vpack.c.b16 %v1097, %v1096
      %1354 = vmatprep.subr.bf16.mxu0 0
      %1355 = vmatpush1.bf16.msra.mxu0 %v1098
      %1356 = vmatprep.subr.bf16.mxu0 0
      %1357 = vmatpush1.bf16.msra.mxu0 %v1099
      %1358 = vmatprep.subr.bf16.mxu0 0
      %1359 = vmatpush1.bf16.msra.mxu0 %v1100
      %1360 = vmatprep.subr.bf16.mxu0 0
      %1361 = vmatpush1.bf16.msra.mxu0 %v1101
      %1362 = vmatprep.subr.bf16.mxu0 0
      %1363 = vmatpush1.bf16.msra.mxu0 %v1102
      %1364 = vmatprep.subr.bf16.mxu0 0
      %1365 = vmatpush1.bf16.msra.mxu0 %v1103
      %1366 = vmatprep.subr.bf16.mxu0 0
      %1367 = vmatpush1.bf16.msra.mxu0 %v1104
      %1368 = vmatprep.subr.bf16.mxu0 0
      %1369 = vmatpush1.bf16.msra.mxu0 %v1105
      %1370 = vmatprep.subr.bf16.mxu0 0
      %1371 = vmatpush1.bf16.msra.mxu0 %v1106
      %1372 = vmatprep.subr.bf16.mxu0 0
      %1373 = vmatpush1.bf16.msra.mxu0 %v1107
      %1374 = vmatprep.subr.bf16.mxu0 0
      %1375 = vmatpush1.bf16.msra.mxu0 %v1108
      %1376 = vmatprep.subr.bf16.mxu0 0
      %1377 = vmatpush1.bf16.msra.mxu0 %v1109
      %1378 = vmatprep.subr.bf16.mxu0 0
      %1379 = vmatpush1.bf16.msra.mxu0 %v1110
      %1380 = vmatprep.subr.bf16.mxu0 0
      %1381 = vmatpush1.bf16.msra.mxu0 %v1111
      %1382 = vmatprep.subr.bf16.mxu0 0
      %1383 = vmatpush1.bf16.msra.mxu0 %v1112
      %1384 = vmatprep.subr.bf16.mxu0 0
      %1385 = vmatpush1.bf16.msra.mxu0 %v1113
      %1386 = vmatprep.mubr.bf16.mxu0 %v555
      %1387 = vmatmul.mubr.bf16.gmra.mrb[0].mxu0 %v554
      %v1388 = vpop.f32.mrb[0].mxu0
      %v1389 = vadd.f32 0.0, %v1388
      %v1390 = vpop.f32.mrb[0].mxu0
      %v1391 = vpop.f32.mrb[0].mxu0
      %v1392 = vpop.f32.mrb[0].mxu0
      %1393 = vdwg.mxu0
      %1394 = vmatprep.subr.bf16.mxu0 0
      %1395 = vmatpush1.bf16.msra.mxu0 %v1114
      %1396 = vmatprep.subr.bf16.mxu0 0
      %1397 = vmatpush1.bf16.msra.mxu0 %v1115
      %1398 = vmatprep.subr.bf16.mxu0 0
      %1399 = vmatpush1.bf16.msra.mxu0 %v1116
      %1400 = vmatprep.subr.bf16.mxu0 0
      %1401 = vmatpush1.bf16.msra.mxu0 %v1117
      %1402 = vmatprep.subr.bf16.mxu0 0
      %1403 = vmatpush1.bf16.msra.mxu0 %v1118
      %1404 = vmatprep.subr.bf16.mxu0 0
      %1405 = vmatpush1.bf16.msra.mxu0 %v1119
      %1406 = vmatprep.subr.bf16.mxu0 0
      %1407 = vmatpush1.bf16.msra.mxu0 %v1120
      %1408 = vmatprep.subr.bf16.mxu0 0
      %1409 = vmatpush1.bf16.msra.mxu0 %v1121
      %1410 = vmatprep.subr.bf16.mxu0 0
      %1411 = vmatpush1.bf16.msra.mxu0 %v1122
      %1412 = vmatprep.subr.bf16.mxu0 0
      %1413 = vmatpush1.bf16.msra.mxu0 %v1123
      %1414 = vmatprep.subr.bf16.mxu0 0
      %1415 = vmatpush1.bf16.msra.mxu0 %v1124
      %1416 = vmatprep.subr.bf16.mxu0 0
      %1417 = vmatpush1.bf16.msra.mxu0 %v1125
      %1418 = vmatprep.subr.bf16.mxu0 0
      %1419 = vmatpush1.bf16.msra.mxu0 %v1126
      %1420 = vmatprep.subr.bf16.mxu0 0
      %1421 = vmatpush1.bf16.msra.mxu0 %v1127
      %1422 = vmatprep.subr.bf16.mxu0 0
      %1423 = vmatpush1.bf16.msra.mxu0 %v1128
      %1424 = vmatprep.subr.bf16.mxu0 0
      %1425 = vmatpush1.bf16.msra.mxu0 %v1129
      %1426 = vmatprep.mubr.bf16.mxu0 %v557
      %1427 = vmatmul.mubr.bf16.gmra.mrb[0].mxu0 %v556
      %v1428 = vpop.f32.mrb[0].mxu0
      %v1429 = vadd.f32 %v1389, %v1428
      %v1430 = vpop.f32.mrb[0].mxu0
      %v1431 = vpop.f32.mrb[0].mxu0
      %v1432 = vpop.f32.mrb[0].mxu0
      %1433 = vdwg.mxu0
      %1434 = vmatprep.subr.bf16.mxu0 0
      %1435 = vmatpush1.bf16.msra.mxu0 %v1130
      %1436 = vmatprep.subr.bf16.mxu0 0
      %1437 = vmatpush1.bf16.msra.mxu0 %v1131
      %1438 = vmatprep.subr.bf16.mxu0 0
      %1439 = vmatpush1.bf16.msra.mxu0 %v1132
      %1440 = vmatprep.subr.bf16.mxu0 0
      %1441 = vmatpush1.bf16.msra.mxu0 %v1133
      %1442 = vmatprep.subr.bf16.mxu0 0
      %1443 = vmatpush1.bf16.msra.mxu0 %v1134
      %1444 = vmatprep.subr.bf16.mxu0 0
      %1445 = vmatpush1.bf16.msra.mxu0 %v1135
      %1446 = vmatprep.subr.bf16.mxu0 0
      %1447 = vmatpush1.bf16.msra.mxu0 %v1136
      %1448 = vmatprep.subr.bf16.mxu0 0
      %1449 = vmatpush1.bf16.msra.mxu0 %v1137
      %1450 = vmatprep.subr.bf16.mxu0 0
      %1451 = vmatpush1.bf16.msra.mxu0 %v1138
      %1452 = vmatprep.subr.bf16.mxu0 0
      %1453 = vmatpush1.bf16.msra.mxu0 %v1139
      %1454 = vmatprep.subr.bf16.mxu0 0
      %1455 = vmatpush1.bf16.msra.mxu0 %v1140
      %1456 = vmatprep.subr.bf16.mxu0 0
      %1457 = vmatpush1.bf16.msra.mxu0 %v1141
      %1458 = vmatprep.subr.bf16.mxu0 0
      %1459 = vmatpush1.bf16.msra.mxu0 %v1142
      %1460 = vmatprep.subr.bf16.mxu0 0
      %1461 = vmatpush1.bf16.msra.mxu0 %v1143
      %1462 = vmatprep.subr.bf16.mxu0 0
      %1463 = vmatpush1.bf16.msra.mxu0 %v1144
      %1464 = vmatprep.subr.bf16.mxu0 0
      %1465 = vmatpush1.bf16.msra.mxu0 %v1145
      %1466 = vmatprep.mubr.bf16.mxu0 %v559
      %1467 = vmatmul.mubr.bf16.gmra.mrb[0].mxu0 %v558
      %v1468 = vpop.f32.mrb[0].mxu0
      %v1469 = vadd.f32 %v1429, %v1468
      %v1470 = vpop.f32.mrb[0].mxu0
      %v1471 = vpop.f32.mrb[0].mxu0
      %v1472 = vpop.f32.mrb[0].mxu0
      %1473 = vdwg.mxu0
      %1474 = vmatprep.subr.bf16.mxu0 0
      %1475 = vmatpush1.bf16.msra.mxu0 %v1146
      %1476 = vmatprep.subr.bf16.mxu0 0
      %1477 = vmatpush1.bf16.msra.mxu0 %v1147
      %1478 = vmatprep.subr.bf16.mxu0 0
      %1479 = vmatpush1.bf16.msra.mxu0 %v1148
      %1480 = vmatprep.subr.bf16.mxu0 0
      %1481 = vmatpush1.bf16.msra.mxu0 %v1149
      %1482 = vmatprep.subr.bf16.mxu0 0
      %1483 = vmatpush1.bf16.msra.mxu0 %v1150
      %1484 = vmatprep.subr.bf16.mxu0 0
      %1485 = vmatpush1.bf16.msra.mxu0 %v1151
      %1486 = vmatprep.subr.bf16.mxu0 0
      %1487 = vmatpush1.bf16.msra.mxu0 %v1152
      %1488 = vmatprep.subr.bf16.mxu0 0
      %1489 = vmatpush1.bf16.msra.mxu0 %v1153
      %1490 = vmatprep.subr.bf16.mxu0 0
      %1491 = vmatpush1.bf16.msra.mxu0 %v1154
      %1492 = vmatprep.subr.bf16.mxu0 0
      %1493 = vmatpush1.bf16.msra.mxu0 %v1155
      %1494 = vmatprep.subr.bf16.mxu0 0
      %1495 = vmatpush1.bf16.msra.mxu0 %v1156
      %1496 = vmatprep.subr.bf16.mxu0 0
      %1497 = vmatpush1.bf16.msra.mxu0 %v1157
      %1498 = vmatprep.subr.bf16.mxu0 0
      %1499 = vmatpush1.bf16.msra.mxu0 %v1158
      %1500 = vmatprep.subr.bf16.mxu0 0
      %1501 = vmatpush1.bf16.msra.mxu0 %v1159
      %1502 = vmatprep.subr.bf16.mxu0 0
      %1503 = vmatpush1.bf16.msra.mxu0 %v1160
      %1504 = vmatprep.subr.bf16.mxu0 0
      %1505 = vmatpush1.bf16.msra.mxu0 %v1161
      %1506 = vmatprep.mubr.bf16.mxu0 %v561
      %1507 = vmatmul.mubr.bf16.gmra.mrb[0].mxu0 %v560
      %v1508 = vpop.f32.mrb[0].mxu0
      %v1509 = vadd.f32 %v1469, %v1508
      %v1510 = vpop.f32.mrb[0].mxu0
      %v1511 = vpop.f32.mrb[0].mxu0
      %v1512 = vpop.f32.mrb[0].mxu0
      %1513 = vdwg.mxu0
      %1514 = vmatprep.subr.bf16.mxu0 0
      %1515 = vmatpush1.bf16.msra.mxu0 %v1162
      %1516 = vmatprep.subr.bf16.mxu0 0
      %1517 = vmatpush1.bf16.msra.mxu0 %v1163
      %1518 = vmatprep.subr.bf16.mxu0 0
      %1519 = vmatpush1.bf16.msra.mxu0 %v1164
      %1520 = vmatprep.subr.bf16.mxu0 0
      %1521 = vmatpush1.bf16.msra.mxu0 %v1165
      %1522 = vmatprep.subr.bf16.mxu0 0
      %1523 = vmatpush1.bf16.msra.mxu0 %v1166
      %1524 = vmatprep.subr.bf16.mxu0 0
      %1525 = vmatpush1.bf16.msra.mxu0 %v1167
      %1526 = vmatprep.subr.bf16.mxu0 0
      %1527 = vmatpush1.bf16.msra.mxu0 %v1168
      %1528 = vmatprep.subr.bf16.mxu0 0
      %1529 = vmatpush1.bf16.msra.mxu0 %v1169
      %1530 = vmatprep.subr.bf16.mxu0 0
      %1531 = vmatpush1.bf16.msra.mxu0 %v1170
      %1532 = vmatprep.subr.bf16.mxu0 0
      %1533 = vmatpush1.bf16.msra.mxu0 %v1171
      %1534 = vmatprep.subr.bf16.mxu0 0
      %1535 = vmatpush1.bf16.msra.mxu0 %v1172
      %1536 = vmatprep.subr.bf16.mxu0 0
      %1537 = vmatpush1.bf16.msra.mxu0 %v1173
      %1538 = vmatprep.subr.bf16.mxu0 0
      %1539 = vmatpush1.bf16.msra.mxu0 %v1174
      %1540 = vmatprep.subr.bf16.mxu0 0
      %1541 = vmatpush1.bf16.msra.mxu0 %v1175
      %1542 = vmatprep.subr.bf16.mxu0 0
      %1543 = vmatpush1.bf16.msra.mxu0 %v1176
      %1544 = vmatprep.subr.bf16.mxu0 0
      %1545 = vmatpush1.bf16.msra.mxu0 %v1177
      %1546 = vmatprep.mubr.bf16.mxu0 %v563
      %1547 = vmatmul.mubr.bf16.gmra.mrb[0].mxu0 %v562
      %v1548 = vpop.f32.mrb[0].mxu0
      %v1549 = vadd.f32 %v1509, %v1548
      %v1550 = vpop.f32.mrb[0].mxu0
      %v1551 = vpop.f32.mrb[0].mxu0
      %v1552 = vpop.f32.mrb[0].mxu0
      %1553 = vdwg.mxu0
      %1554 = vmatprep.subr.bf16.mxu0 0
      %1555 = vmatpush1.bf16.msra.mxu0 %v1178
      %1556 = vmatprep.subr.bf16.mxu0 0
      %1557 = vmatpush1.bf16.msra.mxu0 %v1179
      %1558 = vmatprep.subr.bf16.mxu0 0
      %1559 = vmatpush1.bf16.msra.mxu0 %v1180
      %1560 = vmatprep.subr.bf16.mxu0 0
      %1561 = vmatpush1.bf16.msra.mxu0 %v1181
      %1562 = vmatprep.subr.bf16.mxu0 0
      %1563 = vmatpush1.bf16.msra.mxu0 %v1182
      %1564 = vmatprep.subr.bf16.mxu0 0
      %1565 = vmatpush1.bf16.msra.mxu0 %v1183
      %1566 = vmatprep.subr.bf16.mxu0 0
      %1567 = vmatpush1.bf16.msra.mxu0 %v1184
      %1568 = vmatprep.subr.bf16.mxu0 0
      %1569 = vmatpush1.bf16.msra.mxu0 %v1185
      %1570 = vmatprep.subr.bf16.mxu0 0
      %1571 = vmatpush1.bf16.msra.mxu0 %v1186
      %1572 = vmatprep.subr.bf16.mxu0 0
      %1573 = vmatpush1.bf16.msra.mxu0 %v1187
      %1574 = vmatprep.subr.bf16.mxu0 0
      %1575 = vmatpush1.bf16.msra.mxu0 %v1188
      %1576 = vmatprep.subr.bf16.mxu0 0
      %1577 = vmatpush1.bf16.msra.mxu0 %v1189
      %1578 = vmatprep.subr.bf16.mxu0 0
      %1579 = vmatpush1.bf16.msra.mxu0 %v1190
      %1580 = vmatprep.subr.bf16.mxu0 0
      %1581 = vmatpush1.bf16.msra.mxu0 %v1191
      %1582 = vmatprep.subr.bf16.mxu0 0
      %1583 = vmatpush1.bf16.msra.mxu0 %v1192
      %1584 = vmatprep.subr.bf16.mxu0 0
      %1585 = vmatpush1.bf16.msra.mxu0 %v1193
      %1586 = vmatprep.mubr.bf16.mxu0 %v565
      %1587 = vmatmul.mubr.bf16.gmra.mrb[0].mxu0 %v564
      %v1588 = vpop.f32.mrb[0].mxu0
      %v1589 = vadd.f32 %v1549, %v1588
      %v1590 = vpop.f32.mrb[0].mxu0
      %v1591 = vpop.f32.mrb[0].mxu0
      %v1592 = vpop.f32.mrb[0].mxu0
      %1593 = vdwg.mxu0
      %1594 = vmatprep.subr.bf16.mxu0 0
      %1595 = vmatpush1.bf16.msra.mxu0 %v1194
      %1596 = vmatprep.subr.bf16.mxu0 0
      %1597 = vmatpush1.bf16.msra.mxu0 %v1195
      %1598 = vmatprep.subr.bf16.mxu0 0
      %1599 = vmatpush1.bf16.msra.mxu0 %v1196
      %1600 = vmatprep.subr.bf16.mxu0 0
      %1601 = vmatpush1.bf16.msra.mxu0 %v1197
      %1602 = vmatprep.subr.bf16.mxu0 0
      %1603 = vmatpush1.bf16.msra.mxu0 %v1198
      %1604 = vmatprep.subr.bf16.mxu0 0
      %1605 = vmatpush1.bf16.msra.mxu0 %v1199
      %1606 = vmatprep.subr.bf16.mxu0 0
      %1607 = vmatpush1.bf16.msra.mxu0 %v1200
      %1608 = vmatprep.subr.bf16.mxu0 0
      %1609 = vmatpush1.bf16.msra.mxu0 %v1201
      %1610 = vmatprep.subr.bf16.mxu0 0
      %1611 = vmatpush1.bf16.msra.mxu0 %v1202
      %1612 = vmatprep.subr.bf16.mxu0 0
      %1613 = vmatpush1.bf16.msra.mxu0 %v1203
      %1614 = vmatprep.subr.bf16.mxu0 0
      %1615 = vmatpush1.bf16.msra.mxu0 %v1204
      %1616 = vmatprep.subr.bf16.mxu0 0
      %1617 = vmatpush1.bf16.msra.mxu0 %v1205
      %1618 = vmatprep.subr.bf16.mxu0 0
      %1619 = vmatpush1.bf16.msra.mxu0 %v1206
      %1620 = vmatprep.subr.bf16.mxu0 0
      %1621 = vmatpush1.bf16.msra.mxu0 %v1207
      %1622 = vmatprep.subr.bf16.mxu0 0
      %1623 = vmatpush1.bf16.msra.mxu0 %v1208
      %1624 = vmatprep.subr.bf16.mxu0 0
      %1625 = vmatpush1.bf16.msra.mxu0 %v1209
      %1626 = vmatprep.mubr.bf16.mxu0 %v567
      %1627 = vmatmul.mubr.bf16.gmra.mrb[0].mxu0 %v566
      %v1628 = vpop.f32.mrb[0].mxu0
      %v1629 = vadd.f32 %v1589, %v1628
      %v1630 = vpop.f32.mrb[0].mxu0
      %v1631 = vpop.f32.mrb[0].mxu0
      %v1632 = vpop.f32.mrb[0].mxu0
      %1633 = vdwg.mxu0
      %1634 = vmatprep.subr.bf16.mxu0 0
      %1635 = vmatpush1.bf16.msra.mxu0 %v1210
      %1636 = vmatprep.subr.bf16.mxu0 0
      %1637 = vmatpush1.bf16.msra.mxu0 %v1211
      %1638 = vmatprep.subr.bf16.mxu0 0
      %1639 = vmatpush1.bf16.msra.mxu0 %v1212
      %1640 = vmatprep.subr.bf16.mxu0 0
      %1641 = vmatpush1.bf16.msra.mxu0 %v1213
      %1642 = vmatprep.subr.bf16.mxu0 0
      %1643 = vmatpush1.bf16.msra.mxu0 %v1214
      %1644 = vmatprep.subr.bf16.mxu0 0
      %1645 = vmatpush1.bf16.msra.mxu0 %v1215
      %1646 = vmatprep.subr.bf16.mxu0 0
      %1647 = vmatpush1.bf16.msra.mxu0 %v1216
      %1648 = vmatprep.subr.bf16.mxu0 0
      %1649 = vmatpush1.bf16.msra.mxu0 %v1217
      %1650 = vmatprep.subr.bf16.mxu0 0
      %1651 = vmatpush1.bf16.msra.mxu0 %v1218
      %1652 = vmatprep.subr.bf16.mxu0 0
      %1653 = vmatpush1.bf16.msra.mxu0 %v1219
      %1654 = vmatprep.subr.bf16.mxu0 0
      %1655 = vmatpush1.bf16.msra.mxu0 %v1220
      %1656 = vmatprep.subr.bf16.mxu0 0
      %1657 = vmatpush1.bf16.msra.mxu0 %v1221
      %1658 = vmatprep.subr.bf16.mxu0 0
      %1659 = vmatpush1.bf16.msra.mxu0 %v1222
      %1660 = vmatprep.subr.bf16.mxu0 0
      %1661 = vmatpush1.bf16.msra.mxu0 %v1223
      %1662 = vmatprep.subr.bf16.mxu0 0
      %1663 = vmatpush1.bf16.msra.mxu0 %v1224
      %1664 = vmatprep.subr.bf16.mxu0 0
      %1665 = vmatpush1.bf16.msra.mxu0 %v1225
      %1666 = vmatprep.mubr.bf16.mxu0 %v569
      %1667 = vmatmul.mubr.bf16.gmra.mrb[0].mxu0 %v568
      %v1668 = vpop.f32.mrb[0].mxu0
      %v1669 = vadd.f32 %v1629, %v1668
      %v1670 = vpop.f32.mrb[0].mxu0
      %v1671 = vpop.f32.mrb[0].mxu0
      %v1672 = vpop.f32.mrb[0].mxu0
      %1673 = vdwg.mxu0
      %v1674 = vadd.f32 %v265, %v1669
      %1675 = vst [vmem:[#allocation2] sm:$0xff] %v1674
      %p1676 = scmp.eq.s32.totalorder %s21, 48
      // Predicated region
      $region37: #{_lambda_.10} parent=31 // pred_check
        %p1677 = pneg %p1676
      $region38: #{_lambda_.10} parent=31 // pred_check_branch
        %1679 = sbr.rel (%p1677) target = $region40
      $region39: #{_lambda_.10} parent=31 // pred_region
        %v1680 = vld [vmem:[#allocation2] sm:$0xff]
        %v1681 = vld [vmem:[%s251] sm:$0x1]
        %v1683 = vlaneseq
        %v1684 = vshrl.u32 %v1683, 7
        %v1685 = vsub.s32 0, %v1684
        %v1686 = vrot.slane %v1681, %v1685
        %v1688 = vadd.f32 %v1680, %v1686
        %v1689 = vmax.f32 %v1688, 0.0
        %v1690 = vpack.c.bf16 %v1689, %v1689
        %1691 = vst [vmem:[%s258] sm:$0xf] %v1690
      $region40: #{_lambda_.10} parent=31 // pred_fallthru
        _
      %p1692 = scmp.lt.s32.totalorder %s19, 0
      %s1693 = scalar_select %p1692, %s19, 0
      %p1694 = scmp.lt.s32.totalorder %s20, 0
      %s1695 = scalar_select %p1694, %s20, 0
      %s1696 = sadd.s32 %s1695, %s1693
      %s1697 = smul.addr %s1696, 4
      %s1698 = scalar_lea.vmem %s3, %s1697
      // Predicated region
      $region41: #{_lambda_.10} parent=31 // pred_check
        %p1699 = pneg %p135
      $region42: #{_lambda_.10} parent=31 // pred_check_branch
        %1701 = sbr.rel (%p1699) target = $region44
      $region43: #{_lambda_.10} parent=31 // pred_region
        _
      $region44: #{_lambda_.10} parent=31 // pred_fallthru
        _
      // Predicated region
      $region45: #{_lambda_.10} parent=31 // pred_check
        %p1702 = pneg %p135
      $region46: #{_lambda_.10} parent=31 // pred_check_branch
        %1704 = sbr.rel (%p1702) target = $region48
      $region47: #{_lambda_.10} parent=31 // pred_region
        %p1705 = scmp.lt.s32.totalorder %s19, 0
        %s1706 = scalar_select %p1705, %s19, 0
        %p1707 = scmp.lt.s32.totalorder %s20, 0
        %s1708 = scalar_select %p1707, %s20, 0
        %s1709 = sadd.s32 %s1708, %s1706
        %s1710 = smul.addr %s1709, 4
        %s1711 = scalar_lea.vmem %s3, %s1710
      $region48: #{_lambda_.10} parent=31 // pred_fallthru
        _
    $region32: #{_lambda_.10} parent=5 // pred_fallthru
      _
    %p1712 = scmp.le.s32.totalorder 2, %s9
    // Predicated region
    $region49: #{_lambda_.10} parent=5 // pred_check
      %p1713 = pneg %p1712
    $region50: #{_lambda_.10} parent=5 // pred_check_branch
      %1715 = sbr.rel (%p1713) target = $region52
    $region51: #{_lambda_.10} parent=5 // pred_region
      %s1716 = ssub.s32 %s9, 2
    $region52: #{_lambda_.10} parent=5 // pred_fallthru
      _
  $region6: #{_lambda_.10} parent=0 // loop_footer
    %s13 = sadd.s32 1, %s9
  $region7: #{_lambda_.10} parent=0 // loop_footer_branch
    %8 = sbr.rel target = $region3
  $region8: #{_lambda_.10} parent=0 // loop_exit
    _

// kernel: _lambda_.11
$region0: #{_lambda_.11}
  #allocation0 [shape = 'u32[]', space=smem, size = 0x4, offset = 0x4, fixed_abs, tag = 'smem constant byte address 0x4 - core index']
  #allocation1 [shape = 'u32[144,128]{1,0:T(1,128)}', space=vmem, size = 0x12000, scoped, tag = 'internal scratch']
  #allocation2 [shape = 'f32[8,128]{1,0:T(8,128)}', space=vmem, size = 0x1000, scoped, tag = 'scratch operand']
  %s0 = inlined_call_operand.vmem [shape: bf16[8,128], index: 0, kind: input, shape index: {}]
  %s1 = inlined_call_operand.vmem [shape: bf16[128,128], index: 1, kind: input, shape index: {}]
  %s2 = inlined_call_operand.vmem [shape: f32[1,128], index: 2, kind: input, shape index: {}]
  %s3 = inlined_call_operand.vmem [shape: f32[8,128], index: 3, kind: output, shape index: {}]
  %s4 = sld [smem:[#allocation0]]
  $region30: #{_lambda_.11} parent=0
    _
  %s6 = ssub.s32 1, %s4
  %s7 = scalar_select 0, %s6, %s4
  // Predicated region
  $region2: #{_lambda_.11} parent=0 // pred_check
    _
  $region3: #{_lambda_.11} parent=0 // pred_check_branch
    %9 = sbr.rel (0) target = $region5
  $region4: #{_lambda_.11} parent=0 // pred_region
    _
  $region5: #{_lambda_.11} parent=0 // pred_fallthru
    _
  // Predicated region
  $region6: #{_lambda_.11} parent=0 // pred_check
    _
  $region7: #{_lambda_.11} parent=0 // pred_check_branch
    %11 = sbr.rel (0) target = $region9
  $region8: #{_lambda_.11} parent=0 // pred_region
    _
  $region9: #{_lambda_.11} parent=0 // pred_fallthru
    _
  // Predicated region
  $region10: #{_lambda_.11} parent=0 // pred_check
    _
  $region11: #{_lambda_.11} parent=0 // pred_check_branch
    %13 = sbr.rel (0) target = $region13
  $region12: #{_lambda_.11} parent=0 // pred_region
    _
  $region13: #{_lambda_.11} parent=0 // pred_fallthru
    _
  %p15 = scmp.eq.s32.totalorder 0, 0
  // Predicated region
  $region14: #{_lambda_.11} parent=0 // pred_check
    %p16 = pneg %p15
  $region15: #{_lambda_.11} parent=0 // pred_check_branch
    %18 = sbr.rel (%p16) target = $region17
  $region16: #{_lambda_.11} parent=0 // pred_region
    %19 = vst [vmem:[#allocation2] sm:$0xff] 0.0
  $region17: #{_lambda_.11} parent=0 // pred_fallthru
    _
  %v20 = vld [vmem:[#allocation2] sm:$0xff]
  %v21 = vld [vmem:[%s0] sm:$0xf]
  %v22 = vld [vmem:[%s1] sm:$0xf]
  %v23 = vld [vmem:[%s1 + $0x4] sm:$0xf]
  %v24 = vld [vmem:[%s1 + $0x8] sm:$0xf]
  %v25 = vld [vmem:[%s1 + $0xc] sm:$0xf]
  %v26 = vld [vmem:[%s1 + $0x10] sm:$0xf]
  %v27 = vld [vmem:[%s1 + $0x14] sm:$0xf]
  %v28 = vld [vmem:[%s1 + $0x18] sm:$0xf]
  %v29 = vld [vmem:[%s1 + $0x1c] sm:$0xf]
  %v30 = vld [vmem:[%s1 + $0x20] sm:$0xf]
  %v31 = vld [vmem:[%s1 + $0x24] sm:$0xf]
  %v32 = vld [vmem:[%s1 + $0x28] sm:$0xf]
  %v33 = vld [vmem:[%s1 + $0x2c] sm:$0xf]
  %v34 = vld [vmem:[%s1 + $0x30] sm:$0xf]
  %v35 = vld [vmem:[%s1 + $0x34] sm:$0xf]
  %v36 = vld [vmem:[%s1 + $0x38] sm:$0xf]
  %v37 = vld [vmem:[%s1 + $0x3c] sm:$0xf]
  %v54 = vunpack.c.l.b16 %v22
  %v55 = vunpack.c.l.b16 %v23
  %v56 = vunpack.c.l.b16 %v24
  %v57 = vunpack.c.l.b16 %v25
  %v58 = vunpack.c.l.b16 %v26
  %v59 = vunpack.c.l.b16 %v27
  %v60 = vunpack.c.l.b16 %v28
  %v61 = vunpack.c.l.b16 %v29
  %v62 = vunpack.c.l.b16 %v30
  %v63 = vunpack.c.l.b16 %v31
  %v64 = vunpack.c.l.b16 %v32
  %v65 = vunpack.c.l.b16 %v33
  %v66 = vunpack.c.l.b16 %v34
  %v67 = vunpack.c.l.b16 %v35
  %v68 = vunpack.c.l.b16 %v36
  %v69 = vunpack.c.l.b16 %v37
  %v70 = vpack.c.b16 %v55, %v54
  %v71 = vpack.c.b16 %v57, %v56
  %v72 = vpack.c.b16 %v59, %v58
  %v73 = vpack.c.b16 %v61, %v60
  %v74 = vpack.c.b16 %v63, %v62
  %v75 = vpack.c.b16 %v65, %v64
  %v76 = vpack.c.b16 %v67, %v66
  %v77 = vpack.c.b16 %v69, %v68
  %86 = vmatprep.subr.bf16.mxu0 0
  %87 = vmatpush1.bf16.msra.mxu0 %v70
  %88 = vmatprep.subr.bf16.mxu0 0
  %89 = vmatpush1.bf16.msra.mxu0 %v71
  %90 = vmatprep.subr.bf16.mxu0 0
  %91 = vmatpush1.bf16.msra.mxu0 %v72
  %92 = vmatprep.subr.bf16.mxu0 0
  %93 = vmatpush1.bf16.msra.mxu0 %v73
  %94 = vmatprep.subr.bf16.mxu0 0
  %95 = vmatpush1.bf16.msra.mxu0 %v74
  %96 = vmatprep.subr.bf16.mxu0 0
  %97 = vmatpush1.bf16.msra.mxu0 %v75
  %98 = vmatprep.subr.bf16.mxu0 0
  %99 = vmatpush1.bf16.msra.mxu0 %v76
  %100 = vmatprep.subr.bf16.mxu0 0
  %101 = vmatpush1.bf16.msra.mxu0 %v77
  %102 = vmatprep.subr.bf16.mxu0 0
  %103 = vmatpush1.bf16.msra.mxu0 0
  %104 = vmatprep.subr.bf16.mxu0 0
  %105 = vmatpush1.bf16.msra.mxu0 0
  %106 = vmatprep.subr.bf16.mxu0 0
  %107 = vmatpush1.bf16.msra.mxu0 0
  %108 = vmatprep.subr.bf16.mxu0 0
  %109 = vmatpush1.bf16.msra.mxu0 0
  %110 = vmatprep.subr.bf16.mxu0 0
  %111 = vmatpush1.bf16.msra.mxu0 0
  %112 = vmatprep.subr.bf16.mxu0 0
  %113 = vmatpush1.bf16.msra.mxu0 0
  %114 = vmatprep.subr.bf16.mxu0 0
  %115 = vmatpush1.bf16.msra.mxu0 0
  %116 = vmatprep.subr.bf16.mxu0 0
  %117 = vmatpush1.bf16.msra.mxu0 0
  %118 = vmatprep.mubr.bf16.mxu0 0
  %119 = vmatmul.mubr.bf16.gmra.mrb[0].mxu0 %v21
  %v120 = vpop.f32.mrb[0].mxu0
  %v121 = vadd.f32 0.0, %v120
  %v122 = vpop.f32.mrb[0].mxu0
  %v123 = vpop.f32.mrb[0].mxu0
  %v124 = vpop.f32.mrb[0].mxu0
  %125 = vdwg.mxu0
  %v126 = vadd.f32 %v20, %v121
  %127 = vst [vmem:[#allocation2] sm:$0xff] %v126
  // Predicated region
  $region18: #{_lambda_.11} parent=0 // pred_check
    %p128 = pneg %p15
  $region19: #{_lambda_.11} parent=0 // pred_check_branch
    %130 = sbr.rel (%p128) target = $region21
  $region20: #{_lambda_.11} parent=0 // pred_region
    %v131 = vld [vmem:[#allocation2] sm:$0xff]
    %v132 = vld [vmem:[%s2] sm:$0x1]
    %v134 = vlaneseq
    %v135 = vshrl.u32 %v134, 7
    %v136 = vsub.s32 0, %v135
    %v137 = vrot.slane %v132, %v136
    %v139 = vadd.f32 %v131, %v137
    %140 = vst [vmem:[%s3] sm:$0xff] %v139
  $region21: #{_lambda_.11} parent=0 // pred_fallthru
    _
  // Predicated region
  $region22: #{_lambda_.11} parent=0 // pred_check
    _
  $region23: #{_lambda_.11} parent=0 // pred_check_branch
    %142 = sbr.rel (0) target = $region25
  $region24: #{_lambda_.11} parent=0 // pred_region
    _
  $region25: #{_lambda_.11} parent=0 // pred_fallthru
    _
  // Predicated region
  $region26: #{_lambda_.11} parent=0 // pred_check
    _
  $region27: #{_lambda_.11} parent=0 // pred_check_branch
    %144 = sbr.rel (0) target = $region29
  $region28: #{_lambda_.11} parent=0 // pred_region
    _
  $region29: #{_lambda_.11} parent=0 // pred_fallthru
    _

</llo_original>
